<compile_context>
chip_gen: v5e
topology: v5e:2x2
jax: 0.10.0
libtpu: 0.0.40
codegen_flags: <defaults>
</compile_context>

<pallas_src>
import math
from functools import partial

import numpy as np
import jax
import jax.numpy as jnp
from jax import lax
from jax.experimental import pallas as pl
from jax.experimental.pallas import tpu as pltpu


# ----------------------------------------------------------------------------
# Helpers
# ----------------------------------------------------------------------------
def _gelu(x):
    # OpenAI tanh-approx gelu (matches the PyTorch `gelu` exactly)
    return 0.5 * x * (1.0 + jnp.tanh(math.sqrt(2.0 / math.pi) *
                                     (x + 0.044715 * x * x * x)))


def _round_up(x, m):
    return ((x + m - 1) // m) * m


def _pick_tile(dim, prefs, prefer_multi=False):
    """Pick a tile for `dim`.  Returns (tile, padded_dim).

    Preference order:
      * largest pref that divides `dim` (with prefer_multi, the largest one that
        still leaves >= 2 blocks, so parallel grids keep >= 2 steps for megacore),
      * the full dim for small dims (full-dim blocks are always layout-legal),
      * otherwise the smallest pref with `dim` zero-padded up to a multiple, so
        VMEM use stays predictable for non-128-multiple layer widths.
    """
    divisors = [p for p in prefs if dim >= p and dim % p == 0]
    if divisors:
        if prefer_multi:
            multi = [p for p in divisors if dim // p >= 2]
            if multi:
                return multi[0], dim
        return divisors[0], dim
    if dim <= prefs[-1]:
        return dim, dim
    t = prefs[-1]
    return t, _round_up(dim, t)


_VMEM_BUDGET = 24 * 1024 * 1024          # working-set target; v7x physical VMEM = 64 MiB


def _conv_vmem_bytes(tm, tk, tn, out_bytes, fuse_ln):
    b = 2 * (tm * tk + tk * tn) * 2      # double-buffered bf16 x / w tiles
    b += 2 * tm * tn * out_bytes         # double-buffered output tile
    b += tm * tn * 4                     # fp32 accumulator
    b += 2 * tn * 4 * 2                  # bias / LN params
    if fuse_ln:
        b += 2 * tm * tn * 2             # double-buffered bf16 residual tile
    return b


def _conv1d_tiles(M, K, N, fuse_ln, out_bytes):
    if fuse_ln:
        tn, Np = N, N                    # LN needs the whole feature row resident
    else:
        tn, Np = _pick_tile(N, (512, 256, 128))
    tk, Kp = _pick_tile(K, (1024, 512, 256, 128))
    tm, Mp = _pick_tile(M, (512, 256, 128), prefer_multi=True)
    while (_conv_vmem_bytes(tm, tk, tn, out_bytes, fuse_ln) > _VMEM_BUDGET
           and tk > 128 and Kp % (tk // 2) == 0):
        tk //= 2
    while (_conv_vmem_bytes(tm, tk, tn, out_bytes, fuse_ln) > _VMEM_BUDGET
           and tm > 128 and Mp % (tm // 2) == 0):
        tm //= 2
    return tm, tk, tn, Mp, Kp, Np


def _headmajor_perm(dim, head_dim):
    """Column permutation [q0..qH|k0..kH|v0..vH] -> [q0 k0 v0 | q1 k1 v1 | ...]."""
    H = dim // head_dim
    groups = []
    for h in range(H):
        for part in range(3):
            start = part * dim + h * head_dim
            groups.append(np.arange(start, start + head_dim))
    return np.concatenate(groups)


# ----------------------------------------------------------------------------
# Pallas kernels
# ----------------------------------------------------------------------------
def matmul_kernel(*refs, activation, has_bias, fuse_ln, ln_eps):
    """Tiled o = epilogue(x @ w).  Grid (M/tm, N/tn, K/tk); K is the reduction
    axis (fp32 VMEM accumulator, pl.when init/finalize).  Optional fused
    epilogue: + bias, activation, and residual-add + OpenAI layernorm
    (only used when the N grid has a single block, i.e. the full row is here)."""
    x_ref, w_ref = refs[0], refs[1]
    pos = 2
    b_ref = None
    if has_bias:
        b_ref = refs[pos]
        pos += 1
    if fuse_ln:
        res_ref, g_ref, beta_ref = refs[pos], refs[pos + 1], refs[pos + 2]
        pos += 3
    o_ref, acc_ref = refs[pos], refs[pos + 1]

    k = pl.program_id(2)

    @pl.when(k == 0)
    def _():
        acc_ref[...] = jnp.zeros_like(acc_ref)

    acc_ref[...] += jnp.dot(x_ref[...], w_ref[...],
                            preferred_element_type=jnp.float32)

    @pl.when(k == pl.num_programs(2) - 1)
    def _():
        acc = acc_ref[...]                       # fp32 epilogue (v5e-safe)
        if has_bias:
            acc = acc + b_ref[...]               # (1, tn) broadcasts
        if activation == "gelu":
            acc = _gelu(acc)
        elif activation == "relu":
            acc = jnp.maximum(acc, 0.0)
        elif activation == "swish":
            acc = acc * jax.nn.sigmoid(acc)
        if fuse_ln:
            xr = res_ref[...].astype(jnp.float32) + acc
            u = jnp.mean(xr, axis=-1, keepdims=True)
            d = xr - u
            s = jnp.mean(d * d, axis=-1, keepdims=True)
            acc = g_ref[...] * (d * lax.rsqrt(s + ln_eps)) + beta_ref[...]
        o_ref[...] = acc.astype(o_ref.dtype)


def add_layernorm_kernel(x_ref, a_ref, g_ref, b_ref, o_ref, *, eps):
    """Fallback fused residual + OpenAI layernorm: ln(x + a). Stats in fp32."""
    x = x_ref[...].astype(jnp.float32) + a_ref[...].astype(jnp.float32)
    u = jnp.mean(x, axis=-1, keepdims=True)
    d = x - u
    s = jnp.mean(d * d, axis=-1, keepdims=True)
    y = d * lax.rsqrt(s + eps)
    o_ref[...] = (g_ref[...] * y + b_ref[...]).astype(o_ref.dtype)


def flash_attn_kernel(q_ref, k_ref, v_ref, o_ref, m_ref, l_ref, acc_ref, *, scale):
    """Flash-style causal attention, grid (B, H, S/tq, S/tk), head-major qkv.

    Online softmax with fp32 m/l/acc scratch; KV tiles strictly above the
    diagonal are skipped (causal).  Scale folded into q; final normalization
    uses the EUP approx reciprocal."""
    qi = pl.program_id(2)
    ki = pl.program_id(3)

    @pl.when(ki == 0)
    def _():
        m_ref[...] = jnp.full_like(m_ref, -1e30)
        l_ref[...] = jnp.zeros_like(l_ref)
        acc_ref[...] = jnp.zeros_like(acc_ref)

    @pl.when(ki <= qi)                      # tq == tk: kv tile needed iff ki <= qi
    def _():
        tq = q_ref.shape[1]
        tk = k_ref.shape[1]
        q = q_ref[0] * scale                # [tq, E] bf16, scale folded into q
        k = k_ref[0]                        # [tk, E]
        v = v_ref[0]                        # [tk, E]
        s = lax.dot_general(q, k, (((1,), (1,)), ((), ())),
                            preferred_element_type=jnp.float32)
        row = lax.broadcasted_iota(jnp.int32, (tq, tk), 0) + qi * tq
        col = lax.broadcasted_iota(jnp.int32, (tq, tk), 1) + ki * tk
        s = jnp.where(col <= row, s, -1e9)  # matches w*m + -1e9*(1-m)
        m_prev = m_ref[...]
        m_new = jnp.maximum(m_prev, jnp.max(s, axis=-1, keepdims=True))
        alpha = jnp.exp(m_prev - m_new)
        p = jnp.exp(s - m_new)
        l_ref[...] = alpha * l_ref[...] + jnp.sum(p, axis=-1, keepdims=True)
        acc_ref[...] = alpha * acc_ref[...] + jnp.dot(
            p.astype(v.dtype), v, preferred_element_type=jnp.float32)
        m_ref[...] = m_new

    @pl.when(ki == pl.num_programs(3) - 1)
    def _():
        o_ref[0] = (acc_ref[...] *
                    pl.reciprocal(l_ref[...], approx=True)).astype(o_ref.dtype)


def small_attn_kernel(qkv_ref, o_ref, *, n_heads, head_dim):
    """Fallback causal attention for small / unaligned shapes (one batch per step).

    qkv is head-major ([q_h | k_h | v_h] per head).  Scale folded into q,
    approx reciprocal for the softmax denominator, per-head direct stores
    (no in-kernel concatenate)."""
    S = qkv_ref.shape[1]
    E = head_dim
    qkv = qkv_ref[0]                                       # [S, 3D] bf16

    row = lax.broadcasted_iota(jnp.int32, (S, S), 0)
    col = lax.broadcasted_iota(jnp.int32, (S, S), 1)
    causal = col <= row
    scale = 1.0 / math.sqrt(E)

    for h in range(n_heads):                               # static unrolled loop
        base = 3 * E * h
        qh = qkv[:, base:base + E] * scale                 # [S, E]
        kh = qkv[:, base + E:base + 2 * E]
        vh = qkv[:, base + 2 * E:base + 3 * E]
        s = lax.dot_general(qh, kh, (((1,), (1,)), ((), ())),
                            preferred_element_type=jnp.float32)
        s = jnp.where(causal, s, -1e9)
        m = jnp.max(s, axis=-1, keepdims=True)
        p = jnp.exp(s - m)
        inv = pl.reciprocal(jnp.sum(p, axis=-1, keepdims=True), approx=True)
        oh = jnp.dot(p.astype(vh.dtype), vh,
                     preferred_element_type=jnp.float32) * inv
        o_ref[0, :, h * E:(h + 1) * E] = oh.astype(o_ref.dtype)


# ----------------------------------------------------------------------------
# Pallas wrappers
# ----------------------------------------------------------------------------
def conv1d(x, w, b=None, activation=None, out_dtype=jnp.bfloat16,
           residual=None, ln_g=None, ln_b=None, ln_eps=1e-5):
    """Conv1D: linear transform of the last dim, x: [B,S,Din] -> [B,S,Dout].

    Optional fused epilogue (residual/ln_g/ln_b): out = LN(residual + (x@w+b)),
    used when the full Dout row lives in a single N block."""
    B, S, Din = x.shape
    Dout = w.shape[1]
    M = B * S
    fuse_ln = residual is not None
    out_bytes = jnp.dtype(out_dtype).itemsize

    x2 = x.reshape(M, Din).astype(jnp.bfloat16)
    w2 = w.astype(jnp.bfloat16)

    tm, tk, tn, Mp, Kp, Np = _conv1d_tiles(M, Din, Dout, fuse_ln, out_bytes)
    if Mp != M or Kp != Din:
        x2 = jnp.pad(x2, ((0, Mp - M), (0, Kp - Din)))
    if Kp != Din or Np != Dout:
        w2 = jnp.pad(w2, ((0, Kp - Din), (0, Np - Dout)))
    grid = (Mp // tm, Np // tn, Kp // tk)

    in_specs = [pl.BlockSpec((tm, tk), lambda i, j, k: (i, k)),
                pl.BlockSpec((tk, tn), lambda i, j, k: (k, j))]
    operands = [x2, w2]

    has_bias = b is not None
    if has_bias:
        b2 = b.reshape(1, Dout).astype(jnp.float32)
        if Np != Dout:
            b2 = jnp.pad(b2, ((0, 0), (0, Np - Dout)))
        in_specs.append(pl.BlockSpec((1, tn), lambda i, j, k: (0, j)))
        operands.append(b2)

    if fuse_ln:
        r2 = residual.reshape(M, Dout).astype(jnp.bfloat16)
        if Mp != M:
            r2 = jnp.pad(r2, ((0, Mp - M), (0, 0)))
        in_specs.append(pl.BlockSpec((tm, tn), lambda i, j, k: (i, j)))
        operands.append(r2)
        in_specs.append(pl.BlockSpec((1, tn), lambda i, j, k: (0, j)))
        operands.append(ln_g.reshape(1, Dout).astype(jnp.float32))
        in_specs.append(pl.BlockSpec((1, tn), lambda i, j, k: (0, j)))
        operands.append(ln_b.reshape(1, Dout).astype(jnp.float32))

    cost = pl.CostEstimate(
        flops=2 * M * Dout * Din,
        transcendentals=(M * Dout if activation in ("gelu", "swish") else 0),
        bytes_accessed=(M * Din + Din * Dout) * 2 + M * Dout * out_bytes
                       + (Dout * 4 if has_bias else 0)
                       + (M * Dout * 2 + 2 * Dout * 4 if fuse_ln else 0))

    est = _conv_vmem_bytes(tm, tk, tn, out_bytes, fuse_ln)
    vmem_limit = int(min(max(est * 1.5 + (2 << 20), 32 << 20), 48 << 20))

    out = pl.pallas_call(
        partial(matmul_kernel, activation=activation, has_bias=has_bias,
                fuse_ln=fuse_ln, ln_eps=ln_eps),
        out_shape=jax.ShapeDtypeStruct((Mp, Np), out_dtype),
        grid=grid,
        in_specs=in_specs,
        out_specs=pl.BlockSpec((tm, tn), lambda i, j, k: (i, j)),
        scratch_shapes=[pltpu.VMEM((tm, tn), jnp.float32)],
        compiler_params=pltpu.CompilerParams(
            dimension_semantics=("parallel", "parallel", "arbitrary"),
            vmem_limit_bytes=vmem_limit),
        cost_estimate=cost,
    )(*operands)

    if Mp != M or Np != Dout:
        out = out[:M, :Dout]
    return out.reshape(B, S, Dout)


def add_layernorm(x, a, g, b, eps=1e-5, out_dtype=jnp.bfloat16):
    """Standalone fused residual + layernorm (fallback for very wide features)."""
    B, S, D = x.shape
    M = B * S
    x2 = x.reshape(M, D)
    a2 = a.reshape(M, D)
    tm, Mp = _pick_tile(M, (1024, 512, 256, 128), prefer_multi=True)
    if Mp != M:
        x2 = jnp.pad(x2, ((0, Mp - M), (0, 0)))
        a2 = jnp.pad(a2, ((0, Mp - M), (0, 0)))
    out = pl.pallas_call(
        partial(add_layernorm_kernel, eps=eps),
        out_shape=jax.ShapeDtypeStruct((Mp, D), out_dtype),
        grid=(Mp // tm,),
        in_specs=[
            pl.BlockSpec((tm, D), lambda i: (i, 0)),
            pl.BlockSpec((tm, D), lambda i: (i, 0)),
            pl.BlockSpec((1, D), lambda i: (0, 0)),
            pl.BlockSpec((1, D), lambda i: (0, 0)),
        ],
        out_specs=pl.BlockSpec((tm, D), lambda i: (i, 0)),
        compiler_params=pltpu.CompilerParams(
            dimension_semantics=("parallel",)),
    )(x2, a2, g.reshape(1, D).astype(jnp.float32),
      b.reshape(1, D).astype(jnp.float32))
    if Mp != M:
        out = out[:M]
    return out.reshape(B, S, D)


_FUSE_LN_MAX_D = 4096


def conv1d_residual_ln(x, w, b, residual, g, beta, eps=1e-5):
    """out = LN(residual + conv1d(x)); fused into the conv epilogue when the
    feature width fits in a single VMEM-resident N block."""
    Dout = w.shape[1]
    if Dout <= _FUSE_LN_MAX_D:
        return conv1d(x, w, b, residual=residual, ln_g=g, ln_b=beta, ln_eps=eps)
    a = conv1d(x, w, b)
    return add_layernorm(residual, a, g, beta, eps)


def _flash_attention(qkv, n_heads, head_dim, tq):
    B, S, _ = qkv.shape
    E = head_dim
    D = n_heads * E
    tk = tq
    grid = (B, n_heads, S // tq, S // tk)
    scale = 1.0 / math.sqrt(E)
    cost = pl.CostEstimate(
        flops=2 * 2 * B * n_heads * S * S * E,
        transcendentals=B * n_heads * S * S,
        bytes_accessed=B * S * 3 * D * 2 * 2 + B * S * D * 2)
    return pl.pallas_call(
        partial(flash_attn_kernel, scale=scale),
        out_shape=jax.ShapeDtypeStruct((B, S, D), jnp.bfloat16),
        grid=grid,
        in_specs=[
            pl.BlockSpec((1, tq, E), lambda b, h, qi, ki: (b, qi, 3 * h)),
            pl.BlockSpec((1, tk, E), lambda b, h, qi, ki: (b, ki, 3 * h + 1)),
            pl.BlockSpec((1, tk, E), lambda b, h, qi, ki: (b, ki, 3 * h + 2)),
        ],
        out_specs=pl.BlockSpec((1, tq, E), lambda b, h, qi, ki: (b, qi, h)),
        scratch_shapes=[pltpu.VMEM((tq, 1), jnp.float32),
                        pltpu.VMEM((tq, 1), jnp.float32),
                        pltpu.VMEM((tq, E), jnp.float32)],
        compiler_params=pltpu.CompilerParams(
            dimension_semantics=("parallel", "parallel", "parallel", "arbitrary")),
        cost_estimate=cost,
    )(qkv, qkv, qkv)


def _small_attention(qkv, n_heads, head_dim):
    B, S, threeD = qkv.shape
    D = n_heads * head_dim
    return pl.pallas_call(
        partial(small_attn_kernel, n_heads=n_heads, head_dim=head_dim),
        out_shape=jax.ShapeDtypeStruct((B, S, D), jnp.bfloat16),
        grid=(B,),
        in_specs=[pl.BlockSpec((1, S, threeD), lambda b: (b, 0, 0))],
        out_specs=pl.BlockSpec((1, S, D), lambda b: (b, 0, 0)),
        compiler_params=pltpu.CompilerParams(
            dimension_semantics=("parallel",)),
    )(qkv)


def causal_attention(qkv, n_heads, head_dim):
    """qkv (head-major): [B, S, 3D] -> attention output [B, S, D]."""
    B, S, threeD = qkv.shape
    assert threeD == 3 * n_heads * head_dim
    if head_dim % 128 == 0:
        for tq in (256, 128):
            if S % tq == 0:
                return _flash_attention(qkv, n_heads, head_dim, tq)
    # TODO(synk): pad S / head_dim to 128-multiples so more shapes route onto
    # the flash path instead of the full-sequence fallback below.
    return _small_attention(qkv, n_heads, head_dim)


# ----------------------------------------------------------------------------
# Model (grow_head path): head_dim = emsize, n_heads = D // emsize
# ----------------------------------------------------------------------------
def block_body(x, p, emsize, afn="gelu"):
    """attn + MLP trunk: returns ln2(n + mlp(n)) with n = ln1(x + attn(x)).
    Both layernorms are fused into the epilogue of the preceding conv1d."""
    B, S, D = x.shape
    H = D // emsize
    qkv = conv1d(x, p["attn"]["lin_w"], p["attn"]["lin_b"])      # head-major [B,S,3D]
    a = causal_attention(qkv, H, emsize)                         # [B,S,D]
    n = conv1d_residual_ln(a, p["attn"]["proj_w"], p["attn"]["proj_b"],
                           x, p["ln1_g"], p["ln1_b"])            # ln1(x + proj(a))
    hmid = conv1d(n, p["mlp"]["fc_w"], p["mlp"]["fc_b"], activation=afn)
    h = conv1d_residual_ln(hmid, p["mlp"]["pj_w"], p["mlp"]["pj_b"],
                           n, p["ln2_g"], p["ln2_b"])            # ln2(n + pj(hmid))
    return h


def block_forward(x, p, emsize, afn="gelu"):
    h = block_body(x, p, emsize, afn)
    h = conv1d(h, p["out_w"], p["out_b"])                        # [B, S, emsize]
    # grow_head: cat along heads == cat along the feature dim.
    # TODO(synk): replace with a preallocated [B,S,D_max] slab + out-BlockSpec column
    # offset + input_output_aliases so the growing residual is never re-copied.
    return jnp.concatenate([x, h], axis=-1)                      # [B, S, D + emsize]


def block_reduce_forward(x, p, emsize, afn="gelu"):
    h = block_body(x, p, emsize, afn)
    return conv1d(h, p["out_w"], p["out_b"])                     # [B, S, D - emsize]


def lm_model_forward(tokens, params, emsize, nlayers):
    h = params["embed"][tokens].astype(jnp.bfloat16)             # [B, S, emsize]
    for i in range(nlayers):
        h = block_forward(h, params["blocks"][i], emsize)
    for i in range(nlayers):
        h = block_reduce_forward(h, params["blocks_r"][i], emsize)
    # decoder: weight-tied Linear (no bias), transposed weight precomputed outside jit
    return conv1d(h, params["decoder_w"], None, out_dtype=jnp.float32)


# ----------------------------------------------------------------------------
# Parameter init (normal std=0.02, matching nn.init.normal_) + prep
# ----------------------------------------------------------------------------
def _init_conv1d(key, din, dout):
    return {"w": 0.02 * jax.random.normal(key, (din, dout), jnp.float32),
            "b": jnp.zeros((dout,), jnp.float32)}


def _init_attn(key, dim):
    k1, k2 = jax.random.split(key)
    lin = _init_conv1d(k1, dim, dim * 3)
    prj = _init_conv1d(k2, dim, dim)
    return {"lin_w": lin["w"], "lin_b": lin["b"],
            "proj_w": prj["w"], "proj_b": prj["b"]}


def _init_mlp(key, nstate):
    k1, k2 = jax.random.split(key)
    fc = _init_conv1d(k1, nstate, nstate * 4)
    pj = _init_conv1d(k2, nstate * 4, nstate)
    return {"fc_w": fc["w"], "fc_b": fc["b"], "pj_w": pj["w"], "pj_b": pj["b"]}


def _init_block(key, nx, out_dim):
    k1, k2, k3 = jax.random.split(key, 3)
    out = _init_conv1d(k3, nx, out_dim)
    return {"attn": _init_attn(k1, nx),
            "ln1_g": jnp.ones((nx,), jnp.float32), "ln1_b": jnp.zeros((nx,), jnp.float32),
            "mlp": _init_mlp(k2, nx),
            "ln2_g": jnp.ones((nx,), jnp.float32), "ln2_b": jnp.zeros((nx,), jnp.float32),
            "out_w": out["w"], "out_b": out["b"]}


def init_params(key, emsize, nlayers, vocab):
    keys = jax.random.split(key, 1 + 2 * nlayers)
    params = {"embed": 0.02 * jax.random.normal(keys[0], (vocab, emsize), jnp.float32)}
    blocks = []
    for i in range(nlayers):
        nx = emsize * (i + 1)
        blocks.append(_init_block(keys[1 + i], nx, emsize))                   # Block(cfg, i)
    blocks_r = []
    for i in range(nlayers):
        layer_id = nlayers - i
        nx = emsize * (layer_id + 1)
        blocks_r.append(_init_block(keys[1 + nlayers + i], nx, nx - emsize))  # BlockReduce
    params["blocks"] = blocks
    params["blocks_r"] = blocks_r
    return params


def prepare_params(params, emsize):
    """Eager (outside-jit) parameter prep: head-major qkv column permutation,
    pre-transposed weight-tied decoder, bf16 matmul weights (biases/LN fp32)."""
    def prep_attn(p):
        dim = p["lin_w"].shape[0]
        perm = _headmajor_perm(dim, emsize)
        return {"lin_w": jnp.asarray(p["lin_w"])[:, perm].astype(jnp.bfloat16),
                "lin_b": jnp.asarray(p["lin_b"])[perm].astype(jnp.float32),
                "proj_w": p["proj_w"].astype(jnp.bfloat16),
                "proj_b": p["proj_b"].astype(jnp.float32)}

    def prep_block(p):
        return {"attn": prep_attn(p["attn"]),
                "ln1_g": p["ln1_g"], "ln1_b": p["ln1_b"],
                "ln2_g": p["ln2_g"], "ln2_b": p["ln2_b"],
                "mlp": {"fc_w": p["mlp"]["fc_w"].astype(jnp.bfloat16),
                        "fc_b": p["mlp"]["fc_b"],
                        "pj_w": p["mlp"]["pj_w"].astype(jnp.bfloat16),
                        "pj_b": p["mlp"]["pj_b"]},
                "out_w": p["out_w"].astype(jnp.bfloat16),
                "out_b": p["out_b"]}

    return {"embed": params["embed"],
            "decoder_w": params["embed"].T.astype(jnp.bfloat16),
            "blocks": [prep_block(b) for b in params["blocks"]],
            "blocks_r": [prep_block(b) for b in params["blocks_r"]]}


# ----------------------------------------------------------------------------
# Pure-JAX fp32 reference (no Pallas) for correctness checks
# ----------------------------------------------------------------------------
def _ref_conv1d(x, w, b, act=None):
    y = x @ w + b
    if act == "gelu":
        y = _gelu(y)
    return y


def _ref_ln(x, g, b, eps=1e-5):
    u = jnp.mean(x, -1, keepdims=True)
    s = jnp.mean((x - u) ** 2, -1, keepdims=True)
    return g * ((x - u) / jnp.sqrt(s + eps)) + b


def _ref_attn(x, p, emsize):
    B, S, D = x.shape
    H = D // emsize
    qkv = _ref_conv1d(x, p["lin_w"], p["lin_b"])
    q, k, v = jnp.split(qkv, 3, axis=-1)
    sh = lambda t: t.reshape(B, S, H, emsize).transpose(0, 2, 1, 3)
    q, k, v = sh(q), sh(k), sh(v)
    w = jnp.einsum("bhqe,bhke->bhqk", q, k) / math.sqrt(emsize)
    i = jnp.arange(S)
    mask = (i[None, :] <= i[:, None]).astype(jnp.float32)[None, None]
    w = w * mask + (-1e9) * (1 - mask)
    w = jax.nn.softmax(w, -1)
    a = jnp.einsum("bhqk,bhke->bhqe", w, v).transpose(0, 2, 1, 3).reshape(B, S, D)
    return _ref_conv1d(a, p["proj_w"], p["proj_b"])


def _ref_block(x, p, emsize, reduce=False):
    B, S, D = x.shape
    a = _ref_attn(x, p["attn"], emsize)
    n = _ref_ln(x + a, p["ln1_g"], p["ln1_b"])
    m = _ref_conv1d(_ref_conv1d(n, p["mlp"]["fc_w"], p["mlp"]["fc_b"], "gelu"),
                    p["mlp"]["pj_w"], p["mlp"]["pj_b"])
    h = _ref_ln(n + m, p["ln2_g"], p["ln2_b"])
    h = _ref_conv1d(h, p["out_w"], p["out_b"])
    if reduce:
        return h
    j = x.reshape(B, S, D // emsize, emsize)
    return jnp.concatenate([j, h.reshape(B, S, 1, emsize)], -2).reshape(B, S, D + emsize)


def _ref_model(tokens, params, emsize, nlayers):
    h = params["embed"][tokens]
    for i in range(nlayers):
        h = _ref_block(h, params["blocks"][i], emsize)
    for i in range(nlayers):
        h = _ref_block(h, params["blocks_r"][i], emsize, reduce=True)
    return h @ params["embed"].T


# ----------------------------------------------------------------------------
if __name__ == "__main__":
    # cfg: emsize=32, nlayers=2, afn='gelu', grow_head=True, vocab=10
    EMSIZE, NLAYERS, VOCAB = 32, 2, 10
    B, S = 2, 8

    key = jax.random.PRNGKey(0)
    kp, kt, ka, kb = jax.random.split(key, 4)
    params = init_params(kp, EMSIZE, NLAYERS, VOCAB)
    tokens = jax.random.randint(kt, (B, S), 0, VOCAB, dtype=jnp.int32)

    prepped = prepare_params(params, EMSIZE)
    fwd = jax.jit(lm_model_forward, static_argnums=(2, 3))
    logits = jax.block_until_ready(fwd(tokens, prepped, EMSIZE, NLAYERS))
    assert logits.shape == (B, S, VOCAB), logits.shape
    assert bool(jnp.all(jnp.isfinite(logits)))

    ref = _ref_model(tokens, params, EMSIZE, NLAYERS)
    max_err = float(jnp.max(jnp.abs(logits - ref)))
    assert bool(jnp.allclose(logits, ref, rtol=2e-2, atol=2e-2)), max_err

    # --- extra check: tiled conv1d (multi-block M and K-reduction grid) --------
    xb = jax.random.normal(ka, (2, 256, 2048), jnp.float32).astype(jnp.bfloat16)
    wb = (0.02 * jax.random.normal(kb, (2048, 512), jnp.float32)).astype(jnp.bfloat16)
    bb = jnp.zeros((512,), jnp.float32)
    y = jax.block_until_ready(conv1d(xb, wb, bb))
    yref = (xb.astype(jnp.float32).reshape(-1, 2048)
            @ wb.astype(jnp.float32)).reshape(2, 256, 512)
    assert bool(jnp.allclose(y.astype(jnp.float32), yref, rtol=2e-2, atol=2e-2))

    # --- extra check: flash-attention path (aligned head_dim, head-major qkv) --
    Bf, Sf, Hf, Ef = 1, 256, 2, 128
    qkv_hm = jax.random.normal(jax.random.PRNGKey(1), (Bf, Sf, 3 * Hf * Ef),
                               jnp.float32).astype(jnp.bfloat16)
    attn_out = jax.block_until_ready(causal_attention(qkv_hm, Hf, Ef))
    qkvf = qkv_hm.astype(jnp.float32)
    outs = []
    ii = jnp.arange(Sf)
    maskf = (ii[None, :] <= ii[:, None]).astype(jnp.float32)[None]
    for h in range(Hf):
        base = 3 * Ef * h
        qf = qkvf[:, :, base:base + Ef]
        kf = qkvf[:, :, base + Ef:base + 2 * Ef]
        vf = qkvf[:, :, base + 2 * Ef:base + 3 * Ef]
        sf = jnp.einsum("bqe,bke->bqk", qf, kf) / math.sqrt(Ef)
        sf = sf * maskf + (-1e9) * (1 - maskf)
        pf = jax.nn.softmax(sf, -1)
        outs.append(jnp.einsum("bqk,bke->bqe", pf, vf))
    ref_attn = jnp.concatenate(outs, -1)
    assert bool(jnp.allclose(attn_out.astype(jnp.float32), ref_attn,
                             rtol=2e-2, atol=2e-2))

    print("KERNEL_OK")
</pallas_src>

<mosaic_0001>
module attributes {stable_mosaic.version = 11 : i64} {
  func.func @small_attn_kernel(%arg0: i32, %arg1: memref<1x8x96xbf16, #tpu.memory_space<vmem>>, %arg2: memref<1x8x32xbf16, #tpu.memory_space<vmem>>) attributes {dimension_semantics = [#tpu.dimension_semantics<parallel>], iteration_bounds = array<i64: 2>, scalar_prefetch = 0 : i64, scratch_operands = 0 : i64, tpu.core_type = #tpu.core_type<tc>, window_params = [{transform_indices = @transform_0, window_bounds = array<i64: 1, 8, 96>}, {transform_indices = @transform_1, window_bounds = array<i64: 1, 8, 32>}]} {
    %c0 = arith.constant 0 : index
    %c0_0 = arith.constant 0 : index
    %c0_1 = arith.constant 0 : index
    %0 = vector.load %arg1[%c0, %c0_0, %c0_1] : memref<1x8x96xbf16, #tpu.memory_space<vmem>>, vector<1x8x96xbf16>
    %1 = vector.shape_cast %0 : vector<1x8x96xbf16> to vector<8x96xbf16>
    %2 = tpu.iota {dimensions = array<i32: 0>} : vector<8x8xi32>
    %3 = tpu.iota {dimensions = array<i32: 1>} : vector<8x8xi32>
    %4 = arith.cmpi sle, %3, %2 : vector<8x8xi32>
    %5 = vector.extract_strided_slice %1 {offsets = [0, 0], sizes = [8, 32], strides = [1, 1]} : vector<8x96xbf16> to vector<8x32xbf16>
    %cst = arith.constant 1.767580e-01 : bf16
    %6 = vector.broadcast %cst : bf16 to vector<8x32xbf16>
    %7 = arith.mulf %5, %6 : vector<8x32xbf16>
    %8 = vector.extract_strided_slice %1 {offsets = [0, 32], sizes = [8, 32], strides = [1, 1]} : vector<8x96xbf16> to vector<8x32xbf16>
    %9 = vector.extract_strided_slice %1 {offsets = [0, 64], sizes = [8, 32], strides = [1, 1]} : vector<8x96xbf16> to vector<8x32xbf16>
    %cst_2 = arith.constant dense<0.000000e+00> : vector<8x8xf32>
    %10 = tpu.matmul %7, %8, %cst_2 {dimension_numbers = #tpu.dot_dimension_numbers<[1], [1], [0], [0], [0, 0, 1, 0], [], []>} : vector<8x32xbf16>, vector<8x32xbf16>, vector<8x8xf32> -> vector<8x8xf32>
    %cst_3 = arith.constant -1.000000e+09 : f32
    %11 = vector.broadcast %cst_3 : f32 to vector<8x8xf32>
    %12 = arith.select %4, %10, %11 : vector<8x8xi1>, vector<8x8xf32>
    %cst_4 = arith.constant dense<0xFF800000> : vector<8xf32>
    %13 = vector.multi_reduction <maximumf>, %12, %cst_4 [1] : vector<8x8xf32> to vector<8xf32>
    %14 = vector.shape_cast %13 : vector<8xf32> to vector<8x1xf32>
    %15 = vector.broadcast %14 : vector<8x1xf32> to vector<8x8xf32>
    %16 = arith.subf %12, %15 : vector<8x8xf32>
    %17 = math.exp %16 : vector<8x8xf32>
    %cst_5 = arith.constant dense<0.000000e+00> : vector<8xf32>
    %18 = vector.multi_reduction <add>, %17, %cst_5 [1] : vector<8x8xf32> to vector<8xf32>
    %19 = vector.shape_cast %18 : vector<8xf32> to vector<8x1xf32>
    %20 = tpu.reciprocal %19 {approx = true} : vector<8x1xf32> -> vector<8x1xf32>
    %21 = arith.truncf %17 : vector<8x8xf32> to vector<8x8xbf16>
    %cst_6 = arith.constant dense<0.000000e+00> : vector<8x32xf32>
    %22 = tpu.matmul %21, %9, %cst_6 {dimension_numbers = #tpu.dot_dimension_numbers<[1], [0], [0], [1], [0, 0, 1, 1], [], []>} : vector<8x8xbf16>, vector<8x32xbf16>, vector<8x32xf32> -> vector<8x32xf32>
    %23 = vector.broadcast %20 : vector<8x1xf32> to vector<8x32xf32>
    %24 = arith.mulf %22, %23 : vector<8x32xf32>
    %25 = arith.truncf %24 : vector<8x32xf32> to vector<8x32xbf16>
    %c0_7 = arith.constant 0 : index
    %c0_8 = arith.constant 0 : index
    %c0_9 = arith.constant 0 : index
    %26 = vector.load %arg2[%c0_7, %c0_8, %c0_9] : memref<1x8x32xbf16, #tpu.memory_space<vmem>>, vector<1x8x32xbf16>
    %27 = vector.shape_cast %26 : vector<1x8x32xbf16> to vector<8x32xbf16>
    %28 = vector.shape_cast %25 : vector<8x32xbf16> to vector<1x8x32xbf16>
    tpu.vector_store %arg2[%c0_7, %c0_8, %c0_9], %28 {strides = array<i32>} : memref<1x8x32xbf16, #tpu.memory_space<vmem>>, vector<1x8x32xbf16>,
    return
  }
  func.func @transform_0(%arg0: i32) -> (i32, i32, i32) {
    %c0_i32 = arith.constant 0 : i32
    %c0_i32_0 = arith.constant 0 : i32
    %c0_i32_1 = arith.constant 0 : i32
    return %arg0, %c0_i32, %c0_i32_0 : i32, i32, i32
  }
  func.func @transform_1(%arg0: i32) -> (i32, i32, i32) {
    %c0_i32 = arith.constant 0 : i32
    %c0_i32_0 = arith.constant 0 : i32
    %c0_i32_1 = arith.constant 0 : i32
    return %arg0, %c0_i32, %c0_i32_0 : i32, i32, i32
  }
}

module attributes {stable_mosaic.version = 11 : i64} {
  func.func @matmul_kernel(%arg0: i32, %arg1: i32, %arg2: i32, %arg3: memref<16x32xbf16, #tpu.memory_space<vmem>>, %arg4: memref<32x96xbf16, #tpu.memory_space<vmem>>, %arg5: memref<1x96xf32, #tpu.memory_space<vmem>>, %arg6: memref<16x96xbf16, #tpu.memory_space<vmem>>, %arg7: memref<16x96xf32, #tpu.memory_space<vmem>>) attributes {dimension_semantics = [#tpu.dimension_semantics<parallel>, #tpu.dimension_semantics<parallel>, #tpu.dimension_semantics<arbitrary>], iteration_bounds = array<i64: 1, 1, 1>, scalar_prefetch = 0 : i64, scratch_operands = 1 : i64, tpu.core_type = #tpu.core_type<tc>, window_params = [{transform_indices = @transform_0, window_bounds = array<i64: 16, 32>}, {transform_indices = @transform_1, window_bounds = array<i64: 32, 96>}, {transform_indices = @transform_2, window_bounds = array<i64: 1, 96>}, {transform_indices = @transform_3, window_bounds = array<i64: 16, 96>}]} {
    %c0_i32 = arith.constant 0 : i32
    %0 = arith.cmpi eq, %arg2, %c0_i32 : i32
    %1 = arith.extui %0 : i1 to i32
    %c0_i32_0 = arith.constant 0 : i32
    %2 = arith.cmpi ne, %1, %c0_i32_0 : i32
    scf.if %2 {
      %cst_10 = arith.constant 0.000000e+00 : f32
      %12 = vector.broadcast %cst_10 : f32 to vector<16x96xf32>
      %c0_11 = arith.constant 0 : index
      %c0_12 = arith.constant 0 : index
      %13 = vector.load %arg7[%c0_11, %c0_12] : memref<16x96xf32, #tpu.memory_space<vmem>>, vector<16x96xf32>
      tpu.vector_store %arg7[%c0_11, %c0_12], %12 {strides = array<i32>} : memref<16x96xf32, #tpu.memory_space<vmem>>, vector<16x96xf32>,
    } else {
    }
    %c0 = arith.constant 0 : index
    %c0_1 = arith.constant 0 : index
    %3 = vector.load %arg7[%c0, %c0_1] : memref<16x96xf32, #tpu.memory_space<vmem>>, vector<16x96xf32>
    %c0_2 = arith.constant 0 : index
    %c0_3 = arith.constant 0 : index
    %4 = vector.load %arg3[%c0_2, %c0_3] : memref<16x32xbf16, #tpu.memory_space<vmem>>, vector<16x32xbf16>
    %c0_4 = arith.constant 0 : index
    %c0_5 = arith.constant 0 : index
    %5 = vector.load %arg4[%c0_4, %c0_5] : memref<32x96xbf16, #tpu.memory_space<vmem>>, vector<32x96xbf16>
    %cst = arith.constant dense<0.000000e+00> : vector<16x96xf32>
    %6 = tpu.matmul %4, %5, %cst {dimension_numbers = #tpu.dot_dimension_numbers<[1], [0], [0], [1], [0, 0, 1, 1], [], []>} : vector<16x32xbf16>, vector<32x96xbf16>, vector<16x96xf32> -> vector<16x96xf32>
    %7 = arith.addf %3, %6 : vector<16x96xf32>
    %c0_6 = arith.constant 0 : index
    %c0_7 = arith.constant 0 : index
    %8 = vector.load %arg7[%c0_6, %c0_7] : memref<16x96xf32, #tpu.memory_space<vmem>>, vector<16x96xf32>
    tpu.vector_store %arg7[%c0_6, %c0_7], %7 {strides = array<i32>} : memref<16x96xf32, #tpu.memory_space<vmem>>, vector<16x96xf32>,
    %c0_i32_8 = arith.constant 0 : i32
    %9 = arith.cmpi eq, %arg2, %c0_i32_8 : i32
    %10 = arith.extui %9 : i1 to i32
    %c0_i32_9 = arith.constant 0 : i32
    %11 = arith.cmpi ne, %10, %c0_i32_9 : i32
    scf.if %11 {
      %c0_10 = arith.constant 0 : index
      %c0_11 = arith.constant 0 : index
      %12 = vector.load %arg7[%c0_10, %c0_11] : memref<16x96xf32, #tpu.memory_space<vmem>>, vector<16x96xf32>
      %c0_12 = arith.constant 0 : index
      %c0_13 = arith.constant 0 : index
      %13 = vector.load %arg5[%c0_12, %c0_13] : memref<1x96xf32, #tpu.memory_space<vmem>>, vector<1x96xf32>
      %14 = vector.broadcast %13 : vector<1x96xf32> to vector<16x96xf32>
      %15 = arith.addf %12, %14 : vector<16x96xf32>
      %16 = arith.truncf %15 : vector<16x96xf32> to vector<16x96xbf16>
      %c0_14 = arith.constant 0 : index
      %c0_15 = arith.constant 0 : index
      %17 = vector.load %arg6[%c0_14, %c0_15] : memref<16x96xbf16, #tpu.memory_space<vmem>>, vector<16x96xbf16>
      tpu.vector_store %arg6[%c0_14, %c0_15], %16 {strides = array<i32>} : memref<16x96xbf16, #tpu.memory_space<vmem>>, vector<16x96xbf16>,
    } else {
    }
    return
  }
  func.func @transform_0(%arg0: i32, %arg1: i32, %arg2: i32) -> (i32, i32) {
    %c0_i32 = arith.constant 0 : i32
    return %arg0, %arg2 : i32, i32
  }
  func.func @transform_1(%arg0: i32, %arg1: i32, %arg2: i32) -> (i32, i32) {
    %c0_i32 = arith.constant 0 : i32
    return %arg2, %arg1 : i32, i32
  }
  func.func @transform_2(%arg0: i32, %arg1: i32, %arg2: i32) -> (i32, i32) {
    %c0_i32 = arith.constant 0 : i32
    %c0_i32_0 = arith.constant 0 : i32
    return %c0_i32, %arg1 : i32, i32
  }
  func.func @transform_3(%arg0: i32, %arg1: i32, %arg2: i32) -> (i32, i32) {
    %c0_i32 = arith.constant 0 : i32
    return %arg0, %arg1 : i32, i32
  }
}

module attributes {stable_mosaic.version = 11 : i64} {
  func.func @matmul_kernel(%arg0: i32, %arg1: i32, %arg2: i32, %arg3: memref<16x32xbf16, #tpu.memory_space<vmem>>, %arg4: memref<32x32xbf16, #tpu.memory_space<vmem>>, %arg5: memref<1x32xf32, #tpu.memory_space<vmem>>, %arg6: memref<16x32xbf16, #tpu.memory_space<vmem>>, %arg7: memref<1x32xf32, #tpu.memory_space<vmem>>, %arg8: memref<1x32xf32, #tpu.memory_space<vmem>>, %arg9: memref<16x32xbf16, #tpu.memory_space<vmem>>, %arg10: memref<16x32xf32, #tpu.memory_space<vmem>>) attributes {dimension_semantics = [#tpu.dimension_semantics<parallel>, #tpu.dimension_semantics<parallel>, #tpu.dimension_semantics<arbitrary>], iteration_bounds = array<i64: 1, 1, 1>, scalar_prefetch = 0 : i64, scratch_operands = 1 : i64, tpu.core_type = #tpu.core_type<tc>, window_params = [{transform_indices = @transform_0, window_bounds = array<i64: 16, 32>}, {transform_indices = @transform_1, window_bounds = array<i64: 32, 32>}, {transform_indices = @transform_2, window_bounds = array<i64: 1, 32>}, {transform_indices = @transform_3, window_bounds = array<i64: 16, 32>}, {transform_indices = @transform_4, window_bounds = array<i64: 1, 32>}, {transform_indices = @transform_5, window_bounds = array<i64: 1, 32>}, {transform_indices = @transform_6, window_bounds = array<i64: 16, 32>}]} {
    %c0_i32 = arith.constant 0 : i32
    %0 = arith.cmpi eq, %arg2, %c0_i32 : i32
    %1 = arith.extui %0 : i1 to i32
    %c0_i32_0 = arith.constant 0 : i32
    %2 = arith.cmpi ne, %1, %c0_i32_0 : i32
    scf.if %2 {
      %cst_10 = arith.constant 0.000000e+00 : f32
      %12 = vector.broadcast %cst_10 : f32 to vector<16x32xf32>
      %c0_11 = arith.constant 0 : index
      %c0_12 = arith.constant 0 : index
      %13 = vector.load %arg10[%c0_11, %c0_12] : memref<16x32xf32, #tpu.memory_space<vmem>>, vector<16x32xf32>
      tpu.vector_store %arg10[%c0_11, %c0_12], %12 {strides = array<i32>} : memref<16x32xf32, #tpu.memory_space<vmem>>, vector<16x32xf32>,
    } else {
    }
    %c0 = arith.constant 0 : index
    %c0_1 = arith.constant 0 : index
    %3 = vector.load %arg10[%c0, %c0_1] : memref<16x32xf32, #tpu.memory_space<vmem>>, vector<16x32xf32>
    %c0_2 = arith.constant 0 : index
    %c0_3 = arith.constant 0 : index
    %4 = vector.load %arg3[%c0_2, %c0_3] : memref<16x32xbf16, #tpu.memory_space<vmem>>, vector<16x32xbf16>
    %c0_4 = arith.constant 0 : index
    %c0_5 = arith.constant 0 : index
    %5 = vector.load %arg4[%c0_4, %c0_5] : memref<32x32xbf16, #tpu.memory_space<vmem>>, vector<32x32xbf16>
    %cst = arith.constant dense<0.000000e+00> : vector<16x32xf32>
    %6 = tpu.matmul %4, %5, %cst {dimension_numbers = #tpu.dot_dimension_numbers<[1], [0], [0], [1], [0, 0, 1, 1], [], []>} : vector<16x32xbf16>, vector<32x32xbf16>, vector<16x32xf32> -> vector<16x32xf32>
    %7 = arith.addf %3, %6 : vector<16x32xf32>
    %c0_6 = arith.constant 0 : index
    %c0_7 = arith.constant 0 : index
    %8 = vector.load %arg10[%c0_6, %c0_7] : memref<16x32xf32, #tpu.memory_space<vmem>>, vector<16x32xf32>
    tpu.vector_store %arg10[%c0_6, %c0_7], %7 {strides = array<i32>} : memref<16x32xf32, #tpu.memory_space<vmem>>, vector<16x32xf32>,
    %c0_i32_8 = arith.constant 0 : i32
    %9 = arith.cmpi eq, %arg2, %c0_i32_8 : i32
    %10 = arith.extui %9 : i1 to i32
    %c0_i32_9 = arith.constant 0 : i32
    %11 = arith.cmpi ne, %10, %c0_i32_9 : i32
    scf.if %11 {
      %c0_10 = arith.constant 0 : index
      %c0_11 = arith.constant 0 : index
      %12 = vector.load %arg10[%c0_10, %c0_11] : memref<16x32xf32, #tpu.memory_space<vmem>>, vector<16x32xf32>
      %c0_12 = arith.constant 0 : index
      %c0_13 = arith.constant 0 : index
      %13 = vector.load %arg5[%c0_12, %c0_13] : memref<1x32xf32, #tpu.memory_space<vmem>>, vector<1x32xf32>
      %14 = vector.broadcast %13 : vector<1x32xf32> to vector<16x32xf32>
      %15 = arith.addf %12, %14 : vector<16x32xf32>
      %c0_14 = arith.constant 0 : index
      %c0_15 = arith.constant 0 : index
      %16 = vector.load %arg6[%c0_14, %c0_15] : memref<16x32xbf16, #tpu.memory_space<vmem>>, vector<16x32xbf16>
      %17 = arith.extf %16 : vector<16x32xbf16> to vector<16x32xf32>
      %18 = arith.addf %17, %15 : vector<16x32xf32>
      %cst_16 = arith.constant dense<0.000000e+00> : vector<16xf32>
      %19 = vector.multi_reduction <add>, %18, %cst_16 [1] : vector<16x32xf32> to vector<16xf32>
      %20 = vector.shape_cast %19 : vector<16xf32> to vector<16x1xf32>
      %cst_17 = arith.constant 3.200000e+01 : f32
      %21 = vector.broadcast %cst_17 : f32 to vector<16x1xf32>
      %22 = arith.divf %20, %21 : vector<16x1xf32>
      %23 = vector.broadcast %22 : vector<16x1xf32> to vector<16x32xf32>
      %24 = arith.subf %18, %23 : vector<16x32xf32>
      %25 = arith.mulf %24, %24 : vector<16x32xf32>
      %cst_18 = arith.constant dense<0.000000e+00> : vector<16xf32>
      %26 = vector.multi_reduction <add>, %25, %cst_18 [1] : vector<16x32xf32> to vector<16xf32>
      %27 = vector.shape_cast %26 : vector<16xf32> to vector<16x1xf32>
      %cst_19 = arith.constant 3.200000e+01 : f32
      %28 = vector.broadcast %cst_19 : f32 to vector<16x1xf32>
      %29 = arith.divf %27, %28 : vector<16x1xf32>
      %c0_20 = arith.constant 0 : index
      %c0_21 = arith.constant 0 : index
      %30 = vector.load %arg7[%c0_20, %c0_21] : memref<1x32xf32, #tpu.memory_space<vmem>>, vector<1x32xf32>
      %cst_22 = arith.constant 9.99999974E-6 : f32
      %31 = vector.broadcast %cst_22 : f32 to vector<16x1xf32>
      %32 = arith.addf %29, %31 : vector<16x1xf32>
      %33 = math.rsqrt %32 : vector<16x1xf32>
      %34 = vector.broadcast %33 : vector<16x1xf32> to vector<16x32xf32>
      %35 = arith.mulf %24, %34 : vector<16x32xf32>
      %36 = vector.broadcast %30 : vector<1x32xf32> to vector<16x32xf32>
      %37 = arith.mulf %36, %35 : vector<16x32xf32>
      %c0_23 = arith.constant 0 : index
      %c0_24 = arith.constant 0 : index
      %38 = vector.load %arg8[%c0_23, %c0_24] : memref<1x32xf32, #tpu.memory_space<vmem>>, vector<1x32xf32>
      %39 = vector.broadcast %38 : vector<1x32xf32> to vector<16x32xf32>
      %40 = arith.addf %37, %39 : vector<16x32xf32>
      %41 = arith.truncf %40 : vector<16x32xf32> to vector<16x32xbf16>
      %c0_25 = arith.constant 0 : index
      %c0_26 = arith.constant 0 : index
      %42 = vector.load %arg9[%c0_25, %c0_26] : memref<16x32xbf16, #tpu.memory_space<vmem>>, vector<16x32xbf16>
      tpu.vector_store %arg9[%c0_25, %c0_26], %41 {strides = array<i32>} : memref<16x32xbf16, #tpu.memory_space<vmem>>, vector<16x32xbf16>,
    } else {
    }
    return
  }
  func.func @transform_0(%arg0: i32, %arg1: i32, %arg2: i32) -> (i32, i32) {
    %c0_i32 = arith.constant 0 : i32
    return %arg0, %arg2 : i32, i32
  }
  func.func @transform_1(%arg0: i32, %arg1: i32, %arg2: i32) -> (i32, i32) {
    %c0_i32 = arith.constant 0 : i32
    return %arg2, %arg1 : i32, i32
  }
  func.func @transform_2(%arg0: i32, %arg1: i32, %arg2: i32) -> (i32, i32) {
    %c0_i32 = arith.constant 0 : i32
    %c0_i32_0 = arith.constant 0 : i32
    return %c0_i32, %arg1 : i32, i32
  }
  func.func @transform_3(%arg0: i32, %arg1: i32, %arg2: i32) -> (i32, i32) {
    %c0_i32 = arith.constant 0 : i32
    return %arg0, %arg1 : i32, i32
  }
  func.func @transform_4(%arg0: i32, %arg1: i32, %arg2: i32) -> (i32, i32) {
    %c0_i32 = arith.constant 0 : i32
    %c0_i32_0 = arith.constant 0 : i32
    return %c0_i32, %arg1 : i32, i32
  }
  func.func @transform_5(%arg0: i32, %arg1: i32, %arg2: i32) -> (i32, i32) {
    %c0_i32 = arith.constant 0 : i32
    %c0_i32_0 = arith.constant 0 : i32
    return %c0_i32, %arg1 : i32, i32
  }
  func.func @transform_6(%arg0: i32, %arg1: i32, %arg2: i32) -> (i32, i32) {
    %c0_i32 = arith.constant 0 : i32
    return %arg0, %arg1 : i32, i32
  }
}

module attributes {stable_mosaic.version = 11 : i64} {
  func.func @matmul_kernel(%arg0: i32, %arg1: i32, %arg2: i32, %arg3: memref<16x32xbf16, #tpu.memory_space<vmem>>, %arg4: memref<32x128xbf16, #tpu.memory_space<vmem>>, %arg5: memref<1x128xf32, #tpu.memory_space<vmem>>, %arg6: memref<16x128xbf16, #tpu.memory_space<vmem>>, %arg7: memref<16x128xf32, #tpu.memory_space<vmem>>) attributes {dimension_semantics = [#tpu.dimension_semantics<parallel>, #tpu.dimension_semantics<parallel>, #tpu.dimension_semantics<arbitrary>], iteration_bounds = array<i64: 1, 1, 1>, scalar_prefetch = 0 : i64, scratch_operands = 1 : i64, tpu.core_type = #tpu.core_type<tc>, window_params = [{transform_indices = @transform_0, window_bounds = array<i64: 16, 32>}, {transform_indices = @transform_1, window_bounds = array<i64: 32, 128>}, {transform_indices = @transform_2, window_bounds = array<i64: 1, 128>}, {transform_indices = @transform_3, window_bounds = array<i64: 16, 128>}]} {
    %c0_i32 = arith.constant 0 : i32
    %0 = arith.cmpi eq, %arg2, %c0_i32 : i32
    %1 = arith.extui %0 : i1 to i32
    %c0_i32_0 = arith.constant 0 : i32
    %2 = arith.cmpi ne, %1, %c0_i32_0 : i32
    scf.if %2 {
      %cst_10 = arith.constant 0.000000e+00 : f32
      %12 = vector.broadcast %cst_10 : f32 to vector<16x128xf32>
      %c0_11 = arith.constant 0 : index
      %c0_12 = arith.constant 0 : index
      %13 = vector.load %arg7[%c0_11, %c0_12] : memref<16x128xf32, #tpu.memory_space<vmem>>, vector<16x128xf32>
      tpu.vector_store %arg7[%c0_11, %c0_12], %12 {strides = array<i32>} : memref<16x128xf32, #tpu.memory_space<vmem>>, vector<16x128xf32>,
    } else {
    }
    %c0 = arith.constant 0 : index
    %c0_1 = arith.constant 0 : index
    %3 = vector.load %arg7[%c0, %c0_1] : memref<16x128xf32, #tpu.memory_space<vmem>>, vector<16x128xf32>
    %c0_2 = arith.constant 0 : index
    %c0_3 = arith.constant 0 : index
    %4 = vector.load %arg3[%c0_2, %c0_3] : memref<16x32xbf16, #tpu.memory_space<vmem>>, vector<16x32xbf16>
    %c0_4 = arith.constant 0 : index
    %c0_5 = arith.constant 0 : index
    %5 = vector.load %arg4[%c0_4, %c0_5] : memref<32x128xbf16, #tpu.memory_space<vmem>>, vector<32x128xbf16>
    %cst = arith.constant dense<0.000000e+00> : vector<16x128xf32>
    %6 = tpu.matmul %4, %5, %cst {dimension_numbers = #tpu.dot_dimension_numbers<[1], [0], [0], [1], [0, 0, 1, 1], [], []>} : vector<16x32xbf16>, vector<32x128xbf16>, vector<16x128xf32> -> vector<16x128xf32>
    %7 = arith.addf %3, %6 : vector<16x128xf32>
    %c0_6 = arith.constant 0 : index
    %c0_7 = arith.constant 0 : index
    %8 = vector.load %arg7[%c0_6, %c0_7] : memref<16x128xf32, #tpu.memory_space<vmem>>, vector<16x128xf32>
    tpu.vector_store %arg7[%c0_6, %c0_7], %7 {strides = array<i32>} : memref<16x128xf32, #tpu.memory_space<vmem>>, vector<16x128xf32>,
    %c0_i32_8 = arith.constant 0 : i32
    %9 = arith.cmpi eq, %arg2, %c0_i32_8 : i32
    %10 = arith.extui %9 : i1 to i32
    %c0_i32_9 = arith.constant 0 : i32
    %11 = arith.cmpi ne, %10, %c0_i32_9 : i32
    scf.if %11 {
      %c0_10 = arith.constant 0 : index
      %c0_11 = arith.constant 0 : index
      %12 = vector.load %arg7[%c0_10, %c0_11] : memref<16x128xf32, #tpu.memory_space<vmem>>, vector<16x128xf32>
      %c0_12 = arith.constant 0 : index
      %c0_13 = arith.constant 0 : index
      %13 = vector.load %arg5[%c0_12, %c0_13] : memref<1x128xf32, #tpu.memory_space<vmem>>, vector<1x128xf32>
      %14 = vector.broadcast %13 : vector<1x128xf32> to vector<16x128xf32>
      %15 = arith.addf %12, %14 : vector<16x128xf32>
      %cst_14 = arith.constant 5.000000e-01 : f32
      %16 = vector.broadcast %cst_14 : f32 to vector<16x128xf32>
      %17 = arith.mulf %16, %15 : vector<16x128xf32>
      %cst_15 = arith.constant 4.471500e-02 : f32
      %18 = vector.broadcast %cst_15 : f32 to vector<16x128xf32>
      %19 = arith.mulf %18, %15 : vector<16x128xf32>
      %20 = arith.mulf %19, %15 : vector<16x128xf32>
      %21 = arith.mulf %20, %15 : vector<16x128xf32>
      %22 = arith.addf %15, %21 : vector<16x128xf32>
      %cst_16 = arith.constant 0.797884583 : f32
      %23 = vector.broadcast %cst_16 : f32 to vector<16x128xf32>
      %24 = arith.mulf %23, %22 : vector<16x128xf32>
      %25 = math.tanh %24 : vector<16x128xf32>
      %cst_17 = arith.constant 1.000000e+00 : f32
      %26 = vector.broadcast %cst_17 : f32 to vector<16x128xf32>
      %27 = arith.addf %26, %25 : vector<16x128xf32>
      %28 = arith.mulf %17, %27 : vector<16x128xf32>
      %29 = arith.truncf %28 : vector<16x128xf32> to vector<16x128xbf16>
      %c0_18 = arith.constant 0 : index
      %c0_19 = arith.constant 0 : index
      %30 = vector.load %arg6[%c0_18, %c0_19] : memref<16x128xbf16, #tpu.memory_space<vmem>>, vector<16x128xbf16>
      tpu.vector_store %arg6[%c0_18, %c0_19], %29 {strides = array<i32>} : memref<16x128xbf16, #tpu.memory_space<vmem>>, vector<16x128xbf16>,
    } else {
    }
    return
  }
  func.func @transform_0(%arg0: i32, %arg1: i32, %arg2: i32) -> (i32, i32) {
    %c0_i32 = arith.constant 0 : i32
    return %arg0, %arg2 : i32, i32
  }
  func.func @transform_1(%arg0: i32, %arg1: i32, %arg2: i32) -> (i32, i32) {
    %c0_i32 = arith.constant 0 : i32
    return %arg2, %arg1 : i32, i32
  }
  func.func @transform_2(%arg0: i32, %arg1: i32, %arg2: i32) -> (i32, i32) {
    %c0_i32 = arith.constant 0 : i32
    %c0_i32_0 = arith.constant 0 : i32
    return %c0_i32, %arg1 : i32, i32
  }
  func.func @transform_3(%arg0: i32, %arg1: i32, %arg2: i32) -> (i32, i32) {
    %c0_i32 = arith.constant 0 : i32
    return %arg0, %arg1 : i32, i32
  }
}

module attributes {stable_mosaic.version = 11 : i64} {
  func.func @matmul_kernel(%arg0: i32, %arg1: i32, %arg2: i32, %arg3: memref<16x32xbf16, #tpu.memory_space<vmem>>, %arg4: memref<32x32xbf16, #tpu.memory_space<vmem>>, %arg5: memref<1x32xf32, #tpu.memory_space<vmem>>, %arg6: memref<16x32xbf16, #tpu.memory_space<vmem>>, %arg7: memref<16x32xf32, #tpu.memory_space<vmem>>) attributes {dimension_semantics = [#tpu.dimension_semantics<parallel>, #tpu.dimension_semantics<parallel>, #tpu.dimension_semantics<arbitrary>], iteration_bounds = array<i64: 1, 1, 1>, scalar_prefetch = 0 : i64, scratch_operands = 1 : i64, tpu.core_type = #tpu.core_type<tc>, window_params = [{transform_indices = @transform_0, window_bounds = array<i64: 16, 32>}, {transform_indices = @transform_1, window_bounds = array<i64: 32, 32>}, {transform_indices = @transform_2, window_bounds = array<i64: 1, 32>}, {transform_indices = @transform_3, window_bounds = array<i64: 16, 32>}]} {
    %c0_i32 = arith.constant 0 : i32
    %0 = arith.cmpi eq, %arg2, %c0_i32 : i32
    %1 = arith.extui %0 : i1 to i32
    %c0_i32_0 = arith.constant 0 : i32
    %2 = arith.cmpi ne, %1, %c0_i32_0 : i32
    scf.if %2 {
      %cst_10 = arith.constant 0.000000e+00 : f32
      %12 = vector.broadcast %cst_10 : f32 to vector<16x32xf32>
      %c0_11 = arith.constant 0 : index
      %c0_12 = arith.constant 0 : index
      %13 = vector.load %arg7[%c0_11, %c0_12] : memref<16x32xf32, #tpu.memory_space<vmem>>, vector<16x32xf32>
      tpu.vector_store %arg7[%c0_11, %c0_12], %12 {strides = array<i32>} : memref<16x32xf32, #tpu.memory_space<vmem>>, vector<16x32xf32>,
    } else {
    }
    %c0 = arith.constant 0 : index
    %c0_1 = arith.constant 0 : index
    %3 = vector.load %arg7[%c0, %c0_1] : memref<16x32xf32, #tpu.memory_space<vmem>>, vector<16x32xf32>
    %c0_2 = arith.constant 0 : index
    %c0_3 = arith.constant 0 : index
    %4 = vector.load %arg3[%c0_2, %c0_3] : memref<16x32xbf16, #tpu.memory_space<vmem>>, vector<16x32xbf16>
    %c0_4 = arith.constant 0 : index
    %c0_5 = arith.constant 0 : index
    %5 = vector.load %arg4[%c0_4, %c0_5] : memref<32x32xbf16, #tpu.memory_space<vmem>>, vector<32x32xbf16>
    %cst = arith.constant dense<0.000000e+00> : vector<16x32xf32>
    %6 = tpu.matmul %4, %5, %cst {dimension_numbers = #tpu.dot_dimension_numbers<[1], [0], [0], [1], [0, 0, 1, 1], [], []>} : vector<16x32xbf16>, vector<32x32xbf16>, vector<16x32xf32> -> vector<16x32xf32>
    %7 = arith.addf %3, %6 : vector<16x32xf32>
    %c0_6 = arith.constant 0 : index
    %c0_7 = arith.constant 0 : index
    %8 = vector.load %arg7[%c0_6, %c0_7] : memref<16x32xf32, #tpu.memory_space<vmem>>, vector<16x32xf32>
    tpu.vector_store %arg7[%c0_6, %c0_7], %7 {strides = array<i32>} : memref<16x32xf32, #tpu.memory_space<vmem>>, vector<16x32xf32>,
    %c0_i32_8 = arith.constant 0 : i32
    %9 = arith.cmpi eq, %arg2, %c0_i32_8 : i32
    %10 = arith.extui %9 : i1 to i32
    %c0_i32_9 = arith.constant 0 : i32
    %11 = arith.cmpi ne, %10, %c0_i32_9 : i32
    scf.if %11 {
      %c0_10 = arith.constant 0 : index
      %c0_11 = arith.constant 0 : index
      %12 = vector.load %arg7[%c0_10, %c0_11] : memref<16x32xf32, #tpu.memory_space<vmem>>, vector<16x32xf32>
      %c0_12 = arith.constant 0 : index
      %c0_13 = arith.constant 0 : index
      %13 = vector.load %arg5[%c0_12, %c0_13] : memref<1x32xf32, #tpu.memory_space<vmem>>, vector<1x32xf32>
      %14 = vector.broadcast %13 : vector<1x32xf32> to vector<16x32xf32>
      %15 = arith.addf %12, %14 : vector<16x32xf32>
      %16 = arith.truncf %15 : vector<16x32xf32> to vector<16x32xbf16>
      %c0_14 = arith.constant 0 : index
      %c0_15 = arith.constant 0 : index
      %17 = vector.load %arg6[%c0_14, %c0_15] : memref<16x32xbf16, #tpu.memory_space<vmem>>, vector<16x32xbf16>
      tpu.vector_store %arg6[%c0_14, %c0_15], %16 {strides = array<i32>} : memref<16x32xbf16, #tpu.memory_space<vmem>>, vector<16x32xbf16>,
    } else {
    }
    return
  }
  func.func @transform_0(%arg0: i32, %arg1: i32, %arg2: i32) -> (i32, i32) {
    %c0_i32 = arith.constant 0 : i32
    return %arg0, %arg2 : i32, i32
  }
  func.func @transform_1(%arg0: i32, %arg1: i32, %arg2: i32) -> (i32, i32) {
    %c0_i32 = arith.constant 0 : i32
    return %arg2, %arg1 : i32, i32
  }
  func.func @transform_2(%arg0: i32, %arg1: i32, %arg2: i32) -> (i32, i32) {
    %c0_i32 = arith.constant 0 : i32
    %c0_i32_0 = arith.constant 0 : i32
    return %c0_i32, %arg1 : i32, i32
  }
  func.func @transform_3(%arg0: i32, %arg1: i32, %arg2: i32) -> (i32, i32) {
    %c0_i32 = arith.constant 0 : i32
    return %arg0, %arg1 : i32, i32
  }
}

module attributes {stable_mosaic.version = 11 : i64} {
  func.func @matmul_kernel(%arg0: i32, %arg1: i32, %arg2: i32, %arg3: memref<16x64xbf16, #tpu.memory_space<vmem>>, %arg4: memref<64x128xbf16, #tpu.memory_space<vmem>>, %arg5: memref<1x128xf32, #tpu.memory_space<vmem>>, %arg6: memref<16x128xbf16, #tpu.memory_space<vmem>>, %arg7: memref<16x128xf32, #tpu.memory_space<vmem>>) attributes {dimension_semantics = [#tpu.dimension_semantics<parallel>, #tpu.dimension_semantics<parallel>, #tpu.dimension_semantics<arbitrary>], iteration_bounds = array<i64: 1, 2, 1>, scalar_prefetch = 0 : i64, scratch_operands = 1 : i64, tpu.core_type = #tpu.core_type<tc>, window_params = [{transform_indices = @transform_0, window_bounds = array<i64: 16, 64>}, {transform_indices = @transform_1, window_bounds = array<i64: 64, 128>}, {transform_indices = @transform_2, window_bounds = array<i64: 1, 128>}, {transform_indices = @transform_3, window_bounds = array<i64: 16, 128>}]} {
    %c0_i32 = arith.constant 0 : i32
    %0 = arith.cmpi eq, %arg2, %c0_i32 : i32
    %1 = arith.extui %0 : i1 to i32
    %c0_i32_0 = arith.constant 0 : i32
    %2 = arith.cmpi ne, %1, %c0_i32_0 : i32
    scf.if %2 {
      %cst_10 = arith.constant 0.000000e+00 : f32
      %12 = vector.broadcast %cst_10 : f32 to vector<16x128xf32>
      %c0_11 = arith.constant 0 : index
      %c0_12 = arith.constant 0 : index
      %13 = vector.load %arg7[%c0_11, %c0_12] : memref<16x128xf32, #tpu.memory_space<vmem>>, vector<16x128xf32>
      tpu.vector_store %arg7[%c0_11, %c0_12], %12 {strides = array<i32>} : memref<16x128xf32, #tpu.memory_space<vmem>>, vector<16x128xf32>,
    } else {
    }
    %c0 = arith.constant 0 : index
    %c0_1 = arith.constant 0 : index
    %3 = vector.load %arg7[%c0, %c0_1] : memref<16x128xf32, #tpu.memory_space<vmem>>, vector<16x128xf32>
    %c0_2 = arith.constant 0 : index
    %c0_3 = arith.constant 0 : index
    %4 = vector.load %arg3[%c0_2, %c0_3] : memref<16x64xbf16, #tpu.memory_space<vmem>>, vector<16x64xbf16>
    %c0_4 = arith.constant 0 : index
    %c0_5 = arith.constant 0 : index
    %5 = vector.load %arg4[%c0_4, %c0_5] : memref<64x128xbf16, #tpu.memory_space<vmem>>, vector<64x128xbf16>
    %cst = arith.constant dense<0.000000e+00> : vector<16x128xf32>
    %6 = tpu.matmul %4, %5, %cst {dimension_numbers = #tpu.dot_dimension_numbers<[1], [0], [0], [1], [0, 0, 1, 1], [], []>} : vector<16x64xbf16>, vector<64x128xbf16>, vector<16x128xf32> -> vector<16x128xf32>
    %7 = arith.addf %3, %6 : vector<16x128xf32>
    %c0_6 = arith.constant 0 : index
    %c0_7 = arith.constant 0 : index
    %8 = vector.load %arg7[%c0_6, %c0_7] : memref<16x128xf32, #tpu.memory_space<vmem>>, vector<16x128xf32>
    tpu.vector_store %arg7[%c0_6, %c0_7], %7 {strides = array<i32>} : memref<16x128xf32, #tpu.memory_space<vmem>>, vector<16x128xf32>,
    %c0_i32_8 = arith.constant 0 : i32
    %9 = arith.cmpi eq, %arg2, %c0_i32_8 : i32
    %10 = arith.extui %9 : i1 to i32
    %c0_i32_9 = arith.constant 0 : i32
    %11 = arith.cmpi ne, %10, %c0_i32_9 : i32
    scf.if %11 {
      %c0_10 = arith.constant 0 : index
      %c0_11 = arith.constant 0 : index
      %12 = vector.load %arg7[%c0_10, %c0_11] : memref<16x128xf32, #tpu.memory_space<vmem>>, vector<16x128xf32>
      %c0_12 = arith.constant 0 : index
      %c0_13 = arith.constant 0 : index
      %13 = vector.load %arg5[%c0_12, %c0_13] : memref<1x128xf32, #tpu.memory_space<vmem>>, vector<1x128xf32>
      %14 = vector.broadcast %13 : vector<1x128xf32> to vector<16x128xf32>
      %15 = arith.addf %12, %14 : vector<16x128xf32>
      %16 = arith.truncf %15 : vector<16x128xf32> to vector<16x128xbf16>
      %c0_14 = arith.constant 0 : index
      %c0_15 = arith.constant 0 : index
      %17 = vector.load %arg6[%c0_14, %c0_15] : memref<16x128xbf16, #tpu.memory_space<vmem>>, vector<16x128xbf16>
      tpu.vector_store %arg6[%c0_14, %c0_15], %16 {strides = array<i32>} : memref<16x128xbf16, #tpu.memory_space<vmem>>, vector<16x128xbf16>,
    } else {
    }
    return
  }
  func.func @transform_0(%arg0: i32, %arg1: i32, %arg2: i32) -> (i32, i32) {
    %c0_i32 = arith.constant 0 : i32
    return %arg0, %arg2 : i32, i32
  }
  func.func @transform_1(%arg0: i32, %arg1: i32, %arg2: i32) -> (i32, i32) {
    %c0_i32 = arith.constant 0 : i32
    return %arg2, %arg1 : i32, i32
  }
  func.func @transform_2(%arg0: i32, %arg1: i32, %arg2: i32) -> (i32, i32) {
    %c0_i32 = arith.constant 0 : i32
    %c0_i32_0 = arith.constant 0 : i32
    return %c0_i32, %arg1 : i32, i32
  }
  func.func @transform_3(%arg0: i32, %arg1: i32, %arg2: i32) -> (i32, i32) {
    %c0_i32 = arith.constant 0 : i32
    return %arg0, %arg1 : i32, i32
  }
}

module attributes {stable_mosaic.version = 11 : i64} {
  func.func @matmul_kernel(%arg0: i32, %arg1: i32, %arg2: i32, %arg3: memref<16x128xbf16, #tpu.memory_space<vmem>>, %arg4: memref<128x32xbf16, #tpu.memory_space<vmem>>, %arg5: memref<1x32xf32, #tpu.memory_space<vmem>>, %arg6: memref<16x32xbf16, #tpu.memory_space<vmem>>, %arg7: memref<1x32xf32, #tpu.memory_space<vmem>>, %arg8: memref<1x32xf32, #tpu.memory_space<vmem>>, %arg9: memref<16x32xbf16, #tpu.memory_space<vmem>>, %arg10: memref<16x32xf32, #tpu.memory_space<vmem>>) attributes {dimension_semantics = [#tpu.dimension_semantics<parallel>, #tpu.dimension_semantics<parallel>, #tpu.dimension_semantics<arbitrary>], iteration_bounds = array<i64: 1, 1, 1>, scalar_prefetch = 0 : i64, scratch_operands = 1 : i64, tpu.core_type = #tpu.core_type<tc>, window_params = [{transform_indices = @transform_0, window_bounds = array<i64: 16, 128>}, {transform_indices = @transform_1, window_bounds = array<i64: 128, 32>}, {transform_indices = @transform_2, window_bounds = array<i64: 1, 32>}, {transform_indices = @transform_3, window_bounds = array<i64: 16, 32>}, {transform_indices = @transform_4, window_bounds = array<i64: 1, 32>}, {transform_indices = @transform_5, window_bounds = array<i64: 1, 32>}, {transform_indices = @transform_6, window_bounds = array<i64: 16, 32>}]} {
    %c0_i32 = arith.constant 0 : i32
    %0 = arith.cmpi eq, %arg2, %c0_i32 : i32
    %1 = arith.extui %0 : i1 to i32
    %c0_i32_0 = arith.constant 0 : i32
    %2 = arith.cmpi ne, %1, %c0_i32_0 : i32
    scf.if %2 {
      %cst_10 = arith.constant 0.000000e+00 : f32
      %12 = vector.broadcast %cst_10 : f32 to vector<16x32xf32>
      %c0_11 = arith.constant 0 : index
      %c0_12 = arith.constant 0 : index
      %13 = vector.load %arg10[%c0_11, %c0_12] : memref<16x32xf32, #tpu.memory_space<vmem>>, vector<16x32xf32>
      tpu.vector_store %arg10[%c0_11, %c0_12], %12 {strides = array<i32>} : memref<16x32xf32, #tpu.memory_space<vmem>>, vector<16x32xf32>,
    } else {
    }
    %c0 = arith.constant 0 : index
    %c0_1 = arith.constant 0 : index
    %3 = vector.load %arg10[%c0, %c0_1] : memref<16x32xf32, #tpu.memory_space<vmem>>, vector<16x32xf32>
    %c0_2 = arith.constant 0 : index
    %c0_3 = arith.constant 0 : index
    %4 = vector.load %arg3[%c0_2, %c0_3] : memref<16x128xbf16, #tpu.memory_space<vmem>>, vector<16x128xbf16>
    %c0_4 = arith.constant 0 : index
    %c0_5 = arith.constant 0 : index
    %5 = vector.load %arg4[%c0_4, %c0_5] : memref<128x32xbf16, #tpu.memory_space<vmem>>, vector<128x32xbf16>
    %cst = arith.constant dense<0.000000e+00> : vector<16x32xf32>
    %6 = tpu.matmul %4, %5, %cst {dimension_numbers = #tpu.dot_dimension_numbers<[1], [0], [0], [1], [0, 0, 1, 1], [], []>} : vector<16x128xbf16>, vector<128x32xbf16>, vector<16x32xf32> -> vector<16x32xf32>
    %7 = arith.addf %3, %6 : vector<16x32xf32>
    %c0_6 = arith.constant 0 : index
    %c0_7 = arith.constant 0 : index
    %8 = vector.load %arg10[%c0_6, %c0_7] : memref<16x32xf32, #tpu.memory_space<vmem>>, vector<16x32xf32>
    tpu.vector_store %arg10[%c0_6, %c0_7], %7 {strides = array<i32>} : memref<16x32xf32, #tpu.memory_space<vmem>>, vector<16x32xf32>,
    %c0_i32_8 = arith.constant 0 : i32
    %9 = arith.cmpi eq, %arg2, %c0_i32_8 : i32
    %10 = arith.extui %9 : i1 to i32
    %c0_i32_9 = arith.constant 0 : i32
    %11 = arith.cmpi ne, %10, %c0_i32_9 : i32
    scf.if %11 {
      %c0_10 = arith.constant 0 : index
      %c0_11 = arith.constant 0 : index
      %12 = vector.load %arg10[%c0_10, %c0_11] : memref<16x32xf32, #tpu.memory_space<vmem>>, vector<16x32xf32>
      %c0_12 = arith.constant 0 : index
      %c0_13 = arith.constant 0 : index
      %13 = vector.load %arg5[%c0_12, %c0_13] : memref<1x32xf32, #tpu.memory_space<vmem>>, vector<1x32xf32>
      %14 = vector.broadcast %13 : vector<1x32xf32> to vector<16x32xf32>
      %15 = arith.addf %12, %14 : vector<16x32xf32>
      %c0_14 = arith.constant 0 : index
      %c0_15 = arith.constant 0 : index
      %16 = vector.load %arg6[%c0_14, %c0_15] : memref<16x32xbf16, #tpu.memory_space<vmem>>, vector<16x32xbf16>
      %17 = arith.extf %16 : vector<16x32xbf16> to vector<16x32xf32>
      %18 = arith.addf %17, %15 : vector<16x32xf32>
      %cst_16 = arith.constant dense<0.000000e+00> : vector<16xf32>
      %19 = vector.multi_reduction <add>, %18, %cst_16 [1] : vector<16x32xf32> to vector<16xf32>
      %20 = vector.shape_cast %19 : vector<16xf32> to vector<16x1xf32>
      %cst_17 = arith.constant 3.200000e+01 : f32
      %21 = vector.broadcast %cst_17 : f32 to vector<16x1xf32>
      %22 = arith.divf %20, %21 : vector<16x1xf32>
      %23 = vector.broadcast %22 : vector<16x1xf32> to vector<16x32xf32>
      %24 = arith.subf %18, %23 : vector<16x32xf32>
      %25 = arith.mulf %24, %24 : vector<16x32xf32>
      %cst_18 = arith.constant dense<0.000000e+00> : vector<16xf32>
      %26 = vector.multi_reduction <add>, %25, %cst_18 [1] : vector<16x32xf32> to vector<16xf32>
      %27 = vector.shape_cast %26 : vector<16xf32> to vector<16x1xf32>
      %cst_19 = arith.constant 3.200000e+01 : f32
      %28 = vector.broadcast %cst_19 : f32 to vector<16x1xf32>
      %29 = arith.divf %27, %28 : vector<16x1xf32>
      %c0_20 = arith.constant 0 : index
      %c0_21 = arith.constant 0 : index
      %30 = vector.load %arg7[%c0_20, %c0_21] : memref<1x32xf32, #tpu.memory_space<vmem>>, vector<1x32xf32>
      %cst_22 = arith.constant 9.99999974E-6 : f32
      %31 = vector.broadcast %cst_22 : f32 to vector<16x1xf32>
      %32 = arith.addf %29, %31 : vector<16x1xf32>
      %33 = math.rsqrt %32 : vector<16x1xf32>
      %34 = vector.broadcast %33 : vector<16x1xf32> to vector<16x32xf32>
      %35 = arith.mulf %24, %34 : vector<16x32xf32>
      %36 = vector.broadcast %30 : vector<1x32xf32> to vector<16x32xf32>
      %37 = arith.mulf %36, %35 : vector<16x32xf32>
      %c0_23 = arith.constant 0 : index
      %c0_24 = arith.constant 0 : index
      %38 = vector.load %arg8[%c0_23, %c0_24] : memref<1x32xf32, #tpu.memory_space<vmem>>, vector<1x32xf32>
      %39 = vector.broadcast %38 : vector<1x32xf32> to vector<16x32xf32>
      %40 = arith.addf %37, %39 : vector<16x32xf32>
      %41 = arith.truncf %40 : vector<16x32xf32> to vector<16x32xbf16>
      %c0_25 = arith.constant 0 : index
      %c0_26 = arith.constant 0 : index
      %42 = vector.load %arg9[%c0_25, %c0_26] : memref<16x32xbf16, #tpu.memory_space<vmem>>, vector<16x32xbf16>
      tpu.vector_store %arg9[%c0_25, %c0_26], %41 {strides = array<i32>} : memref<16x32xbf16, #tpu.memory_space<vmem>>, vector<16x32xbf16>,
    } else {
    }
    return
  }
  func.func @transform_0(%arg0: i32, %arg1: i32, %arg2: i32) -> (i32, i32) {
    %c0_i32 = arith.constant 0 : i32
    return %arg0, %arg2 : i32, i32
  }
  func.func @transform_1(%arg0: i32, %arg1: i32, %arg2: i32) -> (i32, i32) {
    %c0_i32 = arith.constant 0 : i32
    return %arg2, %arg1 : i32, i32
  }
  func.func @transform_2(%arg0: i32, %arg1: i32, %arg2: i32) -> (i32, i32) {
    %c0_i32 = arith.constant 0 : i32
    %c0_i32_0 = arith.constant 0 : i32
    return %c0_i32, %arg1 : i32, i32
  }
  func.func @transform_3(%arg0: i32, %arg1: i32, %arg2: i32) -> (i32, i32) {
    %c0_i32 = arith.constant 0 : i32
    return %arg0, %arg1 : i32, i32
  }
  func.func @transform_4(%arg0: i32, %arg1: i32, %arg2: i32) -> (i32, i32) {
    %c0_i32 = arith.constant 0 : i32
    %c0_i32_0 = arith.constant 0 : i32
    return %c0_i32, %arg1 : i32, i32
  }
  func.func @transform_5(%arg0: i32, %arg1: i32, %arg2: i32) -> (i32, i32) {
    %c0_i32 = arith.constant 0 : i32
    %c0_i32_0 = arith.constant 0 : i32
    return %c0_i32, %arg1 : i32, i32
  }
  func.func @transform_6(%arg0: i32, %arg1: i32, %arg2: i32) -> (i32, i32) {
    %c0_i32 = arith.constant 0 : i32
    return %arg0, %arg1 : i32, i32
  }
}

module attributes {stable_mosaic.version = 11 : i64} {
  func.func @small_attn_kernel(%arg0: i32, %arg1: memref<1x8x192xbf16, #tpu.memory_space<vmem>>, %arg2: memref<1x8x64xbf16, #tpu.memory_space<vmem>>) attributes {dimension_semantics = [#tpu.dimension_semantics<parallel>], iteration_bounds = array<i64: 2>, scalar_prefetch = 0 : i64, scratch_operands = 0 : i64, tpu.core_type = #tpu.core_type<tc>, window_params = [{transform_indices = @transform_0, window_bounds = array<i64: 1, 8, 192>}, {transform_indices = @transform_1, window_bounds = array<i64: 1, 8, 64>}]} {
    %c0 = arith.constant 0 : index
    %c0_0 = arith.constant 0 : index
    %c0_1 = arith.constant 0 : index
    %0 = vector.load %arg1[%c0, %c0_0, %c0_1] : memref<1x8x192xbf16, #tpu.memory_space<vmem>>, vector<1x8x192xbf16>
    %1 = vector.shape_cast %0 : vector<1x8x192xbf16> to vector<8x192xbf16>
    %2 = tpu.iota {dimensions = array<i32: 0>} : vector<8x8xi32>
    %3 = tpu.iota {dimensions = array<i32: 1>} : vector<8x8xi32>
    %4 = arith.cmpi sle, %3, %2 : vector<8x8xi32>
    %5 = vector.extract_strided_slice %1 {offsets = [0, 0], sizes = [8, 32], strides = [1, 1]} : vector<8x192xbf16> to vector<8x32xbf16>
    %cst = arith.constant 1.767580e-01 : bf16
    %6 = vector.broadcast %cst : bf16 to vector<8x32xbf16>
    %7 = arith.mulf %5, %6 : vector<8x32xbf16>
    %8 = vector.extract_strided_slice %1 {offsets = [0, 32], sizes = [8, 32], strides = [1, 1]} : vector<8x192xbf16> to vector<8x32xbf16>
    %9 = vector.extract_strided_slice %1 {offsets = [0, 64], sizes = [8, 32], strides = [1, 1]} : vector<8x192xbf16> to vector<8x32xbf16>
    %cst_2 = arith.constant dense<0.000000e+00> : vector<8x8xf32>
    %10 = tpu.matmul %7, %8, %cst_2 {dimension_numbers = #tpu.dot_dimension_numbers<[1], [1], [0], [0], [0, 0, 1, 0], [], []>} : vector<8x32xbf16>, vector<8x32xbf16>, vector<8x8xf32> -> vector<8x8xf32>
    %cst_3 = arith.constant -1.000000e+09 : f32
    %11 = vector.broadcast %cst_3 : f32 to vector<8x8xf32>
    %12 = arith.select %4, %10, %11 : vector<8x8xi1>, vector<8x8xf32>
    %cst_4 = arith.constant dense<0xFF800000> : vector<8xf32>
    %13 = vector.multi_reduction <maximumf>, %12, %cst_4 [1] : vector<8x8xf32> to vector<8xf32>
    %14 = vector.shape_cast %13 : vector<8xf32> to vector<8x1xf32>
    %15 = vector.broadcast %14 : vector<8x1xf32> to vector<8x8xf32>
    %16 = arith.subf %12, %15 : vector<8x8xf32>
    %17 = math.exp %16 : vector<8x8xf32>
    %cst_5 = arith.constant dense<0.000000e+00> : vector<8xf32>
    %18 = vector.multi_reduction <add>, %17, %cst_5 [1] : vector<8x8xf32> to vector<8xf32>
    %19 = vector.shape_cast %18 : vector<8xf32> to vector<8x1xf32>
    %20 = tpu.reciprocal %19 {approx = true} : vector<8x1xf32> -> vector<8x1xf32>
    %21 = arith.truncf %17 : vector<8x8xf32> to vector<8x8xbf16>
    %cst_6 = arith.constant dense<0.000000e+00> : vector<8x32xf32>
    %22 = tpu.matmul %21, %9, %cst_6 {dimension_numbers = #tpu.dot_dimension_numbers<[1], [0], [0], [1], [0, 0, 1, 1], [], []>} : vector<8x8xbf16>, vector<8x32xbf16>, vector<8x32xf32> -> vector<8x32xf32>
    %23 = vector.broadcast %20 : vector<8x1xf32> to vector<8x32xf32>
    %24 = arith.mulf %22, %23 : vector<8x32xf32>
    %25 = arith.truncf %24 : vector<8x32xf32> to vector<8x32xbf16>
    %c0_7 = arith.constant 0 : index
    %c0_8 = arith.constant 0 : index
    %c0_9 = arith.constant 0 : index
    %26 = vector.load %arg2[%c0_7, %c0_8, %c0_9] : memref<1x8x64xbf16, #tpu.memory_space<vmem>>, vector<1x8x32xbf16>
    %27 = vector.shape_cast %26 : vector<1x8x32xbf16> to vector<8x32xbf16>
    %28 = vector.shape_cast %25 : vector<8x32xbf16> to vector<1x8x32xbf16>
    tpu.vector_store %arg2[%c0_7, %c0_8, %c0_9], %28 {strides = array<i32>} : memref<1x8x64xbf16, #tpu.memory_space<vmem>>, vector<1x8x32xbf16>,
    %29 = vector.extract_strided_slice %1 {offsets = [0, 96], sizes = [8, 32], strides = [1, 1]} : vector<8x192xbf16> to vector<8x32xbf16>
    %cst_10 = arith.constant 1.767580e-01 : bf16
    %30 = vector.broadcast %cst_10 : bf16 to vector<8x32xbf16>
    %31 = arith.mulf %29, %30 : vector<8x32xbf16>
    %32 = vector.extract_strided_slice %1 {offsets = [0, 128], sizes = [8, 32], strides = [1, 1]} : vector<8x192xbf16> to vector<8x32xbf16>
    %33 = vector.extract_strided_slice %1 {offsets = [0, 160], sizes = [8, 32], strides = [1, 1]} : vector<8x192xbf16> to vector<8x32xbf16>
    %cst_11 = arith.constant dense<0.000000e+00> : vector<8x8xf32>
    %34 = tpu.matmul %31, %32, %cst_11 {dimension_numbers = #tpu.dot_dimension_numbers<[1], [1], [0], [0], [0, 0, 1, 0], [], []>} : vector<8x32xbf16>, vector<8x32xbf16>, vector<8x8xf32> -> vector<8x8xf32>
    %cst_12 = arith.constant -1.000000e+09 : f32
    %35 = vector.broadcast %cst_12 : f32 to vector<8x8xf32>
    %36 = arith.select %4, %34, %35 : vector<8x8xi1>, vector<8x8xf32>
    %cst_13 = arith.constant dense<0xFF800000> : vector<8xf32>
    %37 = vector.multi_reduction <maximumf>, %36, %cst_13 [1] : vector<8x8xf32> to vector<8xf32>
    %38 = vector.shape_cast %37 : vector<8xf32> to vector<8x1xf32>
    %39 = vector.broadcast %38 : vector<8x1xf32> to vector<8x8xf32>
    %40 = arith.subf %36, %39 : vector<8x8xf32>
    %41 = math.exp %40 : vector<8x8xf32>
    %cst_14 = arith.constant dense<0.000000e+00> : vector<8xf32>
    %42 = vector.multi_reduction <add>, %41, %cst_14 [1] : vector<8x8xf32> to vector<8xf32>
    %43 = vector.shape_cast %42 : vector<8xf32> to vector<8x1xf32>
    %44 = tpu.reciprocal %43 {approx = true} : vector<8x1xf32> -> vector<8x1xf32>
    %45 = arith.truncf %41 : vector<8x8xf32> to vector<8x8xbf16>
    %cst_15 = arith.constant dense<0.000000e+00> : vector<8x32xf32>
    %46 = tpu.matmul %45, %33, %cst_15 {dimension_numbers = #tpu.dot_dimension_numbers<[1], [0], [0], [1], [0, 0, 1, 1], [], []>} : vector<8x8xbf16>, vector<8x32xbf16>, vector<8x32xf32> -> vector<8x32xf32>
    %47 = vector.broadcast %44 : vector<8x1xf32> to vector<8x32xf32>
    %48 = arith.mulf %46, %47 : vector<8x32xf32>
    %49 = arith.truncf %48 : vector<8x32xf32> to vector<8x32xbf16>
    %c0_16 = arith.constant 0 : index
    %c0_17 = arith.constant 0 : index
    %c32 = arith.constant 32 : index
    %50 = vector.load %arg2[%c0_16, %c0_17, %c32] : memref<1x8x64xbf16, #tpu.memory_space<vmem>>, vector<1x8x32xbf16>
    %51 = vector.shape_cast %50 : vector<1x8x32xbf16> to vector<8x32xbf16>
    %52 = vector.shape_cast %49 : vector<8x32xbf16> to vector<1x8x32xbf16>
    tpu.vector_store %arg2[%c0_16, %c0_17, %c32], %52 {strides = array<i32>} : memref<1x8x64xbf16, #tpu.memory_space<vmem>>, vector<1x8x32xbf16>,
    return
  }
  func.func @transform_0(%arg0: i32) -> (i32, i32, i32) {
    %c0_i32 = arith.constant 0 : i32
    %c0_i32_0 = arith.constant 0 : i32
    %c0_i32_1 = arith.constant 0 : i32
    return %arg0, %c0_i32, %c0_i32_0 : i32, i32, i32
  }
  func.func @transform_1(%arg0: i32) -> (i32, i32, i32) {
    %c0_i32 = arith.constant 0 : i32
    %c0_i32_0 = arith.constant 0 : i32
    %c0_i32_1 = arith.constant 0 : i32
    return %arg0, %c0_i32, %c0_i32_0 : i32, i32, i32
  }
}

module attributes {stable_mosaic.version = 11 : i64} {
  func.func @matmul_kernel(%arg0: i32, %arg1: i32, %arg2: i32, %arg3: memref<16x64xbf16, #tpu.memory_space<vmem>>, %arg4: memref<64x64xbf16, #tpu.memory_space<vmem>>, %arg5: memref<1x64xf32, #tpu.memory_space<vmem>>, %arg6: memref<16x64xbf16, #tpu.memory_space<vmem>>, %arg7: memref<1x64xf32, #tpu.memory_space<vmem>>, %arg8: memref<1x64xf32, #tpu.memory_space<vmem>>, %arg9: memref<16x64xbf16, #tpu.memory_space<vmem>>, %arg10: memref<16x64xf32, #tpu.memory_space<vmem>>) attributes {dimension_semantics = [#tpu.dimension_semantics<parallel>, #tpu.dimension_semantics<parallel>, #tpu.dimension_semantics<arbitrary>], iteration_bounds = array<i64: 1, 1, 1>, scalar_prefetch = 0 : i64, scratch_operands = 1 : i64, tpu.core_type = #tpu.core_type<tc>, window_params = [{transform_indices = @transform_0, window_bounds = array<i64: 16, 64>}, {transform_indices = @transform_1, window_bounds = array<i64: 64, 64>}, {transform_indices = @transform_2, window_bounds = array<i64: 1, 64>}, {transform_indices = @transform_3, window_bounds = array<i64: 16, 64>}, {transform_indices = @transform_4, window_bounds = array<i64: 1, 64>}, {transform_indices = @transform_5, window_bounds = array<i64: 1, 64>}, {transform_indices = @transform_6, window_bounds = array<i64: 16, 64>}]} {
    %c0_i32 = arith.constant 0 : i32
    %0 = arith.cmpi eq, %arg2, %c0_i32 : i32
    %1 = arith.extui %0 : i1 to i32
    %c0_i32_0 = arith.constant 0 : i32
    %2 = arith.cmpi ne, %1, %c0_i32_0 : i32
    scf.if %2 {
      %cst_10 = arith.constant 0.000000e+00 : f32
      %12 = vector.broadcast %cst_10 : f32 to vector<16x64xf32>
      %c0_11 = arith.constant 0 : index
      %c0_12 = arith.constant 0 : index
      %13 = vector.load %arg10[%c0_11, %c0_12] : memref<16x64xf32, #tpu.memory_space<vmem>>, vector<16x64xf32>
      tpu.vector_store %arg10[%c0_11, %c0_12], %12 {strides = array<i32>} : memref<16x64xf32, #tpu.memory_space<vmem>>, vector<16x64xf32>,
    } else {
    }
    %c0 = arith.constant 0 : index
    %c0_1 = arith.constant 0 : index
    %3 = vector.load %arg10[%c0, %c0_1] : memref<16x64xf32, #tpu.memory_space<vmem>>, vector<16x64xf32>
    %c0_2 = arith.constant 0 : index
    %c0_3 = arith.constant 0 : index
    %4 = vector.load %arg3[%c0_2, %c0_3] : memref<16x64xbf16, #tpu.memory_space<vmem>>, vector<16x64xbf16>
    %c0_4 = arith.constant 0 : index
    %c0_5 = arith.constant 0 : index
    %5 = vector.load %arg4[%c0_4, %c0_5] : memref<64x64xbf16, #tpu.memory_space<vmem>>, vector<64x64xbf16>
    %cst = arith.constant dense<0.000000e+00> : vector<16x64xf32>
    %6 = tpu.matmul %4, %5, %cst {dimension_numbers = #tpu.dot_dimension_numbers<[1], [0], [0], [1], [0, 0, 1, 1], [], []>} : vector<16x64xbf16>, vector<64x64xbf16>, vector<16x64xf32> -> vector<16x64xf32>
    %7 = arith.addf %3, %6 : vector<16x64xf32>
    %c0_6 = arith.constant 0 : index
    %c0_7 = arith.constant 0 : index
    %8 = vector.load %arg10[%c0_6, %c0_7] : memref<16x64xf32, #tpu.memory_space<vmem>>, vector<16x64xf32>
    tpu.vector_store %arg10[%c0_6, %c0_7], %7 {strides = array<i32>} : memref<16x64xf32, #tpu.memory_space<vmem>>, vector<16x64xf32>,
    %c0_i32_8 = arith.constant 0 : i32
    %9 = arith.cmpi eq, %arg2, %c0_i32_8 : i32
    %10 = arith.extui %9 : i1 to i32
    %c0_i32_9 = arith.constant 0 : i32
    %11 = arith.cmpi ne, %10, %c0_i32_9 : i32
    scf.if %11 {
      %c0_10 = arith.constant 0 : index
      %c0_11 = arith.constant 0 : index
      %12 = vector.load %arg10[%c0_10, %c0_11] : memref<16x64xf32, #tpu.memory_space<vmem>>, vector<16x64xf32>
      %c0_12 = arith.constant 0 : index
      %c0_13 = arith.constant 0 : index
      %13 = vector.load %arg5[%c0_12, %c0_13] : memref<1x64xf32, #tpu.memory_space<vmem>>, vector<1x64xf32>
      %14 = vector.broadcast %13 : vector<1x64xf32> to vector<16x64xf32>
      %15 = arith.addf %12, %14 : vector<16x64xf32>
      %c0_14 = arith.constant 0 : index
      %c0_15 = arith.constant 0 : index
      %16 = vector.load %arg6[%c0_14, %c0_15] : memref<16x64xbf16, #tpu.memory_space<vmem>>, vector<16x64xbf16>
      %17 = arith.extf %16 : vector<16x64xbf16> to vector<16x64xf32>
      %18 = arith.addf %17, %15 : vector<16x64xf32>
      %cst_16 = arith.constant dense<0.000000e+00> : vector<16xf32>
      %19 = vector.multi_reduction <add>, %18, %cst_16 [1] : vector<16x64xf32> to vector<16xf32>
      %20 = vector.shape_cast %19 : vector<16xf32> to vector<16x1xf32>
      %cst_17 = arith.constant 6.400000e+01 : f32
      %21 = vector.broadcast %cst_17 : f32 to vector<16x1xf32>
      %22 = arith.divf %20, %21 : vector<16x1xf32>
      %23 = vector.broadcast %22 : vector<16x1xf32> to vector<16x64xf32>
      %24 = arith.subf %18, %23 : vector<16x64xf32>
      %25 = arith.mulf %24, %24 : vector<16x64xf32>
      %cst_18 = arith.constant dense<0.000000e+00> : vector<16xf32>
      %26 = vector.multi_reduction <add>, %25, %cst_18 [1] : vector<16x64xf32> to vector<16xf32>
      %27 = vector.shape_cast %26 : vector<16xf32> to vector<16x1xf32>
      %cst_19 = arith.constant 6.400000e+01 : f32
      %28 = vector.broadcast %cst_19 : f32 to vector<16x1xf32>
      %29 = arith.divf %27, %28 : vector<16x1xf32>
      %c0_20 = arith.constant 0 : index
      %c0_21 = arith.constant 0 : index
      %30 = vector.load %arg7[%c0_20, %c0_21] : memref<1x64xf32, #tpu.memory_space<vmem>>, vector<1x64xf32>
      %cst_22 = arith.constant 9.99999974E-6 : f32
      %31 = vector.broadcast %cst_22 : f32 to vector<16x1xf32>
      %32 = arith.addf %29, %31 : vector<16x1xf32>
      %33 = math.rsqrt %32 : vector<16x1xf32>
      %34 = vector.broadcast %33 : vector<16x1xf32> to vector<16x64xf32>
      %35 = arith.mulf %24, %34 : vector<16x64xf32>
      %36 = vector.broadcast %30 : vector<1x64xf32> to vector<16x64xf32>
      %37 = arith.mulf %36, %35 : vector<16x64xf32>
      %c0_23 = arith.constant 0 : index
      %c0_24 = arith.constant 0 : index
      %38 = vector.load %arg8[%c0_23, %c0_24] : memref<1x64xf32, #tpu.memory_space<vmem>>, vector<1x64xf32>
      %39 = vector.broadcast %38 : vector<1x64xf32> to vector<16x64xf32>
      %40 = arith.addf %37, %39 : vector<16x64xf32>
      %41 = arith.truncf %40 : vector<16x64xf32> to vector<16x64xbf16>
      %c0_25 = arith.constant 0 : index
      %c0_26 = arith.constant 0 : index
      %42 = vector.load %arg9[%c0_25, %c0_26] : memref<16x64xbf16, #tpu.memory_space<vmem>>, vector<16x64xbf16>
      tpu.vector_store %arg9[%c0_25, %c0_26], %41 {strides = array<i32>} : memref<16x64xbf16, #tpu.memory_space<vmem>>, vector<16x64xbf16>,
    } else {
    }
    return
  }
  func.func @transform_0(%arg0: i32, %arg1: i32, %arg2: i32) -> (i32, i32) {
    %c0_i32 = arith.constant 0 : i32
    return %arg0, %arg2 : i32, i32
  }
  func.func @transform_1(%arg0: i32, %arg1: i32, %arg2: i32) -> (i32, i32) {
    %c0_i32 = arith.constant 0 : i32
    return %arg2, %arg1 : i32, i32
  }
  func.func @transform_2(%arg0: i32, %arg1: i32, %arg2: i32) -> (i32, i32) {
    %c0_i32 = arith.constant 0 : i32
    %c0_i32_0 = arith.constant 0 : i32
    return %c0_i32, %arg1 : i32, i32
  }
  func.func @transform_3(%arg0: i32, %arg1: i32, %arg2: i32) -> (i32, i32) {
    %c0_i32 = arith.constant 0 : i32
    return %arg0, %arg1 : i32, i32
  }
  func.func @transform_4(%arg0: i32, %arg1: i32, %arg2: i32) -> (i32, i32) {
    %c0_i32 = arith.constant 0 : i32
    %c0_i32_0 = arith.constant 0 : i32
    return %c0_i32, %arg1 : i32, i32
  }
  func.func @transform_5(%arg0: i32, %arg1: i32, %arg2: i32) -> (i32, i32) {
    %c0_i32 = arith.constant 0 : i32
    %c0_i32_0 = arith.constant 0 : i32
    return %c0_i32, %arg1 : i32, i32
  }
  func.func @transform_6(%arg0: i32, %arg1: i32, %arg2: i32) -> (i32, i32) {
    %c0_i32 = arith.constant 0 : i32
    return %arg0, %arg1 : i32, i32
  }
}

module attributes {stable_mosaic.version = 11 : i64} {
  func.func @matmul_kernel(%arg0: i32, %arg1: i32, %arg2: i32, %arg3: memref<16x64xbf16, #tpu.memory_space<vmem>>, %arg4: memref<64x256xbf16, #tpu.memory_space<vmem>>, %arg5: memref<1x256xf32, #tpu.memory_space<vmem>>, %arg6: memref<16x256xbf16, #tpu.memory_space<vmem>>, %arg7: memref<16x256xf32, #tpu.memory_space<vmem>>) attributes {dimension_semantics = [#tpu.dimension_semantics<parallel>, #tpu.dimension_semantics<parallel>, #tpu.dimension_semantics<arbitrary>], iteration_bounds = array<i64: 1, 1, 1>, scalar_prefetch = 0 : i64, scratch_operands = 1 : i64, tpu.core_type = #tpu.core_type<tc>, window_params = [{transform_indices = @transform_0, window_bounds = array<i64: 16, 64>}, {transform_indices = @transform_1, window_bounds = array<i64: 64, 256>}, {transform_indices = @transform_2, window_bounds = array<i64: 1, 256>}, {transform_indices = @transform_3, window_bounds = array<i64: 16, 256>}]} {
    %c0_i32 = arith.constant 0 : i32
    %0 = arith.cmpi eq, %arg2, %c0_i32 : i32
    %1 = arith.extui %0 : i1 to i32
    %c0_i32_0 = arith.constant 0 : i32
    %2 = arith.cmpi ne, %1, %c0_i32_0 : i32
    scf.if %2 {
      %cst_10 = arith.constant 0.000000e+00 : f32
      %12 = vector.broadcast %cst_10 : f32 to vector<16x256xf32>
      %c0_11 = arith.constant 0 : index
      %c0_12 = arith.constant 0 : index
      %13 = vector.load %arg7[%c0_11, %c0_12] : memref<16x256xf32, #tpu.memory_space<vmem>>, vector<16x256xf32>
      tpu.vector_store %arg7[%c0_11, %c0_12], %12 {strides = array<i32>} : memref<16x256xf32, #tpu.memory_space<vmem>>, vector<16x256xf32>,
    } else {
    }
    %c0 = arith.constant 0 : index
    %c0_1 = arith.constant 0 : index
    %3 = vector.load %arg7[%c0, %c0_1] : memref<16x256xf32, #tpu.memory_space<vmem>>, vector<16x256xf32>
    %c0_2 = arith.constant 0 : index
    %c0_3 = arith.constant 0 : index
    %4 = vector.load %arg3[%c0_2, %c0_3] : memref<16x64xbf16, #tpu.memory_space<vmem>>, vector<16x64xbf16>
    %c0_4 = arith.constant 0 : index
    %c0_5 = arith.constant 0 : index
    %5 = vector.load %arg4[%c0_4, %c0_5] : memref<64x256xbf16, #tpu.memory_space<vmem>>, vector<64x256xbf16>
    %cst = arith.constant dense<0.000000e+00> : vector<16x256xf32>
    %6 = tpu.matmul %4, %5, %cst {dimension_numbers = #tpu.dot_dimension_numbers<[1], [0], [0], [1], [0, 0, 1, 1], [], []>} : vector<16x64xbf16>, vector<64x256xbf16>, vector<16x256xf32> -> vector<16x256xf32>
    %7 = arith.addf %3, %6 : vector<16x256xf32>
    %c0_6 = arith.constant 0 : index
    %c0_7 = arith.constant 0 : index
    %8 = vector.load %arg7[%c0_6, %c0_7] : memref<16x256xf32, #tpu.memory_space<vmem>>, vector<16x256xf32>
    tpu.vector_store %arg7[%c0_6, %c0_7], %7 {strides = array<i32>} : memref<16x256xf32, #tpu.memory_space<vmem>>, vector<16x256xf32>,
    %c0_i32_8 = arith.constant 0 : i32
    %9 = arith.cmpi eq, %arg2, %c0_i32_8 : i32
    %10 = arith.extui %9 : i1 to i32
    %c0_i32_9 = arith.constant 0 : i32
    %11 = arith.cmpi ne, %10, %c0_i32_9 : i32
    scf.if %11 {
      %c0_10 = arith.constant 0 : index
      %c0_11 = arith.constant 0 : index
      %12 = vector.load %arg7[%c0_10, %c0_11] : memref<16x256xf32, #tpu.memory_space<vmem>>, vector<16x256xf32>
      %c0_12 = arith.constant 0 : index
      %c0_13 = arith.constant 0 : index
      %13 = vector.load %arg5[%c0_12, %c0_13] : memref<1x256xf32, #tpu.memory_space<vmem>>, vector<1x256xf32>
      %14 = vector.broadcast %13 : vector<1x256xf32> to vector<16x256xf32>
      %15 = arith.addf %12, %14 : vector<16x256xf32>
      %cst_14 = arith.constant 5.000000e-01 : f32
      %16 = vector.broadcast %cst_14 : f32 to vector<16x256xf32>
      %17 = arith.mulf %16, %15 : vector<16x256xf32>
      %cst_15 = arith.constant 4.471500e-02 : f32
      %18 = vector.broadcast %cst_15 : f32 to vector<16x256xf32>
      %19 = arith.mulf %18, %15 : vector<16x256xf32>
      %20 = arith.mulf %19, %15 : vector<16x256xf32>
      %21 = arith.mulf %20, %15 : vector<16x256xf32>
      %22 = arith.addf %15, %21 : vector<16x256xf32>
      %cst_16 = arith.constant 0.797884583 : f32
      %23 = vector.broadcast %cst_16 : f32 to vector<16x256xf32>
      %24 = arith.mulf %23, %22 : vector<16x256xf32>
      %25 = math.tanh %24 : vector<16x256xf32>
      %cst_17 = arith.constant 1.000000e+00 : f32
      %26 = vector.broadcast %cst_17 : f32 to vector<16x256xf32>
      %27 = arith.addf %26, %25 : vector<16x256xf32>
      %28 = arith.mulf %17, %27 : vector<16x256xf32>
      %29 = arith.truncf %28 : vector<16x256xf32> to vector<16x256xbf16>
      %c0_18 = arith.constant 0 : index
      %c0_19 = arith.constant 0 : index
      %30 = vector.load %arg6[%c0_18, %c0_19] : memref<16x256xbf16, #tpu.memory_space<vmem>>, vector<16x256xbf16>
      tpu.vector_store %arg6[%c0_18, %c0_19], %29 {strides = array<i32>} : memref<16x256xbf16, #tpu.memory_space<vmem>>, vector<16x256xbf16>,
    } else {
    }
    return
  }
  func.func @transform_0(%arg0: i32, %arg1: i32, %arg2: i32) -> (i32, i32) {
    %c0_i32 = arith.constant 0 : i32
    return %arg0, %arg2 : i32, i32
  }
  func.func @transform_1(%arg0: i32, %arg1: i32, %arg2: i32) -> (i32, i32) {
    %c0_i32 = arith.constant 0 : i32
    return %arg2, %arg1 : i32, i32
  }
  func.func @transform_2(%arg0: i32, %arg1: i32, %arg2: i32) -> (i32, i32) {
    %c0_i32 = arith.constant 0 : i32
    %c0_i32_0 = arith.constant 0 : i32
    return %c0_i32, %arg1 : i32, i32
  }
  func.func @transform_3(%arg0: i32, %arg1: i32, %arg2: i32) -> (i32, i32) {
    %c0_i32 = arith.constant 0 : i32
    return %arg0, %arg1 : i32, i32
  }
}

module attributes {stable_mosaic.version = 11 : i64} {
  func.func @matmul_kernel(%arg0: i32, %arg1: i32, %arg2: i32, %arg3: memref<16x256xbf16, #tpu.memory_space<vmem>>, %arg4: memref<256x64xbf16, #tpu.memory_space<vmem>>, %arg5: memref<1x64xf32, #tpu.memory_space<vmem>>, %arg6: memref<16x64xbf16, #tpu.memory_space<vmem>>, %arg7: memref<1x64xf32, #tpu.memory_space<vmem>>, %arg8: memref<1x64xf32, #tpu.memory_space<vmem>>, %arg9: memref<16x64xbf16, #tpu.memory_space<vmem>>, %arg10: memref<16x64xf32, #tpu.memory_space<vmem>>) attributes {dimension_semantics = [#tpu.dimension_semantics<parallel>, #tpu.dimension_semantics<parallel>, #tpu.dimension_semantics<arbitrary>], iteration_bounds = array<i64: 1, 1, 1>, scalar_prefetch = 0 : i64, scratch_operands = 1 : i64, tpu.core_type = #tpu.core_type<tc>, window_params = [{transform_indices = @transform_0, window_bounds = array<i64: 16, 256>}, {transform_indices = @transform_1, window_bounds = array<i64: 256, 64>}, {transform_indices = @transform_2, window_bounds = array<i64: 1, 64>}, {transform_indices = @transform_3, window_bounds = array<i64: 16, 64>}, {transform_indices = @transform_4, window_bounds = array<i64: 1, 64>}, {transform_indices = @transform_5, window_bounds = array<i64: 1, 64>}, {transform_indices = @transform_6, window_bounds = array<i64: 16, 64>}]} {
    %c0_i32 = arith.constant 0 : i32
    %0 = arith.cmpi eq, %arg2, %c0_i32 : i32
    %1 = arith.extui %0 : i1 to i32
    %c0_i32_0 = arith.constant 0 : i32
    %2 = arith.cmpi ne, %1, %c0_i32_0 : i32
    scf.if %2 {
      %cst_10 = arith.constant 0.000000e+00 : f32
      %12 = vector.broadcast %cst_10 : f32 to vector<16x64xf32>
      %c0_11 = arith.constant 0 : index
      %c0_12 = arith.constant 0 : index
      %13 = vector.load %arg10[%c0_11, %c0_12] : memref<16x64xf32, #tpu.memory_space<vmem>>, vector<16x64xf32>
      tpu.vector_store %arg10[%c0_11, %c0_12], %12 {strides = array<i32>} : memref<16x64xf32, #tpu.memory_space<vmem>>, vector<16x64xf32>,
    } else {
    }
    %c0 = arith.constant 0 : index
    %c0_1 = arith.constant 0 : index
    %3 = vector.load %arg10[%c0, %c0_1] : memref<16x64xf32, #tpu.memory_space<vmem>>, vector<16x64xf32>
    %c0_2 = arith.constant 0 : index
    %c0_3 = arith.constant 0 : index
    %4 = vector.load %arg3[%c0_2, %c0_3] : memref<16x256xbf16, #tpu.memory_space<vmem>>, vector<16x256xbf16>
    %c0_4 = arith.constant 0 : index
    %c0_5 = arith.constant 0 : index
    %5 = vector.load %arg4[%c0_4, %c0_5] : memref<256x64xbf16, #tpu.memory_space<vmem>>, vector<256x64xbf16>
    %cst = arith.constant dense<0.000000e+00> : vector<16x64xf32>
    %6 = tpu.matmul %4, %5, %cst {dimension_numbers = #tpu.dot_dimension_numbers<[1], [0], [0], [1], [0, 0, 1, 1], [], []>} : vector<16x256xbf16>, vector<256x64xbf16>, vector<16x64xf32> -> vector<16x64xf32>
    %7 = arith.addf %3, %6 : vector<16x64xf32>
    %c0_6 = arith.constant 0 : index
    %c0_7 = arith.constant 0 : index
    %8 = vector.load %arg10[%c0_6, %c0_7] : memref<16x64xf32, #tpu.memory_space<vmem>>, vector<16x64xf32>
    tpu.vector_store %arg10[%c0_6, %c0_7], %7 {strides = array<i32>} : memref<16x64xf32, #tpu.memory_space<vmem>>, vector<16x64xf32>,
    %c0_i32_8 = arith.constant 0 : i32
    %9 = arith.cmpi eq, %arg2, %c0_i32_8 : i32
    %10 = arith.extui %9 : i1 to i32
    %c0_i32_9 = arith.constant 0 : i32
    %11 = arith.cmpi ne, %10, %c0_i32_9 : i32
    scf.if %11 {
      %c0_10 = arith.constant 0 : index
      %c0_11 = arith.constant 0 : index
      %12 = vector.load %arg10[%c0_10, %c0_11] : memref<16x64xf32, #tpu.memory_space<vmem>>, vector<16x64xf32>
      %c0_12 = arith.constant 0 : index
      %c0_13 = arith.constant 0 : index
      %13 = vector.load %arg5[%c0_12, %c0_13] : memref<1x64xf32, #tpu.memory_space<vmem>>, vector<1x64xf32>
      %14 = vector.broadcast %13 : vector<1x64xf32> to vector<16x64xf32>
      %15 = arith.addf %12, %14 : vector<16x64xf32>
      %c0_14 = arith.constant 0 : index
      %c0_15 = arith.constant 0 : index
      %16 = vector.load %arg6[%c0_14, %c0_15] : memref<16x64xbf16, #tpu.memory_space<vmem>>, vector<16x64xbf16>
      %17 = arith.extf %16 : vector<16x64xbf16> to vector<16x64xf32>
      %18 = arith.addf %17, %15 : vector<16x64xf32>
      %cst_16 = arith.constant dense<0.000000e+00> : vector<16xf32>
      %19 = vector.multi_reduction <add>, %18, %cst_16 [1] : vector<16x64xf32> to vector<16xf32>
      %20 = vector.shape_cast %19 : vector<16xf32> to vector<16x1xf32>
      %cst_17 = arith.constant 6.400000e+01 : f32
      %21 = vector.broadcast %cst_17 : f32 to vector<16x1xf32>
      %22 = arith.divf %20, %21 : vector<16x1xf32>
      %23 = vector.broadcast %22 : vector<16x1xf32> to vector<16x64xf32>
      %24 = arith.subf %18, %23 : vector<16x64xf32>
      %25 = arith.mulf %24, %24 : vector<16x64xf32>
      %cst_18 = arith.constant dense<0.000000e+00> : vector<16xf32>
      %26 = vector.multi_reduction <add>, %25, %cst_18 [1] : vector<16x64xf32> to vector<16xf32>
      %27 = vector.shape_cast %26 : vector<16xf32> to vector<16x1xf32>
      %cst_19 = arith.constant 6.400000e+01 : f32
      %28 = vector.broadcast %cst_19 : f32 to vector<16x1xf32>
      %29 = arith.divf %27, %28 : vector<16x1xf32>
      %c0_20 = arith.constant 0 : index
      %c0_21 = arith.constant 0 : index
      %30 = vector.load %arg7[%c0_20, %c0_21] : memref<1x64xf32, #tpu.memory_space<vmem>>, vector<1x64xf32>
      %cst_22 = arith.constant 9.99999974E-6 : f32
      %31 = vector.broadcast %cst_22 : f32 to vector<16x1xf32>
      %32 = arith.addf %29, %31 : vector<16x1xf32>
      %33 = math.rsqrt %32 : vector<16x1xf32>
      %34 = vector.broadcast %33 : vector<16x1xf32> to vector<16x64xf32>
      %35 = arith.mulf %24, %34 : vector<16x64xf32>
      %36 = vector.broadcast %30 : vector<1x64xf32> to vector<16x64xf32>
      %37 = arith.mulf %36, %35 : vector<16x64xf32>
      %c0_23 = arith.constant 0 : index
      %c0_24 = arith.constant 0 : index
      %38 = vector.load %arg8[%c0_23, %c0_24] : memref<1x64xf32, #tpu.memory_space<vmem>>, vector<1x64xf32>
      %39 = vector.broadcast %38 : vector<1x64xf32> to vector<16x64xf32>
      %40 = arith.addf %37, %39 : vector<16x64xf32>
      %41 = arith.truncf %40 : vector<16x64xf32> to vector<16x64xbf16>
      %c0_25 = arith.constant 0 : index
      %c0_26 = arith.constant 0 : index
      %42 = vector.load %arg9[%c0_25, %c0_26] : memref<16x64xbf16, #tpu.memory_space<vmem>>, vector<16x64xbf16>
      tpu.vector_store %arg9[%c0_25, %c0_26], %41 {strides = array<i32>} : memref<16x64xbf16, #tpu.memory_space<vmem>>, vector<16x64xbf16>,
    } else {
    }
    return
  }
  func.func @transform_0(%arg0: i32, %arg1: i32, %arg2: i32) -> (i32, i32) {
    %c0_i32 = arith.constant 0 : i32
    return %arg0, %arg2 : i32, i32
  }
  func.func @transform_1(%arg0: i32, %arg1: i32, %arg2: i32) -> (i32, i32) {
    %c0_i32 = arith.constant 0 : i32
    return %arg2, %arg1 : i32, i32
  }
  func.func @transform_2(%arg0: i32, %arg1: i32, %arg2: i32) -> (i32, i32) {
    %c0_i32 = arith.constant 0 : i32
    %c0_i32_0 = arith.constant 0 : i32
    return %c0_i32, %arg1 : i32, i32
  }
  func.func @transform_3(%arg0: i32, %arg1: i32, %arg2: i32) -> (i32, i32) {
    %c0_i32 = arith.constant 0 : i32
    return %arg0, %arg1 : i32, i32
  }
  func.func @transform_4(%arg0: i32, %arg1: i32, %arg2: i32) -> (i32, i32) {
    %c0_i32 = arith.constant 0 : i32
    %c0_i32_0 = arith.constant 0 : i32
    return %c0_i32, %arg1 : i32, i32
  }
  func.func @transform_5(%arg0: i32, %arg1: i32, %arg2: i32) -> (i32, i32) {
    %c0_i32 = arith.constant 0 : i32
    %c0_i32_0 = arith.constant 0 : i32
    return %c0_i32, %arg1 : i32, i32
  }
  func.func @transform_6(%arg0: i32, %arg1: i32, %arg2: i32) -> (i32, i32) {
    %c0_i32 = arith.constant 0 : i32
    return %arg0, %arg1 : i32, i32
  }
}

module attributes {stable_mosaic.version = 11 : i64} {
  func.func @matmul_kernel(%arg0: i32, %arg1: i32, %arg2: i32, %arg3: memref<16x64xbf16, #tpu.memory_space<vmem>>, %arg4: memref<64x32xbf16, #tpu.memory_space<vmem>>, %arg5: memref<1x32xf32, #tpu.memory_space<vmem>>, %arg6: memref<16x32xbf16, #tpu.memory_space<vmem>>, %arg7: memref<16x32xf32, #tpu.memory_space<vmem>>) attributes {dimension_semantics = [#tpu.dimension_semantics<parallel>, #tpu.dimension_semantics<parallel>, #tpu.dimension_semantics<arbitrary>], iteration_bounds = array<i64: 1, 1, 1>, scalar_prefetch = 0 : i64, scratch_operands = 1 : i64, tpu.core_type = #tpu.core_type<tc>, window_params = [{transform_indices = @transform_0, window_bounds = array<i64: 16, 64>}, {transform_indices = @transform_1, window_bounds = array<i64: 64, 32>}, {transform_indices = @transform_2, window_bounds = array<i64: 1, 32>}, {transform_indices = @transform_3, window_bounds = array<i64: 16, 32>}]} {
    %c0_i32 = arith.constant 0 : i32
    %0 = arith.cmpi eq, %arg2, %c0_i32 : i32
    %1 = arith.extui %0 : i1 to i32
    %c0_i32_0 = arith.constant 0 : i32
    %2 = arith.cmpi ne, %1, %c0_i32_0 : i32
    scf.if %2 {
      %cst_10 = arith.constant 0.000000e+00 : f32
      %12 = vector.broadcast %cst_10 : f32 to vector<16x32xf32>
      %c0_11 = arith.constant 0 : index
      %c0_12 = arith.constant 0 : index
      %13 = vector.load %arg7[%c0_11, %c0_12] : memref<16x32xf32, #tpu.memory_space<vmem>>, vector<16x32xf32>
      tpu.vector_store %arg7[%c0_11, %c0_12], %12 {strides = array<i32>} : memref<16x32xf32, #tpu.memory_space<vmem>>, vector<16x32xf32>,
    } else {
    }
    %c0 = arith.constant 0 : index
    %c0_1 = arith.constant 0 : index
    %3 = vector.load %arg7[%c0, %c0_1] : memref<16x32xf32, #tpu.memory_space<vmem>>, vector<16x32xf32>
    %c0_2 = arith.constant 0 : index
    %c0_3 = arith.constant 0 : index
    %4 = vector.load %arg3[%c0_2, %c0_3] : memref<16x64xbf16, #tpu.memory_space<vmem>>, vector<16x64xbf16>
    %c0_4 = arith.constant 0 : index
    %c0_5 = arith.constant 0 : index
    %5 = vector.load %arg4[%c0_4, %c0_5] : memref<64x32xbf16, #tpu.memory_space<vmem>>, vector<64x32xbf16>
    %cst = arith.constant dense<0.000000e+00> : vector<16x32xf32>
    %6 = tpu.matmul %4, %5, %cst {dimension_numbers = #tpu.dot_dimension_numbers<[1], [0], [0], [1], [0, 0, 1, 1], [], []>} : vector<16x64xbf16>, vector<64x32xbf16>, vector<16x32xf32> -> vector<16x32xf32>
    %7 = arith.addf %3, %6 : vector<16x32xf32>
    %c0_6 = arith.constant 0 : index
    %c0_7 = arith.constant 0 : index
    %8 = vector.load %arg7[%c0_6, %c0_7] : memref<16x32xf32, #tpu.memory_space<vmem>>, vector<16x32xf32>
    tpu.vector_store %arg7[%c0_6, %c0_7], %7 {strides = array<i32>} : memref<16x32xf32, #tpu.memory_space<vmem>>, vector<16x32xf32>,
    %c0_i32_8 = arith.constant 0 : i32
    %9 = arith.cmpi eq, %arg2, %c0_i32_8 : i32
    %10 = arith.extui %9 : i1 to i32
    %c0_i32_9 = arith.constant 0 : i32
    %11 = arith.cmpi ne, %10, %c0_i32_9 : i32
    scf.if %11 {
      %c0_10 = arith.constant 0 : index
      %c0_11 = arith.constant 0 : index
      %12 = vector.load %arg7[%c0_10, %c0_11] : memref<16x32xf32, #tpu.memory_space<vmem>>, vector<16x32xf32>
      %c0_12 = arith.constant 0 : index
      %c0_13 = arith.constant 0 : index
      %13 = vector.load %arg5[%c0_12, %c0_13] : memref<1x32xf32, #tpu.memory_space<vmem>>, vector<1x32xf32>
      %14 = vector.broadcast %13 : vector<1x32xf32> to vector<16x32xf32>
      %15 = arith.addf %12, %14 : vector<16x32xf32>
      %16 = arith.truncf %15 : vector<16x32xf32> to vector<16x32xbf16>
      %c0_14 = arith.constant 0 : index
      %c0_15 = arith.constant 0 : index
      %17 = vector.load %arg6[%c0_14, %c0_15] : memref<16x32xbf16, #tpu.memory_space<vmem>>, vector<16x32xbf16>
      tpu.vector_store %arg6[%c0_14, %c0_15], %16 {strides = array<i32>} : memref<16x32xbf16, #tpu.memory_space<vmem>>, vector<16x32xbf16>,
    } else {
    }
    return
  }
  func.func @transform_0(%arg0: i32, %arg1: i32, %arg2: i32) -> (i32, i32) {
    %c0_i32 = arith.constant 0 : i32
    return %arg0, %arg2 : i32, i32
  }
  func.func @transform_1(%arg0: i32, %arg1: i32, %arg2: i32) -> (i32, i32) {
    %c0_i32 = arith.constant 0 : i32
    return %arg2, %arg1 : i32, i32
  }
  func.func @transform_2(%arg0: i32, %arg1: i32, %arg2: i32) -> (i32, i32) {
    %c0_i32 = arith.constant 0 : i32
    %c0_i32_0 = arith.constant 0 : i32
    return %c0_i32, %arg1 : i32, i32
  }
  func.func @transform_3(%arg0: i32, %arg1: i32, %arg2: i32) -> (i32, i32) {
    %c0_i32 = arith.constant 0 : i32
    return %arg0, %arg1 : i32, i32
  }
}

module attributes {stable_mosaic.version = 11 : i64} {
  func.func @matmul_kernel(%arg0: i32, %arg1: i32, %arg2: i32, %arg3: memref<16x96xbf16, #tpu.memory_space<vmem>>, %arg4: memref<96x128xbf16, #tpu.memory_space<vmem>>, %arg5: memref<1x128xf32, #tpu.memory_space<vmem>>, %arg6: memref<16x128xbf16, #tpu.memory_space<vmem>>, %arg7: memref<16x128xf32, #tpu.memory_space<vmem>>) attributes {dimension_semantics = [#tpu.dimension_semantics<parallel>, #tpu.dimension_semantics<parallel>, #tpu.dimension_semantics<arbitrary>], iteration_bounds = array<i64: 1, 3, 1>, scalar_prefetch = 0 : i64, scratch_operands = 1 : i64, tpu.core_type = #tpu.core_type<tc>, window_params = [{transform_indices = @transform_0, window_bounds = array<i64: 16, 96>}, {transform_indices = @transform_1, window_bounds = array<i64: 96, 128>}, {transform_indices = @transform_2, window_bounds = array<i64: 1, 128>}, {transform_indices = @transform_3, window_bounds = array<i64: 16, 128>}]} {
    %c0_i32 = arith.constant 0 : i32
    %0 = arith.cmpi eq, %arg2, %c0_i32 : i32
    %1 = arith.extui %0 : i1 to i32
    %c0_i32_0 = arith.constant 0 : i32
    %2 = arith.cmpi ne, %1, %c0_i32_0 : i32
    scf.if %2 {
      %cst_10 = arith.constant 0.000000e+00 : f32
      %12 = vector.broadcast %cst_10 : f32 to vector<16x128xf32>
      %c0_11 = arith.constant 0 : index
      %c0_12 = arith.constant 0 : index
      %13 = vector.load %arg7[%c0_11, %c0_12] : memref<16x128xf32, #tpu.memory_space<vmem>>, vector<16x128xf32>
      tpu.vector_store %arg7[%c0_11, %c0_12], %12 {strides = array<i32>} : memref<16x128xf32, #tpu.memory_space<vmem>>, vector<16x128xf32>,
    } else {
    }
    %c0 = arith.constant 0 : index
    %c0_1 = arith.constant 0 : index
    %3 = vector.load %arg7[%c0, %c0_1] : memref<16x128xf32, #tpu.memory_space<vmem>>, vector<16x128xf32>
    %c0_2 = arith.constant 0 : index
    %c0_3 = arith.constant 0 : index
    %4 = vector.load %arg3[%c0_2, %c0_3] : memref<16x96xbf16, #tpu.memory_space<vmem>>, vector<16x96xbf16>
    %c0_4 = arith.constant 0 : index
    %c0_5 = arith.constant 0 : index
    %5 = vector.load %arg4[%c0_4, %c0_5] : memref<96x128xbf16, #tpu.memory_space<vmem>>, vector<96x128xbf16>
    %cst = arith.constant dense<0.000000e+00> : vector<16x128xf32>
    %6 = tpu.matmul %4, %5, %cst {dimension_numbers = #tpu.dot_dimension_numbers<[1], [0], [0], [1], [0, 0, 1, 1], [], []>} : vector<16x96xbf16>, vector<96x128xbf16>, vector<16x128xf32> -> vector<16x128xf32>
    %7 = arith.addf %3, %6 : vector<16x128xf32>
    %c0_6 = arith.constant 0 : index
    %c0_7 = arith.constant 0 : index
    %8 = vector.load %arg7[%c0_6, %c0_7] : memref<16x128xf32, #tpu.memory_space<vmem>>, vector<16x128xf32>
    tpu.vector_store %arg7[%c0_6, %c0_7], %7 {strides = array<i32>} : memref<16x128xf32, #tpu.memory_space<vmem>>, vector<16x128xf32>,
    %c0_i32_8 = arith.constant 0 : i32
    %9 = arith.cmpi eq, %arg2, %c0_i32_8 : i32
    %10 = arith.extui %9 : i1 to i32
    %c0_i32_9 = arith.constant 0 : i32
    %11 = arith.cmpi ne, %10, %c0_i32_9 : i32
    scf.if %11 {
      %c0_10 = arith.constant 0 : index
      %c0_11 = arith.constant 0 : index
      %12 = vector.load %arg7[%c0_10, %c0_11] : memref<16x128xf32, #tpu.memory_space<vmem>>, vector<16x128xf32>
      %c0_12 = arith.constant 0 : index
      %c0_13 = arith.constant 0 : index
      %13 = vector.load %arg5[%c0_12, %c0_13] : memref<1x128xf32, #tpu.memory_space<vmem>>, vector<1x128xf32>
      %14 = vector.broadcast %13 : vector<1x128xf32> to vector<16x128xf32>
      %15 = arith.addf %12, %14 : vector<16x128xf32>
      %16 = arith.truncf %15 : vector<16x128xf32> to vector<16x128xbf16>
      %c0_14 = arith.constant 0 : index
      %c0_15 = arith.constant 0 : index
      %17 = vector.load %arg6[%c0_14, %c0_15] : memref<16x128xbf16, #tpu.memory_space<vmem>>, vector<16x128xbf16>
      tpu.vector_store %arg6[%c0_14, %c0_15], %16 {strides = array<i32>} : memref<16x128xbf16, #tpu.memory_space<vmem>>, vector<16x128xbf16>,
    } else {
    }
    return
  }
  func.func @transform_0(%arg0: i32, %arg1: i32, %arg2: i32) -> (i32, i32) {
    %c0_i32 = arith.constant 0 : i32
    return %arg0, %arg2 : i32, i32
  }
  func.func @transform_1(%arg0: i32, %arg1: i32, %arg2: i32) -> (i32, i32) {
    %c0_i32 = arith.constant 0 : i32
    return %arg2, %arg1 : i32, i32
  }
  func.func @transform_2(%arg0: i32, %arg1: i32, %arg2: i32) -> (i32, i32) {
    %c0_i32 = arith.constant 0 : i32
    %c0_i32_0 = arith.constant 0 : i32
    return %c0_i32, %arg1 : i32, i32
  }
  func.func @transform_3(%arg0: i32, %arg1: i32, %arg2: i32) -> (i32, i32) {
    %c0_i32 = arith.constant 0 : i32
    return %arg0, %arg1 : i32, i32
  }
}

module attributes {stable_mosaic.version = 11 : i64} {
  func.func @small_attn_kernel(%arg0: i32, %arg1: memref<1x8x288xbf16, #tpu.memory_space<vmem>>, %arg2: memref<1x8x96xbf16, #tpu.memory_space<vmem>>) attributes {dimension_semantics = [#tpu.dimension_semantics<parallel>], iteration_bounds = array<i64: 2>, scalar_prefetch = 0 : i64, scratch_operands = 0 : i64, tpu.core_type = #tpu.core_type<tc>, window_params = [{transform_indices = @transform_0, window_bounds = array<i64: 1, 8, 288>}, {transform_indices = @transform_1, window_bounds = array<i64: 1, 8, 96>}]} {
    %c0 = arith.constant 0 : index
    %c0_0 = arith.constant 0 : index
    %c0_1 = arith.constant 0 : index
    %0 = vector.load %arg1[%c0, %c0_0, %c0_1] : memref<1x8x288xbf16, #tpu.memory_space<vmem>>, vector<1x8x288xbf16>
    %1 = vector.shape_cast %0 : vector<1x8x288xbf16> to vector<8x288xbf16>
    %2 = tpu.iota {dimensions = array<i32: 0>} : vector<8x8xi32>
    %3 = tpu.iota {dimensions = array<i32: 1>} : vector<8x8xi32>
    %4 = arith.cmpi sle, %3, %2 : vector<8x8xi32>
    %5 = vector.extract_strided_slice %1 {offsets = [0, 0], sizes = [8, 32], strides = [1, 1]} : vector<8x288xbf16> to vector<8x32xbf16>
    %cst = arith.constant 1.767580e-01 : bf16
    %6 = vector.broadcast %cst : bf16 to vector<8x32xbf16>
    %7 = arith.mulf %5, %6 : vector<8x32xbf16>
    %8 = vector.extract_strided_slice %1 {offsets = [0, 32], sizes = [8, 32], strides = [1, 1]} : vector<8x288xbf16> to vector<8x32xbf16>
    %9 = vector.extract_strided_slice %1 {offsets = [0, 64], sizes = [8, 32], strides = [1, 1]} : vector<8x288xbf16> to vector<8x32xbf16>
    %cst_2 = arith.constant dense<0.000000e+00> : vector<8x8xf32>
    %10 = tpu.matmul %7, %8, %cst_2 {dimension_numbers = #tpu.dot_dimension_numbers<[1], [1], [0], [0], [0, 0, 1, 0], [], []>} : vector<8x32xbf16>, vector<8x32xbf16>, vector<8x8xf32> -> vector<8x8xf32>
    %cst_3 = arith.constant -1.000000e+09 : f32
    %11 = vector.broadcast %cst_3 : f32 to vector<8x8xf32>
    %12 = arith.select %4, %10, %11 : vector<8x8xi1>, vector<8x8xf32>
    %cst_4 = arith.constant dense<0xFF800000> : vector<8xf32>
    %13 = vector.multi_reduction <maximumf>, %12, %cst_4 [1] : vector<8x8xf32> to vector<8xf32>
    %14 = vector.shape_cast %13 : vector<8xf32> to vector<8x1xf32>
    %15 = vector.broadcast %14 : vector<8x1xf32> to vector<8x8xf32>
    %16 = arith.subf %12, %15 : vector<8x8xf32>
    %17 = math.exp %16 : vector<8x8xf32>
    %cst_5 = arith.constant dense<0.000000e+00> : vector<8xf32>
    %18 = vector.multi_reduction <add>, %17, %cst_5 [1] : vector<8x8xf32> to vector<8xf32>
    %19 = vector.shape_cast %18 : vector<8xf32> to vector<8x1xf32>
    %20 = tpu.reciprocal %19 {approx = true} : vector<8x1xf32> -> vector<8x1xf32>
    %21 = arith.truncf %17 : vector<8x8xf32> to vector<8x8xbf16>
    %cst_6 = arith.constant dense<0.000000e+00> : vector<8x32xf32>
    %22 = tpu.matmul %21, %9, %cst_6 {dimension_numbers = #tpu.dot_dimension_numbers<[1], [0], [0], [1], [0, 0, 1, 1], [], []>} : vector<8x8xbf16>, vector<8x32xbf16>, vector<8x32xf32> -> vector<8x32xf32>
    %23 = vector.broadcast %20 : vector<8x1xf32> to vector<8x32xf32>
    %24 = arith.mulf %22, %23 : vector<8x32xf32>
    %25 = arith.truncf %24 : vector<8x32xf32> to vector<8x32xbf16>
    %c0_7 = arith.constant 0 : index
    %c0_8 = arith.constant 0 : index
    %c0_9 = arith.constant 0 : index
    %26 = vector.load %arg2[%c0_7, %c0_8, %c0_9] : memref<1x8x96xbf16, #tpu.memory_space<vmem>>, vector<1x8x32xbf16>
    %27 = vector.shape_cast %26 : vector<1x8x32xbf16> to vector<8x32xbf16>
    %28 = vector.shape_cast %25 : vector<8x32xbf16> to vector<1x8x32xbf16>
    tpu.vector_store %arg2[%c0_7, %c0_8, %c0_9], %28 {strides = array<i32>} : memref<1x8x96xbf16, #tpu.memory_space<vmem>>, vector<1x8x32xbf16>,
    %29 = vector.extract_strided_slice %1 {offsets = [0, 96], sizes = [8, 32], strides = [1, 1]} : vector<8x288xbf16> to vector<8x32xbf16>
    %cst_10 = arith.constant 1.767580e-01 : bf16
    %30 = vector.broadcast %cst_10 : bf16 to vector<8x32xbf16>
    %31 = arith.mulf %29, %30 : vector<8x32xbf16>
    %32 = vector.extract_strided_slice %1 {offsets = [0, 128], sizes = [8, 32], strides = [1, 1]} : vector<8x288xbf16> to vector<8x32xbf16>
    %33 = vector.extract_strided_slice %1 {offsets = [0, 160], sizes = [8, 32], strides = [1, 1]} : vector<8x288xbf16> to vector<8x32xbf16>
    %cst_11 = arith.constant dense<0.000000e+00> : vector<8x8xf32>
    %34 = tpu.matmul %31, %32, %cst_11 {dimension_numbers = #tpu.dot_dimension_numbers<[1], [1], [0], [0], [0, 0, 1, 0], [], []>} : vector<8x32xbf16>, vector<8x32xbf16>, vector<8x8xf32> -> vector<8x8xf32>
    %cst_12 = arith.constant -1.000000e+09 : f32
    %35 = vector.broadcast %cst_12 : f32 to vector<8x8xf32>
    %36 = arith.select %4, %34, %35 : vector<8x8xi1>, vector<8x8xf32>
    %cst_13 = arith.constant dense<0xFF800000> : vector<8xf32>
    %37 = vector.multi_reduction <maximumf>, %36, %cst_13 [1] : vector<8x8xf32> to vector<8xf32>
    %38 = vector.shape_cast %37 : vector<8xf32> to vector<8x1xf32>
    %39 = vector.broadcast %38 : vector<8x1xf32> to vector<8x8xf32>
    %40 = arith.subf %36, %39 : vector<8x8xf32>
    %41 = math.exp %40 : vector<8x8xf32>
    %cst_14 = arith.constant dense<0.000000e+00> : vector<8xf32>
    %42 = vector.multi_reduction <add>, %41, %cst_14 [1] : vector<8x8xf32> to vector<8xf32>
    %43 = vector.shape_cast %42 : vector<8xf32> to vector<8x1xf32>
    %44 = tpu.reciprocal %43 {approx = true} : vector<8x1xf32> -> vector<8x1xf32>
    %45 = arith.truncf %41 : vector<8x8xf32> to vector<8x8xbf16>
    %cst_15 = arith.constant dense<0.000000e+00> : vector<8x32xf32>
    %46 = tpu.matmul %45, %33, %cst_15 {dimension_numbers = #tpu.dot_dimension_numbers<[1], [0], [0], [1], [0, 0, 1, 1], [], []>} : vector<8x8xbf16>, vector<8x32xbf16>, vector<8x32xf32> -> vector<8x32xf32>
    %47 = vector.broadcast %44 : vector<8x1xf32> to vector<8x32xf32>
    %48 = arith.mulf %46, %47 : vector<8x32xf32>
    %49 = arith.truncf %48 : vector<8x32xf32> to vector<8x32xbf16>
    %c0_16 = arith.constant 0 : index
    %c0_17 = arith.constant 0 : index
    %c32 = arith.constant 32 : index
    %50 = vector.load %arg2[%c0_16, %c0_17, %c32] : memref<1x8x96xbf16, #tpu.memory_space<vmem>>, vector<1x8x32xbf16>
    %51 = vector.shape_cast %50 : vector<1x8x32xbf16> to vector<8x32xbf16>
    %52 = vector.shape_cast %49 : vector<8x32xbf16> to vector<1x8x32xbf16>
    tpu.vector_store %arg2[%c0_16, %c0_17, %c32], %52 {strides = array<i32>} : memref<1x8x96xbf16, #tpu.memory_space<vmem>>, vector<1x8x32xbf16>,
    %53 = vector.extract_strided_slice %1 {offsets = [0, 192], sizes = [8, 32], strides = [1, 1]} : vector<8x288xbf16> to vector<8x32xbf16>
    %cst_18 = arith.constant 1.767580e-01 : bf16
    %54 = vector.broadcast %cst_18 : bf16 to vector<8x32xbf16>
    %55 = arith.mulf %53, %54 : vector<8x32xbf16>
    %56 = vector.extract_strided_slice %1 {offsets = [0, 224], sizes = [8, 32], strides = [1, 1]} : vector<8x288xbf16> to vector<8x32xbf16>
    %57 = vector.extract_strided_slice %1 {offsets = [0, 256], sizes = [8, 32], strides = [1, 1]} : vector<8x288xbf16> to vector<8x32xbf16>
    %cst_19 = arith.constant dense<0.000000e+00> : vector<8x8xf32>
    %58 = tpu.matmul %55, %56, %cst_19 {dimension_numbers = #tpu.dot_dimension_numbers<[1], [1], [0], [0], [0, 0, 1, 0], [], []>} : vector<8x32xbf16>, vector<8x32xbf16>, vector<8x8xf32> -> vector<8x8xf32>
    %cst_20 = arith.constant -1.000000e+09 : f32
    %59 = vector.broadcast %cst_20 : f32 to vector<8x8xf32>
    %60 = arith.select %4, %58, %59 : vector<8x8xi1>, vector<8x8xf32>
    %cst_21 = arith.constant dense<0xFF800000> : vector<8xf32>
    %61 = vector.multi_reduction <maximumf>, %60, %cst_21 [1] : vector<8x8xf32> to vector<8xf32>
    %62 = vector.shape_cast %61 : vector<8xf32> to vector<8x1xf32>
    %63 = vector.broadcast %62 : vector<8x1xf32> to vector<8x8xf32>
    %64 = arith.subf %60, %63 : vector<8x8xf32>
    %65 = math.exp %64 : vector<8x8xf32>
    %cst_22 = arith.constant dense<0.000000e+00> : vector<8xf32>
    %66 = vector.multi_reduction <add>, %65, %cst_22 [1] : vector<8x8xf32> to vector<8xf32>
    %67 = vector.shape_cast %66 : vector<8xf32> to vector<8x1xf32>
    %68 = tpu.reciprocal %67 {approx = true} : vector<8x1xf32> -> vector<8x1xf32>
    %69 = arith.truncf %65 : vector<8x8xf32> to vector<8x8xbf16>
    %cst_23 = arith.constant dense<0.000000e+00> : vector<8x32xf32>
    %70 = tpu.matmul %69, %57, %cst_23 {dimension_numbers = #tpu.dot_dimension_numbers<[1], [0], [0], [1], [0, 0, 1, 1], [], []>} : vector<8x8xbf16>, vector<8x32xbf16>, vector<8x32xf32> -> vector<8x32xf32>
    %71 = vector.broadcast %68 : vector<8x1xf32> to vector<8x32xf32>
    %72 = arith.mulf %70, %71 : vector<8x32xf32>
    %73 = arith.truncf %72 : vector<8x32xf32> to vector<8x32xbf16>
    %c0_24 = arith.constant 0 : index
    %c0_25 = arith.constant 0 : index
    %c64 = arith.constant 64 : index
    %74 = vector.load %arg2[%c0_24, %c0_25, %c64] : memref<1x8x96xbf16, #tpu.memory_space<vmem>>, vector<1x8x32xbf16>
    %75 = vector.shape_cast %74 : vector<1x8x32xbf16> to vector<8x32xbf16>
    %76 = vector.shape_cast %73 : vector<8x32xbf16> to vector<1x8x32xbf16>
    tpu.vector_store %arg2[%c0_24, %c0_25, %c64], %76 {strides = array<i32>} : memref<1x8x96xbf16, #tpu.memory_space<vmem>>, vector<1x8x32xbf16>,
    return
  }
  func.func @transform_0(%arg0: i32) -> (i32, i32, i32) {
    %c0_i32 = arith.constant 0 : i32
    %c0_i32_0 = arith.constant 0 : i32
    %c0_i32_1 = arith.constant 0 : i32
    return %arg0, %c0_i32, %c0_i32_0 : i32, i32, i32
  }
  func.func @transform_1(%arg0: i32) -> (i32, i32, i32) {
    %c0_i32 = arith.constant 0 : i32
    %c0_i32_0 = arith.constant 0 : i32
    %c0_i32_1 = arith.constant 0 : i32
    return %arg0, %c0_i32, %c0_i32_0 : i32, i32, i32
  }
}

module attributes {stable_mosaic.version = 11 : i64} {
  func.func @matmul_kernel(%arg0: i32, %arg1: i32, %arg2: i32, %arg3: memref<16x96xbf16, #tpu.memory_space<vmem>>, %arg4: memref<96x96xbf16, #tpu.memory_space<vmem>>, %arg5: memref<1x96xf32, #tpu.memory_space<vmem>>, %arg6: memref<16x96xbf16, #tpu.memory_space<vmem>>, %arg7: memref<1x96xf32, #tpu.memory_space<vmem>>, %arg8: memref<1x96xf32, #tpu.memory_space<vmem>>, %arg9: memref<16x96xbf16, #tpu.memory_space<vmem>>, %arg10: memref<16x96xf32, #tpu.memory_space<vmem>>) attributes {dimension_semantics = [#tpu.dimension_semantics<parallel>, #tpu.dimension_semantics<parallel>, #tpu.dimension_semantics<arbitrary>], iteration_bounds = array<i64: 1, 1, 1>, scalar_prefetch = 0 : i64, scratch_operands = 1 : i64, tpu.core_type = #tpu.core_type<tc>, window_params = [{transform_indices = @transform_0, window_bounds = array<i64: 16, 96>}, {transform_indices = @transform_1, window_bounds = array<i64: 96, 96>}, {transform_indices = @transform_2, window_bounds = array<i64: 1, 96>}, {transform_indices = @transform_3, window_bounds = array<i64: 16, 96>}, {transform_indices = @transform_4, window_bounds = array<i64: 1, 96>}, {transform_indices = @transform_5, window_bounds = array<i64: 1, 96>}, {transform_indices = @transform_6, window_bounds = array<i64: 16, 96>}]} {
    %c0_i32 = arith.constant 0 : i32
    %0 = arith.cmpi eq, %arg2, %c0_i32 : i32
    %1 = arith.extui %0 : i1 to i32
    %c0_i32_0 = arith.constant 0 : i32
    %2 = arith.cmpi ne, %1, %c0_i32_0 : i32
    scf.if %2 {
      %cst_10 = arith.constant 0.000000e+00 : f32
      %12 = vector.broadcast %cst_10 : f32 to vector<16x96xf32>
      %c0_11 = arith.constant 0 : index
      %c0_12 = arith.constant 0 : index
      %13 = vector.load %arg10[%c0_11, %c0_12] : memref<16x96xf32, #tpu.memory_space<vmem>>, vector<16x96xf32>
      tpu.vector_store %arg10[%c0_11, %c0_12], %12 {strides = array<i32>} : memref<16x96xf32, #tpu.memory_space<vmem>>, vector<16x96xf32>,
    } else {
    }
    %c0 = arith.constant 0 : index
    %c0_1 = arith.constant 0 : index
    %3 = vector.load %arg10[%c0, %c0_1] : memref<16x96xf32, #tpu.memory_space<vmem>>, vector<16x96xf32>
    %c0_2 = arith.constant 0 : index
    %c0_3 = arith.constant 0 : index
    %4 = vector.load %arg3[%c0_2, %c0_3] : memref<16x96xbf16, #tpu.memory_space<vmem>>, vector<16x96xbf16>
    %c0_4 = arith.constant 0 : index
    %c0_5 = arith.constant 0 : index
    %5 = vector.load %arg4[%c0_4, %c0_5] : memref<96x96xbf16, #tpu.memory_space<vmem>>, vector<96x96xbf16>
    %cst = arith.constant dense<0.000000e+00> : vector<16x96xf32>
    %6 = tpu.matmul %4, %5, %cst {dimension_numbers = #tpu.dot_dimension_numbers<[1], [0], [0], [1], [0, 0, 1, 1], [], []>} : vector<16x96xbf16>, vector<96x96xbf16>, vector<16x96xf32> -> vector<16x96xf32>
    %7 = arith.addf %3, %6 : vector<16x96xf32>
    %c0_6 = arith.constant 0 : index
    %c0_7 = arith.constant 0 : index
    %8 = vector.load %arg10[%c0_6, %c0_7] : memref<16x96xf32, #tpu.memory_space<vmem>>, vector<16x96xf32>
    tpu.vector_store %arg10[%c0_6, %c0_7], %7 {strides = array<i32>} : memref<16x96xf32, #tpu.memory_space<vmem>>, vector<16x96xf32>,
    %c0_i32_8 = arith.constant 0 : i32
    %9 = arith.cmpi eq, %arg2, %c0_i32_8 : i32
    %10 = arith.extui %9 : i1 to i32
    %c0_i32_9 = arith.constant 0 : i32
    %11 = arith.cmpi ne, %10, %c0_i32_9 : i32
    scf.if %11 {
      %c0_10 = arith.constant 0 : index
      %c0_11 = arith.constant 0 : index
      %12 = vector.load %arg10[%c0_10, %c0_11] : memref<16x96xf32, #tpu.memory_space<vmem>>, vector<16x96xf32>
      %c0_12 = arith.constant 0 : index
      %c0_13 = arith.constant 0 : index
      %13 = vector.load %arg5[%c0_12, %c0_13] : memref<1x96xf32, #tpu.memory_space<vmem>>, vector<1x96xf32>
      %14 = vector.broadcast %13 : vector<1x96xf32> to vector<16x96xf32>
      %15 = arith.addf %12, %14 : vector<16x96xf32>
      %c0_14 = arith.constant 0 : index
      %c0_15 = arith.constant 0 : index
      %16 = vector.load %arg6[%c0_14, %c0_15] : memref<16x96xbf16, #tpu.memory_space<vmem>>, vector<16x96xbf16>
      %17 = arith.extf %16 : vector<16x96xbf16> to vector<16x96xf32>
      %18 = arith.addf %17, %15 : vector<16x96xf32>
      %cst_16 = arith.constant dense<0.000000e+00> : vector<16xf32>
      %19 = vector.multi_reduction <add>, %18, %cst_16 [1] : vector<16x96xf32> to vector<16xf32>
      %20 = vector.shape_cast %19 : vector<16xf32> to vector<16x1xf32>
      %cst_17 = arith.constant 9.600000e+01 : f32
      %21 = vector.broadcast %cst_17 : f32 to vector<16x1xf32>
      %22 = arith.divf %20, %21 : vector<16x1xf32>
      %23 = vector.broadcast %22 : vector<16x1xf32> to vector<16x96xf32>
      %24 = arith.subf %18, %23 : vector<16x96xf32>
      %25 = arith.mulf %24, %24 : vector<16x96xf32>
      %cst_18 = arith.constant dense<0.000000e+00> : vector<16xf32>
      %26 = vector.multi_reduction <add>, %25, %cst_18 [1] : vector<16x96xf32> to vector<16xf32>
      %27 = vector.shape_cast %26 : vector<16xf32> to vector<16x1xf32>
      %cst_19 = arith.constant 9.600000e+01 : f32
      %28 = vector.broadcast %cst_19 : f32 to vector<16x1xf32>
      %29 = arith.divf %27, %28 : vector<16x1xf32>
      %c0_20 = arith.constant 0 : index
      %c0_21 = arith.constant 0 : index
      %30 = vector.load %arg7[%c0_20, %c0_21] : memref<1x96xf32, #tpu.memory_space<vmem>>, vector<1x96xf32>
      %cst_22 = arith.constant 9.99999974E-6 : f32
      %31 = vector.broadcast %cst_22 : f32 to vector<16x1xf32>
      %32 = arith.addf %29, %31 : vector<16x1xf32>
      %33 = math.rsqrt %32 : vector<16x1xf32>
      %34 = vector.broadcast %33 : vector<16x1xf32> to vector<16x96xf32>
      %35 = arith.mulf %24, %34 : vector<16x96xf32>
      %36 = vector.broadcast %30 : vector<1x96xf32> to vector<16x96xf32>
      %37 = arith.mulf %36, %35 : vector<16x96xf32>
      %c0_23 = arith.constant 0 : index
      %c0_24 = arith.constant 0 : index
      %38 = vector.load %arg8[%c0_23, %c0_24] : memref<1x96xf32, #tpu.memory_space<vmem>>, vector<1x96xf32>
      %39 = vector.broadcast %38 : vector<1x96xf32> to vector<16x96xf32>
      %40 = arith.addf %37, %39 : vector<16x96xf32>
      %41 = arith.truncf %40 : vector<16x96xf32> to vector<16x96xbf16>
      %c0_25 = arith.constant 0 : index
      %c0_26 = arith.constant 0 : index
      %42 = vector.load %arg9[%c0_25, %c0_26] : memref<16x96xbf16, #tpu.memory_space<vmem>>, vector<16x96xbf16>
      tpu.vector_store %arg9[%c0_25, %c0_26], %41 {strides = array<i32>} : memref<16x96xbf16, #tpu.memory_space<vmem>>, vector<16x96xbf16>,
    } else {
    }
    return
  }
  func.func @transform_0(%arg0: i32, %arg1: i32, %arg2: i32) -> (i32, i32) {
    %c0_i32 = arith.constant 0 : i32
    return %arg0, %arg2 : i32, i32
  }
  func.func @transform_1(%arg0: i32, %arg1: i32, %arg2: i32) -> (i32, i32) {
    %c0_i32 = arith.constant 0 : i32
    return %arg2, %arg1 : i32, i32
  }
  func.func @transform_2(%arg0: i32, %arg1: i32, %arg2: i32) -> (i32, i32) {
    %c0_i32 = arith.constant 0 : i32
    %c0_i32_0 = arith.constant 0 : i32
    return %c0_i32, %arg1 : i32, i32
  }
  func.func @transform_3(%arg0: i32, %arg1: i32, %arg2: i32) -> (i32, i32) {
    %c0_i32 = arith.constant 0 : i32
    return %arg0, %arg1 : i32, i32
  }
  func.func @transform_4(%arg0: i32, %arg1: i32, %arg2: i32) -> (i32, i32) {
    %c0_i32 = arith.constant 0 : i32
    %c0_i32_0 = arith.constant 0 : i32
    return %c0_i32, %arg1 : i32, i32
  }
  func.func @transform_5(%arg0: i32, %arg1: i32, %arg2: i32) -> (i32, i32) {
    %c0_i32 = arith.constant 0 : i32
    %c0_i32_0 = arith.constant 0 : i32
    return %c0_i32, %arg1 : i32, i32
  }
  func.func @transform_6(%arg0: i32, %arg1: i32, %arg2: i32) -> (i32, i32) {
    %c0_i32 = arith.constant 0 : i32
    return %arg0, %arg1 : i32, i32
  }
}

module attributes {stable_mosaic.version = 11 : i64} {
  func.func @matmul_kernel(%arg0: i32, %arg1: i32, %arg2: i32, %arg3: memref<16x96xbf16, #tpu.memory_space<vmem>>, %arg4: memref<96x128xbf16, #tpu.memory_space<vmem>>, %arg5: memref<1x128xf32, #tpu.memory_space<vmem>>, %arg6: memref<16x128xbf16, #tpu.memory_space<vmem>>, %arg7: memref<16x128xf32, #tpu.memory_space<vmem>>) attributes {dimension_semantics = [#tpu.dimension_semantics<parallel>, #tpu.dimension_semantics<parallel>, #tpu.dimension_semantics<arbitrary>], iteration_bounds = array<i64: 1, 3, 1>, scalar_prefetch = 0 : i64, scratch_operands = 1 : i64, tpu.core_type = #tpu.core_type<tc>, window_params = [{transform_indices = @transform_0, window_bounds = array<i64: 16, 96>}, {transform_indices = @transform_1, window_bounds = array<i64: 96, 128>}, {transform_indices = @transform_2, window_bounds = array<i64: 1, 128>}, {transform_indices = @transform_3, window_bounds = array<i64: 16, 128>}]} {
    %c0_i32 = arith.constant 0 : i32
    %0 = arith.cmpi eq, %arg2, %c0_i32 : i32
    %1 = arith.extui %0 : i1 to i32
    %c0_i32_0 = arith.constant 0 : i32
    %2 = arith.cmpi ne, %1, %c0_i32_0 : i32
    scf.if %2 {
      %cst_10 = arith.constant 0.000000e+00 : f32
      %12 = vector.broadcast %cst_10 : f32 to vector<16x128xf32>
      %c0_11 = arith.constant 0 : index
      %c0_12 = arith.constant 0 : index
      %13 = vector.load %arg7[%c0_11, %c0_12] : memref<16x128xf32, #tpu.memory_space<vmem>>, vector<16x128xf32>
      tpu.vector_store %arg7[%c0_11, %c0_12], %12 {strides = array<i32>} : memref<16x128xf32, #tpu.memory_space<vmem>>, vector<16x128xf32>,
    } else {
    }
    %c0 = arith.constant 0 : index
    %c0_1 = arith.constant 0 : index
    %3 = vector.load %arg7[%c0, %c0_1] : memref<16x128xf32, #tpu.memory_space<vmem>>, vector<16x128xf32>
    %c0_2 = arith.constant 0 : index
    %c0_3 = arith.constant 0 : index
    %4 = vector.load %arg3[%c0_2, %c0_3] : memref<16x96xbf16, #tpu.memory_space<vmem>>, vector<16x96xbf16>
    %c0_4 = arith.constant 0 : index
    %c0_5 = arith.constant 0 : index
    %5 = vector.load %arg4[%c0_4, %c0_5] : memref<96x128xbf16, #tpu.memory_space<vmem>>, vector<96x128xbf16>
    %cst = arith.constant dense<0.000000e+00> : vector<16x128xf32>
    %6 = tpu.matmul %4, %5, %cst {dimension_numbers = #tpu.dot_dimension_numbers<[1], [0], [0], [1], [0, 0, 1, 1], [], []>} : vector<16x96xbf16>, vector<96x128xbf16>, vector<16x128xf32> -> vector<16x128xf32>
    %7 = arith.addf %3, %6 : vector<16x128xf32>
    %c0_6 = arith.constant 0 : index
    %c0_7 = arith.constant 0 : index
    %8 = vector.load %arg7[%c0_6, %c0_7] : memref<16x128xf32, #tpu.memory_space<vmem>>, vector<16x128xf32>
    tpu.vector_store %arg7[%c0_6, %c0_7], %7 {strides = array<i32>} : memref<16x128xf32, #tpu.memory_space<vmem>>, vector<16x128xf32>,
    %c0_i32_8 = arith.constant 0 : i32
    %9 = arith.cmpi eq, %arg2, %c0_i32_8 : i32
    %10 = arith.extui %9 : i1 to i32
    %c0_i32_9 = arith.constant 0 : i32
    %11 = arith.cmpi ne, %10, %c0_i32_9 : i32
    scf.if %11 {
      %c0_10 = arith.constant 0 : index
      %c0_11 = arith.constant 0 : index
      %12 = vector.load %arg7[%c0_10, %c0_11] : memref<16x128xf32, #tpu.memory_space<vmem>>, vector<16x128xf32>
      %c0_12 = arith.constant 0 : index
      %c0_13 = arith.constant 0 : index
      %13 = vector.load %arg5[%c0_12, %c0_13] : memref<1x128xf32, #tpu.memory_space<vmem>>, vector<1x128xf32>
      %14 = vector.broadcast %13 : vector<1x128xf32> to vector<16x128xf32>
      %15 = arith.addf %12, %14 : vector<16x128xf32>
      %cst_14 = arith.constant 5.000000e-01 : f32
      %16 = vector.broadcast %cst_14 : f32 to vector<16x128xf32>
      %17 = arith.mulf %16, %15 : vector<16x128xf32>
      %cst_15 = arith.constant 4.471500e-02 : f32
      %18 = vector.broadcast %cst_15 : f32 to vector<16x128xf32>
      %19 = arith.mulf %18, %15 : vector<16x128xf32>
      %20 = arith.mulf %19, %15 : vector<16x128xf32>
      %21 = arith.mulf %20, %15 : vector<16x128xf32>
      %22 = arith.addf %15, %21 : vector<16x128xf32>
      %cst_16 = arith.constant 0.797884583 : f32
      %23 = vector.broadcast %cst_16 : f32 to vector<16x128xf32>
      %24 = arith.mulf %23, %22 : vector<16x128xf32>
      %25 = math.tanh %24 : vector<16x128xf32>
      %cst_17 = arith.constant 1.000000e+00 : f32
      %26 = vector.broadcast %cst_17 : f32 to vector<16x128xf32>
      %27 = arith.addf %26, %25 : vector<16x128xf32>
      %28 = arith.mulf %17, %27 : vector<16x128xf32>
      %29 = arith.truncf %28 : vector<16x128xf32> to vector<16x128xbf16>
      %c0_18 = arith.constant 0 : index
      %c0_19 = arith.constant 0 : index
      %30 = vector.load %arg6[%c0_18, %c0_19] : memref<16x128xbf16, #tpu.memory_space<vmem>>, vector<16x128xbf16>
      tpu.vector_store %arg6[%c0_18, %c0_19], %29 {strides = array<i32>} : memref<16x128xbf16, #tpu.memory_space<vmem>>, vector<16x128xbf16>,
    } else {
    }
    return
  }
  func.func @transform_0(%arg0: i32, %arg1: i32, %arg2: i32) -> (i32, i32) {
    %c0_i32 = arith.constant 0 : i32
    return %arg0, %arg2 : i32, i32
  }
  func.func @transform_1(%arg0: i32, %arg1: i32, %arg2: i32) -> (i32, i32) {
    %c0_i32 = arith.constant 0 : i32
    return %arg2, %arg1 : i32, i32
  }
  func.func @transform_2(%arg0: i32, %arg1: i32, %arg2: i32) -> (i32, i32) {
    %c0_i32 = arith.constant 0 : i32
    %c0_i32_0 = arith.constant 0 : i32
    return %c0_i32, %arg1 : i32, i32
  }
  func.func @transform_3(%arg0: i32, %arg1: i32, %arg2: i32) -> (i32, i32) {
    %c0_i32 = arith.constant 0 : i32
    return %arg0, %arg1 : i32, i32
  }
}

module attributes {stable_mosaic.version = 11 : i64} {
  func.func @matmul_kernel(%arg0: i32, %arg1: i32, %arg2: i32, %arg3: memref<16x128xbf16, #tpu.memory_space<vmem>>, %arg4: memref<128x96xbf16, #tpu.memory_space<vmem>>, %arg5: memref<1x96xf32, #tpu.memory_space<vmem>>, %arg6: memref<16x96xbf16, #tpu.memory_space<vmem>>, %arg7: memref<1x96xf32, #tpu.memory_space<vmem>>, %arg8: memref<1x96xf32, #tpu.memory_space<vmem>>, %arg9: memref<16x96xbf16, #tpu.memory_space<vmem>>, %arg10: memref<16x96xf32, #tpu.memory_space<vmem>>) attributes {dimension_semantics = [#tpu.dimension_semantics<parallel>, #tpu.dimension_semantics<parallel>, #tpu.dimension_semantics<arbitrary>], iteration_bounds = array<i64: 1, 1, 3>, scalar_prefetch = 0 : i64, scratch_operands = 1 : i64, tpu.core_type = #tpu.core_type<tc>, window_params = [{transform_indices = @transform_0, window_bounds = array<i64: 16, 128>}, {transform_indices = @transform_1, window_bounds = array<i64: 128, 96>}, {transform_indices = @transform_2, window_bounds = array<i64: 1, 96>}, {transform_indices = @transform_3, window_bounds = array<i64: 16, 96>}, {transform_indices = @transform_4, window_bounds = array<i64: 1, 96>}, {transform_indices = @transform_5, window_bounds = array<i64: 1, 96>}, {transform_indices = @transform_6, window_bounds = array<i64: 16, 96>}]} {
    %c0_i32 = arith.constant 0 : i32
    %0 = arith.cmpi eq, %arg2, %c0_i32 : i32
    %1 = arith.extui %0 : i1 to i32
    %c0_i32_0 = arith.constant 0 : i32
    %2 = arith.cmpi ne, %1, %c0_i32_0 : i32
    scf.if %2 {
      %cst_9 = arith.constant 0.000000e+00 : f32
      %12 = vector.broadcast %cst_9 : f32 to vector<16x96xf32>
      %c0_10 = arith.constant 0 : index
      %c0_11 = arith.constant 0 : index
      %13 = vector.load %arg10[%c0_10, %c0_11] : memref<16x96xf32, #tpu.memory_space<vmem>>, vector<16x96xf32>
      tpu.vector_store %arg10[%c0_10, %c0_11], %12 {strides = array<i32>} : memref<16x96xf32, #tpu.memory_space<vmem>>, vector<16x96xf32>,
    } else {
    }
    %c0 = arith.constant 0 : index
    %c0_1 = arith.constant 0 : index
    %3 = vector.load %arg10[%c0, %c0_1] : memref<16x96xf32, #tpu.memory_space<vmem>>, vector<16x96xf32>
    %c0_2 = arith.constant 0 : index
    %c0_3 = arith.constant 0 : index
    %4 = vector.load %arg3[%c0_2, %c0_3] : memref<16x128xbf16, #tpu.memory_space<vmem>>, vector<16x128xbf16>
    %c0_4 = arith.constant 0 : index
    %c0_5 = arith.constant 0 : index
    %5 = vector.load %arg4[%c0_4, %c0_5] : memref<128x96xbf16, #tpu.memory_space<vmem>>, vector<128x96xbf16>
    %cst = arith.constant dense<0.000000e+00> : vector<16x96xf32>
    %6 = tpu.matmul %4, %5, %cst {dimension_numbers = #tpu.dot_dimension_numbers<[1], [0], [0], [1], [0, 0, 1, 1], [], []>} : vector<16x128xbf16>, vector<128x96xbf16>, vector<16x96xf32> -> vector<16x96xf32>
    %7 = arith.addf %3, %6 : vector<16x96xf32>
    %c0_6 = arith.constant 0 : index
    %c0_7 = arith.constant 0 : index
    %8 = vector.load %arg10[%c0_6, %c0_7] : memref<16x96xf32, #tpu.memory_space<vmem>>, vector<16x96xf32>
    tpu.vector_store %arg10[%c0_6, %c0_7], %7 {strides = array<i32>} : memref<16x96xf32, #tpu.memory_space<vmem>>, vector<16x96xf32>,
    %c2_i32 = arith.constant 2 : i32
    %9 = arith.cmpi eq, %arg2, %c2_i32 : i32
    %10 = arith.extui %9 : i1 to i32
    %c0_i32_8 = arith.constant 0 : i32
    %11 = arith.cmpi ne, %10, %c0_i32_8 : i32
    scf.if %11 {
      %c0_9 = arith.constant 0 : index
      %c0_10 = arith.constant 0 : index
      %12 = vector.load %arg10[%c0_9, %c0_10] : memref<16x96xf32, #tpu.memory_space<vmem>>, vector<16x96xf32>
      %c0_11 = arith.constant 0 : index
      %c0_12 = arith.constant 0 : index
      %13 = vector.load %arg5[%c0_11, %c0_12] : memref<1x96xf32, #tpu.memory_space<vmem>>, vector<1x96xf32>
      %14 = vector.broadcast %13 : vector<1x96xf32> to vector<16x96xf32>
      %15 = arith.addf %12, %14 : vector<16x96xf32>
      %c0_13 = arith.constant 0 : index
      %c0_14 = arith.constant 0 : index
      %16 = vector.load %arg6[%c0_13, %c0_14] : memref<16x96xbf16, #tpu.memory_space<vmem>>, vector<16x96xbf16>
      %17 = arith.extf %16 : vector<16x96xbf16> to vector<16x96xf32>
      %18 = arith.addf %17, %15 : vector<16x96xf32>
      %cst_15 = arith.constant dense<0.000000e+00> : vector<16xf32>
      %19 = vector.multi_reduction <add>, %18, %cst_15 [1] : vector<16x96xf32> to vector<16xf32>
      %20 = vector.shape_cast %19 : vector<16xf32> to vector<16x1xf32>
      %cst_16 = arith.constant 9.600000e+01 : f32
      %21 = vector.broadcast %cst_16 : f32 to vector<16x1xf32>
      %22 = arith.divf %20, %21 : vector<16x1xf32>
      %23 = vector.broadcast %22 : vector<16x1xf32> to vector<16x96xf32>
      %24 = arith.subf %18, %23 : vector<16x96xf32>
      %25 = arith.mulf %24, %24 : vector<16x96xf32>
      %cst_17 = arith.constant dense<0.000000e+00> : vector<16xf32>
      %26 = vector.multi_reduction <add>, %25, %cst_17 [1] : vector<16x96xf32> to vector<16xf32>
      %27 = vector.shape_cast %26 : vector<16xf32> to vector<16x1xf32>
      %cst_18 = arith.constant 9.600000e+01 : f32
      %28 = vector.broadcast %cst_18 : f32 to vector<16x1xf32>
      %29 = arith.divf %27, %28 : vector<16x1xf32>
      %c0_19 = arith.constant 0 : index
      %c0_20 = arith.constant 0 : index
      %30 = vector.load %arg7[%c0_19, %c0_20] : memref<1x96xf32, #tpu.memory_space<vmem>>, vector<1x96xf32>
      %cst_21 = arith.constant 9.99999974E-6 : f32
      %31 = vector.broadcast %cst_21 : f32 to vector<16x1xf32>
      %32 = arith.addf %29, %31 : vector<16x1xf32>
      %33 = math.rsqrt %32 : vector<16x1xf32>
      %34 = vector.broadcast %33 : vector<16x1xf32> to vector<16x96xf32>
      %35 = arith.mulf %24, %34 : vector<16x96xf32>
      %36 = vector.broadcast %30 : vector<1x96xf32> to vector<16x96xf32>
      %37 = arith.mulf %36, %35 : vector<16x96xf32>
      %c0_22 = arith.constant 0 : index
      %c0_23 = arith.constant 0 : index
      %38 = vector.load %arg8[%c0_22, %c0_23] : memref<1x96xf32, #tpu.memory_space<vmem>>, vector<1x96xf32>
      %39 = vector.broadcast %38 : vector<1x96xf32> to vector<16x96xf32>
      %40 = arith.addf %37, %39 : vector<16x96xf32>
      %41 = arith.truncf %40 : vector<16x96xf32> to vector<16x96xbf16>
      %c0_24 = arith.constant 0 : index
      %c0_25 = arith.constant 0 : index
      %42 = vector.load %arg9[%c0_24, %c0_25] : memref<16x96xbf16, #tpu.memory_space<vmem>>, vector<16x96xbf16>
      tpu.vector_store %arg9[%c0_24, %c0_25], %41 {strides = array<i32>} : memref<16x96xbf16, #tpu.memory_space<vmem>>, vector<16x96xbf16>,
    } else {
    }
    return
  }
  func.func @transform_0(%arg0: i32, %arg1: i32, %arg2: i32) -> (i32, i32) {
    %c0_i32 = arith.constant 0 : i32
    return %arg0, %arg2 : i32, i32
  }
  func.func @transform_1(%arg0: i32, %arg1: i32, %arg2: i32) -> (i32, i32) {
    %c0_i32 = arith.constant 0 : i32
    return %arg2, %arg1 : i32, i32
  }
  func.func @transform_2(%arg0: i32, %arg1: i32, %arg2: i32) -> (i32, i32) {
    %c0_i32 = arith.constant 0 : i32
    %c0_i32_0 = arith.constant 0 : i32
    return %c0_i32, %arg1 : i32, i32
  }
  func.func @transform_3(%arg0: i32, %arg1: i32, %arg2: i32) -> (i32, i32) {
    %c0_i32 = arith.constant 0 : i32
    return %arg0, %arg1 : i32, i32
  }
  func.func @transform_4(%arg0: i32, %arg1: i32, %arg2: i32) -> (i32, i32) {
    %c0_i32 = arith.constant 0 : i32
    %c0_i32_0 = arith.constant 0 : i32
    return %c0_i32, %arg1 : i32, i32
  }
  func.func @transform_5(%arg0: i32, %arg1: i32, %arg2: i32) -> (i32, i32) {
    %c0_i32 = arith.constant 0 : i32
    %c0_i32_0 = arith.constant 0 : i32
    return %c0_i32, %arg1 : i32, i32
  }
  func.func @transform_6(%arg0: i32, %arg1: i32, %arg2: i32) -> (i32, i32) {
    %c0_i32 = arith.constant 0 : i32
    return %arg0, %arg1 : i32, i32
  }
}

module attributes {stable_mosaic.version = 11 : i64} {
  func.func @matmul_kernel(%arg0: i32, %arg1: i32, %arg2: i32, %arg3: memref<16x96xbf16, #tpu.memory_space<vmem>>, %arg4: memref<96x64xbf16, #tpu.memory_space<vmem>>, %arg5: memref<1x64xf32, #tpu.memory_space<vmem>>, %arg6: memref<16x64xbf16, #tpu.memory_space<vmem>>, %arg7: memref<16x64xf32, #tpu.memory_space<vmem>>) attributes {dimension_semantics = [#tpu.dimension_semantics<parallel>, #tpu.dimension_semantics<parallel>, #tpu.dimension_semantics<arbitrary>], iteration_bounds = array<i64: 1, 1, 1>, scalar_prefetch = 0 : i64, scratch_operands = 1 : i64, tpu.core_type = #tpu.core_type<tc>, window_params = [{transform_indices = @transform_0, window_bounds = array<i64: 16, 96>}, {transform_indices = @transform_1, window_bounds = array<i64: 96, 64>}, {transform_indices = @transform_2, window_bounds = array<i64: 1, 64>}, {transform_indices = @transform_3, window_bounds = array<i64: 16, 64>}]} {
    %c0_i32 = arith.constant 0 : i32
    %0 = arith.cmpi eq, %arg2, %c0_i32 : i32
    %1 = arith.extui %0 : i1 to i32
    %c0_i32_0 = arith.constant 0 : i32
    %2 = arith.cmpi ne, %1, %c0_i32_0 : i32
    scf.if %2 {
      %cst_10 = arith.constant 0.000000e+00 : f32
      %12 = vector.broadcast %cst_10 : f32 to vector<16x64xf32>
      %c0_11 = arith.constant 0 : index
      %c0_12 = arith.constant 0 : index
      %13 = vector.load %arg7[%c0_11, %c0_12] : memref<16x64xf32, #tpu.memory_space<vmem>>, vector<16x64xf32>
      tpu.vector_store %arg7[%c0_11, %c0_12], %12 {strides = array<i32>} : memref<16x64xf32, #tpu.memory_space<vmem>>, vector<16x64xf32>,
    } else {
    }
    %c0 = arith.constant 0 : index
    %c0_1 = arith.constant 0 : index
    %3 = vector.load %arg7[%c0, %c0_1] : memref<16x64xf32, #tpu.memory_space<vmem>>, vector<16x64xf32>
    %c0_2 = arith.constant 0 : index
    %c0_3 = arith.constant 0 : index
    %4 = vector.load %arg3[%c0_2, %c0_3] : memref<16x96xbf16, #tpu.memory_space<vmem>>, vector<16x96xbf16>
    %c0_4 = arith.constant 0 : index
    %c0_5 = arith.constant 0 : index
    %5 = vector.load %arg4[%c0_4, %c0_5] : memref<96x64xbf16, #tpu.memory_space<vmem>>, vector<96x64xbf16>
    %cst = arith.constant dense<0.000000e+00> : vector<16x64xf32>
    %6 = tpu.matmul %4, %5, %cst {dimension_numbers = #tpu.dot_dimension_numbers<[1], [0], [0], [1], [0, 0, 1, 1], [], []>} : vector<16x96xbf16>, vector<96x64xbf16>, vector<16x64xf32> -> vector<16x64xf32>
    %7 = arith.addf %3, %6 : vector<16x64xf32>
    %c0_6 = arith.constant 0 : index
    %c0_7 = arith.constant 0 : index
    %8 = vector.load %arg7[%c0_6, %c0_7] : memref<16x64xf32, #tpu.memory_space<vmem>>, vector<16x64xf32>
    tpu.vector_store %arg7[%c0_6, %c0_7], %7 {strides = array<i32>} : memref<16x64xf32, #tpu.memory_space<vmem>>, vector<16x64xf32>,
    %c0_i32_8 = arith.constant 0 : i32
    %9 = arith.cmpi eq, %arg2, %c0_i32_8 : i32
    %10 = arith.extui %9 : i1 to i32
    %c0_i32_9 = arith.constant 0 : i32
    %11 = arith.cmpi ne, %10, %c0_i32_9 : i32
    scf.if %11 {
      %c0_10 = arith.constant 0 : index
      %c0_11 = arith.constant 0 : index
      %12 = vector.load %arg7[%c0_10, %c0_11] : memref<16x64xf32, #tpu.memory_space<vmem>>, vector<16x64xf32>
      %c0_12 = arith.constant 0 : index
      %c0_13 = arith.constant 0 : index
      %13 = vector.load %arg5[%c0_12, %c0_13] : memref<1x64xf32, #tpu.memory_space<vmem>>, vector<1x64xf32>
      %14 = vector.broadcast %13 : vector<1x64xf32> to vector<16x64xf32>
      %15 = arith.addf %12, %14 : vector<16x64xf32>
      %16 = arith.truncf %15 : vector<16x64xf32> to vector<16x64xbf16>
      %c0_14 = arith.constant 0 : index
      %c0_15 = arith.constant 0 : index
      %17 = vector.load %arg6[%c0_14, %c0_15] : memref<16x64xbf16, #tpu.memory_space<vmem>>, vector<16x64xbf16>
      tpu.vector_store %arg6[%c0_14, %c0_15], %16 {strides = array<i32>} : memref<16x64xbf16, #tpu.memory_space<vmem>>, vector<16x64xbf16>,
    } else {
    }
    return
  }
  func.func @transform_0(%arg0: i32, %arg1: i32, %arg2: i32) -> (i32, i32) {
    %c0_i32 = arith.constant 0 : i32
    return %arg0, %arg2 : i32, i32
  }
  func.func @transform_1(%arg0: i32, %arg1: i32, %arg2: i32) -> (i32, i32) {
    %c0_i32 = arith.constant 0 : i32
    return %arg2, %arg1 : i32, i32
  }
  func.func @transform_2(%arg0: i32, %arg1: i32, %arg2: i32) -> (i32, i32) {
    %c0_i32 = arith.constant 0 : i32
    %c0_i32_0 = arith.constant 0 : i32
    return %c0_i32, %arg1 : i32, i32
  }
  func.func @transform_3(%arg0: i32, %arg1: i32, %arg2: i32) -> (i32, i32) {
    %c0_i32 = arith.constant 0 : i32
    return %arg0, %arg1 : i32, i32
  }
}

module attributes {stable_mosaic.version = 11 : i64} {
  func.func @matmul_kernel(%arg0: i32, %arg1: i32, %arg2: i32, %arg3: memref<16x32xbf16, #tpu.memory_space<vmem>>, %arg4: memref<32x10xbf16, #tpu.memory_space<vmem>>, %arg5: memref<16x10xf32, #tpu.memory_space<vmem>>, %arg6: memref<16x10xf32, #tpu.memory_space<vmem>>) attributes {dimension_semantics = [#tpu.dimension_semantics<parallel>, #tpu.dimension_semantics<parallel>, #tpu.dimension_semantics<arbitrary>], iteration_bounds = array<i64: 1, 1, 1>, scalar_prefetch = 0 : i64, scratch_operands = 1 : i64, tpu.core_type = #tpu.core_type<tc>, window_params = [{transform_indices = @transform_0, window_bounds = array<i64: 16, 32>}, {transform_indices = @transform_1, window_bounds = array<i64: 32, 10>}, {transform_indices = @transform_2, window_bounds = array<i64: 16, 10>}]} {
    %c0_i32 = arith.constant 0 : i32
    %0 = arith.cmpi eq, %arg2, %c0_i32 : i32
    %1 = arith.extui %0 : i1 to i32
    %c0_i32_0 = arith.constant 0 : i32
    %2 = arith.cmpi ne, %1, %c0_i32_0 : i32
    scf.if %2 {
      %cst_10 = arith.constant 0.000000e+00 : f32
      %12 = vector.broadcast %cst_10 : f32 to vector<16x10xf32>
      %c0_11 = arith.constant 0 : index
      %c0_12 = arith.constant 0 : index
      %13 = vector.load %arg6[%c0_11, %c0_12] : memref<16x10xf32, #tpu.memory_space<vmem>>, vector<16x10xf32>
      tpu.vector_store %arg6[%c0_11, %c0_12], %12 {strides = array<i32>} : memref<16x10xf32, #tpu.memory_space<vmem>>, vector<16x10xf32>,
    } else {
    }
    %c0 = arith.constant 0 : index
    %c0_1 = arith.constant 0 : index
    %3 = vector.load %arg6[%c0, %c0_1] : memref<16x10xf32, #tpu.memory_space<vmem>>, vector<16x10xf32>
    %c0_2 = arith.constant 0 : index
    %c0_3 = arith.constant 0 : index
    %4 = vector.load %arg3[%c0_2, %c0_3] : memref<16x32xbf16, #tpu.memory_space<vmem>>, vector<16x32xbf16>
    %c0_4 = arith.constant 0 : index
    %c0_5 = arith.constant 0 : index
    %5 = vector.load %arg4[%c0_4, %c0_5] : memref<32x10xbf16, #tpu.memory_space<vmem>>, vector<32x10xbf16>
    %cst = arith.constant dense<0.000000e+00> : vector<16x10xf32>
    %6 = tpu.matmul %4, %5, %cst {dimension_numbers = #tpu.dot_dimension_numbers<[1], [0], [0], [1], [0, 0, 1, 1], [], []>} : vector<16x32xbf16>, vector<32x10xbf16>, vector<16x10xf32> -> vector<16x10xf32>
    %7 = arith.addf %3, %6 : vector<16x10xf32>
    %c0_6 = arith.constant 0 : index
    %c0_7 = arith.constant 0 : index
    %8 = vector.load %arg6[%c0_6, %c0_7] : memref<16x10xf32, #tpu.memory_space<vmem>>, vector<16x10xf32>
    tpu.vector_store %arg6[%c0_6, %c0_7], %7 {strides = array<i32>} : memref<16x10xf32, #tpu.memory_space<vmem>>, vector<16x10xf32>,
    %c0_i32_8 = arith.constant 0 : i32
    %9 = arith.cmpi eq, %arg2, %c0_i32_8 : i32
    %10 = arith.extui %9 : i1 to i32
    %c0_i32_9 = arith.constant 0 : i32
    %11 = arith.cmpi ne, %10, %c0_i32_9 : i32
    scf.if %11 {
      %c0_10 = arith.constant 0 : index
      %c0_11 = arith.constant 0 : index
      %12 = vector.load %arg6[%c0_10, %c0_11] : memref<16x10xf32, #tpu.memory_space<vmem>>, vector<16x10xf32>
      %c0_12 = arith.constant 0 : index
      %c0_13 = arith.constant 0 : index
      %13 = vector.load %arg5[%c0_12, %c0_13] : memref<16x10xf32, #tpu.memory_space<vmem>>, vector<16x10xf32>
      tpu.vector_store %arg5[%c0_12, %c0_13], %12 {strides = array<i32>} : memref<16x10xf32, #tpu.memory_space<vmem>>, vector<16x10xf32>,
    } else {
    }
    return
  }
  func.func @transform_0(%arg0: i32, %arg1: i32, %arg2: i32) -> (i32, i32) {
    %c0_i32 = arith.constant 0 : i32
    return %arg0, %arg2 : i32, i32
  }
  func.func @transform_1(%arg0: i32, %arg1: i32, %arg2: i32) -> (i32, i32) {
    %c0_i32 = arith.constant 0 : i32
    return %arg2, %arg1 : i32, i32
  }
  func.func @transform_2(%arg0: i32, %arg1: i32, %arg2: i32) -> (i32, i32) {
    %c0_i32 = arith.constant 0 : i32
    return %arg0, %arg1 : i32, i32
  }
}

</mosaic_0001>

<llo_original>
// kernel: lm_model_forward.25
$region0: #{lm_model_forward.25}
  #allocation0 [shape = 'u32[]', space=smem, size = 0x4, offset = 0x4, fixed_abs, tag = 'smem constant byte address 0x4 - core index']
  #allocation1 [shape = 'u32[72,128]{1,0:T(1,128)}', space=vmem, size = 0x9000, scoped, tag = 'internal scratch']
  #allocation2 [shape = 'f32[16,96]{1,0:T(8,128)}', space=vmem, size = 0x2000, scoped, tag = 'scratch operand']
  %s0 = inlined_call_operand.vmem [shape: bf16[16,32], index: 0, kind: input, shape index: {}]
  %s1 = inlined_call_operand.vmem [shape: bf16[32,96], index: 1, kind: input, shape index: {}]
  %s2 = inlined_call_operand.vmem [shape: f32[1,96], index: 2, kind: input, shape index: {}]
  %s3 = inlined_call_operand.vmem [shape: bf16[16,96], index: 3, kind: output, shape index: {}]
  %s4 = sld [smem:[#allocation0]]
  $region30: #{lm_model_forward.25} parent=0
    _
  %s6 = ssub.s32 1, %s4
  %s7 = scalar_select 0, %s6, %s4
  // Predicated region
  $region2: #{lm_model_forward.25} parent=0 // pred_check
    _
  $region3: #{lm_model_forward.25} parent=0 // pred_check_branch
    %9 = sbr.rel (0) target = $region5
  $region4: #{lm_model_forward.25} parent=0 // pred_region
    _
  $region5: #{lm_model_forward.25} parent=0 // pred_fallthru
    _
  // Predicated region
  $region6: #{lm_model_forward.25} parent=0 // pred_check
    _
  $region7: #{lm_model_forward.25} parent=0 // pred_check_branch
    %11 = sbr.rel (0) target = $region9
  $region8: #{lm_model_forward.25} parent=0 // pred_region
    _
  $region9: #{lm_model_forward.25} parent=0 // pred_fallthru
    _
  // Predicated region
  $region10: #{lm_model_forward.25} parent=0 // pred_check
    _
  $region11: #{lm_model_forward.25} parent=0 // pred_check_branch
    %13 = sbr.rel (0) target = $region13
  $region12: #{lm_model_forward.25} parent=0 // pred_region
    _
  $region13: #{lm_model_forward.25} parent=0 // pred_fallthru
    _
  %p15 = scmp.eq.s32.totalorder 0, 0
  // Predicated region
  $region14: #{lm_model_forward.25} parent=0 // pred_check
    %p16 = pneg %p15
  $region15: #{lm_model_forward.25} parent=0 // pred_check_branch
    %18 = sbr.rel (%p16) target = $region17
  $region16: #{lm_model_forward.25} parent=0 // pred_region
    %vm19 = vcmask 785408
    %20 = vst.msk [vmem:[#allocation2] sm:$0xff] %vm19, 0.0
    %21 = vst.msk [vmem:[#allocation2 + $0x8] sm:$0xff] %vm19, 0.0
  $region17: #{lm_model_forward.25} parent=0 // pred_fallthru
    _
  %v22 = vld [vmem:[#allocation2] sm:$0xff]
  %v23 = vld [vmem:[#allocation2 + $0x8] sm:$0xff]
  %v24 = vld [vmem:[%s0] sm:$0xf]
  %v25 = vld [vmem:[%s0 + $0x4] sm:$0xf]
  %v26 = vld [vmem:[%s1] sm:$0xf]
  %v27 = vld [vmem:[%s1 + $0x4] sm:$0xf]
  %v28 = vld [vmem:[%s1 + $0x8] sm:$0xf]
  %v29 = vld [vmem:[%s1 + $0xc] sm:$0xf]
  %v32 = vunpack.c.l.b16 %v24
  %v33 = vunpack.c.l.b16 %v25
  %v34 = vpack.c.b16 %v33, %v32
  %v39 = vunpack.c.l.b16 %v26
  %v40 = vunpack.c.l.b16 %v27
  %v41 = vunpack.c.l.b16 %v28
  %v42 = vunpack.c.l.b16 %v29
  %v43 = vpack.c.b16 %v40, %v39
  %v44 = vpack.c.b16 %v42, %v41
  %vm47 = vcmask 261120
  %v49 = vsel %vm47, %v34, 0
  %51 = vmatpush.bf16.msra.mxu0 0
  %52 = vmatpush.bf16.msra.mxu0 0
  %53 = vmatpush.bf16.msra.mxu0 0
  %54 = vmatpush.bf16.msra.mxu0 0
  %55 = vmatpush.bf16.msra.mxu0 0
  %56 = vmatpush.bf16.msra.mxu0 0
  %57 = vmatpush.bf16.msra.mxu0 %v44
  %58 = vmatpush.bf16.msra.mxu0 %v43
  %59 = vmatmul.bf16.gmra.mxu0 %v49
  %v60 = vpop.f32.mrf.mxu0
  %v61 = vadd.f32 0.0, %v60
  %v62 = vpop.f32.mrf.mxu0
  %v63 = vadd.f32 0.0, %v62
  %64 = vdwg.mxu0
  %v65 = vadd.f32 %v22, %v61
  %v66 = vadd.f32 %v23, %v63
  %vm67 = vcmask 785408
  %68 = vst.msk [vmem:[#allocation2] sm:$0xff] %vm67, %v65
  %69 = vst.msk [vmem:[#allocation2 + $0x8] sm:$0xff] %vm67, %v66
  // Predicated region
  $region18: #{lm_model_forward.25} parent=0 // pred_check
    %p70 = pneg %p15
  $region19: #{lm_model_forward.25} parent=0 // pred_check_branch
    %72 = sbr.rel (%p70) target = $region21
  $region20: #{lm_model_forward.25} parent=0 // pred_region
    %v73 = vld [vmem:[#allocation2] sm:$0xff]
    %v74 = vld [vmem:[#allocation2 + $0x8] sm:$0xff]
    %v75 = vld [vmem:[%s2] sm:$0x1]
    %v77 = vperm.slane %v75, 0
    %v79 = vadd.f32 %v73, %v77
    %v80 = vadd.f32 %v74, %v77
    %v81 = vpack.c.bf16 %v79, %v79
    %v82 = vpack.c.bf16 %v80, %v80
    %vm83 = vcmask 781312
    %84 = vst.msk [vmem:[%s3] sm:$0xf] %vm83, %v81
    %85 = vst.msk [vmem:[%s3 + $0x4] sm:$0xf] %vm83, %v82
  $region21: #{lm_model_forward.25} parent=0 // pred_fallthru
    _
  // Predicated region
  $region22: #{lm_model_forward.25} parent=0 // pred_check
    _
  $region23: #{lm_model_forward.25} parent=0 // pred_check_branch
    %87 = sbr.rel (0) target = $region25
  $region24: #{lm_model_forward.25} parent=0 // pred_region
    _
  $region25: #{lm_model_forward.25} parent=0 // pred_fallthru
    _
  // Predicated region
  $region26: #{lm_model_forward.25} parent=0 // pred_check
    _
  $region27: #{lm_model_forward.25} parent=0 // pred_check_branch
    %89 = sbr.rel (0) target = $region29
  $region28: #{lm_model_forward.25} parent=0 // pred_region
    _
  $region29: #{lm_model_forward.25} parent=0 // pred_fallthru
    _

// kernel: lm_model_forward.26
$region0: #{lm_model_forward.26}
  #allocation0 [shape = 'u32[]', space=smem, size = 0x4, offset = 0x4, fixed_abs, tag = 'smem constant byte address 0x4 - core index']
  #allocation1 [shape = 'u32[72,128]{1,0:T(1,128)}', space=vmem, size = 0x9000, scoped, tag = 'internal scratch']
  %s0 = inlined_call_operand.vmem [shape: bf16[2,8,96], index: 0, kind: input, shape index: {}]
  %s1 = inlined_call_operand.vmem [shape: bf16[2,8,32], index: 1, kind: output, shape index: {}]
  %s2 = sld [smem:[#allocation0]]
  $region37: #{lm_model_forward.26} parent=0
    _
  %s4 = ssub.s32 1, %s2
  %s5 = scalar_select 0, %s4, %s2
  loop: start=0, step=1, limit=4
  $region2: #{lm_model_forward.26} parent=0 // loop_pre_header
    _
  $region3: #{lm_model_forward.26} parent=0 // loop_header
    %s7 = sphi 0, %s11
    %p8 = scmp.ge.s32.totalorder %s7, 4
    %s17 = sphi 0, %s19
    %s20 = sphi 0, %s17
    %s21 = sphi 0, %s20
    %s37 = sphi 0, %s21
    %s43 = sphi 0, %s45
    %s46 = sphi 0, %s43
    %s47 = sphi 0, %s46
    %s63 = sphi 0, %s47
  $region4: #{lm_model_forward.26} parent=0 // loop_header_branch
    %10 = sbr.rel (%p8) target = $region8
  $region5: #{lm_model_forward.26} parent=0 // loop_body
    %s12 = ssub.s32 %s7, 1
    %s13 = ssub.s32 %s7, 2
    %s14 = sadd.s32 %s7, 1
    %s15 = ssub.s32 %s7, %s14
    %p16 = scmp.eq.s32.totalorder %s15, 0
    %s18 = sadd.s32 %s17, 1
    %s19 = scalar_select %p16, %s17, %s18
    %p22 = pneg %p16
    %p23 = scmp.eq.s32.totalorder %s7, 1
    %p24 = por %p22, %p23
    %p25 = scmp.ne.s32.totalorder %s17, %s20
    %p26 = scmp.eq.s32.totalorder %s7, 0
    %p27 = por %p25, %p26
    %p28 = scmp.ne.s32.totalorder %s17, %s20
    %p29 = scmp.eq.s32.totalorder %s12, 1
    %p30 = por %p28, %p29
    %p31 = scmp.ne.s32.totalorder %s20, %s21
    %p32 = scmp.eq.s32.totalorder %s12, 0
    %p33 = por %p31, %p32
    %p34 = scmp.ne.s32.totalorder %s20, %s21
    %p35 = scmp.eq.s32.totalorder %s13, 1
    %p36 = por %p34, %p35
    %p38 = scmp.ne.s32.totalorder %s21, %s37
    %p39 = scmp.eq.s32.totalorder %s13, 0
    %p40 = por %p38, %p39
    %s41 = ssub.s32 %s7, %s14
    %p42 = scmp.eq.s32.totalorder %s41, 0
    %s44 = sadd.s32 %s43, 1
    %s45 = scalar_select %p42, %s43, %s44
    %p48 = pneg %p42
    %p49 = scmp.eq.s32.totalorder %s7, 1
    %p50 = por %p48, %p49
    %p51 = scmp.ne.s32.totalorder %s43, %s46
    %p52 = scmp.eq.s32.totalorder %s7, 0
    %p53 = por %p51, %p52
    %p54 = scmp.ne.s32.totalorder %s43, %s46
    %p55 = scmp.eq.s32.totalorder %s12, 1
    %p56 = por %p54, %p55
    %p57 = scmp.ne.s32.totalorder %s46, %s47
    %p58 = scmp.eq.s32.totalorder %s12, 0
    %p59 = por %p57, %p58
    %p60 = scmp.ne.s32.totalorder %s46, %s47
    %p61 = scmp.eq.s32.totalorder %s13, 1
    %p62 = por %p60, %p61
    %p64 = scmp.ne.s32.totalorder %s47, %s63
    %p65 = scmp.eq.s32.totalorder %s13, 0
    %p66 = por %p64, %p65
    %p67 = scmp.le.s32.totalorder 1, %s7
    %p68 = scmp.lt.s32.totalorder %s7, 3
    %p69 = pnand %p67, %p68
    %p70 = pneg %p69
    // Predicated region
    $region9: #{lm_model_forward.26} parent=5 // pred_check
      _
    $region10: #{lm_model_forward.26} parent=5 // pred_check_branch
      %72 = sbr.rel (%p69) target = $region12
    $region11: #{lm_model_forward.26} parent=5 // pred_region
      %s73 = ssub.s32 %s7, 1
    $region12: #{lm_model_forward.26} parent=5 // pred_fallthru
      _
    %p74 = scmp.lt.s32.totalorder %s7, 2
    // Predicated region
    $region13: #{lm_model_forward.26} parent=5 // pred_check
      %p75 = pneg %p74
    $region14: #{lm_model_forward.26} parent=5 // pred_check_branch
      %77 = sbr.rel (%p75) target = $region16
    $region15: #{lm_model_forward.26} parent=5 // pred_region
      // Predicated region
      $region17: #{lm_model_forward.26} parent=15 // pred_check
        %p78 = pneg %p27
      $region18: #{lm_model_forward.26} parent=15 // pred_check_branch
        %80 = sbr.rel (%p78) target = $region20
      $region19: #{lm_model_forward.26} parent=15 // pred_region
        %p81 = scmp.lt.s32.totalorder %s7, 1
        %s82 = scalar_select %p81, %s7, 1
        %s83 = smul.addr %s82, 4
        %s84 = scalar_lea.vmem %s0, %s83
      $region20: #{lm_model_forward.26} parent=15 // pred_fallthru
        _
    $region16: #{lm_model_forward.26} parent=5 // pred_fallthru
      _
    %p85 = scmp.le.s32.totalorder 1, %s7
    %p86 = scmp.lt.s32.totalorder %s7, 3
    %p87 = pnand %p85, %p86
    %p88 = pneg %p87
    // Predicated region
    $region21: #{lm_model_forward.26} parent=5 // pred_check
      _
    $region22: #{lm_model_forward.26} parent=5 // pred_check_branch
      %90 = sbr.rel (%p87) target = $region24
    $region23: #{lm_model_forward.26} parent=5 // pred_region
      %s91 = ssub.s32 %s7, 1
      %p92 = scmp.lt.s32.totalorder %s12, 1
      %s93 = scalar_select %p92, %s12, 1
      %s94 = smul.addr %s93, 4
      %s95 = scalar_lea.vmem %s0, %s94
      %p96 = pneg %p33
      %p97 = pneg %p30
      %p98 = pneg %p59
      %p99 = pneg %p56
      %p100 = scmp.lt.s32.totalorder %s12, 1
      %s101 = scalar_select %p100, %s12, 1
      %s102 = smul.addr %s101, 4
      %s103 = scalar_lea.vmem %s1, %s102
      %p104 = scmp.lt.s32.totalorder %s12, 1
      %s105 = scalar_select %p104, %s12, 1
      %s106 = smul.addr %s105, 4
      %s107 = scalar_lea.vmem %s0, %s106
      %p108 = scmp.lt.s32.totalorder %s12, 1
      %s109 = scalar_select %p108, %s12, 1
      %s110 = smul.addr %s109, 4
      %s111 = scalar_lea.vmem %s1, %s110
      %v113 = vld [vmem:[%s107] sm:$0xf]
      %v114 = vlaneseq
      %v115 = vshrl.u32 %v114, 7
      %v116 = vlaneseq
      %v117 = vand.u32 %v116, 127
      %vm118 = vcmp.le.s32.totalorder %v117, %v115
      %v119 = vunpack.c.l.bf16 %v113
      %v120 = vmul.f32 %v119, 0.17675781
      %v121 = vpack.c.bf16 %v120, %v120
      %v123 = vunpack.c.l.b16 %v113
      %v124 = vpack.c.b16 %v123, %v123
      %125 = vrot.lane.b32.xlu0 %v124, 96
      %v126 = vpop.permute.xlu0 %125
      %vm127 = vcmask 261120
      %v129 = vsel %vm127, %v121, 0
      %v132 = vsel %vm127, %v126, 0
      %134 = vmatpush.bf16.xpose.msra.mxu0 0
      %135 = vmatpush.bf16.xpose.msra.mxu0 0
      %136 = vmatpush.bf16.xpose.msra.mxu0 0
      %137 = vmatpush.bf16.xpose.msra.mxu0 0
      %138 = vmatpush.bf16.xpose.msra.mxu0 0
      %139 = vmatpush.bf16.xpose.msra.mxu0 0
      %140 = vmatpush.bf16.xpose.msra.mxu0 0
      %141 = vmatpush.bf16.xpose.msra.mxu0 %v132
      %142 = vmatmul.bf16.gmra.mxu0 %v129
      %v143 = vpop.f32.mrf.mxu0
      %v144 = vadd.f32 0.0, %v143
      %v145 = vpop.f32.mrf.mxu0
      %146 = vdwg.mxu0
      %v147 = vsel %vm118, %v144, -1e+09
      %vm148 = vcmask 64512
      %v149 = vsel %vm148, %v147, -inf
      %150 = vmax.xlane.f32.xlu0 %v149
      %v151 = vpop.xlane.xlu0 %150
      %v152 = vsub.f32 %v147, %v151
      %v153 = vmul.f32 %v152, 1.442695
      %v154 = vpow.pop %v153
      %v155 = vsel %vm148, %v154, 0.0
      %156 = vadd.xlane.f32.xlu0 %v155
      %v157 = vpop.xlane.xlu0 %156
      %v158 = vrcp.pop %v157
      %v159 = vpack.c.bf16 %v154, %v154
      %160 = vrot.lane.b32.xlu0 %v124, 64
      %v161 = vpop.permute.xlu0 %160
      %v163 = vsel %vm148, %v159, 0
      %vm165 = vcmask 1043456
      %v167 = vsel %vm165, %v161, 0
      %169 = vmatpush.bf16.msra.mxu0 0
      %170 = vmatpush.bf16.msra.mxu0 0
      %171 = vmatpush.bf16.msra.mxu0 0
      %172 = vmatpush.bf16.msra.mxu0 0
      %173 = vmatpush.bf16.msra.mxu0 0
      %174 = vmatpush.bf16.msra.mxu0 0
      %175 = vmatpush.bf16.msra.mxu0 0
      %176 = vmatpush.bf16.msra.mxu0 %v167
      %177 = vmatmul.bf16.gmra.mxu0 %v163
      %v178 = vpop.f32.mrf.mxu0
      %v179 = vadd.f32 0.0, %v178
      %v180 = vpop.f32.mrf.mxu0
      %181 = vdwg.mxu0
      %v182 = vmul.f32 %v179, %v158
      %v183 = vpack.c.bf16 %v182, %v182
      %vm184 = vcmask 257024
      %185 = vst.msk [vmem:[%s111] sm:$0xf] %vm184, %v183
      %p186 = scmp.lt.s32.totalorder %s12, 1
      %s187 = scalar_select %p186, %s12, 1
      %s188 = smul.addr %s187, 4
      %s189 = scalar_lea.vmem %s1, %s188
      // Predicated region
      $region25: #{lm_model_forward.26} parent=23 // pred_check
        %p190 = pneg %p56
      $region26: #{lm_model_forward.26} parent=23 // pred_check_branch
        %192 = sbr.rel (%p190) target = $region28
      $region27: #{lm_model_forward.26} parent=23 // pred_region
        _
      $region28: #{lm_model_forward.26} parent=23 // pred_fallthru
        _
    $region24: #{lm_model_forward.26} parent=5 // pred_fallthru
      _
    %p193 = scmp.le.s32.totalorder 2, %s7
    // Predicated region
    $region29: #{lm_model_forward.26} parent=5 // pred_check
      %p194 = pneg %p193
    $region30: #{lm_model_forward.26} parent=5 // pred_check_branch
      %196 = sbr.rel (%p194) target = $region32
    $region31: #{lm_model_forward.26} parent=5 // pred_region
      %s197 = ssub.s32 %s7, 2
      // Predicated region
      $region33: #{lm_model_forward.26} parent=31 // pred_check
        %p198 = pneg %p62
      $region34: #{lm_model_forward.26} parent=31 // pred_check_branch
        %200 = sbr.rel (%p198) target = $region36
      $region35: #{lm_model_forward.26} parent=31 // pred_region
        %p201 = scmp.lt.s32.totalorder %s13, 1
        %s202 = scalar_select %p201, %s13, 1
        %s203 = smul.addr %s202, 4
        %s204 = scalar_lea.vmem %s1, %s203
      $region36: #{lm_model_forward.26} parent=31 // pred_fallthru
        _
    $region32: #{lm_model_forward.26} parent=5 // pred_fallthru
      _
  $region6: #{lm_model_forward.26} parent=0 // loop_footer
    %s11 = sadd.s32 1, %s7
  $region7: #{lm_model_forward.26} parent=0 // loop_footer_branch
    %6 = sbr.rel target = $region3
  $region8: #{lm_model_forward.26} parent=0 // loop_exit
    _

// kernel: lm_model_forward.28
$region0: #{lm_model_forward.28}
  #allocation0 [shape = 'u32[]', space=smem, size = 0x4, offset = 0x4, fixed_abs, tag = 'smem constant byte address 0x4 - core index']
  #allocation1 [shape = 'u32[72,128]{1,0:T(1,128)}', space=vmem, size = 0x9000, scoped, tag = 'internal scratch']
  #allocation2 [shape = 'f32[16,128]{1,0:T(8,128)}', space=vmem, size = 0x2000, scoped, tag = 'scratch operand']
  %s0 = inlined_call_operand.vmem [shape: bf16[16,32], index: 0, kind: input, shape index: {}]
  %s1 = inlined_call_operand.vmem [shape: bf16[32,128], index: 1, kind: input, shape index: {}]
  %s2 = inlined_call_operand.vmem [shape: f32[1,128], index: 2, kind: input, shape index: {}]
  %s3 = inlined_call_operand.vmem [shape: bf16[16,128], index: 3, kind: output, shape index: {}]
  %s4 = sld [smem:[#allocation0]]
  $region30: #{lm_model_forward.28} parent=0
    _
  %s6 = ssub.s32 1, %s4
  %s7 = scalar_select 0, %s6, %s4
  // Predicated region
  $region2: #{lm_model_forward.28} parent=0 // pred_check
    _
  $region3: #{lm_model_forward.28} parent=0 // pred_check_branch
    %9 = sbr.rel (0) target = $region5
  $region4: #{lm_model_forward.28} parent=0 // pred_region
    _
  $region5: #{lm_model_forward.28} parent=0 // pred_fallthru
    _
  // Predicated region
  $region6: #{lm_model_forward.28} parent=0 // pred_check
    _
  $region7: #{lm_model_forward.28} parent=0 // pred_check_branch
    %11 = sbr.rel (0) target = $region9
  $region8: #{lm_model_forward.28} parent=0 // pred_region
    _
  $region9: #{lm_model_forward.28} parent=0 // pred_fallthru
    _
  // Predicated region
  $region10: #{lm_model_forward.28} parent=0 // pred_check
    _
  $region11: #{lm_model_forward.28} parent=0 // pred_check_branch
    %13 = sbr.rel (0) target = $region13
  $region12: #{lm_model_forward.28} parent=0 // pred_region
    _
  $region13: #{lm_model_forward.28} parent=0 // pred_fallthru
    _
  %p15 = scmp.eq.s32.totalorder 0, 0
  // Predicated region
  $region14: #{lm_model_forward.28} parent=0 // pred_check
    %p16 = pneg %p15
  $region15: #{lm_model_forward.28} parent=0 // pred_check_branch
    %18 = sbr.rel (%p16) target = $region17
  $region16: #{lm_model_forward.28} parent=0 // pred_region
    %19 = vst [vmem:[#allocation2] sm:$0xff] 0.0
    %20 = vst [vmem:[#allocation2 + $0x8] sm:$0xff] 0.0
  $region17: #{lm_model_forward.28} parent=0 // pred_fallthru
    _
  %v21 = vld [vmem:[#allocation2] sm:$0xff]
  %v22 = vld [vmem:[#allocation2 + $0x8] sm:$0xff]
  %v23 = vld [vmem:[%s0] sm:$0xf]
  %v24 = vld [vmem:[%s0 + $0x4] sm:$0xf]
  %v25 = vld [vmem:[%s1] sm:$0xf]
  %v26 = vld [vmem:[%s1 + $0x4] sm:$0xf]
  %v27 = vld [vmem:[%s1 + $0x8] sm:$0xf]
  %v28 = vld [vmem:[%s1 + $0xc] sm:$0xf]
  %v31 = vunpack.c.l.b16 %v23
  %v32 = vunpack.c.l.b16 %v24
  %v33 = vpack.c.b16 %v32, %v31
  %v38 = vunpack.c.l.b16 %v25
  %v39 = vunpack.c.l.b16 %v26
  %v40 = vunpack.c.l.b16 %v27
  %v41 = vunpack.c.l.b16 %v28
  %v42 = vpack.c.b16 %v39, %v38
  %v43 = vpack.c.b16 %v41, %v40
  %vm46 = vcmask 261120
  %v48 = vsel %vm46, %v33, 0
  %50 = vmatpush.bf16.msra.mxu0 0
  %51 = vmatpush.bf16.msra.mxu0 0
  %52 = vmatpush.bf16.msra.mxu0 0
  %53 = vmatpush.bf16.msra.mxu0 0
  %54 = vmatpush.bf16.msra.mxu0 0
  %55 = vmatpush.bf16.msra.mxu0 0
  %56 = vmatpush.bf16.msra.mxu0 %v43
  %57 = vmatpush.bf16.msra.mxu0 %v42
  %58 = vmatmul.bf16.gmra.mxu0 %v48
  %v59 = vpop.f32.mrf.mxu0
  %v60 = vadd.f32 0.0, %v59
  %v61 = vpop.f32.mrf.mxu0
  %v62 = vadd.f32 0.0, %v61
  %63 = vdwg.mxu0
  %v64 = vadd.f32 %v21, %v60
  %v65 = vadd.f32 %v22, %v62
  %66 = vst [vmem:[#allocation2] sm:$0xff] %v64
  %67 = vst [vmem:[#allocation2 + $0x8] sm:$0xff] %v65
  // Predicated region
  $region18: #{lm_model_forward.28} parent=0 // pred_check
    %p68 = pneg %p15
  $region19: #{lm_model_forward.28} parent=0 // pred_check_branch
    %70 = sbr.rel (%p68) target = $region21
  $region20: #{lm_model_forward.28} parent=0 // pred_region
    %v71 = vld [vmem:[#allocation2] sm:$0xff]
    %v72 = vld [vmem:[#allocation2 + $0x8] sm:$0xff]
    %v73 = vld [vmem:[%s2] sm:$0x1]
    %v75 = vperm.slane %v73, 0
    %v77 = vadd.f32 %v71, %v75
    %v78 = vadd.f32 %v72, %v75
    %v79 = vmul.f32 %v77, 0.5
    %v80 = vmul.f32 %v78, 0.5
    %v81 = vmul.f32 %v77, 0.044715
    %v82 = vmul.f32 %v78, 0.044715
    %v83 = vmul.f32 %v81, %v77
    %v84 = vmul.f32 %v82, %v78
    %v85 = vmul.f32 %v83, %v77
    %v86 = vmul.f32 %v84, %v78
    %v87 = vadd.f32 %v77, %v85
    %v88 = vadd.f32 %v78, %v86
    %v89 = vmul.f32 %v87, 0.7978846
    %v90 = vmul.f32 %v88, 0.7978846
    %v91 = vtanh.pop %v89
    %v92 = vtanh.pop %v90
    %v93 = vadd.f32 %v91, 1.0
    %v94 = vadd.f32 %v92, 1.0
    %v95 = vmul.f32 %v79, %v93
    %v96 = vmul.f32 %v80, %v94
    %v97 = vpack.c.bf16 %v95, %v95
    %v98 = vpack.c.bf16 %v96, %v96
    %99 = vst [vmem:[%s3] sm:$0xf] %v97
    %100 = vst [vmem:[%s3 + $0x4] sm:$0xf] %v98
  $region21: #{lm_model_forward.28} parent=0 // pred_fallthru
    _
  // Predicated region
  $region22: #{lm_model_forward.28} parent=0 // pred_check
    _
  $region23: #{lm_model_forward.28} parent=0 // pred_check_branch
    %102 = sbr.rel (0) target = $region25
  $region24: #{lm_model_forward.28} parent=0 // pred_region
    _
  $region25: #{lm_model_forward.28} parent=0 // pred_fallthru
    _
  // Predicated region
  $region26: #{lm_model_forward.28} parent=0 // pred_check
    _
  $region27: #{lm_model_forward.28} parent=0 // pred_check_branch
    %104 = sbr.rel (0) target = $region29
  $region28: #{lm_model_forward.28} parent=0 // pred_region
    _
  $region29: #{lm_model_forward.28} parent=0 // pred_fallthru
    _

// kernel: lm_model_forward.27
$region0: #{lm_model_forward.27}
  #allocation0 [shape = 'u32[]', space=smem, size = 0x4, offset = 0x4, fixed_abs, tag = 'smem constant byte address 0x4 - core index']
  #allocation1 [shape = 'u32[72,128]{1,0:T(1,128)}', space=vmem, size = 0x9000, scoped, tag = 'internal scratch']
  #allocation2 [shape = 'f32[16,32]{1,0:T(8,128)}', space=vmem, size = 0x2000, scoped, tag = 'scratch operand']
  %s0 = inlined_call_operand.vmem [shape: bf16[16,32], index: 0, kind: input, shape index: {}]
  %s1 = inlined_call_operand.vmem [shape: bf16[32,32], index: 1, kind: input, shape index: {}]
  %s2 = inlined_call_operand.vmem [shape: f32[1,32], index: 2, kind: input, shape index: {}]
  %s3 = inlined_call_operand.vmem [shape: bf16[16,32], index: 3, kind: input, shape index: {}]
  %s4 = inlined_call_operand.vmem [shape: f32[1,32], index: 4, kind: input, shape index: {}]
  %s5 = inlined_call_operand.vmem [shape: f32[1,32], index: 5, kind: input, shape index: {}]
  %s6 = inlined_call_operand.vmem [shape: bf16[16,32], index: 6, kind: output, shape index: {}]
  %s7 = sld [smem:[#allocation0]]
  $region42: #{lm_model_forward.27} parent=0
    _
  %s9 = ssub.s32 1, %s7
  %s10 = scalar_select 0, %s9, %s7
  // Predicated region
  $region2: #{lm_model_forward.27} parent=0 // pred_check
    _
  $region3: #{lm_model_forward.27} parent=0 // pred_check_branch
    %12 = sbr.rel (0) target = $region5
  $region4: #{lm_model_forward.27} parent=0 // pred_region
    _
  $region5: #{lm_model_forward.27} parent=0 // pred_fallthru
    _
  // Predicated region
  $region6: #{lm_model_forward.27} parent=0 // pred_check
    _
  $region7: #{lm_model_forward.27} parent=0 // pred_check_branch
    %14 = sbr.rel (0) target = $region9
  $region8: #{lm_model_forward.27} parent=0 // pred_region
    _
  $region9: #{lm_model_forward.27} parent=0 // pred_fallthru
    _
  // Predicated region
  $region10: #{lm_model_forward.27} parent=0 // pred_check
    _
  $region11: #{lm_model_forward.27} parent=0 // pred_check_branch
    %16 = sbr.rel (0) target = $region13
  $region12: #{lm_model_forward.27} parent=0 // pred_region
    _
  $region13: #{lm_model_forward.27} parent=0 // pred_fallthru
    _
  // Predicated region
  $region14: #{lm_model_forward.27} parent=0 // pred_check
    _
  $region15: #{lm_model_forward.27} parent=0 // pred_check_branch
    %18 = sbr.rel (0) target = $region17
  $region16: #{lm_model_forward.27} parent=0 // pred_region
    _
  $region17: #{lm_model_forward.27} parent=0 // pred_fallthru
    _
  // Predicated region
  $region18: #{lm_model_forward.27} parent=0 // pred_check
    _
  $region19: #{lm_model_forward.27} parent=0 // pred_check_branch
    %20 = sbr.rel (0) target = $region21
  $region20: #{lm_model_forward.27} parent=0 // pred_region
    _
  $region21: #{lm_model_forward.27} parent=0 // pred_fallthru
    _
  // Predicated region
  $region22: #{lm_model_forward.27} parent=0 // pred_check
    _
  $region23: #{lm_model_forward.27} parent=0 // pred_check_branch
    %22 = sbr.rel (0) target = $region25
  $region24: #{lm_model_forward.27} parent=0 // pred_region
    _
  $region25: #{lm_model_forward.27} parent=0 // pred_fallthru
    _
  %p24 = scmp.eq.s32.totalorder 0, 0
  // Predicated region
  $region26: #{lm_model_forward.27} parent=0 // pred_check
    %p25 = pneg %p24
  $region27: #{lm_model_forward.27} parent=0 // pred_check_branch
    %27 = sbr.rel (%p25) target = $region29
  $region28: #{lm_model_forward.27} parent=0 // pred_region
    %vm28 = vcmask 261120
    %29 = vst.msk [vmem:[#allocation2] sm:$0xff] %vm28, 0.0
    %30 = vst.msk [vmem:[#allocation2 + $0x8] sm:$0xff] %vm28, 0.0
  $region29: #{lm_model_forward.27} parent=0 // pred_fallthru
    _
  %v31 = vld [vmem:[#allocation2] sm:$0xff]
  %v32 = vld [vmem:[#allocation2 + $0x8] sm:$0xff]
  %v33 = vld [vmem:[%s0] sm:$0xf]
  %v34 = vld [vmem:[%s0 + $0x4] sm:$0xf]
  %v35 = vld [vmem:[%s1] sm:$0xf]
  %v36 = vld [vmem:[%s1 + $0x4] sm:$0xf]
  %v37 = vld [vmem:[%s1 + $0x8] sm:$0xf]
  %v38 = vld [vmem:[%s1 + $0xc] sm:$0xf]
  %v41 = vunpack.c.l.b16 %v33
  %v42 = vunpack.c.l.b16 %v34
  %v43 = vpack.c.b16 %v42, %v41
  %v48 = vunpack.c.l.b16 %v35
  %v49 = vunpack.c.l.b16 %v36
  %v50 = vunpack.c.l.b16 %v37
  %v51 = vunpack.c.l.b16 %v38
  %v52 = vpack.c.b16 %v49, %v48
  %v53 = vpack.c.b16 %v51, %v50
  %vm56 = vcmask 261120
  %v58 = vsel %vm56, %v43, 0
  %60 = vmatpush.bf16.msra.mxu0 0
  %61 = vmatpush.bf16.msra.mxu0 0
  %62 = vmatpush.bf16.msra.mxu0 0
  %63 = vmatpush.bf16.msra.mxu0 0
  %64 = vmatpush.bf16.msra.mxu0 0
  %65 = vmatpush.bf16.msra.mxu0 0
  %66 = vmatpush.bf16.msra.mxu0 %v53
  %67 = vmatpush.bf16.msra.mxu0 %v52
  %68 = vmatmul.bf16.gmra.mxu0 %v58
  %v69 = vpop.f32.mrf.mxu0
  %v70 = vadd.f32 0.0, %v69
  %v71 = vpop.f32.mrf.mxu0
  %v72 = vadd.f32 0.0, %v71
  %73 = vdwg.mxu0
  %v74 = vadd.f32 %v31, %v70
  %v75 = vadd.f32 %v32, %v72
  %76 = vst.msk [vmem:[#allocation2] sm:$0xff] %vm56, %v74
  %77 = vst.msk [vmem:[#allocation2 + $0x8] sm:$0xff] %vm56, %v75
  // Predicated region
  $region30: #{lm_model_forward.27} parent=0 // pred_check
    %p78 = pneg %p24
  $region31: #{lm_model_forward.27} parent=0 // pred_check_branch
    %80 = sbr.rel (%p78) target = $region33
  $region32: #{lm_model_forward.27} parent=0 // pred_region
    %v81 = vld [vmem:[#allocation2] sm:$0xff]
    %v82 = vld [vmem:[#allocation2 + $0x8] sm:$0xff]
    %v83 = vld [vmem:[%s2] sm:$0x1]
    %v85 = vperm.slane %v83, 0
    %v87 = vadd.f32 %v81, %v85
    %v88 = vadd.f32 %v82, %v85
    %v89 = vld [vmem:[%s3] sm:$0xf]
    %v90 = vld [vmem:[%s3 + $0x4] sm:$0xf]
    %v91 = vunpack.c.l.bf16 %v89
    %v92 = vunpack.c.l.bf16 %v90
    %v93 = vadd.f32 %v91, %v87
    %v94 = vadd.f32 %v92, %v88
    %v95 = vsel %vm56, %v93, 0.0
    %96 = vadd.xlane.f32.xlu0 %v95
    %v97 = vpop.xlane.xlu0 %96
    %v98 = vsel %vm56, %v94, 0.0
    %99 = vadd.xlane.f32.xlu0 %v98
    %v100 = vpop.xlane.xlu0 %99
    %v101 = vrcp.pop 32.0
    %v102 = vmul.f32 32.0, %v101
    %v103 = vsub.f32 1.0, %v102
    %v104 = vmul.f32 %v101, %v103
    %v105 = vadd.f32 %v101, %v104
    %vm106 = vweird.f32 %v101
    %v107 = vsel %vm106, %v101, %v105
    %v108 = vmul.f32 %v97, %v107
    %v109 = vmul.f32 %v100, %v107
    %v110 = vsub.f32 %v93, %v108
    %v111 = vsub.f32 %v94, %v109
    %v112 = vmul.f32 %v110, %v110
    %v113 = vmul.f32 %v111, %v111
    %v114 = vsel %vm56, %v112, 0.0
    %115 = vadd.xlane.f32.xlu0 %v114
    %v116 = vpop.xlane.xlu0 %115
    %v117 = vsel %vm56, %v113, 0.0
    %118 = vadd.xlane.f32.xlu0 %v117
    %v119 = vpop.xlane.xlu0 %118
    %v120 = vmul.f32 %v116, %v107
    %v121 = vmul.f32 %v119, %v107
    %v122 = vld [vmem:[%s4] sm:$0x1]
    %v123 = vadd.f32 %v120, 1e-05
    %v124 = vadd.f32 %v121, 1e-05
    %v125 = vrsqrt.pop %v123
    %v126 = vmul.f32 %v125, %v123
    %v127 = vmul.f32 %v126, %v125
    %v128 = vmul.f32 0.5, %v127
    %v129 = vsub.f32 1.5, %v128
    %v130 = vmul.f32 %v125, %v129
    %vm131 = vweird.f32 %v123
    %vm132 = vweird.f32 %v125
    %vm133 = vmor %vm131, %vm132
    %v134 = vsel %vm133, %v125, %v130
    %v135 = vrsqrt.pop %v124
    %v136 = vmul.f32 %v135, %v124
    %v137 = vmul.f32 %v136, %v135
    %v138 = vmul.f32 0.5, %v137
    %v139 = vsub.f32 1.5, %v138
    %v140 = vmul.f32 %v135, %v139
    %vm141 = vweird.f32 %v124
    %vm142 = vweird.f32 %v135
    %vm143 = vmor %vm141, %vm142
    %v144 = vsel %vm143, %v135, %v140
    %v145 = vmul.f32 %v110, %v134
    %v146 = vmul.f32 %v111, %v144
    %v148 = vperm.slane %v122, 0
    %v150 = vmul.f32 %v148, %v145
    %v151 = vmul.f32 %v148, %v146
    %v152 = vld [vmem:[%s5] sm:$0x1]
    %v154 = vperm.slane %v152, 0
    %v156 = vadd.f32 %v150, %v154
    %v157 = vadd.f32 %v151, %v154
    %v158 = vpack.c.bf16 %v156, %v156
    %v159 = vpack.c.bf16 %v157, %v157
    %vm160 = vcmask 257024
    %161 = vst.msk [vmem:[%s6] sm:$0xf] %vm160, %v158
    %162 = vst.msk [vmem:[%s6 + $0x4] sm:$0xf] %vm160, %v159
  $region33: #{lm_model_forward.27} parent=0 // pred_fallthru
    _
  // Predicated region
  $region34: #{lm_model_forward.27} parent=0 // pred_check
    _
  $region35: #{lm_model_forward.27} parent=0 // pred_check_branch
    %164 = sbr.rel (0) target = $region37
  $region36: #{lm_model_forward.27} parent=0 // pred_region
    _
  $region37: #{lm_model_forward.27} parent=0 // pred_fallthru
    _
  // Predicated region
  $region38: #{lm_model_forward.27} parent=0 // pred_check
    _
  $region39: #{lm_model_forward.27} parent=0 // pred_check_branch
    %166 = sbr.rel (0) target = $region41
  $region40: #{lm_model_forward.27} parent=0 // pred_region
    _
  $region41: #{lm_model_forward.27} parent=0 // pred_fallthru
    _

// kernel: lm_model_forward.30
$region0: #{lm_model_forward.30}
  #allocation0 [shape = 'u32[]', space=smem, size = 0x4, offset = 0x4, fixed_abs, tag = 'smem constant byte address 0x4 - core index']
  #allocation1 [shape = 'u32[72,128]{1,0:T(1,128)}', space=vmem, size = 0x9000, scoped, tag = 'internal scratch']
  #allocation2 [shape = 'f32[16,32]{1,0:T(8,128)}', space=vmem, size = 0x2000, scoped, tag = 'scratch operand']
  %s0 = inlined_call_operand.vmem [shape: bf16[16,32], index: 0, kind: input, shape index: {}]
  %s1 = inlined_call_operand.vmem [shape: bf16[32,32], index: 1, kind: input, shape index: {}]
  %s2 = inlined_call_operand.vmem [shape: f32[1,32], index: 2, kind: input, shape index: {}]
  %s3 = inlined_call_operand.vmem [shape: bf16[16,32], index: 3, kind: output, shape index: {}]
  %s4 = sld [smem:[#allocation0]]
  $region30: #{lm_model_forward.30} parent=0
    _
  %s6 = ssub.s32 1, %s4
  %s7 = scalar_select 0, %s6, %s4
  // Predicated region
  $region2: #{lm_model_forward.30} parent=0 // pred_check
    _
  $region3: #{lm_model_forward.30} parent=0 // pred_check_branch
    %9 = sbr.rel (0) target = $region5
  $region4: #{lm_model_forward.30} parent=0 // pred_region
    _
  $region5: #{lm_model_forward.30} parent=0 // pred_fallthru
    _
  // Predicated region
  $region6: #{lm_model_forward.30} parent=0 // pred_check
    _
  $region7: #{lm_model_forward.30} parent=0 // pred_check_branch
    %11 = sbr.rel (0) target = $region9
  $region8: #{lm_model_forward.30} parent=0 // pred_region
    _
  $region9: #{lm_model_forward.30} parent=0 // pred_fallthru
    _
  // Predicated region
  $region10: #{lm_model_forward.30} parent=0 // pred_check
    _
  $region11: #{lm_model_forward.30} parent=0 // pred_check_branch
    %13 = sbr.rel (0) target = $region13
  $region12: #{lm_model_forward.30} parent=0 // pred_region
    _
  $region13: #{lm_model_forward.30} parent=0 // pred_fallthru
    _
  %p15 = scmp.eq.s32.totalorder 0, 0
  // Predicated region
  $region14: #{lm_model_forward.30} parent=0 // pred_check
    %p16 = pneg %p15
  $region15: #{lm_model_forward.30} parent=0 // pred_check_branch
    %18 = sbr.rel (%p16) target = $region17
  $region16: #{lm_model_forward.30} parent=0 // pred_region
    %vm19 = vcmask 261120
    %20 = vst.msk [vmem:[#allocation2] sm:$0xff] %vm19, 0.0
    %21 = vst.msk [vmem:[#allocation2 + $0x8] sm:$0xff] %vm19, 0.0
  $region17: #{lm_model_forward.30} parent=0 // pred_fallthru
    _
  %v22 = vld [vmem:[#allocation2] sm:$0xff]
  %v23 = vld [vmem:[#allocation2 + $0x8] sm:$0xff]
  %v24 = vld [vmem:[%s0] sm:$0xf]
  %v25 = vld [vmem:[%s0 + $0x4] sm:$0xf]
  %v26 = vld [vmem:[%s1] sm:$0xf]
  %v27 = vld [vmem:[%s1 + $0x4] sm:$0xf]
  %v28 = vld [vmem:[%s1 + $0x8] sm:$0xf]
  %v29 = vld [vmem:[%s1 + $0xc] sm:$0xf]
  %v32 = vunpack.c.l.b16 %v24
  %v33 = vunpack.c.l.b16 %v25
  %v34 = vpack.c.b16 %v33, %v32
  %v39 = vunpack.c.l.b16 %v26
  %v40 = vunpack.c.l.b16 %v27
  %v41 = vunpack.c.l.b16 %v28
  %v42 = vunpack.c.l.b16 %v29
  %v43 = vpack.c.b16 %v40, %v39
  %v44 = vpack.c.b16 %v42, %v41
  %vm47 = vcmask 261120
  %v49 = vsel %vm47, %v34, 0
  %51 = vmatpush.bf16.msra.mxu0 0
  %52 = vmatpush.bf16.msra.mxu0 0
  %53 = vmatpush.bf16.msra.mxu0 0
  %54 = vmatpush.bf16.msra.mxu0 0
  %55 = vmatpush.bf16.msra.mxu0 0
  %56 = vmatpush.bf16.msra.mxu0 0
  %57 = vmatpush.bf16.msra.mxu0 %v44
  %58 = vmatpush.bf16.msra.mxu0 %v43
  %59 = vmatmul.bf16.gmra.mxu0 %v49
  %v60 = vpop.f32.mrf.mxu0
  %v61 = vadd.f32 0.0, %v60
  %v62 = vpop.f32.mrf.mxu0
  %v63 = vadd.f32 0.0, %v62
  %64 = vdwg.mxu0
  %v65 = vadd.f32 %v22, %v61
  %v66 = vadd.f32 %v23, %v63
  %67 = vst.msk [vmem:[#allocation2] sm:$0xff] %vm47, %v65
  %68 = vst.msk [vmem:[#allocation2 + $0x8] sm:$0xff] %vm47, %v66
  // Predicated region
  $region18: #{lm_model_forward.30} parent=0 // pred_check
    %p69 = pneg %p15
  $region19: #{lm_model_forward.30} parent=0 // pred_check_branch
    %71 = sbr.rel (%p69) target = $region21
  $region20: #{lm_model_forward.30} parent=0 // pred_region
    %v72 = vld [vmem:[#allocation2] sm:$0xff]
    %v73 = vld [vmem:[#allocation2 + $0x8] sm:$0xff]
    %v74 = vld [vmem:[%s2] sm:$0x1]
    %v76 = vperm.slane %v74, 0
    %v78 = vadd.f32 %v72, %v76
    %v79 = vadd.f32 %v73, %v76
    %v80 = vpack.c.bf16 %v78, %v78
    %v81 = vpack.c.bf16 %v79, %v79
    %vm82 = vcmask 257024
    %83 = vst.msk [vmem:[%s3] sm:$0xf] %vm82, %v80
    %84 = vst.msk [vmem:[%s3 + $0x4] sm:$0xf] %vm82, %v81
  $region21: #{lm_model_forward.30} parent=0 // pred_fallthru
    _
  // Predicated region
  $region22: #{lm_model_forward.30} parent=0 // pred_check
    _
  $region23: #{lm_model_forward.30} parent=0 // pred_check_branch
    %86 = sbr.rel (0) target = $region25
  $region24: #{lm_model_forward.30} parent=0 // pred_region
    _
  $region25: #{lm_model_forward.30} parent=0 // pred_fallthru
    _
  // Predicated region
  $region26: #{lm_model_forward.30} parent=0 // pred_check
    _
  $region27: #{lm_model_forward.30} parent=0 // pred_check_branch
    %88 = sbr.rel (0) target = $region29
  $region28: #{lm_model_forward.30} parent=0 // pred_region
    _
  $region29: #{lm_model_forward.30} parent=0 // pred_fallthru
    _

// kernel: lm_model_forward.31
$region0: #{lm_model_forward.31}
  #allocation0 [shape = 'u32[]', space=smem, size = 0x4, offset = 0x4, fixed_abs, tag = 'smem constant byte address 0x4 - core index']
  #allocation1 [shape = 'u32[72,128]{1,0:T(1,128)}', space=vmem, size = 0x9000, scoped, tag = 'internal scratch']
  #allocation2 [shape = 'f32[16,128]{1,0:T(8,128)}', space=vmem, size = 0x2000, scoped, tag = 'scratch operand']
  %s0 = inlined_call_operand.vmem [shape: bf16[16,64], index: 0, kind: input, shape index: {}]
  %s1 = inlined_call_operand.vmem [shape: bf16[64,256], index: 1, kind: input, shape index: {}]
  %s2 = inlined_call_operand.vmem [shape: f32[1,256], index: 2, kind: input, shape index: {}]
  %s3 = inlined_call_operand.vmem [shape: bf16[16,256], index: 3, kind: output, shape index: {}]
  %s4 = sld [smem:[#allocation0]]
  $region131: #{lm_model_forward.31} parent=0
    _
  %s6 = ssub.s32 1, %s4
  %s7 = scalar_select 0, %s6, %s4
  $region1: #{lm_model_forward.31} parent=0
    #allocation3 [shape = 'u8[32768]{0}', space=vmem, size = 0x8000, scoped, tag = 'input window, operand 1']
    #allocation4 [shape = 'u8[8192]{0}', space=vmem, size = 0x2000, scoped, tag = 'output window, operand 0']
    loop: start=0, step=1, limit=4
    $region2: #{lm_model_forward.31} parent=1 // loop_pre_header
      _
    $region3: #{lm_model_forward.31} parent=1 // loop_header
      %s9 = sphi 0, %s13
      %p10 = scmp.ge.s32.totalorder %s9, 4
      %s16 = sphi 0, %s35
      %s17 = sphi 0, %s31
      %s18 = sphi 0, %s27
      %s19 = sphi 0, %s16
      %s20 = sphi 0, %s17
      %s21 = sphi 0, %s18
      %s22 = sphi 0, %s19
      %s23 = sphi 0, %s20
      %s24 = sphi 0, %s21
      %s40 = sphi 0, %s42
      %s43 = sphi 0, %s40
      %s44 = sphi 0, %s43
      %s60 = sphi 0, %s44
      %s68 = sphi 0, %s70
      %s71 = sphi 0, %s68
      %s72 = sphi 0, %s71
      %s88 = sphi 0, %s72
      %s94 = sphi 0, %s96
      %s97 = sphi 0, %s94
      %s98 = sphi 0, %s97
      %s114 = sphi 0, %s98
      %s122 = sphi 0, %s124
      %s125 = sphi 0, %s122
      %s126 = sphi 0, %s125
      %s142 = sphi 0, %s126
    $region4: #{lm_model_forward.31} parent=1 // loop_header_branch
      %12 = sbr.rel (%p10) target = $region8
    $region5: #{lm_model_forward.31} parent=1 // loop_body
      %s14 = ssub.s32 %s9, 1
      %s15 = ssub.s32 %s9, 2
      %s25 = sadd.s32 1, %s18
      %p26 = scmp.ge.s32.totalorder %s25, 1
      %s27 = scalar_select %p26, 0, %s25
      %s28 = sadd.s32 1, %s17
      %s29 = scalar_select %p26, %s28, %s17
      %p30 = scmp.ge.s32.totalorder %s29, 2
      %s31 = scalar_select %p30, 0, %s29
      %s32 = sadd.s32 1, %s16
      %s33 = scalar_select %p30, %s32, %s16
      %p34 = scmp.ge.s32.totalorder %s33, 1
      %s35 = scalar_select %p34, 0, %s33
      %s36 = ssub.s32 %s16, %s35
      %s37 = ssub.s32 %s18, %s27
      %s38 = sor.u32 %s36, %s37
      %p39 = scmp.eq.s32.totalorder %s38, 0
      %s41 = sadd.s32 %s40, 1
      %s42 = scalar_select %p39, %s40, %s41
      %p45 = pneg %p39
      %p46 = scmp.eq.s32.totalorder %s9, 1
      %p47 = por %p45, %p46
      %p48 = scmp.ne.s32.totalorder %s40, %s43
      %p49 = scmp.eq.s32.totalorder %s9, 0
      %p50 = por %p48, %p49
      %p51 = scmp.ne.s32.totalorder %s40, %s43
      %p52 = scmp.eq.s32.totalorder %s14, 1
      %p53 = por %p51, %p52
      %p54 = scmp.ne.s32.totalorder %s43, %s44
      %p55 = scmp.eq.s32.totalorder %s14, 0
      %p56 = por %p54, %p55
      %p57 = scmp.ne.s32.totalorder %s43, %s44
      %p58 = scmp.eq.s32.totalorder %s15, 1
      %p59 = por %p57, %p58
      %p61 = scmp.ne.s32.totalorder %s44, %s60
      %p62 = scmp.eq.s32.totalorder %s15, 0
      %p63 = por %p61, %p62
      %s64 = ssub.s32 %s18, %s27
      %s65 = ssub.s32 %s17, %s31
      %s66 = sor.u32 %s64, %s65
      %p67 = scmp.eq.s32.totalorder %s66, 0
      %s69 = sadd.s32 %s68, 1
      %s70 = scalar_select %p67, %s68, %s69
      %p73 = pneg %p67
      %p74 = scmp.eq.s32.totalorder %s9, 1
      %p75 = por %p73, %p74
      %p76 = scmp.ne.s32.totalorder %s68, %s71
      %p77 = scmp.eq.s32.totalorder %s9, 0
      %p78 = por %p76, %p77
      %p79 = scmp.ne.s32.totalorder %s68, %s71
      %p80 = scmp.eq.s32.totalorder %s14, 1
      %p81 = por %p79, %p80
      %p82 = scmp.ne.s32.totalorder %s71, %s72
      %p83 = scmp.eq.s32.totalorder %s14, 0
      %p84 = por %p82, %p83
      %p85 = scmp.ne.s32.totalorder %s71, %s72
      %p86 = scmp.eq.s32.totalorder %s15, 1
      %p87 = por %p85, %p86
      %p89 = scmp.ne.s32.totalorder %s72, %s88
      %p90 = scmp.eq.s32.totalorder %s15, 0
      %p91 = por %p89, %p90
      %s92 = ssub.s32 %s17, %s31
      %p93 = scmp.eq.s32.totalorder %s92, 0
      %s95 = sadd.s32 %s94, 1
      %s96 = scalar_select %p93, %s94, %s95
      %p99 = pneg %p93
      %p100 = scmp.eq.s32.totalorder %s9, 1
      %p101 = por %p99, %p100
      %p102 = scmp.ne.s32.totalorder %s94, %s97
      %p103 = scmp.eq.s32.totalorder %s9, 0
      %p104 = por %p102, %p103
      %p105 = scmp.ne.s32.totalorder %s94, %s97
      %p106 = scmp.eq.s32.totalorder %s14, 1
      %p107 = por %p105, %p106
      %p108 = scmp.ne.s32.totalorder %s97, %s98
      %p109 = scmp.eq.s32.totalorder %s14, 0
      %p110 = por %p108, %p109
      %p111 = scmp.ne.s32.totalorder %s97, %s98
      %p112 = scmp.eq.s32.totalorder %s15, 1
      %p113 = por %p111, %p112
      %p115 = scmp.ne.s32.totalorder %s98, %s114
      %p116 = scmp.eq.s32.totalorder %s15, 0
      %p117 = por %p115, %p116
      %s118 = ssub.s32 %s16, %s35
      %s119 = ssub.s32 %s17, %s31
      %s120 = sor.u32 %s118, %s119
      %p121 = scmp.eq.s32.totalorder %s120, 0
      %s123 = sadd.s32 %s122, 1
      %s124 = scalar_select %p121, %s122, %s123
      %p127 = pneg %p121
      %p128 = scmp.eq.s32.totalorder %s9, 1
      %p129 = por %p127, %p128
      %p130 = scmp.ne.s32.totalorder %s122, %s125
      %p131 = scmp.eq.s32.totalorder %s9, 0
      %p132 = por %p130, %p131
      %p133 = scmp.ne.s32.totalorder %s122, %s125
      %p134 = scmp.eq.s32.totalorder %s14, 1
      %p135 = por %p133, %p134
      %p136 = scmp.ne.s32.totalorder %s125, %s126
      %p137 = scmp.eq.s32.totalorder %s14, 0
      %p138 = por %p136, %p137
      %p139 = scmp.ne.s32.totalorder %s125, %s126
      %p140 = scmp.eq.s32.totalorder %s15, 1
      %p141 = por %p139, %p140
      %p143 = scmp.ne.s32.totalorder %s126, %s142
      %p144 = scmp.eq.s32.totalorder %s15, 0
      %p145 = por %p143, %p144
      %p146 = scmp.le.s32.totalorder 1, %s9
      %p147 = scmp.lt.s32.totalorder %s9, 3
      %p148 = pnand %p146, %p147
      %p149 = pneg %p148
      // Predicated region
      $region9: #{lm_model_forward.31} parent=5 // pred_check
        _
      $region10: #{lm_model_forward.31} parent=5 // pred_check_branch
        %151 = sbr.rel (%p148) target = $region12
      $region11: #{lm_model_forward.31} parent=5 // pred_region
        %s152 = ssub.s32 %s9, 1
        // Predicated region
        $region13: #{lm_model_forward.31} parent=11 // pred_check
          %p153 = pneg %p56
        $region14: #{lm_model_forward.31} parent=11 // pred_check_branch
          %155 = sbr.rel (%p153) target = $region16
        $region15: #{lm_model_forward.31} parent=11 // pred_region
          %s156 = smul.u32 2, %s19
          %p157 = scmp.lt.s32.totalorder %s156, 1
          %s158 = scalar_select %p157, %s156, 1
          %p159 = scmp.lt.s32.totalorder %s21, 0
          %s160 = scalar_select %p159, %s21, 0
          %s161 = sadd.s32 %s160, %s158
          %s162 = smul.addr %s161, 4
          %s163 = scalar_lea.vmem %s0, %s162
          %s164 = smul.u32 2, %s19
        $region16: #{lm_model_forward.31} parent=11 // pred_fallthru
          _
      $region12: #{lm_model_forward.31} parent=5 // pred_fallthru
        _
      %p165 = scmp.lt.s32.totalorder %s9, 2
      // Predicated region
      $region17: #{lm_model_forward.31} parent=5 // pred_check
        %p166 = pneg %p165
      $region18: #{lm_model_forward.31} parent=5 // pred_check_branch
        %168 = sbr.rel (%p166) target = $region20
      $region19: #{lm_model_forward.31} parent=5 // pred_region
        // Predicated region
        $region21: #{lm_model_forward.31} parent=19 // pred_check
          %p169 = pneg %p78
        $region22: #{lm_model_forward.31} parent=19 // pred_check_branch
          %171 = sbr.rel (%p169) target = $region24
        $region23: #{lm_model_forward.31} parent=19 // pred_region
          %s172 = sand.u32 %s68, 1
          %s173 = sand.u32 %s68, 1
          %s174 = smul.addr %s173, 32
          %s175 = scalar_lea.vmem [#allocation3], %s174
          %s176 = smul.u32 8, %s18
          %s177 = smul.addr %s176, 2
          %s178 = sadd.s32 %s17, %s177
          %s179 = smul.addr %s178, 4
          %s180 = scalar_lea.vmem %s1, %s179
          // Predicated region
          $region25: #{lm_model_forward.31} parent=23 // pred_check
            _
          $region26: #{lm_model_forward.31} parent=23 // pred_check_branch
            %182 = sbr.rel (0) target = $region28
          $region27: #{lm_model_forward.31} parent=23 // pred_region
            // Predicated region
            $region29: #{lm_model_forward.31} parent=27 // pred_check
              _
            $region30: #{lm_model_forward.31} parent=27 // pred_check_branch
              %184 = sbr.rel target = $region32
            $region31: #{lm_model_forward.31} parent=27 // pred_region
              // Predicated region
              $region44: #{lm_model_forward.31} parent=31 // pred_check
                _
              $region45: #{lm_model_forward.31} parent=31 // pred_check_branch
                %214 = sbr.rel (0) target = $region47
              $region46: #{lm_model_forward.31} parent=31 // pred_region
                loop: start=0, step=1, limit=1
                $region48: #{lm_model_forward.31} parent=46 // loop_pre_header
                  _
                $region49: #{lm_model_forward.31} parent=46 // loop_header
                  %s216 = sphi 0, %s220
                  %p217 = scmp.ge.s32.totalorder %s216, 1
                  %s221 = sphi %s180, %s180
                  %s222 = sphi %s175, %s175
                $region50: #{lm_model_forward.31} parent=46 // loop_header_branch
                  %219 = sbr.rel (%p217) target = $region54
                $region51: #{lm_model_forward.31} parent=46 // loop_body
                  _
                $region52: #{lm_model_forward.31} parent=46 // loop_footer
                  %s220 = sadd.s32 1, %s216
                $region53: #{lm_model_forward.31} parent=46 // loop_footer_branch
                  %215 = sbr.rel target = $region49
                $region54: #{lm_model_forward.31} parent=46 // loop_exit
                  _
                %s224 = ssub.s32 16, 1
                loop: start=0, step=1, limit=1
                $region55: #{lm_model_forward.31} parent=46 // loop_pre_header
                  _
                $region56: #{lm_model_forward.31} parent=46 // loop_header
                  %s226 = sphi 0, %s230
                  %p227 = scmp.ge.s32.totalorder %s226, 1
                  %s231 = sphi %s180, %s180
                  %s232 = sphi %s175, %s175
                $region57: #{lm_model_forward.31} parent=46 // loop_header_branch
                  %229 = sbr.rel (%p227) target = $region61
                $region58: #{lm_model_forward.31} parent=46 // loop_body
                  %v233 = vld [vmem:[%s231] sm:%s224]
                  %234 = vst [vmem:[%s232] sm:%s224] %v233
                  %v235 = vld [vmem:[%s231 + $0x8] sm:%s224]
                  %236 = vst [vmem:[%s232 + $0x4] sm:%s224] %v235
                  %v237 = vld [vmem:[%s231 + $0x10] sm:%s224]
                  %238 = vst [vmem:[%s232 + $0x8] sm:%s224] %v237
                  %v239 = vld [vmem:[%s231 + $0x18] sm:%s224]
                  %240 = vst [vmem:[%s232 + $0xc] sm:%s224] %v239
                  %v241 = vld [vmem:[%s231 + $0x20] sm:%s224]
                  %242 = vst [vmem:[%s232 + $0x10] sm:%s224] %v241
                  %v243 = vld [vmem:[%s231 + $0x28] sm:%s224]
                  %244 = vst [vmem:[%s232 + $0x14] sm:%s224] %v243
                  %v245 = vld [vmem:[%s231 + $0x30] sm:%s224]
                  %246 = vst [vmem:[%s232 + $0x18] sm:%s224] %v245
                  %v247 = vld [vmem:[%s231 + $0x38] sm:%s224]
                  %248 = vst [vmem:[%s232 + $0x1c] sm:%s224] %v247
                $region59: #{lm_model_forward.31} parent=46 // loop_footer
                  %s230 = sadd.s32 1, %s226
                $region60: #{lm_model_forward.31} parent=46 // loop_footer_branch
                  %225 = sbr.rel target = $region56
                $region61: #{lm_model_forward.31} parent=46 // loop_exit
                  _
              $region47: #{lm_model_forward.31} parent=31 // pred_fallthru
                _
            $region32: #{lm_model_forward.31} parent=27 // pred_fallthru
              _
            // Predicated region
            $region33: #{lm_model_forward.31} parent=27 // pred_check
              _
            $region34: #{lm_model_forward.31} parent=27 // pred_check_branch
              %186 = sbr.rel (0) target = $region36
            $region35: #{lm_model_forward.31} parent=27 // pred_region
              %s188 = ssub.s32 16, 1
              loop: start=0, step=1, limit=1
              $region37: #{lm_model_forward.31} parent=35 // loop_pre_header
                _
              $region38: #{lm_model_forward.31} parent=35 // loop_header
                %s190 = sphi 0, %s194
                %p191 = scmp.ge.s32.totalorder %s190, 1
                %s195 = sphi %s180, %s180
                %s196 = sphi %s175, %s175
              $region39: #{lm_model_forward.31} parent=35 // loop_header_branch
                %193 = sbr.rel (%p191) target = $region43
              $region40: #{lm_model_forward.31} parent=35 // loop_body
                %v197 = vld [vmem:[%s195] sm:%s188]
                %198 = vst [vmem:[%s196] sm:%s188] %v197
                %v199 = vld [vmem:[%s195 + $0x8] sm:%s188]
                %200 = vst [vmem:[%s196 + $0x4] sm:%s188] %v199
                %v201 = vld [vmem:[%s195 + $0x10] sm:%s188]
                %202 = vst [vmem:[%s196 + $0x8] sm:%s188] %v201
                %v203 = vld [vmem:[%s195 + $0x18] sm:%s188]
                %204 = vst [vmem:[%s196 + $0xc] sm:%s188] %v203
                %v205 = vld [vmem:[%s195 + $0x20] sm:%s188]
                %206 = vst [vmem:[%s196 + $0x10] sm:%s188] %v205
                %v207 = vld [vmem:[%s195 + $0x28] sm:%s188]
                %208 = vst [vmem:[%s196 + $0x14] sm:%s188] %v207
                %v209 = vld [vmem:[%s195 + $0x30] sm:%s188]
                %210 = vst [vmem:[%s196 + $0x18] sm:%s188] %v209
                %v211 = vld [vmem:[%s195 + $0x38] sm:%s188]
                %212 = vst [vmem:[%s196 + $0x1c] sm:%s188] %v211
              $region41: #{lm_model_forward.31} parent=35 // loop_footer
                %s194 = sadd.s32 1, %s190
              $region42: #{lm_model_forward.31} parent=35 // loop_footer_branch
                %189 = sbr.rel target = $region38
              $region43: #{lm_model_forward.31} parent=35 // loop_exit
                _
            $region36: #{lm_model_forward.31} parent=27 // pred_fallthru
              _
          $region28: #{lm_model_forward.31} parent=23 // pred_fallthru
            _
          %249 = vnop
        $region24: #{lm_model_forward.31} parent=19 // pred_fallthru
          _
        // Predicated region
        $region62: #{lm_model_forward.31} parent=19 // pred_check
          %p250 = pneg %p104
        $region63: #{lm_model_forward.31} parent=19 // pred_check_branch
          %252 = sbr.rel (%p250) target = $region65
        $region64: #{lm_model_forward.31} parent=19 // pred_region
          %p253 = scmp.lt.s32.totalorder %s17, 1
          %s254 = scalar_select %p253, %s17, 1
          %s255 = scalar_lea.vmem %s2, %s254
        $region65: #{lm_model_forward.31} parent=19 // pred_fallthru
          _
      $region20: #{lm_model_forward.31} parent=5 // pred_fallthru
        _
      %p256 = scmp.le.s32.totalorder 1, %s9
      %p257 = scmp.lt.s32.totalorder %s9, 3
      %p258 = pnand %p256, %p257
      %p259 = pneg %p258
      // Predicated region
      $region66: #{lm_model_forward.31} parent=5 // pred_check
        _
      $region67: #{lm_model_forward.31} parent=5 // pred_check_branch
        %261 = sbr.rel (%p258) target = $region69
      $region68: #{lm_model_forward.31} parent=5 // pred_region
        %s262 = ssub.s32 %s9, 1
        %s263 = sand.u32 %s71, 1
        %s264 = sand.u32 %s71, 1
        %s265 = smul.addr %s264, 32
        %s266 = scalar_lea.vmem [#allocation3], %s265
        // Predicated region
        $region70: #{lm_model_forward.31} parent=68 // pred_check
          %p267 = pneg %p84
        $region71: #{lm_model_forward.31} parent=68 // pred_check_branch
          %269 = sbr.rel (%p267) target = $region73
        $region72: #{lm_model_forward.31} parent=68 // pred_region
          _
        $region73: #{lm_model_forward.31} parent=68 // pred_fallthru
          _
        %s270 = smul.u32 2, %s19
        %p271 = scmp.lt.s32.totalorder %s270, 1
        %s272 = scalar_select %p271, %s270, 1
        %p273 = scmp.lt.s32.totalorder %s21, 0
        %s274 = scalar_select %p273, %s21, 0
        %s275 = sadd.s32 %s274, %s272
        %s276 = smul.addr %s275, 4
        %s277 = scalar_lea.vmem %s0, %s276
        %p278 = pneg %p56
        %p279 = pneg %p53
        %s280 = sand.u32 %s71, 1
        %s281 = sand.u32 %s71, 1
        %s282 = smul.addr %s281, 32
        %s283 = scalar_lea.vmem [#allocation3], %s282
        %p284 = pneg %p84
        %p285 = pneg %p81
        %p286 = scmp.lt.s32.totalorder %s20, 1
        %s287 = scalar_select %p286, %s20, 1
        %s288 = scalar_lea.vmem %s2, %s287
        %p289 = pneg %p110
        %p290 = pneg %p107
        %p291 = pneg %p138
        %p292 = pneg %p135
        %s293 = sand.u32 %s125, 1
        %s294 = sand.u32 %s125, 1
        %s295 = smul.addr %s294, 8
        %s296 = scalar_lea.vmem [#allocation4], %s295
        %s297 = smul.u32 2, %s19
        %p298 = scmp.lt.s32.totalorder %s297, 1
        %s299 = scalar_select %p298, %s297, 1
        %p300 = scmp.lt.s32.totalorder %s21, 0
        %s301 = scalar_select %p300, %s21, 0
        %s302 = sadd.s32 %s301, %s299
        %s303 = smul.addr %s302, 4
        %s304 = scalar_lea.vmem %s0, %s303
        %s305 = smul.u32 2, %s19
        %s306 = smul.u32 8, %s21
        %p307 = scmp.lt.s32.totalorder %s20, 1
        %s308 = scalar_select %p307, %s20, 1
        %s309 = scalar_lea.vmem %s2, %s308
        %s310 = smul.u32 2, %s19
        %p312 = scmp.eq.s32.totalorder %s21, 0
        // Predicated region
        $region74: #{lm_model_forward.31} parent=68 // pred_check
          %p313 = pneg %p312
        $region75: #{lm_model_forward.31} parent=68 // pred_check_branch
          %315 = sbr.rel (%p313) target = $region77
        $region76: #{lm_model_forward.31} parent=68 // pred_region
          %316 = vst [vmem:[#allocation2] sm:$0xff] 0.0
          %317 = vst [vmem:[#allocation2 + $0x8] sm:$0xff] 0.0
        $region77: #{lm_model_forward.31} parent=68 // pred_fallthru
          _
        %v318 = vld [vmem:[#allocation2] sm:$0xff]
        %v319 = vld [vmem:[#allocation2 + $0x8] sm:$0xff]
        %v320 = vld [vmem:[%s304] sm:$0xf]
        %v321 = vld [vmem:[%s304 + $0x4] sm:$0xf]
        %v322 = vld [vmem:[%s266] sm:$0xf]
        %v323 = vld [vmem:[%s266 + $0x4] sm:$0xf]
        %v324 = vld [vmem:[%s266 + $0x8] sm:$0xf]
        %v325 = vld [vmem:[%s266 + $0xc] sm:$0xf]
        %v326 = vld [vmem:[%s266 + $0x10] sm:$0xf]
        %v327 = vld [vmem:[%s266 + $0x14] sm:$0xf]
        %v328 = vld [vmem:[%s266 + $0x18] sm:$0xf]
        %v329 = vld [vmem:[%s266 + $0x1c] sm:$0xf]
        %v332 = vunpack.c.l.b16 %v320
        %v333 = vunpack.c.l.b16 %v321
        %v334 = vpack.c.b16 %v333, %v332
        %v343 = vunpack.c.l.b16 %v322
        %v344 = vunpack.c.l.b16 %v323
        %v345 = vunpack.c.l.b16 %v324
        %v346 = vunpack.c.l.b16 %v325
        %v347 = vunpack.c.l.b16 %v326
        %v348 = vunpack.c.l.b16 %v327
        %v349 = vunpack.c.l.b16 %v328
        %v350 = vunpack.c.l.b16 %v329
        %v351 = vpack.c.b16 %v344, %v343
        %v352 = vpack.c.b16 %v346, %v345
        %v353 = vpack.c.b16 %v348, %v347
        %v354 = vpack.c.b16 %v350, %v349
        %vm359 = vcmask 523264
        %v361 = vsel %vm359, %v334, 0
        %363 = vmatpush.bf16.msra.mxu0 0
        %364 = vmatpush.bf16.msra.mxu0 0
        %365 = vmatpush.bf16.msra.mxu0 0
        %366 = vmatpush.bf16.msra.mxu0 0
        %367 = vmatpush.bf16.msra.mxu0 %v354
        %368 = vmatpush.bf16.msra.mxu0 %v353
        %369 = vmatpush.bf16.msra.mxu0 %v352
        %370 = vmatpush.bf16.msra.mxu0 %v351
        %371 = vmatmul.bf16.gmra.mxu0 %v361
        %v372 = vpop.f32.mrf.mxu0
        %v373 = vadd.f32 0.0, %v372
        %v374 = vpop.f32.mrf.mxu0
        %v375 = vadd.f32 0.0, %v374
        %376 = vdwg.mxu0
        %v377 = vadd.f32 %v318, %v373
        %v378 = vadd.f32 %v319, %v375
        %379 = vst [vmem:[#allocation2] sm:$0xff] %v377
        %380 = vst [vmem:[#allocation2 + $0x8] sm:$0xff] %v378
        // Predicated region
        $region78: #{lm_model_forward.31} parent=68 // pred_check
          %p381 = pneg %p312
        $region79: #{lm_model_forward.31} parent=68 // pred_check_branch
          %383 = sbr.rel (%p381) target = $region81
        $region80: #{lm_model_forward.31} parent=68 // pred_region
          %v384 = vld [vmem:[#allocation2] sm:$0xff]
          %v385 = vld [vmem:[#allocation2 + $0x8] sm:$0xff]
          %v386 = vld [vmem:[%s309] sm:$0x1]
          %v388 = vperm.slane %v386, 0
          %v390 = vadd.f32 %v384, %v388
          %v391 = vadd.f32 %v385, %v388
          %v392 = vpack.c.bf16 %v390, %v390
          %v393 = vpack.c.bf16 %v391, %v391
          %394 = vst [vmem:[%s296] sm:$0xf] %v392
          %395 = vst [vmem:[%s296 + $0x4] sm:$0xf] %v393
        $region81: #{lm_model_forward.31} parent=68 // pred_fallthru
          _
        %s396 = sand.u32 %s125, 1
        %s397 = sand.u32 %s125, 1
        %s398 = smul.addr %s397, 8
        %s399 = scalar_lea.vmem [#allocation4], %s398
        // Predicated region
        $region82: #{lm_model_forward.31} parent=68 // pred_check
          %p400 = pneg %p135
        $region83: #{lm_model_forward.31} parent=68 // pred_check_branch
          %402 = sbr.rel (%p400) target = $region85
        $region84: #{lm_model_forward.31} parent=68 // pred_region
          %s403 = smul.u32 2, %s19
          %s404 = smul.addr %s403, 2
          %s405 = sadd.s32 %s20, %s404
          %s406 = smul.addr %s405, 4
          %s407 = scalar_lea.vmem %s3, %s406
          // Predicated region
          $region86: #{lm_model_forward.31} parent=84 // pred_check
            _
          $region87: #{lm_model_forward.31} parent=84 // pred_check_branch
            %409 = sbr.rel (0) target = $region89
          $region88: #{lm_model_forward.31} parent=84 // pred_region
            // Predicated region
            $region90: #{lm_model_forward.31} parent=88 // pred_check
              _
            $region91: #{lm_model_forward.31} parent=88 // pred_check_branch
              %411 = sbr.rel target = $region93
            $region92: #{lm_model_forward.31} parent=88 // pred_region
              // Predicated region
              $region105: #{lm_model_forward.31} parent=92 // pred_check
                _
              $region106: #{lm_model_forward.31} parent=92 // pred_check_branch
                %429 = sbr.rel (0) target = $region108
              $region107: #{lm_model_forward.31} parent=92 // pred_region
                loop: start=0, step=1, limit=1
                $region109: #{lm_model_forward.31} parent=107 // loop_pre_header
                  _
                $region110: #{lm_model_forward.31} parent=107 // loop_header
                  %s431 = sphi 0, %s435
                  %p432 = scmp.ge.s32.totalorder %s431, 1
                  %s436 = sphi %s399, %s399
                  %s437 = sphi %s407, %s407
                $region111: #{lm_model_forward.31} parent=107 // loop_header_branch
                  %434 = sbr.rel (%p432) target = $region115
                $region112: #{lm_model_forward.31} parent=107 // loop_body
                  _
                $region113: #{lm_model_forward.31} parent=107 // loop_footer
                  %s435 = sadd.s32 1, %s431
                $region114: #{lm_model_forward.31} parent=107 // loop_footer_branch
                  %430 = sbr.rel target = $region110
                $region115: #{lm_model_forward.31} parent=107 // loop_exit
                  _
                %s439 = ssub.s32 16, 1
                loop: start=0, step=1, limit=1
                $region116: #{lm_model_forward.31} parent=107 // loop_pre_header
                  _
                $region117: #{lm_model_forward.31} parent=107 // loop_header
                  %s441 = sphi 0, %s445
                  %p442 = scmp.ge.s32.totalorder %s441, 1
                  %s446 = sphi %s399, %s399
                  %s447 = sphi %s407, %s407
                $region118: #{lm_model_forward.31} parent=107 // loop_header_branch
                  %444 = sbr.rel (%p442) target = $region122
                $region119: #{lm_model_forward.31} parent=107 // loop_body
                  %v448 = vld [vmem:[%s446] sm:%s439]
                  %449 = vst [vmem:[%s447] sm:%s439] %v448
                  %v450 = vld [vmem:[%s446 + $0x4] sm:%s439]
                  %451 = vst [vmem:[%s447 + $0x8] sm:%s439] %v450
                $region120: #{lm_model_forward.31} parent=107 // loop_footer
                  %s445 = sadd.s32 1, %s441
                $region121: #{lm_model_forward.31} parent=107 // loop_footer_branch
                  %440 = sbr.rel target = $region117
                $region122: #{lm_model_forward.31} parent=107 // loop_exit
                  _
              $region108: #{lm_model_forward.31} parent=92 // pred_fallthru
                _
            $region93: #{lm_model_forward.31} parent=88 // pred_fallthru
              _
            // Predicated region
            $region94: #{lm_model_forward.31} parent=88 // pred_check
              _
            $region95: #{lm_model_forward.31} parent=88 // pred_check_branch
              %413 = sbr.rel (0) target = $region97
            $region96: #{lm_model_forward.31} parent=88 // pred_region
              %s415 = ssub.s32 16, 1
              loop: start=0, step=1, limit=1
              $region98: #{lm_model_forward.31} parent=96 // loop_pre_header
                _
              $region99: #{lm_model_forward.31} parent=96 // loop_header
                %s417 = sphi 0, %s421
                %p418 = scmp.ge.s32.totalorder %s417, 1
                %s422 = sphi %s399, %s399
                %s423 = sphi %s407, %s407
              $region100: #{lm_model_forward.31} parent=96 // loop_header_branch
                %420 = sbr.rel (%p418) target = $region104
              $region101: #{lm_model_forward.31} parent=96 // loop_body
                %v424 = vld [vmem:[%s422] sm:%s415]
                %425 = vst [vmem:[%s423] sm:%s415] %v424
                %v426 = vld [vmem:[%s422 + $0x4] sm:%s415]
                %427 = vst [vmem:[%s423 + $0x8] sm:%s415] %v426
              $region102: #{lm_model_forward.31} parent=96 // loop_footer
                %s421 = sadd.s32 1, %s417
              $region103: #{lm_model_forward.31} parent=96 // loop_footer_branch
                %416 = sbr.rel target = $region99
              $region104: #{lm_model_forward.31} parent=96 // loop_exit
                _
            $region97: #{lm_model_forward.31} parent=88 // pred_fallthru
              _
          $region89: #{lm_model_forward.31} parent=84 // pred_fallthru
            _
          %452 = vnop
        $region85: #{lm_model_forward.31} parent=68 // pred_fallthru
          _
      $region69: #{lm_model_forward.31} parent=5 // pred_fallthru
        _
      %p453 = scmp.le.s32.totalorder 2, %s9
      // Predicated region
      $region123: #{lm_model_forward.31} parent=5 // pred_check
        %p454 = pneg %p453
      $region124: #{lm_model_forward.31} parent=5 // pred_check_branch
        %456 = sbr.rel (%p454) target = $region126
      $region125: #{lm_model_forward.31} parent=5 // pred_region
        %s457 = ssub.s32 %s9, 2
        // Predicated region
        $region127: #{lm_model_forward.31} parent=125 // pred_check
          %p458 = pneg %p141
        $region128: #{lm_model_forward.31} parent=125 // pred_check_branch
          %460 = sbr.rel (%p458) target = $region130
        $region129: #{lm_model_forward.31} parent=125 // pred_region
          %s461 = sand.u32 %s126, 1
          %s462 = sand.u32 %s126, 1
          %s463 = smul.addr %s462, 8
          %s464 = scalar_lea.vmem [#allocation4], %s463
        $region130: #{lm_model_forward.31} parent=125 // pred_fallthru
          _
      $region126: #{lm_model_forward.31} parent=5 // pred_fallthru
        _
    $region6: #{lm_model_forward.31} parent=1 // loop_footer
      %s13 = sadd.s32 1, %s9
    $region7: #{lm_model_forward.31} parent=1 // loop_footer_branch
      %8 = sbr.rel target = $region3
    $region8: #{lm_model_forward.31} parent=1 // loop_exit
      _

// kernel: lm_model_forward.29
$region0: #{lm_model_forward.29}
  #allocation0 [shape = 'u32[]', space=smem, size = 0x4, offset = 0x4, fixed_abs, tag = 'smem constant byte address 0x4 - core index']
  #allocation1 [shape = 'u32[72,128]{1,0:T(1,128)}', space=vmem, size = 0x9000, scoped, tag = 'internal scratch']
  #allocation2 [shape = 'f32[16,32]{1,0:T(8,128)}', space=vmem, size = 0x2000, scoped, tag = 'scratch operand']
  %s0 = inlined_call_operand.vmem [shape: bf16[16,128], index: 0, kind: input, shape index: {}]
  %s1 = inlined_call_operand.vmem [shape: bf16[128,32], index: 1, kind: input, shape index: {}]
  %s2 = inlined_call_operand.vmem [shape: f32[1,32], index: 2, kind: input, shape index: {}]
  %s3 = inlined_call_operand.vmem [shape: bf16[16,32], index: 3, kind: input, shape index: {}]
  %s4 = inlined_call_operand.vmem [shape: f32[1,32], index: 4, kind: input, shape index: {}]
  %s5 = inlined_call_operand.vmem [shape: f32[1,32], index: 5, kind: input, shape index: {}]
  %s6 = inlined_call_operand.vmem [shape: bf16[16,32], index: 6, kind: output, shape index: {}]
  %s7 = sld [smem:[#allocation0]]
  $region42: #{lm_model_forward.29} parent=0
    _
  %s9 = ssub.s32 1, %s7
  %s10 = scalar_select 0, %s9, %s7
  // Predicated region
  $region2: #{lm_model_forward.29} parent=0 // pred_check
    _
  $region3: #{lm_model_forward.29} parent=0 // pred_check_branch
    %12 = sbr.rel (0) target = $region5
  $region4: #{lm_model_forward.29} parent=0 // pred_region
    _
  $region5: #{lm_model_forward.29} parent=0 // pred_fallthru
    _
  // Predicated region
  $region6: #{lm_model_forward.29} parent=0 // pred_check
    _
  $region7: #{lm_model_forward.29} parent=0 // pred_check_branch
    %14 = sbr.rel (0) target = $region9
  $region8: #{lm_model_forward.29} parent=0 // pred_region
    _
  $region9: #{lm_model_forward.29} parent=0 // pred_fallthru
    _
  // Predicated region
  $region10: #{lm_model_forward.29} parent=0 // pred_check
    _
  $region11: #{lm_model_forward.29} parent=0 // pred_check_branch
    %16 = sbr.rel (0) target = $region13
  $region12: #{lm_model_forward.29} parent=0 // pred_region
    _
  $region13: #{lm_model_forward.29} parent=0 // pred_fallthru
    _
  // Predicated region
  $region14: #{lm_model_forward.29} parent=0 // pred_check
    _
  $region15: #{lm_model_forward.29} parent=0 // pred_check_branch
    %18 = sbr.rel (0) target = $region17
  $region16: #{lm_model_forward.29} parent=0 // pred_region
    _
  $region17: #{lm_model_forward.29} parent=0 // pred_fallthru
    _
  // Predicated region
  $region18: #{lm_model_forward.29} parent=0 // pred_check
    _
  $region19: #{lm_model_forward.29} parent=0 // pred_check_branch
    %20 = sbr.rel (0) target = $region21
  $region20: #{lm_model_forward.29} parent=0 // pred_region
    _
  $region21: #{lm_model_forward.29} parent=0 // pred_fallthru
    _
  // Predicated region
  $region22: #{lm_model_forward.29} parent=0 // pred_check
    _
  $region23: #{lm_model_forward.29} parent=0 // pred_check_branch
    %22 = sbr.rel (0) target = $region25
  $region24: #{lm_model_forward.29} parent=0 // pred_region
    _
  $region25: #{lm_model_forward.29} parent=0 // pred_fallthru
    _
  %p23 = scmp.eq.s32.totalorder 0, 0
  // Predicated region
  $region26: #{lm_model_forward.29} parent=0 // pred_check
    %p24 = pneg %p23
  $region27: #{lm_model_forward.29} parent=0 // pred_check_branch
    %26 = sbr.rel (%p24) target = $region29
  $region28: #{lm_model_forward.29} parent=0 // pred_region
    %vm27 = vcmask 261120
    %28 = vst.msk [vmem:[#allocation2] sm:$0xff] %vm27, 0.0
    %29 = vst.msk [vmem:[#allocation2 + $0x8] sm:$0xff] %vm27, 0.0
  $region29: #{lm_model_forward.29} parent=0 // pred_fallthru
    _
  %v30 = vld [vmem:[#allocation2] sm:$0xff]
  %v31 = vld [vmem:[#allocation2 + $0x8] sm:$0xff]
  %v32 = vld [vmem:[%s0] sm:$0xf]
  %v33 = vld [vmem:[%s0 + $0x4] sm:$0xf]
  %v34 = vld [vmem:[%s1] sm:$0xf]
  %v35 = vld [vmem:[%s1 + $0x4] sm:$0xf]
  %v36 = vld [vmem:[%s1 + $0x8] sm:$0xf]
  %v37 = vld [vmem:[%s1 + $0xc] sm:$0xf]
  %v38 = vld [vmem:[%s1 + $0x10] sm:$0xf]
  %v39 = vld [vmem:[%s1 + $0x14] sm:$0xf]
  %v40 = vld [vmem:[%s1 + $0x18] sm:$0xf]
  %v41 = vld [vmem:[%s1 + $0x1c] sm:$0xf]
  %v42 = vld [vmem:[%s1 + $0x20] sm:$0xf]
  %v43 = vld [vmem:[%s1 + $0x24] sm:$0xf]
  %v44 = vld [vmem:[%s1 + $0x28] sm:$0xf]
  %v45 = vld [vmem:[%s1 + $0x2c] sm:$0xf]
  %v46 = vld [vmem:[%s1 + $0x30] sm:$0xf]
  %v47 = vld [vmem:[%s1 + $0x34] sm:$0xf]
  %v48 = vld [vmem:[%s1 + $0x38] sm:$0xf]
  %v49 = vld [vmem:[%s1 + $0x3c] sm:$0xf]
  %v52 = vunpack.c.l.b16 %v32
  %v53 = vunpack.c.l.b16 %v33
  %v54 = vpack.c.b16 %v53, %v52
  %v72 = vunpack.c.l.b16 %v34
  %v73 = vunpack.c.l.b16 %v35
  %v74 = vunpack.c.l.b16 %v36
  %v75 = vunpack.c.l.b16 %v37
  %v76 = vunpack.c.l.b16 %v38
  %v77 = vunpack.c.l.b16 %v39
  %v78 = vunpack.c.l.b16 %v40
  %v79 = vunpack.c.l.b16 %v41
  %v80 = vunpack.c.l.b16 %v42
  %v81 = vunpack.c.l.b16 %v43
  %v82 = vunpack.c.l.b16 %v44
  %v83 = vunpack.c.l.b16 %v45
  %v84 = vunpack.c.l.b16 %v46
  %v85 = vunpack.c.l.b16 %v47
  %v86 = vunpack.c.l.b16 %v48
  %v87 = vunpack.c.l.b16 %v49
  %v88 = vpack.c.b16 %v73, %v72
  %v89 = vpack.c.b16 %v75, %v74
  %v90 = vpack.c.b16 %v77, %v76
  %v91 = vpack.c.b16 %v79, %v78
  %v92 = vpack.c.b16 %v81, %v80
  %v93 = vpack.c.b16 %v83, %v82
  %v94 = vpack.c.b16 %v85, %v84
  %v95 = vpack.c.b16 %v87, %v86
  %104 = vmatpush.bf16.msra.mxu0 %v95
  %105 = vmatpush.bf16.msra.mxu0 %v94
  %106 = vmatpush.bf16.msra.mxu0 %v93
  %107 = vmatpush.bf16.msra.mxu0 %v92
  %108 = vmatpush.bf16.msra.mxu0 %v91
  %109 = vmatpush.bf16.msra.mxu0 %v90
  %110 = vmatpush.bf16.msra.mxu0 %v89
  %111 = vmatpush.bf16.msra.mxu0 %v88
  %112 = vmatmul.bf16.gmra.mxu0 %v54
  %v113 = vpop.f32.mrf.mxu0
  %v114 = vadd.f32 0.0, %v113
  %v115 = vpop.f32.mrf.mxu0
  %v116 = vadd.f32 0.0, %v115
  %117 = vdwg.mxu0
  %v118 = vadd.f32 %v30, %v114
  %v119 = vadd.f32 %v31, %v116
  %vm120 = vcmask 261120
  %121 = vst.msk [vmem:[#allocation2] sm:$0xff] %vm120, %v118
  %122 = vst.msk [vmem:[#allocation2 + $0x8] sm:$0xff] %vm120, %v119
  // Predicated region
  $region30: #{lm_model_forward.29} parent=0 // pred_check
    %p123 = pneg %p23
  $region31: #{lm_model_forward.29} parent=0 // pred_check_branch
    %125 = sbr.rel (%p123) target = $region33
  $region32: #{lm_model_forward.29} parent=0 // pred_region
    %v126 = vld [vmem:[#allocation2] sm:$0xff]
    %v127 = vld [vmem:[#allocation2 + $0x8] sm:$0xff]
    %v128 = vld [vmem:[%s2] sm:$0x1]
    %v130 = vperm.slane %v128, 0
    %v132 = vadd.f32 %v126, %v130
    %v133 = vadd.f32 %v127, %v130
    %v134 = vld [vmem:[%s3] sm:$0xf]
    %v135 = vld [vmem:[%s3 + $0x4] sm:$0xf]
    %v136 = vunpack.c.l.bf16 %v134
    %v137 = vunpack.c.l.bf16 %v135
    %v138 = vadd.f32 %v136, %v132
    %v139 = vadd.f32 %v137, %v133
    %v140 = vsel %vm120, %v138, 0.0
    %141 = vadd.xlane.f32.xlu0 %v140
    %v142 = vpop.xlane.xlu0 %141
    %v143 = vsel %vm120, %v139, 0.0
    %144 = vadd.xlane.f32.xlu0 %v143
    %v145 = vpop.xlane.xlu0 %144
    %v146 = vrcp.pop 32.0
    %v147 = vmul.f32 32.0, %v146
    %v148 = vsub.f32 1.0, %v147
    %v149 = vmul.f32 %v146, %v148
    %v150 = vadd.f32 %v146, %v149
    %vm151 = vweird.f32 %v146
    %v152 = vsel %vm151, %v146, %v150
    %v153 = vmul.f32 %v142, %v152
    %v154 = vmul.f32 %v145, %v152
    %v155 = vsub.f32 %v138, %v153
    %v156 = vsub.f32 %v139, %v154
    %v157 = vmul.f32 %v155, %v155
    %v158 = vmul.f32 %v156, %v156
    %v159 = vsel %vm120, %v157, 0.0
    %160 = vadd.xlane.f32.xlu0 %v159
    %v161 = vpop.xlane.xlu0 %160
    %v162 = vsel %vm120, %v158, 0.0
    %163 = vadd.xlane.f32.xlu0 %v162
    %v164 = vpop.xlane.xlu0 %163
    %v165 = vmul.f32 %v161, %v152
    %v166 = vmul.f32 %v164, %v152
    %v167 = vld [vmem:[%s4] sm:$0x1]
    %v168 = vadd.f32 %v165, 1e-05
    %v169 = vadd.f32 %v166, 1e-05
    %v170 = vrsqrt.pop %v168
    %v171 = vmul.f32 %v170, %v168
    %v172 = vmul.f32 %v171, %v170
    %v173 = vmul.f32 0.5, %v172
    %v174 = vsub.f32 1.5, %v173
    %v175 = vmul.f32 %v170, %v174
    %vm176 = vweird.f32 %v168
    %vm177 = vweird.f32 %v170
    %vm178 = vmor %vm176, %vm177
    %v179 = vsel %vm178, %v170, %v175
    %v180 = vrsqrt.pop %v169
    %v181 = vmul.f32 %v180, %v169
    %v182 = vmul.f32 %v181, %v180
    %v183 = vmul.f32 0.5, %v182
    %v184 = vsub.f32 1.5, %v183
    %v185 = vmul.f32 %v180, %v184
    %vm186 = vweird.f32 %v169
    %vm187 = vweird.f32 %v180
    %vm188 = vmor %vm186, %vm187
    %v189 = vsel %vm188, %v180, %v185
    %v190 = vmul.f32 %v155, %v179
    %v191 = vmul.f32 %v156, %v189
    %v193 = vperm.slane %v167, 0
    %v195 = vmul.f32 %v193, %v190
    %v196 = vmul.f32 %v193, %v191
    %v197 = vld [vmem:[%s5] sm:$0x1]
    %v199 = vperm.slane %v197, 0
    %v201 = vadd.f32 %v195, %v199
    %v202 = vadd.f32 %v196, %v199
    %v203 = vpack.c.bf16 %v201, %v201
    %v204 = vpack.c.bf16 %v202, %v202
    %vm205 = vcmask 257024
    %206 = vst.msk [vmem:[%s6] sm:$0xf] %vm205, %v203
    %207 = vst.msk [vmem:[%s6 + $0x4] sm:$0xf] %vm205, %v204
  $region33: #{lm_model_forward.29} parent=0 // pred_fallthru
    _
  // Predicated region
  $region34: #{lm_model_forward.29} parent=0 // pred_check
    _
  $region35: #{lm_model_forward.29} parent=0 // pred_check_branch
    %209 = sbr.rel (0) target = $region37
  $region36: #{lm_model_forward.29} parent=0 // pred_region
    _
  $region37: #{lm_model_forward.29} parent=0 // pred_fallthru
    _
  // Predicated region
  $region38: #{lm_model_forward.29} parent=0 // pred_check
    _
  $region39: #{lm_model_forward.29} parent=0 // pred_check_branch
    %211 = sbr.rel (0) target = $region41
  $region40: #{lm_model_forward.29} parent=0 // pred_region
    _
  $region41: #{lm_model_forward.29} parent=0 // pred_fallthru
    _

// kernel: lm_model_forward.32
$region0: #{lm_model_forward.32}
  #allocation0 [shape = 'u32[]', space=smem, size = 0x4, offset = 0x4, fixed_abs, tag = 'smem constant byte address 0x4 - core index']
  #allocation1 [shape = 'u32[72,128]{1,0:T(1,128)}', space=vmem, size = 0x9000, scoped, tag = 'internal scratch']
  %s0 = inlined_call_operand.vmem [shape: bf16[2,8,192], index: 0, kind: input, shape index: {}]
  %s1 = inlined_call_operand.vmem [shape: bf16[2,8,64], index: 1, kind: output, shape index: {}]
  %s2 = sld [smem:[#allocation0]]
  $region37: #{lm_model_forward.32} parent=0
    _
  %s4 = ssub.s32 1, %s2
  %s5 = scalar_select 0, %s4, %s2
  loop: start=0, step=1, limit=4
  $region2: #{lm_model_forward.32} parent=0 // loop_pre_header
    _
  $region3: #{lm_model_forward.32} parent=0 // loop_header
    %s7 = sphi 0, %s11
    %p8 = scmp.ge.s32.totalorder %s7, 4
    %s17 = sphi 0, %s19
    %s20 = sphi 0, %s17
    %s21 = sphi 0, %s20
    %s37 = sphi 0, %s21
    %s43 = sphi 0, %s45
    %s46 = sphi 0, %s43
    %s47 = sphi 0, %s46
    %s63 = sphi 0, %s47
  $region4: #{lm_model_forward.32} parent=0 // loop_header_branch
    %10 = sbr.rel (%p8) target = $region8
  $region5: #{lm_model_forward.32} parent=0 // loop_body
    %s12 = ssub.s32 %s7, 1
    %s13 = ssub.s32 %s7, 2
    %s14 = sadd.s32 %s7, 1
    %s15 = ssub.s32 %s7, %s14
    %p16 = scmp.eq.s32.totalorder %s15, 0
    %s18 = sadd.s32 %s17, 1
    %s19 = scalar_select %p16, %s17, %s18
    %p22 = pneg %p16
    %p23 = scmp.eq.s32.totalorder %s7, 1
    %p24 = por %p22, %p23
    %p25 = scmp.ne.s32.totalorder %s17, %s20
    %p26 = scmp.eq.s32.totalorder %s7, 0
    %p27 = por %p25, %p26
    %p28 = scmp.ne.s32.totalorder %s17, %s20
    %p29 = scmp.eq.s32.totalorder %s12, 1
    %p30 = por %p28, %p29
    %p31 = scmp.ne.s32.totalorder %s20, %s21
    %p32 = scmp.eq.s32.totalorder %s12, 0
    %p33 = por %p31, %p32
    %p34 = scmp.ne.s32.totalorder %s20, %s21
    %p35 = scmp.eq.s32.totalorder %s13, 1
    %p36 = por %p34, %p35
    %p38 = scmp.ne.s32.totalorder %s21, %s37
    %p39 = scmp.eq.s32.totalorder %s13, 0
    %p40 = por %p38, %p39
    %s41 = ssub.s32 %s7, %s14
    %p42 = scmp.eq.s32.totalorder %s41, 0
    %s44 = sadd.s32 %s43, 1
    %s45 = scalar_select %p42, %s43, %s44
    %p48 = pneg %p42
    %p49 = scmp.eq.s32.totalorder %s7, 1
    %p50 = por %p48, %p49
    %p51 = scmp.ne.s32.totalorder %s43, %s46
    %p52 = scmp.eq.s32.totalorder %s7, 0
    %p53 = por %p51, %p52
    %p54 = scmp.ne.s32.totalorder %s43, %s46
    %p55 = scmp.eq.s32.totalorder %s12, 1
    %p56 = por %p54, %p55
    %p57 = scmp.ne.s32.totalorder %s46, %s47
    %p58 = scmp.eq.s32.totalorder %s12, 0
    %p59 = por %p57, %p58
    %p60 = scmp.ne.s32.totalorder %s46, %s47
    %p61 = scmp.eq.s32.totalorder %s13, 1
    %p62 = por %p60, %p61
    %p64 = scmp.ne.s32.totalorder %s47, %s63
    %p65 = scmp.eq.s32.totalorder %s13, 0
    %p66 = por %p64, %p65
    %p67 = scmp.le.s32.totalorder 1, %s7
    %p68 = scmp.lt.s32.totalorder %s7, 3
    %p69 = pnand %p67, %p68
    %p70 = pneg %p69
    // Predicated region
    $region9: #{lm_model_forward.32} parent=5 // pred_check
      _
    $region10: #{lm_model_forward.32} parent=5 // pred_check_branch
      %72 = sbr.rel (%p69) target = $region12
    $region11: #{lm_model_forward.32} parent=5 // pred_region
      %s73 = ssub.s32 %s7, 1
    $region12: #{lm_model_forward.32} parent=5 // pred_fallthru
      _
    %p74 = scmp.lt.s32.totalorder %s7, 2
    // Predicated region
    $region13: #{lm_model_forward.32} parent=5 // pred_check
      %p75 = pneg %p74
    $region14: #{lm_model_forward.32} parent=5 // pred_check_branch
      %77 = sbr.rel (%p75) target = $region16
    $region15: #{lm_model_forward.32} parent=5 // pred_region
      // Predicated region
      $region17: #{lm_model_forward.32} parent=15 // pred_check
        %p78 = pneg %p27
      $region18: #{lm_model_forward.32} parent=15 // pred_check_branch
        %80 = sbr.rel (%p78) target = $region20
      $region19: #{lm_model_forward.32} parent=15 // pred_region
        %p81 = scmp.lt.s32.totalorder %s7, 1
        %s82 = scalar_select %p81, %s7, 1
        %s83 = smul.addr %s82, 2
        %s84 = smul.addr %s83, 4
        %s85 = scalar_lea.vmem %s0, %s84
      $region20: #{lm_model_forward.32} parent=15 // pred_fallthru
        _
    $region16: #{lm_model_forward.32} parent=5 // pred_fallthru
      _
    %p86 = scmp.le.s32.totalorder 1, %s7
    %p87 = scmp.lt.s32.totalorder %s7, 3
    %p88 = pnand %p86, %p87
    %p89 = pneg %p88
    // Predicated region
    $region21: #{lm_model_forward.32} parent=5 // pred_check
      _
    $region22: #{lm_model_forward.32} parent=5 // pred_check_branch
      %91 = sbr.rel (%p88) target = $region24
    $region23: #{lm_model_forward.32} parent=5 // pred_region
      %s92 = ssub.s32 %s7, 1
      %p93 = scmp.lt.s32.totalorder %s12, 1
      %s94 = scalar_select %p93, %s12, 1
      %s95 = smul.addr %s94, 2
      %s96 = smul.addr %s95, 4
      %s97 = scalar_lea.vmem %s0, %s96
      %p98 = pneg %p33
      %p99 = pneg %p30
      %p100 = pneg %p59
      %p101 = pneg %p56
      %p102 = scmp.lt.s32.totalorder %s12, 1
      %s103 = scalar_select %p102, %s12, 1
      %s104 = smul.addr %s103, 4
      %s105 = scalar_lea.vmem %s1, %s104
      %p106 = scmp.lt.s32.totalorder %s12, 1
      %s107 = scalar_select %p106, %s12, 1
      %s108 = smul.addr %s107, 2
      %s109 = smul.addr %s108, 4
      %s110 = scalar_lea.vmem %s0, %s109
      %p111 = scmp.lt.s32.totalorder %s12, 1
      %s112 = scalar_select %p111, %s12, 1
      %s113 = smul.addr %s112, 4
      %s114 = scalar_lea.vmem %s1, %s113
      %v116 = vld [vmem:[%s110] sm:$0xff]
      %v117 = vlaneseq
      %v118 = vshrl.u32 %v117, 7
      %v119 = vlaneseq
      %v120 = vand.u32 %v119, 127
      %vm121 = vcmp.le.s32.totalorder %v120, %v118
      %v122 = vunpack.c.l.bf16 %v116
      %v123 = vmul.f32 %v122, 0.17675781
      %v124 = vpack.c.bf16 %v123, %v123
      %v126 = vunpack.c.l.b16 %v116
      %v127 = vpack.c.b16 %v126, %v126
      %128 = vrot.lane.b32.xlu0 %v127, 96
      %v129 = vpop.permute.xlu0 %128
      %vm130 = vcmask 261120
      %v132 = vsel %vm130, %v124, 0
      %v135 = vsel %vm130, %v129, 0
      %137 = vmatpush.bf16.xpose.msra.mxu0 0
      %138 = vmatpush.bf16.xpose.msra.mxu0 0
      %139 = vmatpush.bf16.xpose.msra.mxu0 0
      %140 = vmatpush.bf16.xpose.msra.mxu0 0
      %141 = vmatpush.bf16.xpose.msra.mxu0 0
      %142 = vmatpush.bf16.xpose.msra.mxu0 0
      %143 = vmatpush.bf16.xpose.msra.mxu0 0
      %144 = vmatpush.bf16.xpose.msra.mxu0 %v135
      %145 = vmatmul.bf16.gmra.mxu0 %v132
      %v146 = vpop.f32.mrf.mxu0
      %v147 = vadd.f32 0.0, %v146
      %v148 = vpop.f32.mrf.mxu0
      %149 = vdwg.mxu0
      %v150 = vsel %vm121, %v147, -1e+09
      %vm151 = vcmask 64512
      %v152 = vsel %vm151, %v150, -inf
      %153 = vmax.xlane.f32.xlu0 %v152
      %v154 = vpop.xlane.xlu0 %153
      %v155 = vsub.f32 %v150, %v154
      %v156 = vmul.f32 %v155, 1.442695
      %v157 = vpow.pop %v156
      %v158 = vsel %vm151, %v157, 0.0
      %159 = vadd.xlane.f32.xlu0 %v158
      %v160 = vpop.xlane.xlu0 %159
      %v161 = vrcp.pop %v160
      %v162 = vpack.c.bf16 %v157, %v157
      %163 = vrot.lane.b32.xlu0 %v127, 64
      %v164 = vpop.permute.xlu0 %163
      %v166 = vsel %vm151, %v162, 0
      %vm168 = vcmask 1043456
      %v170 = vsel %vm168, %v164, 0
      %172 = vmatpush.bf16.msra.mxu0 0
      %173 = vmatpush.bf16.msra.mxu0 0
      %174 = vmatpush.bf16.msra.mxu0 0
      %175 = vmatpush.bf16.msra.mxu0 0
      %176 = vmatpush.bf16.msra.mxu0 0
      %177 = vmatpush.bf16.msra.mxu0 0
      %178 = vmatpush.bf16.msra.mxu0 0
      %179 = vmatpush.bf16.msra.mxu0 %v170
      %180 = vmatmul.bf16.gmra.mxu0 %v166
      %v181 = vpop.f32.mrf.mxu0
      %v182 = vadd.f32 0.0, %v181
      %v183 = vpop.f32.mrf.mxu0
      %184 = vdwg.mxu0
      %v185 = vmul.f32 %v182, %v161
      %v186 = vpack.c.bf16 %v185, %v185
      %vm187 = vcmask 257024
      %188 = vst.msk [vmem:[%s114] sm:$0xf] %vm187, %v186
      %190 = vrot.lane.b32.xlu0 %v124, 32
      %v191 = vpop.permute.xlu0 %190
      %v192 = vunpack.c.h.b16 %v116
      %v193 = vpack.c.b16 %v192, %v192
      %v195 = vsel %vm130, %v191, 0
      %v198 = vsel %vm130, %v193, 0
      %200 = vmatpush.bf16.xpose.msra.mxu0 0
      %201 = vmatpush.bf16.xpose.msra.mxu0 0
      %202 = vmatpush.bf16.xpose.msra.mxu0 0
      %203 = vmatpush.bf16.xpose.msra.mxu0 0
      %204 = vmatpush.bf16.xpose.msra.mxu0 0
      %205 = vmatpush.bf16.xpose.msra.mxu0 0
      %206 = vmatpush.bf16.xpose.msra.mxu0 0
      %207 = vmatpush.bf16.xpose.msra.mxu0 %v198
      %208 = vmatmul.bf16.gmra.mxu0 %v195
      %v209 = vpop.f32.mrf.mxu0
      %v210 = vadd.f32 0.0, %v209
      %v211 = vpop.f32.mrf.mxu0
      %212 = vdwg.mxu0
      %v213 = vsel %vm121, %v210, -1e+09
      %v214 = vsel %vm151, %v213, -inf
      %215 = vmax.xlane.f32.xlu0 %v214
      %v216 = vpop.xlane.xlu0 %215
      %v217 = vsub.f32 %v213, %v216
      %v218 = vmul.f32 %v217, 1.442695
      %v219 = vpow.pop %v218
      %v220 = vsel %vm151, %v219, 0.0
      %221 = vadd.xlane.f32.xlu0 %v220
      %v222 = vpop.xlane.xlu0 %221
      %v223 = vrcp.pop %v222
      %v224 = vpack.c.bf16 %v219, %v219
      %225 = vrot.lane.b32.xlu0 %v193, 96
      %v226 = vpop.permute.xlu0 %225
      %v228 = vsel %vm151, %v224, 0
      %v231 = vsel %vm168, %v226, 0
      %233 = vmatpush.bf16.msra.mxu0 0
      %234 = vmatpush.bf16.msra.mxu0 0
      %235 = vmatpush.bf16.msra.mxu0 0
      %236 = vmatpush.bf16.msra.mxu0 0
      %237 = vmatpush.bf16.msra.mxu0 0
      %238 = vmatpush.bf16.msra.mxu0 0
      %239 = vmatpush.bf16.msra.mxu0 0
      %240 = vmatpush.bf16.msra.mxu0 %v231
      %241 = vmatmul.bf16.gmra.mxu0 %v228
      %v242 = vpop.f32.mrf.mxu0
      %v243 = vadd.f32 0.0, %v242
      %v244 = vpop.f32.mrf.mxu0
      %245 = vdwg.mxu0
      %v246 = vmul.f32 %v243, %v223
      %v247 = vpack.c.bf16 %v246, %v246
      %249 = vrot.lane.b32.xlu0 %v247, 32
      %v250 = vpop.permute.xlu0 %249
      %vm252 = vcmask 519424
      %253 = vst.msk [vmem:[%s114] sm:$0xf] %vm252, %v250
      %p254 = scmp.lt.s32.totalorder %s12, 1
      %s255 = scalar_select %p254, %s12, 1
      %s256 = smul.addr %s255, 4
      %s257 = scalar_lea.vmem %s1, %s256
      // Predicated region
      $region25: #{lm_model_forward.32} parent=23 // pred_check
        %p258 = pneg %p56
      $region26: #{lm_model_forward.32} parent=23 // pred_check_branch
        %260 = sbr.rel (%p258) target = $region28
      $region27: #{lm_model_forward.32} parent=23 // pred_region
        _
      $region28: #{lm_model_forward.32} parent=23 // pred_fallthru
        _
    $region24: #{lm_model_forward.32} parent=5 // pred_fallthru
      _
    %p261 = scmp.le.s32.totalorder 2, %s7
    // Predicated region
    $region29: #{lm_model_forward.32} parent=5 // pred_check
      %p262 = pneg %p261
    $region30: #{lm_model_forward.32} parent=5 // pred_check_branch
      %264 = sbr.rel (%p262) target = $region32
    $region31: #{lm_model_forward.32} parent=5 // pred_region
      %s265 = ssub.s32 %s7, 2
      // Predicated region
      $region33: #{lm_model_forward.32} parent=31 // pred_check
        %p266 = pneg %p62
      $region34: #{lm_model_forward.32} parent=31 // pred_check_branch
        %268 = sbr.rel (%p266) target = $region36
      $region35: #{lm_model_forward.32} parent=31 // pred_region
        %p269 = scmp.lt.s32.totalorder %s13, 1
        %s270 = scalar_select %p269, %s13, 1
        %s271 = smul.addr %s270, 4
        %s272 = scalar_lea.vmem %s1, %s271
      $region36: #{lm_model_forward.32} parent=31 // pred_fallthru
        _
    $region32: #{lm_model_forward.32} parent=5 // pred_fallthru
      _
  $region6: #{lm_model_forward.32} parent=0 // loop_footer
    %s11 = sadd.s32 1, %s7
  $region7: #{lm_model_forward.32} parent=0 // loop_footer_branch
    %6 = sbr.rel target = $region3
  $region8: #{lm_model_forward.32} parent=0 // loop_exit
    _

// kernel: lm_model_forward.33
$region0: #{lm_model_forward.33}
  #allocation0 [shape = 'u32[]', space=smem, size = 0x4, offset = 0x4, fixed_abs, tag = 'smem constant byte address 0x4 - core index']
  #allocation1 [shape = 'u32[72,128]{1,0:T(1,128)}', space=vmem, size = 0x9000, scoped, tag = 'internal scratch']
  #allocation2 [shape = 'f32[16,64]{1,0:T(8,128)}', space=vmem, size = 0x2000, scoped, tag = 'scratch operand']
  %s0 = inlined_call_operand.vmem [shape: bf16[16,64], index: 0, kind: input, shape index: {}]
  %s1 = inlined_call_operand.vmem [shape: bf16[64,64], index: 1, kind: input, shape index: {}]
  %s2 = inlined_call_operand.vmem [shape: f32[1,64], index: 2, kind: input, shape index: {}]
  %s3 = inlined_call_operand.vmem [shape: bf16[16,64], index: 3, kind: input, shape index: {}]
  %s4 = inlined_call_operand.vmem [shape: f32[1,64], index: 4, kind: input, shape index: {}]
  %s5 = inlined_call_operand.vmem [shape: f32[1,64], index: 5, kind: input, shape index: {}]
  %s6 = inlined_call_operand.vmem [shape: bf16[16,64], index: 6, kind: output, shape index: {}]
  %s7 = sld [smem:[#allocation0]]
  $region42: #{lm_model_forward.33} parent=0
    _
  %s9 = ssub.s32 1, %s7
  %s10 = scalar_select 0, %s9, %s7
  // Predicated region
  $region2: #{lm_model_forward.33} parent=0 // pred_check
    _
  $region3: #{lm_model_forward.33} parent=0 // pred_check_branch
    %12 = sbr.rel (0) target = $region5
  $region4: #{lm_model_forward.33} parent=0 // pred_region
    _
  $region5: #{lm_model_forward.33} parent=0 // pred_fallthru
    _
  // Predicated region
  $region6: #{lm_model_forward.33} parent=0 // pred_check
    _
  $region7: #{lm_model_forward.33} parent=0 // pred_check_branch
    %14 = sbr.rel (0) target = $region9
  $region8: #{lm_model_forward.33} parent=0 // pred_region
    _
  $region9: #{lm_model_forward.33} parent=0 // pred_fallthru
    _
  // Predicated region
  $region10: #{lm_model_forward.33} parent=0 // pred_check
    _
  $region11: #{lm_model_forward.33} parent=0 // pred_check_branch
    %16 = sbr.rel (0) target = $region13
  $region12: #{lm_model_forward.33} parent=0 // pred_region
    _
  $region13: #{lm_model_forward.33} parent=0 // pred_fallthru
    _
  // Predicated region
  $region14: #{lm_model_forward.33} parent=0 // pred_check
    _
  $region15: #{lm_model_forward.33} parent=0 // pred_check_branch
    %18 = sbr.rel (0) target = $region17
  $region16: #{lm_model_forward.33} parent=0 // pred_region
    _
  $region17: #{lm_model_forward.33} parent=0 // pred_fallthru
    _
  // Predicated region
  $region18: #{lm_model_forward.33} parent=0 // pred_check
    _
  $region19: #{lm_model_forward.33} parent=0 // pred_check_branch
    %20 = sbr.rel (0) target = $region21
  $region20: #{lm_model_forward.33} parent=0 // pred_region
    _
  $region21: #{lm_model_forward.33} parent=0 // pred_fallthru
    _
  // Predicated region
  $region22: #{lm_model_forward.33} parent=0 // pred_check
    _
  $region23: #{lm_model_forward.33} parent=0 // pred_check_branch
    %22 = sbr.rel (0) target = $region25
  $region24: #{lm_model_forward.33} parent=0 // pred_region
    _
  $region25: #{lm_model_forward.33} parent=0 // pred_fallthru
    _
  %p24 = scmp.eq.s32.totalorder 0, 0
  // Predicated region
  $region26: #{lm_model_forward.33} parent=0 // pred_check
    %p25 = pneg %p24
  $region27: #{lm_model_forward.33} parent=0 // pred_check_branch
    %27 = sbr.rel (%p25) target = $region29
  $region28: #{lm_model_forward.33} parent=0 // pred_region
    %vm28 = vcmask 523264
    %29 = vst.msk [vmem:[#allocation2] sm:$0xff] %vm28, 0.0
    %30 = vst.msk [vmem:[#allocation2 + $0x8] sm:$0xff] %vm28, 0.0
  $region29: #{lm_model_forward.33} parent=0 // pred_fallthru
    _
  %v31 = vld [vmem:[#allocation2] sm:$0xff]
  %v32 = vld [vmem:[#allocation2 + $0x8] sm:$0xff]
  %v33 = vld [vmem:[%s0] sm:$0xf]
  %v34 = vld [vmem:[%s0 + $0x4] sm:$0xf]
  %v35 = vld [vmem:[%s1] sm:$0xf]
  %v36 = vld [vmem:[%s1 + $0x4] sm:$0xf]
  %v37 = vld [vmem:[%s1 + $0x8] sm:$0xf]
  %v38 = vld [vmem:[%s1 + $0xc] sm:$0xf]
  %v39 = vld [vmem:[%s1 + $0x10] sm:$0xf]
  %v40 = vld [vmem:[%s1 + $0x14] sm:$0xf]
  %v41 = vld [vmem:[%s1 + $0x18] sm:$0xf]
  %v42 = vld [vmem:[%s1 + $0x1c] sm:$0xf]
  %v45 = vunpack.c.l.b16 %v33
  %v46 = vunpack.c.l.b16 %v34
  %v47 = vpack.c.b16 %v46, %v45
  %v56 = vunpack.c.l.b16 %v35
  %v57 = vunpack.c.l.b16 %v36
  %v58 = vunpack.c.l.b16 %v37
  %v59 = vunpack.c.l.b16 %v38
  %v60 = vunpack.c.l.b16 %v39
  %v61 = vunpack.c.l.b16 %v40
  %v62 = vunpack.c.l.b16 %v41
  %v63 = vunpack.c.l.b16 %v42
  %v64 = vpack.c.b16 %v57, %v56
  %v65 = vpack.c.b16 %v59, %v58
  %v66 = vpack.c.b16 %v61, %v60
  %v67 = vpack.c.b16 %v63, %v62
  %vm72 = vcmask 523264
  %v74 = vsel %vm72, %v47, 0
  %76 = vmatpush.bf16.msra.mxu0 0
  %77 = vmatpush.bf16.msra.mxu0 0
  %78 = vmatpush.bf16.msra.mxu0 0
  %79 = vmatpush.bf16.msra.mxu0 0
  %80 = vmatpush.bf16.msra.mxu0 %v67
  %81 = vmatpush.bf16.msra.mxu0 %v66
  %82 = vmatpush.bf16.msra.mxu0 %v65
  %83 = vmatpush.bf16.msra.mxu0 %v64
  %84 = vmatmul.bf16.gmra.mxu0 %v74
  %v85 = vpop.f32.mrf.mxu0
  %v86 = vadd.f32 0.0, %v85
  %v87 = vpop.f32.mrf.mxu0
  %v88 = vadd.f32 0.0, %v87
  %89 = vdwg.mxu0
  %v90 = vadd.f32 %v31, %v86
  %v91 = vadd.f32 %v32, %v88
  %92 = vst.msk [vmem:[#allocation2] sm:$0xff] %vm72, %v90
  %93 = vst.msk [vmem:[#allocation2 + $0x8] sm:$0xff] %vm72, %v91
  // Predicated region
  $region30: #{lm_model_forward.33} parent=0 // pred_check
    %p94 = pneg %p24
  $region31: #{lm_model_forward.33} parent=0 // pred_check_branch
    %96 = sbr.rel (%p94) target = $region33
  $region32: #{lm_model_forward.33} parent=0 // pred_region
    %v97 = vld [vmem:[#allocation2] sm:$0xff]
    %v98 = vld [vmem:[#allocation2 + $0x8] sm:$0xff]
    %v99 = vld [vmem:[%s2] sm:$0x1]
    %v101 = vperm.slane %v99, 0
    %v103 = vadd.f32 %v97, %v101
    %v104 = vadd.f32 %v98, %v101
    %v105 = vld [vmem:[%s3] sm:$0xf]
    %v106 = vld [vmem:[%s3 + $0x4] sm:$0xf]
    %v107 = vunpack.c.l.bf16 %v105
    %v108 = vunpack.c.l.bf16 %v106
    %v109 = vadd.f32 %v107, %v103
    %v110 = vadd.f32 %v108, %v104
    %v111 = vsel %vm72, %v109, 0.0
    %112 = vadd.xlane.f32.xlu0 %v111
    %v113 = vpop.xlane.xlu0 %112
    %v114 = vsel %vm72, %v110, 0.0
    %115 = vadd.xlane.f32.xlu0 %v114
    %v116 = vpop.xlane.xlu0 %115
    %v117 = vrcp.pop 64.0
    %v118 = vmul.f32 64.0, %v117
    %v119 = vsub.f32 1.0, %v118
    %v120 = vmul.f32 %v117, %v119
    %v121 = vadd.f32 %v117, %v120
    %vm122 = vweird.f32 %v117
    %v123 = vsel %vm122, %v117, %v121
    %v124 = vmul.f32 %v113, %v123
    %v125 = vmul.f32 %v116, %v123
    %v126 = vsub.f32 %v109, %v124
    %v127 = vsub.f32 %v110, %v125
    %v128 = vmul.f32 %v126, %v126
    %v129 = vmul.f32 %v127, %v127
    %v130 = vsel %vm72, %v128, 0.0
    %131 = vadd.xlane.f32.xlu0 %v130
    %v132 = vpop.xlane.xlu0 %131
    %v133 = vsel %vm72, %v129, 0.0
    %134 = vadd.xlane.f32.xlu0 %v133
    %v135 = vpop.xlane.xlu0 %134
    %v136 = vmul.f32 %v132, %v123
    %v137 = vmul.f32 %v135, %v123
    %v138 = vld [vmem:[%s4] sm:$0x1]
    %v139 = vadd.f32 %v136, 1e-05
    %v140 = vadd.f32 %v137, 1e-05
    %v141 = vrsqrt.pop %v139
    %v142 = vmul.f32 %v141, %v139
    %v143 = vmul.f32 %v142, %v141
    %v144 = vmul.f32 0.5, %v143
    %v145 = vsub.f32 1.5, %v144
    %v146 = vmul.f32 %v141, %v145
    %vm147 = vweird.f32 %v139
    %vm148 = vweird.f32 %v141
    %vm149 = vmor %vm147, %vm148
    %v150 = vsel %vm149, %v141, %v146
    %v151 = vrsqrt.pop %v140
    %v152 = vmul.f32 %v151, %v140
    %v153 = vmul.f32 %v152, %v151
    %v154 = vmul.f32 0.5, %v153
    %v155 = vsub.f32 1.5, %v154
    %v156 = vmul.f32 %v151, %v155
    %vm157 = vweird.f32 %v140
    %vm158 = vweird.f32 %v151
    %vm159 = vmor %vm157, %vm158
    %v160 = vsel %vm159, %v151, %v156
    %v161 = vmul.f32 %v126, %v150
    %v162 = vmul.f32 %v127, %v160
    %v164 = vperm.slane %v138, 0
    %v166 = vmul.f32 %v164, %v161
    %v167 = vmul.f32 %v164, %v162
    %v168 = vld [vmem:[%s5] sm:$0x1]
    %v170 = vperm.slane %v168, 0
    %v172 = vadd.f32 %v166, %v170
    %v173 = vadd.f32 %v167, %v170
    %v174 = vpack.c.bf16 %v172, %v172
    %v175 = vpack.c.bf16 %v173, %v173
    %vm176 = vcmask 519168
    %177 = vst.msk [vmem:[%s6] sm:$0xf] %vm176, %v174
    %178 = vst.msk [vmem:[%s6 + $0x4] sm:$0xf] %vm176, %v175
  $region33: #{lm_model_forward.33} parent=0 // pred_fallthru
    _
  // Predicated region
  $region34: #{lm_model_forward.33} parent=0 // pred_check
    _
  $region35: #{lm_model_forward.33} parent=0 // pred_check_branch
    %180 = sbr.rel (0) target = $region37
  $region36: #{lm_model_forward.33} parent=0 // pred_region
    _
  $region37: #{lm_model_forward.33} parent=0 // pred_fallthru
    _
  // Predicated region
  $region38: #{lm_model_forward.33} parent=0 // pred_check
    _
  $region39: #{lm_model_forward.33} parent=0 // pred_check_branch
    %182 = sbr.rel (0) target = $region41
  $region40: #{lm_model_forward.33} parent=0 // pred_region
    _
  $region41: #{lm_model_forward.33} parent=0 // pred_fallthru
    _

// kernel: lm_model_forward.34
$region0: #{lm_model_forward.34}
  #allocation0 [shape = 'u32[]', space=smem, size = 0x4, offset = 0x4, fixed_abs, tag = 'smem constant byte address 0x4 - core index']
  #allocation1 [shape = 'u32[72,128]{1,0:T(1,128)}', space=vmem, size = 0x9000, scoped, tag = 'internal scratch']
  #allocation2 [shape = 'f32[16,256]{1,0:T(8,128)}', space=vmem, size = 0x4000, scoped, tag = 'scratch operand']
  %s0 = inlined_call_operand.vmem [shape: bf16[16,64], index: 0, kind: input, shape index: {}]
  %s1 = inlined_call_operand.vmem [shape: bf16[64,256], index: 1, kind: input, shape index: {}]
  %s2 = inlined_call_operand.vmem [shape: f32[1,256], index: 2, kind: input, shape index: {}]
  %s3 = inlined_call_operand.vmem [shape: bf16[16,256], index: 3, kind: output, shape index: {}]
  %s4 = sld [smem:[#allocation0]]
  $region30: #{lm_model_forward.34} parent=0
    _
  %s6 = ssub.s32 1, %s4
  %s7 = scalar_select 0, %s6, %s4
  // Predicated region
  $region2: #{lm_model_forward.34} parent=0 // pred_check
    _
  $region3: #{lm_model_forward.34} parent=0 // pred_check_branch
    %9 = sbr.rel (0) target = $region5
  $region4: #{lm_model_forward.34} parent=0 // pred_region
    _
  $region5: #{lm_model_forward.34} parent=0 // pred_fallthru
    _
  // Predicated region
  $region6: #{lm_model_forward.34} parent=0 // pred_check
    _
  $region7: #{lm_model_forward.34} parent=0 // pred_check_branch
    %11 = sbr.rel (0) target = $region9
  $region8: #{lm_model_forward.34} parent=0 // pred_region
    _
  $region9: #{lm_model_forward.34} parent=0 // pred_fallthru
    _
  // Predicated region
  $region10: #{lm_model_forward.34} parent=0 // pred_check
    _
  $region11: #{lm_model_forward.34} parent=0 // pred_check_branch
    %13 = sbr.rel (0) target = $region13
  $region12: #{lm_model_forward.34} parent=0 // pred_region
    _
  $region13: #{lm_model_forward.34} parent=0 // pred_fallthru
    _
  %p15 = scmp.eq.s32.totalorder 0, 0
  // Predicated region
  $region14: #{lm_model_forward.34} parent=0 // pred_check
    %p16 = pneg %p15
  $region15: #{lm_model_forward.34} parent=0 // pred_check_branch
    %18 = sbr.rel (%p16) target = $region17
  $region16: #{lm_model_forward.34} parent=0 // pred_region
    %19 = vst [vmem:[#allocation2] sm:$0xff] 0.0
    %20 = vst [vmem:[#allocation2 + $0x8] sm:$0xff] 0.0
    %21 = vst [vmem:[#allocation2 + $0x10] sm:$0xff] 0.0
    %22 = vst [vmem:[#allocation2 + $0x18] sm:$0xff] 0.0
  $region17: #{lm_model_forward.34} parent=0 // pred_fallthru
    _
  %v23 = vld [vmem:[#allocation2] sm:$0xff]
  %v24 = vld [vmem:[#allocation2 + $0x8] sm:$0xff]
  %v25 = vld [vmem:[#allocation2 + $0x10] sm:$0xff]
  %v26 = vld [vmem:[#allocation2 + $0x18] sm:$0xff]
  %v27 = vld [vmem:[%s0] sm:$0xf]
  %v28 = vld [vmem:[%s0 + $0x4] sm:$0xf]
  %v29 = vld [vmem:[%s1] sm:$0xff]
  %v30 = vld [vmem:[%s1 + $0x8] sm:$0xff]
  %v31 = vld [vmem:[%s1 + $0x10] sm:$0xff]
  %v32 = vld [vmem:[%s1 + $0x18] sm:$0xff]
  %v33 = vld [vmem:[%s1 + $0x20] sm:$0xff]
  %v34 = vld [vmem:[%s1 + $0x28] sm:$0xff]
  %v35 = vld [vmem:[%s1 + $0x30] sm:$0xff]
  %v36 = vld [vmem:[%s1 + $0x38] sm:$0xff]
  %v39 = vunpack.c.l.b16 %v27
  %v40 = vunpack.c.l.b16 %v28
  %v41 = vpack.c.b16 %v40, %v39
  %v50 = vunpack.c.l.b16 %v29
  %v51 = vunpack.c.h.b16 %v29
  %v52 = vunpack.c.l.b16 %v30
  %v53 = vunpack.c.h.b16 %v30
  %v54 = vunpack.c.l.b16 %v31
  %v55 = vunpack.c.h.b16 %v31
  %v56 = vunpack.c.l.b16 %v32
  %v57 = vunpack.c.h.b16 %v32
  %v58 = vunpack.c.l.b16 %v33
  %v59 = vunpack.c.h.b16 %v33
  %v60 = vunpack.c.l.b16 %v34
  %v61 = vunpack.c.h.b16 %v34
  %v62 = vunpack.c.l.b16 %v35
  %v63 = vunpack.c.h.b16 %v35
  %v64 = vunpack.c.l.b16 %v36
  %v65 = vunpack.c.h.b16 %v36
  %v66 = vpack.c.b16 %v52, %v50
  %v67 = vpack.c.b16 %v53, %v51
  %v68 = vpack.c.b16 %v56, %v54
  %v69 = vpack.c.b16 %v57, %v55
  %v70 = vpack.c.b16 %v60, %v58
  %v71 = vpack.c.b16 %v61, %v59
  %v72 = vpack.c.b16 %v64, %v62
  %v73 = vpack.c.b16 %v65, %v63
  %vm82 = vcmask 523264
  %v84 = vsel %vm82, %v41, 0
  %86 = vmatpush.bf16.msra.mxu0 0
  %87 = vmatpush.bf16.msra.mxu0 0
  %88 = vmatpush.bf16.msra.mxu0 0
  %89 = vmatpush.bf16.msra.mxu0 0
  %90 = vmatpush.bf16.msra.mxu0 %v72
  %91 = vmatpush.bf16.msra.mxu0 %v70
  %92 = vmatpush.bf16.msra.mxu0 %v68
  %93 = vmatpush.bf16.msra.mxu0 %v66
  %94 = vmatmul.bf16.gmra.mxu0 %v84
  %v95 = vpop.f32.mrf.mxu0
  %v96 = vadd.f32 0.0, %v95
  %v97 = vpop.f32.mrf.mxu0
  %v98 = vadd.f32 0.0, %v97
  %99 = vdwg.mxu0
  %100 = vmatpush.bf16.msra.mxu0 0
  %101 = vmatpush.bf16.msra.mxu0 0
  %102 = vmatpush.bf16.msra.mxu0 0
  %103 = vmatpush.bf16.msra.mxu0 0
  %104 = vmatpush.bf16.msra.mxu0 %v73
  %105 = vmatpush.bf16.msra.mxu0 %v71
  %106 = vmatpush.bf16.msra.mxu0 %v69
  %107 = vmatpush.bf16.msra.mxu0 %v67
  %108 = vmatmul.bf16.gmra.mxu0 %v84
  %v109 = vpop.f32.mrf.mxu0
  %v110 = vadd.f32 0.0, %v109
  %v111 = vpop.f32.mrf.mxu0
  %v112 = vadd.f32 0.0, %v111
  %113 = vdwg.mxu0
  %v114 = vadd.f32 %v23, %v96
  %v115 = vadd.f32 %v24, %v110
  %v116 = vadd.f32 %v25, %v98
  %v117 = vadd.f32 %v26, %v112
  %118 = vst [vmem:[#allocation2] sm:$0xff] %v114
  %119 = vst [vmem:[#allocation2 + $0x8] sm:$0xff] %v115
  %120 = vst [vmem:[#allocation2 + $0x10] sm:$0xff] %v116
  %121 = vst [vmem:[#allocation2 + $0x18] sm:$0xff] %v117
  // Predicated region
  $region18: #{lm_model_forward.34} parent=0 // pred_check
    %p122 = pneg %p15
  $region19: #{lm_model_forward.34} parent=0 // pred_check_branch
    %124 = sbr.rel (%p122) target = $region21
  $region20: #{lm_model_forward.34} parent=0 // pred_region
    %v125 = vld [vmem:[#allocation2] sm:$0xff]
    %v126 = vld [vmem:[#allocation2 + $0x8] sm:$0xff]
    %v127 = vld [vmem:[#allocation2 + $0x10] sm:$0xff]
    %v128 = vld [vmem:[#allocation2 + $0x18] sm:$0xff]
    %v129 = vld [vmem:[%s2] sm:$0x3]
    %v131 = vperm.slane %v129, 0
    %v132 = vperm.slane %v129, 1
    %v135 = vadd.f32 %v125, %v131
    %v136 = vadd.f32 %v126, %v132
    %v137 = vadd.f32 %v127, %v131
    %v138 = vadd.f32 %v128, %v132
    %v139 = vmul.f32 %v135, 0.5
    %v140 = vmul.f32 %v136, 0.5
    %v141 = vmul.f32 %v137, 0.5
    %v142 = vmul.f32 %v138, 0.5
    %v143 = vmul.f32 %v135, 0.044715
    %v144 = vmul.f32 %v136, 0.044715
    %v145 = vmul.f32 %v137, 0.044715
    %v146 = vmul.f32 %v138, 0.044715
    %v147 = vmul.f32 %v143, %v135
    %v148 = vmul.f32 %v144, %v136
    %v149 = vmul.f32 %v145, %v137
    %v150 = vmul.f32 %v146, %v138
    %v151 = vmul.f32 %v147, %v135
    %v152 = vmul.f32 %v148, %v136
    %v153 = vmul.f32 %v149, %v137
    %v154 = vmul.f32 %v150, %v138
    %v155 = vadd.f32 %v135, %v151
    %v156 = vadd.f32 %v136, %v152
    %v157 = vadd.f32 %v137, %v153
    %v158 = vadd.f32 %v138, %v154
    %v159 = vmul.f32 %v155, 0.7978846
    %v160 = vmul.f32 %v156, 0.7978846
    %v161 = vmul.f32 %v157, 0.7978846
    %v162 = vmul.f32 %v158, 0.7978846
    %v163 = vtanh.pop %v159
    %v164 = vtanh.pop %v160
    %v165 = vtanh.pop %v161
    %v166 = vtanh.pop %v162
    %v167 = vadd.f32 %v163, 1.0
    %v168 = vadd.f32 %v164, 1.0
    %v169 = vadd.f32 %v165, 1.0
    %v170 = vadd.f32 %v166, 1.0
    %v171 = vmul.f32 %v139, %v167
    %v172 = vmul.f32 %v140, %v168
    %v173 = vmul.f32 %v141, %v169
    %v174 = vmul.f32 %v142, %v170
    %v175 = vpack.c.bf16 %v172, %v171
    %v176 = vpack.c.bf16 %v174, %v173
    %177 = vst [vmem:[%s3] sm:$0xff] %v175
    %178 = vst [vmem:[%s3 + $0x8] sm:$0xff] %v176
  $region21: #{lm_model_forward.34} parent=0 // pred_fallthru
    _
  // Predicated region
  $region22: #{lm_model_forward.34} parent=0 // pred_check
    _
  $region23: #{lm_model_forward.34} parent=0 // pred_check_branch
    %180 = sbr.rel (0) target = $region25
  $region24: #{lm_model_forward.34} parent=0 // pred_region
    _
  $region25: #{lm_model_forward.34} parent=0 // pred_fallthru
    _
  // Predicated region
  $region26: #{lm_model_forward.34} parent=0 // pred_check
    _
  $region27: #{lm_model_forward.34} parent=0 // pred_check_branch
    %182 = sbr.rel (0) target = $region29
  $region28: #{lm_model_forward.34} parent=0 // pred_region
    _
  $region29: #{lm_model_forward.34} parent=0 // pred_fallthru
    _

// kernel: lm_model_forward.36
$region0: #{lm_model_forward.36}
  #allocation0 [shape = 'u32[]', space=smem, size = 0x4, offset = 0x4, fixed_abs, tag = 'smem constant byte address 0x4 - core index']
  #allocation1 [shape = 'u32[72,128]{1,0:T(1,128)}', space=vmem, size = 0x9000, scoped, tag = 'internal scratch']
  #allocation2 [shape = 'f32[16,32]{1,0:T(8,128)}', space=vmem, size = 0x2000, scoped, tag = 'scratch operand']
  %s0 = inlined_call_operand.vmem [shape: bf16[16,64], index: 0, kind: input, shape index: {}]
  %s1 = inlined_call_operand.vmem [shape: bf16[64,32], index: 1, kind: input, shape index: {}]
  %s2 = inlined_call_operand.vmem [shape: f32[1,32], index: 2, kind: input, shape index: {}]
  %s3 = inlined_call_operand.vmem [shape: bf16[16,32], index: 3, kind: output, shape index: {}]
  %s4 = sld [smem:[#allocation0]]
  $region30: #{lm_model_forward.36} parent=0
    _
  %s6 = ssub.s32 1, %s4
  %s7 = scalar_select 0, %s6, %s4
  // Predicated region
  $region2: #{lm_model_forward.36} parent=0 // pred_check
    _
  $region3: #{lm_model_forward.36} parent=0 // pred_check_branch
    %9 = sbr.rel (0) target = $region5
  $region4: #{lm_model_forward.36} parent=0 // pred_region
    _
  $region5: #{lm_model_forward.36} parent=0 // pred_fallthru
    _
  // Predicated region
  $region6: #{lm_model_forward.36} parent=0 // pred_check
    _
  $region7: #{lm_model_forward.36} parent=0 // pred_check_branch
    %11 = sbr.rel (0) target = $region9
  $region8: #{lm_model_forward.36} parent=0 // pred_region
    _
  $region9: #{lm_model_forward.36} parent=0 // pred_fallthru
    _
  // Predicated region
  $region10: #{lm_model_forward.36} parent=0 // pred_check
    _
  $region11: #{lm_model_forward.36} parent=0 // pred_check_branch
    %13 = sbr.rel (0) target = $region13
  $region12: #{lm_model_forward.36} parent=0 // pred_region
    _
  $region13: #{lm_model_forward.36} parent=0 // pred_fallthru
    _
  %p15 = scmp.eq.s32.totalorder 0, 0
  // Predicated region
  $region14: #{lm_model_forward.36} parent=0 // pred_check
    %p16 = pneg %p15
  $region15: #{lm_model_forward.36} parent=0 // pred_check_branch
    %18 = sbr.rel (%p16) target = $region17
  $region16: #{lm_model_forward.36} parent=0 // pred_region
    %vm19 = vcmask 261120
    %20 = vst.msk [vmem:[#allocation2] sm:$0xff] %vm19, 0.0
    %21 = vst.msk [vmem:[#allocation2 + $0x8] sm:$0xff] %vm19, 0.0
  $region17: #{lm_model_forward.36} parent=0 // pred_fallthru
    _
  %v22 = vld [vmem:[#allocation2] sm:$0xff]
  %v23 = vld [vmem:[#allocation2 + $0x8] sm:$0xff]
  %v24 = vld [vmem:[%s0] sm:$0xf]
  %v25 = vld [vmem:[%s0 + $0x4] sm:$0xf]
  %v26 = vld [vmem:[%s1] sm:$0xf]
  %v27 = vld [vmem:[%s1 + $0x4] sm:$0xf]
  %v28 = vld [vmem:[%s1 + $0x8] sm:$0xf]
  %v29 = vld [vmem:[%s1 + $0xc] sm:$0xf]
  %v30 = vld [vmem:[%s1 + $0x10] sm:$0xf]
  %v31 = vld [vmem:[%s1 + $0x14] sm:$0xf]
  %v32 = vld [vmem:[%s1 + $0x18] sm:$0xf]
  %v33 = vld [vmem:[%s1 + $0x1c] sm:$0xf]
  %v36 = vunpack.c.l.b16 %v24
  %v37 = vunpack.c.l.b16 %v25
  %v38 = vpack.c.b16 %v37, %v36
  %v47 = vunpack.c.l.b16 %v26
  %v48 = vunpack.c.l.b16 %v27
  %v49 = vunpack.c.l.b16 %v28
  %v50 = vunpack.c.l.b16 %v29
  %v51 = vunpack.c.l.b16 %v30
  %v52 = vunpack.c.l.b16 %v31
  %v53 = vunpack.c.l.b16 %v32
  %v54 = vunpack.c.l.b16 %v33
  %v55 = vpack.c.b16 %v48, %v47
  %v56 = vpack.c.b16 %v50, %v49
  %v57 = vpack.c.b16 %v52, %v51
  %v58 = vpack.c.b16 %v54, %v53
  %vm63 = vcmask 523264
  %v65 = vsel %vm63, %v38, 0
  %67 = vmatpush.bf16.msra.mxu0 0
  %68 = vmatpush.bf16.msra.mxu0 0
  %69 = vmatpush.bf16.msra.mxu0 0
  %70 = vmatpush.bf16.msra.mxu0 0
  %71 = vmatpush.bf16.msra.mxu0 %v58
  %72 = vmatpush.bf16.msra.mxu0 %v57
  %73 = vmatpush.bf16.msra.mxu0 %v56
  %74 = vmatpush.bf16.msra.mxu0 %v55
  %75 = vmatmul.bf16.gmra.mxu0 %v65
  %v76 = vpop.f32.mrf.mxu0
  %v77 = vadd.f32 0.0, %v76
  %v78 = vpop.f32.mrf.mxu0
  %v79 = vadd.f32 0.0, %v78
  %80 = vdwg.mxu0
  %v81 = vadd.f32 %v22, %v77
  %v82 = vadd.f32 %v23, %v79
  %vm83 = vcmask 261120
  %84 = vst.msk [vmem:[#allocation2] sm:$0xff] %vm83, %v81
  %85 = vst.msk [vmem:[#allocation2 + $0x8] sm:$0xff] %vm83, %v82
  // Predicated region
  $region18: #{lm_model_forward.36} parent=0 // pred_check
    %p86 = pneg %p15
  $region19: #{lm_model_forward.36} parent=0 // pred_check_branch
    %88 = sbr.rel (%p86) target = $region21
  $region20: #{lm_model_forward.36} parent=0 // pred_region
    %v89 = vld [vmem:[#allocation2] sm:$0xff]
    %v90 = vld [vmem:[#allocation2 + $0x8] sm:$0xff]
    %v91 = vld [vmem:[%s2] sm:$0x1]
    %v93 = vperm.slane %v91, 0
    %v95 = vadd.f32 %v89, %v93
    %v96 = vadd.f32 %v90, %v93
    %v97 = vpack.c.bf16 %v95, %v95
    %v98 = vpack.c.bf16 %v96, %v96
    %vm99 = vcmask 257024
    %100 = vst.msk [vmem:[%s3] sm:$0xf] %vm99, %v97
    %101 = vst.msk [vmem:[%s3 + $0x4] sm:$0xf] %vm99, %v98
  $region21: #{lm_model_forward.36} parent=0 // pred_fallthru
    _
  // Predicated region
  $region22: #{lm_model_forward.36} parent=0 // pred_check
    _
  $region23: #{lm_model_forward.36} parent=0 // pred_check_branch
    %103 = sbr.rel (0) target = $region25
  $region24: #{lm_model_forward.36} parent=0 // pred_region
    _
  $region25: #{lm_model_forward.36} parent=0 // pred_fallthru
    _
  // Predicated region
  $region26: #{lm_model_forward.36} parent=0 // pred_check
    _
  $region27: #{lm_model_forward.36} parent=0 // pred_check_branch
    %105 = sbr.rel (0) target = $region29
  $region28: #{lm_model_forward.36} parent=0 // pred_region
    _
  $region29: #{lm_model_forward.36} parent=0 // pred_fallthru
    _

// kernel: lm_model_forward.35
$region0: #{lm_model_forward.35}
  #allocation0 [shape = 'u32[]', space=smem, size = 0x4, offset = 0x4, fixed_abs, tag = 'smem constant byte address 0x4 - core index']
  #allocation1 [shape = 'u32[72,128]{1,0:T(1,128)}', space=vmem, size = 0x9000, scoped, tag = 'internal scratch']
  #allocation2 [shape = 'f32[16,64]{1,0:T(8,128)}', space=vmem, size = 0x2000, scoped, tag = 'scratch operand']
  %s0 = inlined_call_operand.vmem [shape: bf16[16,256], index: 0, kind: input, shape index: {}]
  %s1 = inlined_call_operand.vmem [shape: bf16[256,64], index: 1, kind: input, shape index: {}]
  %s2 = inlined_call_operand.vmem [shape: f32[1,64], index: 2, kind: input, shape index: {}]
  %s3 = inlined_call_operand.vmem [shape: bf16[16,64], index: 3, kind: input, shape index: {}]
  %s4 = inlined_call_operand.vmem [shape: f32[1,64], index: 4, kind: input, shape index: {}]
  %s5 = inlined_call_operand.vmem [shape: f32[1,64], index: 5, kind: input, shape index: {}]
  %s6 = inlined_call_operand.vmem [shape: bf16[16,64], index: 6, kind: output, shape index: {}]
  %s7 = sld [smem:[#allocation0]]
  $region42: #{lm_model_forward.35} parent=0
    _
  %s9 = ssub.s32 1, %s7
  %s10 = scalar_select 0, %s9, %s7
  // Predicated region
  $region2: #{lm_model_forward.35} parent=0 // pred_check
    _
  $region3: #{lm_model_forward.35} parent=0 // pred_check_branch
    %12 = sbr.rel (0) target = $region5
  $region4: #{lm_model_forward.35} parent=0 // pred_region
    _
  $region5: #{lm_model_forward.35} parent=0 // pred_fallthru
    _
  // Predicated region
  $region6: #{lm_model_forward.35} parent=0 // pred_check
    _
  $region7: #{lm_model_forward.35} parent=0 // pred_check_branch
    %14 = sbr.rel (0) target = $region9
  $region8: #{lm_model_forward.35} parent=0 // pred_region
    _
  $region9: #{lm_model_forward.35} parent=0 // pred_fallthru
    _
  // Predicated region
  $region10: #{lm_model_forward.35} parent=0 // pred_check
    _
  $region11: #{lm_model_forward.35} parent=0 // pred_check_branch
    %16 = sbr.rel (0) target = $region13
  $region12: #{lm_model_forward.35} parent=0 // pred_region
    _
  $region13: #{lm_model_forward.35} parent=0 // pred_fallthru
    _
  // Predicated region
  $region14: #{lm_model_forward.35} parent=0 // pred_check
    _
  $region15: #{lm_model_forward.35} parent=0 // pred_check_branch
    %18 = sbr.rel (0) target = $region17
  $region16: #{lm_model_forward.35} parent=0 // pred_region
    _
  $region17: #{lm_model_forward.35} parent=0 // pred_fallthru
    _
  // Predicated region
  $region18: #{lm_model_forward.35} parent=0 // pred_check
    _
  $region19: #{lm_model_forward.35} parent=0 // pred_check_branch
    %20 = sbr.rel (0) target = $region21
  $region20: #{lm_model_forward.35} parent=0 // pred_region
    _
  $region21: #{lm_model_forward.35} parent=0 // pred_fallthru
    _
  // Predicated region
  $region22: #{lm_model_forward.35} parent=0 // pred_check
    _
  $region23: #{lm_model_forward.35} parent=0 // pred_check_branch
    %22 = sbr.rel (0) target = $region25
  $region24: #{lm_model_forward.35} parent=0 // pred_region
    _
  $region25: #{lm_model_forward.35} parent=0 // pred_fallthru
    _
  %p23 = scmp.eq.s32.totalorder 0, 0
  // Predicated region
  $region26: #{lm_model_forward.35} parent=0 // pred_check
    %p24 = pneg %p23
  $region27: #{lm_model_forward.35} parent=0 // pred_check_branch
    %26 = sbr.rel (%p24) target = $region29
  $region28: #{lm_model_forward.35} parent=0 // pred_region
    %vm27 = vcmask 523264
    %28 = vst.msk [vmem:[#allocation2] sm:$0xff] %vm27, 0.0
    %29 = vst.msk [vmem:[#allocation2 + $0x8] sm:$0xff] %vm27, 0.0
  $region29: #{lm_model_forward.35} parent=0 // pred_fallthru
    _
  %v30 = vld [vmem:[#allocation2] sm:$0xff]
  %v31 = vld [vmem:[#allocation2 + $0x8] sm:$0xff]
  %v32 = vld [vmem:[%s0] sm:$0xff]
  %v33 = vld [vmem:[%s0 + $0x8] sm:$0xff]
  %v34 = vld [vmem:[%s1] sm:$0xf]
  %v35 = vld [vmem:[%s1 + $0x4] sm:$0xf]
  %v36 = vld [vmem:[%s1 + $0x8] sm:$0xf]
  %v37 = vld [vmem:[%s1 + $0xc] sm:$0xf]
  %v38 = vld [vmem:[%s1 + $0x10] sm:$0xf]
  %v39 = vld [vmem:[%s1 + $0x14] sm:$0xf]
  %v40 = vld [vmem:[%s1 + $0x18] sm:$0xf]
  %v41 = vld [vmem:[%s1 + $0x1c] sm:$0xf]
  %v42 = vld [vmem:[%s1 + $0x20] sm:$0xf]
  %v43 = vld [vmem:[%s1 + $0x24] sm:$0xf]
  %v44 = vld [vmem:[%s1 + $0x28] sm:$0xf]
  %v45 = vld [vmem:[%s1 + $0x2c] sm:$0xf]
  %v46 = vld [vmem:[%s1 + $0x30] sm:$0xf]
  %v47 = vld [vmem:[%s1 + $0x34] sm:$0xf]
  %v48 = vld [vmem:[%s1 + $0x38] sm:$0xf]
  %v49 = vld [vmem:[%s1 + $0x3c] sm:$0xf]
  %v50 = vld [vmem:[%s1 + $0x40] sm:$0xf]
  %v51 = vld [vmem:[%s1 + $0x44] sm:$0xf]
  %v52 = vld [vmem:[%s1 + $0x48] sm:$0xf]
  %v53 = vld [vmem:[%s1 + $0x4c] sm:$0xf]
  %v54 = vld [vmem:[%s1 + $0x50] sm:$0xf]
  %v55 = vld [vmem:[%s1 + $0x54] sm:$0xf]
  %v56 = vld [vmem:[%s1 + $0x58] sm:$0xf]
  %v57 = vld [vmem:[%s1 + $0x5c] sm:$0xf]
  %v58 = vld [vmem:[%s1 + $0x60] sm:$0xf]
  %v59 = vld [vmem:[%s1 + $0x64] sm:$0xf]
  %v60 = vld [vmem:[%s1 + $0x68] sm:$0xf]
  %v61 = vld [vmem:[%s1 + $0x6c] sm:$0xf]
  %v62 = vld [vmem:[%s1 + $0x70] sm:$0xf]
  %v63 = vld [vmem:[%s1 + $0x74] sm:$0xf]
  %v64 = vld [vmem:[%s1 + $0x78] sm:$0xf]
  %v65 = vld [vmem:[%s1 + $0x7c] sm:$0xf]
  %v68 = vunpack.c.l.b16 %v32
  %v69 = vunpack.c.h.b16 %v32
  %v70 = vunpack.c.l.b16 %v33
  %v71 = vunpack.c.h.b16 %v33
  %v72 = vpack.c.b16 %v70, %v68
  %v73 = vpack.c.b16 %v71, %v69
  %v108 = vunpack.c.l.b16 %v34
  %v109 = vunpack.c.l.b16 %v35
  %v110 = vunpack.c.l.b16 %v36
  %v111 = vunpack.c.l.b16 %v37
  %v112 = vunpack.c.l.b16 %v38
  %v113 = vunpack.c.l.b16 %v39
  %v114 = vunpack.c.l.b16 %v40
  %v115 = vunpack.c.l.b16 %v41
  %v116 = vunpack.c.l.b16 %v42
  %v117 = vunpack.c.l.b16 %v43
  %v118 = vunpack.c.l.b16 %v44
  %v119 = vunpack.c.l.b16 %v45
  %v120 = vunpack.c.l.b16 %v46
  %v121 = vunpack.c.l.b16 %v47
  %v122 = vunpack.c.l.b16 %v48
  %v123 = vunpack.c.l.b16 %v49
  %v124 = vunpack.c.l.b16 %v50
  %v125 = vunpack.c.l.b16 %v51
  %v126 = vunpack.c.l.b16 %v52
  %v127 = vunpack.c.l.b16 %v53
  %v128 = vunpack.c.l.b16 %v54
  %v129 = vunpack.c.l.b16 %v55
  %v130 = vunpack.c.l.b16 %v56
  %v131 = vunpack.c.l.b16 %v57
  %v132 = vunpack.c.l.b16 %v58
  %v133 = vunpack.c.l.b16 %v59
  %v134 = vunpack.c.l.b16 %v60
  %v135 = vunpack.c.l.b16 %v61
  %v136 = vunpack.c.l.b16 %v62
  %v137 = vunpack.c.l.b16 %v63
  %v138 = vunpack.c.l.b16 %v64
  %v139 = vunpack.c.l.b16 %v65
  %v140 = vpack.c.b16 %v109, %v108
  %v141 = vpack.c.b16 %v111, %v110
  %v142 = vpack.c.b16 %v113, %v112
  %v143 = vpack.c.b16 %v115, %v114
  %v144 = vpack.c.b16 %v117, %v116
  %v145 = vpack.c.b16 %v119, %v118
  %v146 = vpack.c.b16 %v121, %v120
  %v147 = vpack.c.b16 %v123, %v122
  %v148 = vpack.c.b16 %v125, %v124
  %v149 = vpack.c.b16 %v127, %v126
  %v150 = vpack.c.b16 %v129, %v128
  %v151 = vpack.c.b16 %v131, %v130
  %v152 = vpack.c.b16 %v133, %v132
  %v153 = vpack.c.b16 %v135, %v134
  %v154 = vpack.c.b16 %v137, %v136
  %v155 = vpack.c.b16 %v139, %v138
  %172 = vmatpush.bf16.msra.mxu0 %v147
  %173 = vmatpush.bf16.msra.mxu0 %v146
  %174 = vmatpush.bf16.msra.mxu0 %v145
  %175 = vmatpush.bf16.msra.mxu0 %v144
  %176 = vmatpush.bf16.msra.mxu0 %v143
  %177 = vmatpush.bf16.msra.mxu0 %v142
  %178 = vmatpush.bf16.msra.mxu0 %v141
  %179 = vmatpush.bf16.msra.mxu0 %v140
  %180 = vmatmul.bf16.gmra.mxu0 %v72
  %v181 = vpop.f32.mrf.mxu0
  %v182 = vadd.f32 0.0, %v181
  %v183 = vpop.f32.mrf.mxu0
  %v184 = vadd.f32 0.0, %v183
  %185 = vdwg.mxu0
  %186 = vmatpush.bf16.msra.mxu0 %v155
  %187 = vmatpush.bf16.msra.mxu0 %v154
  %188 = vmatpush.bf16.msra.mxu0 %v153
  %189 = vmatpush.bf16.msra.mxu0 %v152
  %190 = vmatpush.bf16.msra.mxu0 %v151
  %191 = vmatpush.bf16.msra.mxu0 %v150
  %192 = vmatpush.bf16.msra.mxu0 %v149
  %193 = vmatpush.bf16.msra.mxu0 %v148
  %194 = vmatmul.bf16.gmra.mxu0 %v73
  %v195 = vpop.f32.mrf.mxu0
  %v196 = vadd.f32 %v182, %v195
  %v197 = vpop.f32.mrf.mxu0
  %v198 = vadd.f32 %v184, %v197
  %199 = vdwg.mxu0
  %v200 = vadd.f32 %v30, %v196
  %v201 = vadd.f32 %v31, %v198
  %vm202 = vcmask 523264
  %203 = vst.msk [vmem:[#allocation2] sm:$0xff] %vm202, %v200
  %204 = vst.msk [vmem:[#allocation2 + $0x8] sm:$0xff] %vm202, %v201
  // Predicated region
  $region30: #{lm_model_forward.35} parent=0 // pred_check
    %p205 = pneg %p23
  $region31: #{lm_model_forward.35} parent=0 // pred_check_branch
    %207 = sbr.rel (%p205) target = $region33
  $region32: #{lm_model_forward.35} parent=0 // pred_region
    %v208 = vld [vmem:[#allocation2] sm:$0xff]
    %v209 = vld [vmem:[#allocation2 + $0x8] sm:$0xff]
    %v210 = vld [vmem:[%s2] sm:$0x1]
    %v212 = vperm.slane %v210, 0
    %v214 = vadd.f32 %v208, %v212
    %v215 = vadd.f32 %v209, %v212
    %v216 = vld [vmem:[%s3] sm:$0xf]
    %v217 = vld [vmem:[%s3 + $0x4] sm:$0xf]
    %v218 = vunpack.c.l.bf16 %v216
    %v219 = vunpack.c.l.bf16 %v217
    %v220 = vadd.f32 %v218, %v214
    %v221 = vadd.f32 %v219, %v215
    %v222 = vsel %vm202, %v220, 0.0
    %223 = vadd.xlane.f32.xlu0 %v222
    %v224 = vpop.xlane.xlu0 %223
    %v225 = vsel %vm202, %v221, 0.0
    %226 = vadd.xlane.f32.xlu0 %v225
    %v227 = vpop.xlane.xlu0 %226
    %v228 = vrcp.pop 64.0
    %v229 = vmul.f32 64.0, %v228
    %v230 = vsub.f32 1.0, %v229
    %v231 = vmul.f32 %v228, %v230
    %v232 = vadd.f32 %v228, %v231
    %vm233 = vweird.f32 %v228
    %v234 = vsel %vm233, %v228, %v232
    %v235 = vmul.f32 %v224, %v234
    %v236 = vmul.f32 %v227, %v234
    %v237 = vsub.f32 %v220, %v235
    %v238 = vsub.f32 %v221, %v236
    %v239 = vmul.f32 %v237, %v237
    %v240 = vmul.f32 %v238, %v238
    %v241 = vsel %vm202, %v239, 0.0
    %242 = vadd.xlane.f32.xlu0 %v241
    %v243 = vpop.xlane.xlu0 %242
    %v244 = vsel %vm202, %v240, 0.0
    %245 = vadd.xlane.f32.xlu0 %v244
    %v246 = vpop.xlane.xlu0 %245
    %v247 = vmul.f32 %v243, %v234
    %v248 = vmul.f32 %v246, %v234
    %v249 = vld [vmem:[%s4] sm:$0x1]
    %v250 = vadd.f32 %v247, 1e-05
    %v251 = vadd.f32 %v248, 1e-05
    %v252 = vrsqrt.pop %v250
    %v253 = vmul.f32 %v252, %v250
    %v254 = vmul.f32 %v253, %v252
    %v255 = vmul.f32 0.5, %v254
    %v256 = vsub.f32 1.5, %v255
    %v257 = vmul.f32 %v252, %v256
    %vm258 = vweird.f32 %v250
    %vm259 = vweird.f32 %v252
    %vm260 = vmor %vm258, %vm259
    %v261 = vsel %vm260, %v252, %v257
    %v262 = vrsqrt.pop %v251
    %v263 = vmul.f32 %v262, %v251
    %v264 = vmul.f32 %v263, %v262
    %v265 = vmul.f32 0.5, %v264
    %v266 = vsub.f32 1.5, %v265
    %v267 = vmul.f32 %v262, %v266
    %vm268 = vweird.f32 %v251
    %vm269 = vweird.f32 %v262
    %vm270 = vmor %vm268, %vm269
    %v271 = vsel %vm270, %v262, %v267
    %v272 = vmul.f32 %v237, %v261
    %v273 = vmul.f32 %v238, %v271
    %v275 = vperm.slane %v249, 0
    %v277 = vmul.f32 %v275, %v272
    %v278 = vmul.f32 %v275, %v273
    %v279 = vld [vmem:[%s5] sm:$0x1]
    %v281 = vperm.slane %v279, 0
    %v283 = vadd.f32 %v277, %v281
    %v284 = vadd.f32 %v278, %v281
    %v285 = vpack.c.bf16 %v283, %v283
    %v286 = vpack.c.bf16 %v284, %v284
    %vm287 = vcmask 519168
    %288 = vst.msk [vmem:[%s6] sm:$0xf] %vm287, %v285
    %289 = vst.msk [vmem:[%s6 + $0x4] sm:$0xf] %vm287, %v286
  $region33: #{lm_model_forward.35} parent=0 // pred_fallthru
    _
  // Predicated region
  $region34: #{lm_model_forward.35} parent=0 // pred_check
    _
  $region35: #{lm_model_forward.35} parent=0 // pred_check_branch
    %291 = sbr.rel (0) target = $region37
  $region36: #{lm_model_forward.35} parent=0 // pred_region
    _
  $region37: #{lm_model_forward.35} parent=0 // pred_fallthru
    _
  // Predicated region
  $region38: #{lm_model_forward.35} parent=0 // pred_check
    _
  $region39: #{lm_model_forward.35} parent=0 // pred_check_branch
    %293 = sbr.rel (0) target = $region41
  $region40: #{lm_model_forward.35} parent=0 // pred_region
    _
  $region41: #{lm_model_forward.35} parent=0 // pred_fallthru
    _

// kernel: lm_model_forward.37
$region0: #{lm_model_forward.37}
  #allocation0 [shape = 'u32[]', space=smem, size = 0x4, offset = 0x4, fixed_abs, tag = 'smem constant byte address 0x4 - core index']
  #allocation1 [shape = 'u32[72,128]{1,0:T(1,128)}', space=vmem, size = 0x9000, scoped, tag = 'internal scratch']
  #allocation2 [shape = 'f32[16,128]{1,0:T(8,128)}', space=vmem, size = 0x2000, scoped, tag = 'scratch operand']
  %s0 = inlined_call_operand.vmem [shape: bf16[16,96], index: 0, kind: input, shape index: {}]
  %s1 = inlined_call_operand.vmem [shape: bf16[96,384], index: 1, kind: input, shape index: {}]
  %s2 = inlined_call_operand.vmem [shape: f32[1,384], index: 2, kind: input, shape index: {}]
  %s3 = inlined_call_operand.vmem [shape: bf16[16,384], index: 3, kind: output, shape index: {}]
  %s4 = sld [smem:[#allocation0]]
  $region131: #{lm_model_forward.37} parent=0
    _
  %s6 = ssub.s32 1, %s4
  %s7 = scalar_select 0, %s6, %s4
  $region1: #{lm_model_forward.37} parent=0
    #allocation3 [shape = 'u8[49152]{0}', space=vmem, size = 0xc000, scoped, tag = 'input window, operand 1']
    #allocation4 [shape = 'u8[8192]{0}', space=vmem, size = 0x2000, scoped, tag = 'output window, operand 0']
    loop: start=0, step=1, limit=5
    $region2: #{lm_model_forward.37} parent=1 // loop_pre_header
      _
    $region3: #{lm_model_forward.37} parent=1 // loop_header
      %s9 = sphi 0, %s13
      %p10 = scmp.ge.s32.totalorder %s9, 5
      %s16 = sphi 0, %s35
      %s17 = sphi 0, %s31
      %s18 = sphi 0, %s27
      %s19 = sphi 0, %s16
      %s20 = sphi 0, %s17
      %s21 = sphi 0, %s18
      %s22 = sphi 0, %s19
      %s23 = sphi 0, %s20
      %s24 = sphi 0, %s21
      %s40 = sphi 0, %s42
      %s43 = sphi 0, %s40
      %s44 = sphi 0, %s43
      %s60 = sphi 0, %s44
      %s68 = sphi 0, %s70
      %s71 = sphi 0, %s68
      %s72 = sphi 0, %s71
      %s88 = sphi 0, %s72
      %s94 = sphi 0, %s96
      %s97 = sphi 0, %s94
      %s98 = sphi 0, %s97
      %s114 = sphi 0, %s98
      %s122 = sphi 0, %s124
      %s125 = sphi 0, %s122
      %s126 = sphi 0, %s125
      %s142 = sphi 0, %s126
    $region4: #{lm_model_forward.37} parent=1 // loop_header_branch
      %12 = sbr.rel (%p10) target = $region8
    $region5: #{lm_model_forward.37} parent=1 // loop_body
      %s14 = ssub.s32 %s9, 1
      %s15 = ssub.s32 %s9, 2
      %s25 = sadd.s32 1, %s18
      %p26 = scmp.ge.s32.totalorder %s25, 1
      %s27 = scalar_select %p26, 0, %s25
      %s28 = sadd.s32 1, %s17
      %s29 = scalar_select %p26, %s28, %s17
      %p30 = scmp.ge.s32.totalorder %s29, 3
      %s31 = scalar_select %p30, 0, %s29
      %s32 = sadd.s32 1, %s16
      %s33 = scalar_select %p30, %s32, %s16
      %p34 = scmp.ge.s32.totalorder %s33, 1
      %s35 = scalar_select %p34, 0, %s33
      %s36 = ssub.s32 %s16, %s35
      %s37 = ssub.s32 %s18, %s27
      %s38 = sor.u32 %s36, %s37
      %p39 = scmp.eq.s32.totalorder %s38, 0
      %s41 = sadd.s32 %s40, 1
      %s42 = scalar_select %p39, %s40, %s41
      %p45 = pneg %p39
      %p46 = scmp.eq.s32.totalorder %s9, 2
      %p47 = por %p45, %p46
      %p48 = scmp.ne.s32.totalorder %s40, %s43
      %p49 = scmp.eq.s32.totalorder %s9, 0
      %p50 = por %p48, %p49
      %p51 = scmp.ne.s32.totalorder %s40, %s43
      %p52 = scmp.eq.s32.totalorder %s14, 2
      %p53 = por %p51, %p52
      %p54 = scmp.ne.s32.totalorder %s43, %s44
      %p55 = scmp.eq.s32.totalorder %s14, 0
      %p56 = por %p54, %p55
      %p57 = scmp.ne.s32.totalorder %s43, %s44
      %p58 = scmp.eq.s32.totalorder %s15, 2
      %p59 = por %p57, %p58
      %p61 = scmp.ne.s32.totalorder %s44, %s60
      %p62 = scmp.eq.s32.totalorder %s15, 0
      %p63 = por %p61, %p62
      %s64 = ssub.s32 %s18, %s27
      %s65 = ssub.s32 %s17, %s31
      %s66 = sor.u32 %s64, %s65
      %p67 = scmp.eq.s32.totalorder %s66, 0
      %s69 = sadd.s32 %s68, 1
      %s70 = scalar_select %p67, %s68, %s69
      %p73 = pneg %p67
      %p74 = scmp.eq.s32.totalorder %s9, 2
      %p75 = por %p73, %p74
      %p76 = scmp.ne.s32.totalorder %s68, %s71
      %p77 = scmp.eq.s32.totalorder %s9, 0
      %p78 = por %p76, %p77
      %p79 = scmp.ne.s32.totalorder %s68, %s71
      %p80 = scmp.eq.s32.totalorder %s14, 2
      %p81 = por %p79, %p80
      %p82 = scmp.ne.s32.totalorder %s71, %s72
      %p83 = scmp.eq.s32.totalorder %s14, 0
      %p84 = por %p82, %p83
      %p85 = scmp.ne.s32.totalorder %s71, %s72
      %p86 = scmp.eq.s32.totalorder %s15, 2
      %p87 = por %p85, %p86
      %p89 = scmp.ne.s32.totalorder %s72, %s88
      %p90 = scmp.eq.s32.totalorder %s15, 0
      %p91 = por %p89, %p90
      %s92 = ssub.s32 %s17, %s31
      %p93 = scmp.eq.s32.totalorder %s92, 0
      %s95 = sadd.s32 %s94, 1
      %s96 = scalar_select %p93, %s94, %s95
      %p99 = pneg %p93
      %p100 = scmp.eq.s32.totalorder %s9, 2
      %p101 = por %p99, %p100
      %p102 = scmp.ne.s32.totalorder %s94, %s97
      %p103 = scmp.eq.s32.totalorder %s9, 0
      %p104 = por %p102, %p103
      %p105 = scmp.ne.s32.totalorder %s94, %s97
      %p106 = scmp.eq.s32.totalorder %s14, 2
      %p107 = por %p105, %p106
      %p108 = scmp.ne.s32.totalorder %s97, %s98
      %p109 = scmp.eq.s32.totalorder %s14, 0
      %p110 = por %p108, %p109
      %p111 = scmp.ne.s32.totalorder %s97, %s98
      %p112 = scmp.eq.s32.totalorder %s15, 2
      %p113 = por %p111, %p112
      %p115 = scmp.ne.s32.totalorder %s98, %s114
      %p116 = scmp.eq.s32.totalorder %s15, 0
      %p117 = por %p115, %p116
      %s118 = ssub.s32 %s16, %s35
      %s119 = ssub.s32 %s17, %s31
      %s120 = sor.u32 %s118, %s119
      %p121 = scmp.eq.s32.totalorder %s120, 0
      %s123 = sadd.s32 %s122, 1
      %s124 = scalar_select %p121, %s122, %s123
      %p127 = pneg %p121
      %p128 = scmp.eq.s32.totalorder %s9, 2
      %p129 = por %p127, %p128
      %p130 = scmp.ne.s32.totalorder %s122, %s125
      %p131 = scmp.eq.s32.totalorder %s9, 0
      %p132 = por %p130, %p131
      %p133 = scmp.ne.s32.totalorder %s122, %s125
      %p134 = scmp.eq.s32.totalorder %s14, 2
      %p135 = por %p133, %p134
      %p136 = scmp.ne.s32.totalorder %s125, %s126
      %p137 = scmp.eq.s32.totalorder %s14, 0
      %p138 = por %p136, %p137
      %p139 = scmp.ne.s32.totalorder %s125, %s126
      %p140 = scmp.eq.s32.totalorder %s15, 2
      %p141 = por %p139, %p140
      %p143 = scmp.ne.s32.totalorder %s126, %s142
      %p144 = scmp.eq.s32.totalorder %s15, 0
      %p145 = por %p143, %p144
      %p146 = scmp.le.s32.totalorder 1, %s9
      %p147 = scmp.lt.s32.totalorder %s9, 4
      %p148 = pnand %p146, %p147
      %p149 = pneg %p148
      // Predicated region
      $region9: #{lm_model_forward.37} parent=5 // pred_check
        _
      $region10: #{lm_model_forward.37} parent=5 // pred_check_branch
        %151 = sbr.rel (%p148) target = $region12
      $region11: #{lm_model_forward.37} parent=5 // pred_region
        %s152 = ssub.s32 %s9, 1
        // Predicated region
        $region13: #{lm_model_forward.37} parent=11 // pred_check
          %p153 = pneg %p56
        $region14: #{lm_model_forward.37} parent=11 // pred_check_branch
          %155 = sbr.rel (%p153) target = $region16
        $region15: #{lm_model_forward.37} parent=11 // pred_region
          %s156 = smul.u32 2, %s19
          %p157 = scmp.lt.s32.totalorder %s156, 1
          %s158 = scalar_select %p157, %s156, 1
          %p159 = scmp.lt.s32.totalorder %s21, 0
          %s160 = scalar_select %p159, %s21, 0
          %s161 = sadd.s32 %s160, %s158
          %s162 = smul.addr %s161, 4
          %s163 = scalar_lea.vmem %s0, %s162
          %s164 = smul.u32 2, %s19
        $region16: #{lm_model_forward.37} parent=11 // pred_fallthru
          _
      $region12: #{lm_model_forward.37} parent=5 // pred_fallthru
        _
      %p165 = scmp.lt.s32.totalorder %s9, 3
      // Predicated region
      $region17: #{lm_model_forward.37} parent=5 // pred_check
        %p166 = pneg %p165
      $region18: #{lm_model_forward.37} parent=5 // pred_check_branch
        %168 = sbr.rel (%p166) target = $region20
      $region19: #{lm_model_forward.37} parent=5 // pred_region
        // Predicated region
        $region21: #{lm_model_forward.37} parent=19 // pred_check
          %p169 = pneg %p78
        $region22: #{lm_model_forward.37} parent=19 // pred_check_branch
          %171 = sbr.rel (%p169) target = $region24
        $region23: #{lm_model_forward.37} parent=19 // pred_region
          %s172 = sand.u32 %s68, 1
          %s173 = sand.u32 %s68, 1
          %s174 = smul.addr %s173, 48
          %s175 = scalar_lea.vmem [#allocation3], %s174
          %s176 = smul.u32 12, %s18
          %s177 = smul.addr %s176, 3
          %s178 = sadd.s32 %s17, %s177
          %s179 = smul.addr %s178, 4
          %s180 = scalar_lea.vmem %s1, %s179
          // Predicated region
          $region25: #{lm_model_forward.37} parent=23 // pred_check
            _
          $region26: #{lm_model_forward.37} parent=23 // pred_check_branch
            %182 = sbr.rel (0) target = $region28
          $region27: #{lm_model_forward.37} parent=23 // pred_region
            // Predicated region
            $region29: #{lm_model_forward.37} parent=27 // pred_check
              _
            $region30: #{lm_model_forward.37} parent=27 // pred_check_branch
              %184 = sbr.rel target = $region32
            $region31: #{lm_model_forward.37} parent=27 // pred_region
              // Predicated region
              $region44: #{lm_model_forward.37} parent=31 // pred_check
                _
              $region45: #{lm_model_forward.37} parent=31 // pred_check_branch
                %222 = sbr.rel (0) target = $region47
              $region46: #{lm_model_forward.37} parent=31 // pred_region
                loop: start=0, step=1, limit=1
                $region48: #{lm_model_forward.37} parent=46 // loop_pre_header
                  _
                $region49: #{lm_model_forward.37} parent=46 // loop_header
                  %s224 = sphi 0, %s228
                  %p225 = scmp.ge.s32.totalorder %s224, 1
                  %s229 = sphi %s180, %s180
                  %s230 = sphi %s175, %s175
                $region50: #{lm_model_forward.37} parent=46 // loop_header_branch
                  %227 = sbr.rel (%p225) target = $region54
                $region51: #{lm_model_forward.37} parent=46 // loop_body
                  _
                $region52: #{lm_model_forward.37} parent=46 // loop_footer
                  %s228 = sadd.s32 1, %s224
                $region53: #{lm_model_forward.37} parent=46 // loop_footer_branch
                  %223 = sbr.rel target = $region49
                $region54: #{lm_model_forward.37} parent=46 // loop_exit
                  _
                %s232 = ssub.s32 16, 1
                loop: start=0, step=1, limit=1
                $region55: #{lm_model_forward.37} parent=46 // loop_pre_header
                  _
                $region56: #{lm_model_forward.37} parent=46 // loop_header
                  %s234 = sphi 0, %s238
                  %p235 = scmp.ge.s32.totalorder %s234, 1
                  %s239 = sphi %s180, %s180
                  %s240 = sphi %s175, %s175
                $region57: #{lm_model_forward.37} parent=46 // loop_header_branch
                  %237 = sbr.rel (%p235) target = $region61
                $region58: #{lm_model_forward.37} parent=46 // loop_body
                  %v241 = vld [vmem:[%s239] sm:%s232]
                  %242 = vst [vmem:[%s240] sm:%s232] %v241
                  %v243 = vld [vmem:[%s239 + $0xc] sm:%s232]
                  %244 = vst [vmem:[%s240 + $0x4] sm:%s232] %v243
                  %v245 = vld [vmem:[%s239 + $0x18] sm:%s232]
                  %246 = vst [vmem:[%s240 + $0x8] sm:%s232] %v245
                  %v247 = vld [vmem:[%s239 + $0x24] sm:%s232]
                  %248 = vst [vmem:[%s240 + $0xc] sm:%s232] %v247
                  %v249 = vld [vmem:[%s239 + $0x30] sm:%s232]
                  %250 = vst [vmem:[%s240 + $0x10] sm:%s232] %v249
                  %v251 = vld [vmem:[%s239 + $0x3c] sm:%s232]
                  %252 = vst [vmem:[%s240 + $0x14] sm:%s232] %v251
                  %v253 = vld [vmem:[%s239 + $0x48] sm:%s232]
                  %254 = vst [vmem:[%s240 + $0x18] sm:%s232] %v253
                  %v255 = vld [vmem:[%s239 + $0x54] sm:%s232]
                  %256 = vst [vmem:[%s240 + $0x1c] sm:%s232] %v255
                  %v257 = vld [vmem:[%s239 + $0x60] sm:%s232]
                  %258 = vst [vmem:[%s240 + $0x20] sm:%s232] %v257
                  %v259 = vld [vmem:[%s239 + $0x6c] sm:%s232]
                  %260 = vst [vmem:[%s240 + $0x24] sm:%s232] %v259
                  %v261 = vld [vmem:[%s239 + $0x78] sm:%s232]
                  %262 = vst [vmem:[%s240 + $0x28] sm:%s232] %v261
                  %v263 = vld [vmem:[%s239 + $0x84] sm:%s232]
                  %264 = vst [vmem:[%s240 + $0x2c] sm:%s232] %v263
                $region59: #{lm_model_forward.37} parent=46 // loop_footer
                  %s238 = sadd.s32 1, %s234
                $region60: #{lm_model_forward.37} parent=46 // loop_footer_branch
                  %233 = sbr.rel target = $region56
                $region61: #{lm_model_forward.37} parent=46 // loop_exit
                  _
              $region47: #{lm_model_forward.37} parent=31 // pred_fallthru
                _
            $region32: #{lm_model_forward.37} parent=27 // pred_fallthru
              _
            // Predicated region
            $region33: #{lm_model_forward.37} parent=27 // pred_check
              _
            $region34: #{lm_model_forward.37} parent=27 // pred_check_branch
              %186 = sbr.rel (0) target = $region36
            $region35: #{lm_model_forward.37} parent=27 // pred_region
              %s188 = ssub.s32 16, 1
              loop: start=0, step=1, limit=1
              $region37: #{lm_model_forward.37} parent=35 // loop_pre_header
                _
              $region38: #{lm_model_forward.37} parent=35 // loop_header
                %s190 = sphi 0, %s194
                %p191 = scmp.ge.s32.totalorder %s190, 1
                %s195 = sphi %s180, %s180
                %s196 = sphi %s175, %s175
              $region39: #{lm_model_forward.37} parent=35 // loop_header_branch
                %193 = sbr.rel (%p191) target = $region43
              $region40: #{lm_model_forward.37} parent=35 // loop_body
                %v197 = vld [vmem:[%s195] sm:%s188]
                %198 = vst [vmem:[%s196] sm:%s188] %v197
                %v199 = vld [vmem:[%s195 + $0xc] sm:%s188]
                %200 = vst [vmem:[%s196 + $0x4] sm:%s188] %v199
                %v201 = vld [vmem:[%s195 + $0x18] sm:%s188]
                %202 = vst [vmem:[%s196 + $0x8] sm:%s188] %v201
                %v203 = vld [vmem:[%s195 + $0x24] sm:%s188]
                %204 = vst [vmem:[%s196 + $0xc] sm:%s188] %v203
                %v205 = vld [vmem:[%s195 + $0x30] sm:%s188]
                %206 = vst [vmem:[%s196 + $0x10] sm:%s188] %v205
                %v207 = vld [vmem:[%s195 + $0x3c] sm:%s188]
                %208 = vst [vmem:[%s196 + $0x14] sm:%s188] %v207
                %v209 = vld [vmem:[%s195 + $0x48] sm:%s188]
                %210 = vst [vmem:[%s196 + $0x18] sm:%s188] %v209
                %v211 = vld [vmem:[%s195 + $0x54] sm:%s188]
                %212 = vst [vmem:[%s196 + $0x1c] sm:%s188] %v211
                %v213 = vld [vmem:[%s195 + $0x60] sm:%s188]
                %214 = vst [vmem:[%s196 + $0x20] sm:%s188] %v213
                %v215 = vld [vmem:[%s195 + $0x6c] sm:%s188]
                %216 = vst [vmem:[%s196 + $0x24] sm:%s188] %v215
                %v217 = vld [vmem:[%s195 + $0x78] sm:%s188]
                %218 = vst [vmem:[%s196 + $0x28] sm:%s188] %v217
                %v219 = vld [vmem:[%s195 + $0x84] sm:%s188]
                %220 = vst [vmem:[%s196 + $0x2c] sm:%s188] %v219
              $region41: #{lm_model_forward.37} parent=35 // loop_footer
                %s194 = sadd.s32 1, %s190
              $region42: #{lm_model_forward.37} parent=35 // loop_footer_branch
                %189 = sbr.rel target = $region38
              $region43: #{lm_model_forward.37} parent=35 // loop_exit
                _
            $region36: #{lm_model_forward.37} parent=27 // pred_fallthru
              _
          $region28: #{lm_model_forward.37} parent=23 // pred_fallthru
            _
          %265 = vnop
        $region24: #{lm_model_forward.37} parent=19 // pred_fallthru
          _
        // Predicated region
        $region62: #{lm_model_forward.37} parent=19 // pred_check
          %p266 = pneg %p104
        $region63: #{lm_model_forward.37} parent=19 // pred_check_branch
          %268 = sbr.rel (%p266) target = $region65
        $region64: #{lm_model_forward.37} parent=19 // pred_region
          %p269 = scmp.lt.s32.totalorder %s17, 2
          %s270 = scalar_select %p269, %s17, 2
          %s271 = scalar_lea.vmem %s2, %s270
        $region65: #{lm_model_forward.37} parent=19 // pred_fallthru
          _
      $region20: #{lm_model_forward.37} parent=5 // pred_fallthru
        _
      %p272 = scmp.le.s32.totalorder 1, %s9
      %p273 = scmp.lt.s32.totalorder %s9, 4
      %p274 = pnand %p272, %p273
      %p275 = pneg %p274
      // Predicated region
      $region66: #{lm_model_forward.37} parent=5 // pred_check
        _
      $region67: #{lm_model_forward.37} parent=5 // pred_check_branch
        %277 = sbr.rel (%p274) target = $region69
      $region68: #{lm_model_forward.37} parent=5 // pred_region
        %s278 = ssub.s32 %s9, 1
        %s279 = sand.u32 %s71, 1
        %s280 = sand.u32 %s71, 1
        %s281 = smul.addr %s280, 48
        %s282 = scalar_lea.vmem [#allocation3], %s281
        // Predicated region
        $region70: #{lm_model_forward.37} parent=68 // pred_check
          %p283 = pneg %p84
        $region71: #{lm_model_forward.37} parent=68 // pred_check_branch
          %285 = sbr.rel (%p283) target = $region73
        $region72: #{lm_model_forward.37} parent=68 // pred_region
          _
        $region73: #{lm_model_forward.37} parent=68 // pred_fallthru
          _
        %s286 = smul.u32 2, %s19
        %p287 = scmp.lt.s32.totalorder %s286, 1
        %s288 = scalar_select %p287, %s286, 1
        %p289 = scmp.lt.s32.totalorder %s21, 0
        %s290 = scalar_select %p289, %s21, 0
        %s291 = sadd.s32 %s290, %s288
        %s292 = smul.addr %s291, 4
        %s293 = scalar_lea.vmem %s0, %s292
        %p294 = pneg %p56
        %p295 = pneg %p53
        %s296 = sand.u32 %s71, 1
        %s297 = sand.u32 %s71, 1
        %s298 = smul.addr %s297, 48
        %s299 = scalar_lea.vmem [#allocation3], %s298
        %p300 = pneg %p84
        %p301 = pneg %p81
        %p302 = scmp.lt.s32.totalorder %s20, 2
        %s303 = scalar_select %p302, %s20, 2
        %s304 = scalar_lea.vmem %s2, %s303
        %p305 = pneg %p110
        %p306 = pneg %p107
        %p307 = pneg %p138
        %p308 = pneg %p135
        %s309 = sand.u32 %s125, 1
        %s310 = sand.u32 %s125, 1
        %s311 = smul.addr %s310, 8
        %s312 = scalar_lea.vmem [#allocation4], %s311
        %s313 = smul.u32 2, %s19
        %p314 = scmp.lt.s32.totalorder %s313, 1
        %s315 = scalar_select %p314, %s313, 1
        %p316 = scmp.lt.s32.totalorder %s21, 0
        %s317 = scalar_select %p316, %s21, 0
        %s318 = sadd.s32 %s317, %s315
        %s319 = smul.addr %s318, 4
        %s320 = scalar_lea.vmem %s0, %s319
        %s321 = smul.u32 2, %s19
        %s322 = smul.u32 12, %s21
        %p323 = scmp.lt.s32.totalorder %s20, 2
        %s324 = scalar_select %p323, %s20, 2
        %s325 = scalar_lea.vmem %s2, %s324
        %s326 = smul.u32 2, %s19
        %p328 = scmp.eq.s32.totalorder %s21, 0
        // Predicated region
        $region74: #{lm_model_forward.37} parent=68 // pred_check
          %p329 = pneg %p328
        $region75: #{lm_model_forward.37} parent=68 // pred_check_branch
          %331 = sbr.rel (%p329) target = $region77
        $region76: #{lm_model_forward.37} parent=68 // pred_region
          %332 = vst [vmem:[#allocation2] sm:$0xff] 0.0
          %333 = vst [vmem:[#allocation2 + $0x8] sm:$0xff] 0.0
        $region77: #{lm_model_forward.37} parent=68 // pred_fallthru
          _
        %v334 = vld [vmem:[#allocation2] sm:$0xff]
        %v335 = vld [vmem:[#allocation2 + $0x8] sm:$0xff]
        %v336 = vld [vmem:[%s320] sm:$0xf]
        %v337 = vld [vmem:[%s320 + $0x4] sm:$0xf]
        %v338 = vld [vmem:[%s282] sm:$0xf]
        %v339 = vld [vmem:[%s282 + $0x4] sm:$0xf]
        %v340 = vld [vmem:[%s282 + $0x8] sm:$0xf]
        %v341 = vld [vmem:[%s282 + $0xc] sm:$0xf]
        %v342 = vld [vmem:[%s282 + $0x10] sm:$0xf]
        %v343 = vld [vmem:[%s282 + $0x14] sm:$0xf]
        %v344 = vld [vmem:[%s282 + $0x18] sm:$0xf]
        %v345 = vld [vmem:[%s282 + $0x1c] sm:$0xf]
        %v346 = vld [vmem:[%s282 + $0x20] sm:$0xf]
        %v347 = vld [vmem:[%s282 + $0x24] sm:$0xf]
        %v348 = vld [vmem:[%s282 + $0x28] sm:$0xf]
        %v349 = vld [vmem:[%s282 + $0x2c] sm:$0xf]
        %v352 = vunpack.c.l.b16 %v336
        %v353 = vunpack.c.l.b16 %v337
        %v354 = vpack.c.b16 %v353, %v352
        %v367 = vunpack.c.l.b16 %v338
        %v368 = vunpack.c.l.b16 %v339
        %v369 = vunpack.c.l.b16 %v340
        %v370 = vunpack.c.l.b16 %v341
        %v371 = vunpack.c.l.b16 %v342
        %v372 = vunpack.c.l.b16 %v343
        %v373 = vunpack.c.l.b16 %v344
        %v374 = vunpack.c.l.b16 %v345
        %v375 = vunpack.c.l.b16 %v346
        %v376 = vunpack.c.l.b16 %v347
        %v377 = vunpack.c.l.b16 %v348
        %v378 = vunpack.c.l.b16 %v349
        %v379 = vpack.c.b16 %v368, %v367
        %v380 = vpack.c.b16 %v370, %v369
        %v381 = vpack.c.b16 %v372, %v371
        %v382 = vpack.c.b16 %v374, %v373
        %v383 = vpack.c.b16 %v376, %v375
        %v384 = vpack.c.b16 %v378, %v377
        %vm391 = vcmask 785408
        %v393 = vsel %vm391, %v354, 0
        %395 = vmatpush.bf16.msra.mxu0 0
        %396 = vmatpush.bf16.msra.mxu0 0
        %397 = vmatpush.bf16.msra.mxu0 %v384
        %398 = vmatpush.bf16.msra.mxu0 %v383
        %399 = vmatpush.bf16.msra.mxu0 %v382
        %400 = vmatpush.bf16.msra.mxu0 %v381
        %401 = vmatpush.bf16.msra.mxu0 %v380
        %402 = vmatpush.bf16.msra.mxu0 %v379
        %403 = vmatmul.bf16.gmra.mxu0 %v393
        %v404 = vpop.f32.mrf.mxu0
        %v405 = vadd.f32 0.0, %v404
        %v406 = vpop.f32.mrf.mxu0
        %v407 = vadd.f32 0.0, %v406
        %408 = vdwg.mxu0
        %v409 = vadd.f32 %v334, %v405
        %v410 = vadd.f32 %v335, %v407
        %411 = vst [vmem:[#allocation2] sm:$0xff] %v409
        %412 = vst [vmem:[#allocation2 + $0x8] sm:$0xff] %v410
        // Predicated region
        $region78: #{lm_model_forward.37} parent=68 // pred_check
          %p413 = pneg %p328
        $region79: #{lm_model_forward.37} parent=68 // pred_check_branch
          %415 = sbr.rel (%p413) target = $region81
        $region80: #{lm_model_forward.37} parent=68 // pred_region
          %v416 = vld [vmem:[#allocation2] sm:$0xff]
          %v417 = vld [vmem:[#allocation2 + $0x8] sm:$0xff]
          %v418 = vld [vmem:[%s325] sm:$0x1]
          %v420 = vperm.slane %v418, 0
          %v422 = vadd.f32 %v416, %v420
          %v423 = vadd.f32 %v417, %v420
          %v424 = vpack.c.bf16 %v422, %v422
          %v425 = vpack.c.bf16 %v423, %v423
          %426 = vst [vmem:[%s312] sm:$0xf] %v424
          %427 = vst [vmem:[%s312 + $0x4] sm:$0xf] %v425
        $region81: #{lm_model_forward.37} parent=68 // pred_fallthru
          _
        %s428 = sand.u32 %s125, 1
        %s429 = sand.u32 %s125, 1
        %s430 = smul.addr %s429, 8
        %s431 = scalar_lea.vmem [#allocation4], %s430
        // Predicated region
        $region82: #{lm_model_forward.37} parent=68 // pred_check
          %p432 = pneg %p135
        $region83: #{lm_model_forward.37} parent=68 // pred_check_branch
          %434 = sbr.rel (%p432) target = $region85
        $region84: #{lm_model_forward.37} parent=68 // pred_region
          %s435 = smul.u32 2, %s19
          %s436 = smul.addr %s435, 3
          %s437 = sadd.s32 %s20, %s436
          %s438 = smul.addr %s437, 4
          %s439 = scalar_lea.vmem %s3, %s438
          // Predicated region
          $region86: #{lm_model_forward.37} parent=84 // pred_check
            _
          $region87: #{lm_model_forward.37} parent=84 // pred_check_branch
            %441 = sbr.rel (0) target = $region89
          $region88: #{lm_model_forward.37} parent=84 // pred_region
            // Predicated region
            $region90: #{lm_model_forward.37} parent=88 // pred_check
              _
            $region91: #{lm_model_forward.37} parent=88 // pred_check_branch
              %443 = sbr.rel target = $region93
            $region92: #{lm_model_forward.37} parent=88 // pred_region
              // Predicated region
              $region105: #{lm_model_forward.37} parent=92 // pred_check
                _
              $region106: #{lm_model_forward.37} parent=92 // pred_check_branch
                %461 = sbr.rel (0) target = $region108
              $region107: #{lm_model_forward.37} parent=92 // pred_region
                loop: start=0, step=1, limit=1
                $region109: #{lm_model_forward.37} parent=107 // loop_pre_header
                  _
                $region110: #{lm_model_forward.37} parent=107 // loop_header
                  %s463 = sphi 0, %s467
                  %p464 = scmp.ge.s32.totalorder %s463, 1
                  %s468 = sphi %s431, %s431
                  %s469 = sphi %s439, %s439
                $region111: #{lm_model_forward.37} parent=107 // loop_header_branch
                  %466 = sbr.rel (%p464) target = $region115
                $region112: #{lm_model_forward.37} parent=107 // loop_body
                  _
                $region113: #{lm_model_forward.37} parent=107 // loop_footer
                  %s467 = sadd.s32 1, %s463
                $region114: #{lm_model_forward.37} parent=107 // loop_footer_branch
                  %462 = sbr.rel target = $region110
                $region115: #{lm_model_forward.37} parent=107 // loop_exit
                  _
                %s471 = ssub.s32 16, 1
                loop: start=0, step=1, limit=1
                $region116: #{lm_model_forward.37} parent=107 // loop_pre_header
                  _
                $region117: #{lm_model_forward.37} parent=107 // loop_header
                  %s473 = sphi 0, %s477
                  %p474 = scmp.ge.s32.totalorder %s473, 1
                  %s478 = sphi %s431, %s431
                  %s479 = sphi %s439, %s439
                $region118: #{lm_model_forward.37} parent=107 // loop_header_branch
                  %476 = sbr.rel (%p474) target = $region122
                $region119: #{lm_model_forward.37} parent=107 // loop_body
                  %v480 = vld [vmem:[%s478] sm:%s471]
                  %481 = vst [vmem:[%s479] sm:%s471] %v480
                  %v482 = vld [vmem:[%s478 + $0x4] sm:%s471]
                  %483 = vst [vmem:[%s479 + $0xc] sm:%s471] %v482
                $region120: #{lm_model_forward.37} parent=107 // loop_footer
                  %s477 = sadd.s32 1, %s473
                $region121: #{lm_model_forward.37} parent=107 // loop_footer_branch
                  %472 = sbr.rel target = $region117
                $region122: #{lm_model_forward.37} parent=107 // loop_exit
                  _
              $region108: #{lm_model_forward.37} parent=92 // pred_fallthru
                _
            $region93: #{lm_model_forward.37} parent=88 // pred_fallthru
              _
            // Predicated region
            $region94: #{lm_model_forward.37} parent=88 // pred_check
              _
            $region95: #{lm_model_forward.37} parent=88 // pred_check_branch
              %445 = sbr.rel (0) target = $region97
            $region96: #{lm_model_forward.37} parent=88 // pred_region
              %s447 = ssub.s32 16, 1
              loop: start=0, step=1, limit=1
              $region98: #{lm_model_forward.37} parent=96 // loop_pre_header
                _
              $region99: #{lm_model_forward.37} parent=96 // loop_header
                %s449 = sphi 0, %s453
                %p450 = scmp.ge.s32.totalorder %s449, 1
                %s454 = sphi %s431, %s431
                %s455 = sphi %s439, %s439
              $region100: #{lm_model_forward.37} parent=96 // loop_header_branch
                %452 = sbr.rel (%p450) target = $region104
              $region101: #{lm_model_forward.37} parent=96 // loop_body
                %v456 = vld [vmem:[%s454] sm:%s447]
                %457 = vst [vmem:[%s455] sm:%s447] %v456
                %v458 = vld [vmem:[%s454 + $0x4] sm:%s447]
                %459 = vst [vmem:[%s455 + $0xc] sm:%s447] %v458
              $region102: #{lm_model_forward.37} parent=96 // loop_footer
                %s453 = sadd.s32 1, %s449
              $region103: #{lm_model_forward.37} parent=96 // loop_footer_branch
                %448 = sbr.rel target = $region99
              $region104: #{lm_model_forward.37} parent=96 // loop_exit
                _
            $region97: #{lm_model_forward.37} parent=88 // pred_fallthru
              _
          $region89: #{lm_model_forward.37} parent=84 // pred_fallthru
            _
          %484 = vnop
        $region85: #{lm_model_forward.37} parent=68 // pred_fallthru
          _
      $region69: #{lm_model_forward.37} parent=5 // pred_fallthru
        _
      %p485 = scmp.le.s32.totalorder 2, %s9
      // Predicated region
      $region123: #{lm_model_forward.37} parent=5 // pred_check
        %p486 = pneg %p485
      $region124: #{lm_model_forward.37} parent=5 // pred_check_branch
        %488 = sbr.rel (%p486) target = $region126
      $region125: #{lm_model_forward.37} parent=5 // pred_region
        %s489 = ssub.s32 %s9, 2
        // Predicated region
        $region127: #{lm_model_forward.37} parent=125 // pred_check
          %p490 = pneg %p141
        $region128: #{lm_model_forward.37} parent=125 // pred_check_branch
          %492 = sbr.rel (%p490) target = $region130
        $region129: #{lm_model_forward.37} parent=125 // pred_region
          %s493 = sand.u32 %s126, 1
          %s494 = sand.u32 %s126, 1
          %s495 = smul.addr %s494, 8
          %s496 = scalar_lea.vmem [#allocation4], %s495
        $region130: #{lm_model_forward.37} parent=125 // pred_fallthru
          _
      $region126: #{lm_model_forward.37} parent=5 // pred_fallthru
        _
    $region6: #{lm_model_forward.37} parent=1 // loop_footer
      %s13 = sadd.s32 1, %s9
    $region7: #{lm_model_forward.37} parent=1 // loop_footer_branch
      %8 = sbr.rel target = $region3
    $region8: #{lm_model_forward.37} parent=1 // loop_exit
      _

// kernel: lm_model_forward.38
$region0: #{lm_model_forward.38}
  #allocation0 [shape = 'u32[]', space=smem, size = 0x4, offset = 0x4, fixed_abs, tag = 'smem constant byte address 0x4 - core index']
  #allocation1 [shape = 'u32[72,128]{1,0:T(1,128)}', space=vmem, size = 0x9000, scoped, tag = 'internal scratch']
  %s0 = inlined_call_operand.vmem [shape: bf16[2,8,288], index: 0, kind: input, shape index: {}]
  %s1 = inlined_call_operand.vmem [shape: bf16[2,8,96], index: 1, kind: output, shape index: {}]
  %s2 = sld [smem:[#allocation0]]
  $region37: #{lm_model_forward.38} parent=0
    _
  %s4 = ssub.s32 1, %s2
  %s5 = scalar_select 0, %s4, %s2
  loop: start=0, step=1, limit=4
  $region2: #{lm_model_forward.38} parent=0 // loop_pre_header
    _
  $region3: #{lm_model_forward.38} parent=0 // loop_header
    %s7 = sphi 0, %s11
    %p8 = scmp.ge.s32.totalorder %s7, 4
    %s17 = sphi 0, %s19
    %s20 = sphi 0, %s17
    %s21 = sphi 0, %s20
    %s37 = sphi 0, %s21
    %s43 = sphi 0, %s45
    %s46 = sphi 0, %s43
    %s47 = sphi 0, %s46
    %s63 = sphi 0, %s47
  $region4: #{lm_model_forward.38} parent=0 // loop_header_branch
    %10 = sbr.rel (%p8) target = $region8
  $region5: #{lm_model_forward.38} parent=0 // loop_body
    %s12 = ssub.s32 %s7, 1
    %s13 = ssub.s32 %s7, 2
    %s14 = sadd.s32 %s7, 1
    %s15 = ssub.s32 %s7, %s14
    %p16 = scmp.eq.s32.totalorder %s15, 0
    %s18 = sadd.s32 %s17, 1
    %s19 = scalar_select %p16, %s17, %s18
    %p22 = pneg %p16
    %p23 = scmp.eq.s32.totalorder %s7, 1
    %p24 = por %p22, %p23
    %p25 = scmp.ne.s32.totalorder %s17, %s20
    %p26 = scmp.eq.s32.totalorder %s7, 0
    %p27 = por %p25, %p26
    %p28 = scmp.ne.s32.totalorder %s17, %s20
    %p29 = scmp.eq.s32.totalorder %s12, 1
    %p30 = por %p28, %p29
    %p31 = scmp.ne.s32.totalorder %s20, %s21
    %p32 = scmp.eq.s32.totalorder %s12, 0
    %p33 = por %p31, %p32
    %p34 = scmp.ne.s32.totalorder %s20, %s21
    %p35 = scmp.eq.s32.totalorder %s13, 1
    %p36 = por %p34, %p35
    %p38 = scmp.ne.s32.totalorder %s21, %s37
    %p39 = scmp.eq.s32.totalorder %s13, 0
    %p40 = por %p38, %p39
    %s41 = ssub.s32 %s7, %s14
    %p42 = scmp.eq.s32.totalorder %s41, 0
    %s44 = sadd.s32 %s43, 1
    %s45 = scalar_select %p42, %s43, %s44
    %p48 = pneg %p42
    %p49 = scmp.eq.s32.totalorder %s7, 1
    %p50 = por %p48, %p49
    %p51 = scmp.ne.s32.totalorder %s43, %s46
    %p52 = scmp.eq.s32.totalorder %s7, 0
    %p53 = por %p51, %p52
    %p54 = scmp.ne.s32.totalorder %s43, %s46
    %p55 = scmp.eq.s32.totalorder %s12, 1
    %p56 = por %p54, %p55
    %p57 = scmp.ne.s32.totalorder %s46, %s47
    %p58 = scmp.eq.s32.totalorder %s12, 0
    %p59 = por %p57, %p58
    %p60 = scmp.ne.s32.totalorder %s46, %s47
    %p61 = scmp.eq.s32.totalorder %s13, 1
    %p62 = por %p60, %p61
    %p64 = scmp.ne.s32.totalorder %s47, %s63
    %p65 = scmp.eq.s32.totalorder %s13, 0
    %p66 = por %p64, %p65
    %p67 = scmp.le.s32.totalorder 1, %s7
    %p68 = scmp.lt.s32.totalorder %s7, 3
    %p69 = pnand %p67, %p68
    %p70 = pneg %p69
    // Predicated region
    $region9: #{lm_model_forward.38} parent=5 // pred_check
      _
    $region10: #{lm_model_forward.38} parent=5 // pred_check_branch
      %72 = sbr.rel (%p69) target = $region12
    $region11: #{lm_model_forward.38} parent=5 // pred_region
      %s73 = ssub.s32 %s7, 1
    $region12: #{lm_model_forward.38} parent=5 // pred_fallthru
      _
    %p74 = scmp.lt.s32.totalorder %s7, 2
    // Predicated region
    $region13: #{lm_model_forward.38} parent=5 // pred_check
      %p75 = pneg %p74
    $region14: #{lm_model_forward.38} parent=5 // pred_check_branch
      %77 = sbr.rel (%p75) target = $region16
    $region15: #{lm_model_forward.38} parent=5 // pred_region
      // Predicated region
      $region17: #{lm_model_forward.38} parent=15 // pred_check
        %p78 = pneg %p27
      $region18: #{lm_model_forward.38} parent=15 // pred_check_branch
        %80 = sbr.rel (%p78) target = $region20
      $region19: #{lm_model_forward.38} parent=15 // pred_region
        %p81 = scmp.lt.s32.totalorder %s7, 1
        %s82 = scalar_select %p81, %s7, 1
        %s83 = smul.addr %s82, 3
        %s84 = smul.addr %s83, 4
        %s85 = scalar_lea.vmem %s0, %s84
      $region20: #{lm_model_forward.38} parent=15 // pred_fallthru
        _
    $region16: #{lm_model_forward.38} parent=5 // pred_fallthru
      _
    %p86 = scmp.le.s32.totalorder 1, %s7
    %p87 = scmp.lt.s32.totalorder %s7, 3
    %p88 = pnand %p86, %p87
    %p89 = pneg %p88
    // Predicated region
    $region21: #{lm_model_forward.38} parent=5 // pred_check
      _
    $region22: #{lm_model_forward.38} parent=5 // pred_check_branch
      %91 = sbr.rel (%p88) target = $region24
    $region23: #{lm_model_forward.38} parent=5 // pred_region
      %s92 = ssub.s32 %s7, 1
      %p93 = scmp.lt.s32.totalorder %s12, 1
      %s94 = scalar_select %p93, %s12, 1
      %s95 = smul.addr %s94, 3
      %s96 = smul.addr %s95, 4
      %s97 = scalar_lea.vmem %s0, %s96
      %p98 = pneg %p33
      %p99 = pneg %p30
      %p100 = pneg %p59
      %p101 = pneg %p56
      %p102 = scmp.lt.s32.totalorder %s12, 1
      %s103 = scalar_select %p102, %s12, 1
      %s104 = smul.addr %s103, 4
      %s105 = scalar_lea.vmem %s1, %s104
      %p106 = scmp.lt.s32.totalorder %s12, 1
      %s107 = scalar_select %p106, %s12, 1
      %s108 = smul.addr %s107, 3
      %s109 = smul.addr %s108, 4
      %s110 = scalar_lea.vmem %s0, %s109
      %p111 = scmp.lt.s32.totalorder %s12, 1
      %s112 = scalar_select %p111, %s12, 1
      %s113 = smul.addr %s112, 4
      %s114 = scalar_lea.vmem %s1, %s113
      %v116 = vld [vmem:[%s110] sm:$0xff]
      %v117 = vld [vmem:[%s110 + $0x8] sm:$0xf]
      %v118 = vlaneseq
      %v119 = vshrl.u32 %v118, 7
      %v120 = vlaneseq
      %v121 = vand.u32 %v120, 127
      %vm122 = vcmp.le.s32.totalorder %v121, %v119
      %v123 = vunpack.c.l.bf16 %v116
      %v124 = vmul.f32 %v123, 0.17675781
      %v125 = vpack.c.bf16 %v124, %v124
      %v127 = vunpack.c.l.b16 %v116
      %v128 = vpack.c.b16 %v127, %v127
      %129 = vrot.lane.b32.xlu0 %v128, 96
      %v130 = vpop.permute.xlu0 %129
      %vm131 = vcmask 261120
      %v133 = vsel %vm131, %v125, 0
      %v136 = vsel %vm131, %v130, 0
      %138 = vmatpush.bf16.xpose.msra.mxu0 0
      %139 = vmatpush.bf16.xpose.msra.mxu0 0
      %140 = vmatpush.bf16.xpose.msra.mxu0 0
      %141 = vmatpush.bf16.xpose.msra.mxu0 0
      %142 = vmatpush.bf16.xpose.msra.mxu0 0
      %143 = vmatpush.bf16.xpose.msra.mxu0 0
      %144 = vmatpush.bf16.xpose.msra.mxu0 0
      %145 = vmatpush.bf16.xpose.msra.mxu0 %v136
      %146 = vmatmul.bf16.gmra.mxu0 %v133
      %v147 = vpop.f32.mrf.mxu0
      %v148 = vadd.f32 0.0, %v147
      %v149 = vpop.f32.mrf.mxu0
      %150 = vdwg.mxu0
      %v151 = vsel %vm122, %v148, -1e+09
      %vm152 = vcmask 64512
      %v153 = vsel %vm152, %v151, -inf
      %154 = vmax.xlane.f32.xlu0 %v153
      %v155 = vpop.xlane.xlu0 %154
      %v156 = vsub.f32 %v151, %v155
      %v157 = vmul.f32 %v156, 1.442695
      %v158 = vpow.pop %v157
      %v159 = vsel %vm152, %v158, 0.0
      %160 = vadd.xlane.f32.xlu0 %v159
      %v161 = vpop.xlane.xlu0 %160
      %v162 = vrcp.pop %v161
      %v163 = vpack.c.bf16 %v158, %v158
      %164 = vrot.lane.b32.xlu0 %v128, 64
      %v165 = vpop.permute.xlu0 %164
      %v167 = vsel %vm152, %v163, 0
      %vm169 = vcmask 1043456
      %v171 = vsel %vm169, %v165, 0
      %173 = vmatpush.bf16.msra.mxu0 0
      %174 = vmatpush.bf16.msra.mxu0 0
      %175 = vmatpush.bf16.msra.mxu0 0
      %176 = vmatpush.bf16.msra.mxu0 0
      %177 = vmatpush.bf16.msra.mxu0 0
      %178 = vmatpush.bf16.msra.mxu0 0
      %179 = vmatpush.bf16.msra.mxu0 0
      %180 = vmatpush.bf16.msra.mxu0 %v171
      %181 = vmatmul.bf16.gmra.mxu0 %v167
      %v182 = vpop.f32.mrf.mxu0
      %v183 = vadd.f32 0.0, %v182
      %v184 = vpop.f32.mrf.mxu0
      %185 = vdwg.mxu0
      %v186 = vmul.f32 %v183, %v162
      %v187 = vpack.c.bf16 %v186, %v186
      %vm188 = vcmask 257024
      %189 = vst.msk [vmem:[%s114] sm:$0xf] %vm188, %v187
      %191 = vrot.lane.b32.xlu0 %v125, 32
      %v192 = vpop.permute.xlu0 %191
      %v193 = vunpack.c.h.b16 %v116
      %v194 = vpack.c.b16 %v193, %v193
      %v196 = vsel %vm131, %v192, 0
      %v199 = vsel %vm131, %v194, 0
      %201 = vmatpush.bf16.xpose.msra.mxu0 0
      %202 = vmatpush.bf16.xpose.msra.mxu0 0
      %203 = vmatpush.bf16.xpose.msra.mxu0 0
      %204 = vmatpush.bf16.xpose.msra.mxu0 0
      %205 = vmatpush.bf16.xpose.msra.mxu0 0
      %206 = vmatpush.bf16.xpose.msra.mxu0 0
      %207 = vmatpush.bf16.xpose.msra.mxu0 0
      %208 = vmatpush.bf16.xpose.msra.mxu0 %v199
      %209 = vmatmul.bf16.gmra.mxu0 %v196
      %v210 = vpop.f32.mrf.mxu0
      %v211 = vadd.f32 0.0, %v210
      %v212 = vpop.f32.mrf.mxu0
      %213 = vdwg.mxu0
      %v214 = vsel %vm122, %v211, -1e+09
      %v215 = vsel %vm152, %v214, -inf
      %216 = vmax.xlane.f32.xlu0 %v215
      %v217 = vpop.xlane.xlu0 %216
      %v218 = vsub.f32 %v214, %v217
      %v219 = vmul.f32 %v218, 1.442695
      %v220 = vpow.pop %v219
      %v221 = vsel %vm152, %v220, 0.0
      %222 = vadd.xlane.f32.xlu0 %v221
      %v223 = vpop.xlane.xlu0 %222
      %v224 = vrcp.pop %v223
      %v225 = vpack.c.bf16 %v220, %v220
      %226 = vrot.lane.b32.xlu0 %v194, 96
      %v227 = vpop.permute.xlu0 %226
      %v229 = vsel %vm152, %v225, 0
      %v232 = vsel %vm169, %v227, 0
      %234 = vmatpush.bf16.msra.mxu0 0
      %235 = vmatpush.bf16.msra.mxu0 0
      %236 = vmatpush.bf16.msra.mxu0 0
      %237 = vmatpush.bf16.msra.mxu0 0
      %238 = vmatpush.bf16.msra.mxu0 0
      %239 = vmatpush.bf16.msra.mxu0 0
      %240 = vmatpush.bf16.msra.mxu0 0
      %241 = vmatpush.bf16.msra.mxu0 %v232
      %242 = vmatmul.bf16.gmra.mxu0 %v229
      %v243 = vpop.f32.mrf.mxu0
      %v244 = vadd.f32 0.0, %v243
      %v245 = vpop.f32.mrf.mxu0
      %246 = vdwg.mxu0
      %v247 = vmul.f32 %v244, %v224
      %v248 = vpack.c.bf16 %v247, %v247
      %250 = vrot.lane.b32.xlu0 %v248, 32
      %v251 = vpop.permute.xlu0 %250
      %vm253 = vcmask 519424
      %254 = vst.msk [vmem:[%s114] sm:$0xf] %vm253, %v251
      %255 = vrot.lane.b32.xlu0 %v116, 64
      %v256 = vpop.permute.xlu0 %255
      %v257 = vrot.slane %v256, 4
      %v259 = vunpack.c.l.bf16 %v257
      %v260 = vmul.f32 %v259, 0.17675781
      %v261 = vpack.c.bf16 %v260, %v260
      %262 = vrot.lane.b32.xlu0 %v194, 32
      %v263 = vpop.permute.xlu0 %262
      %v265 = vsel %vm131, %v261, 0
      %v268 = vsel %vm131, %v263, 0
      %270 = vmatpush.bf16.xpose.msra.mxu0 0
      %271 = vmatpush.bf16.xpose.msra.mxu0 0
      %272 = vmatpush.bf16.xpose.msra.mxu0 0
      %273 = vmatpush.bf16.xpose.msra.mxu0 0
      %274 = vmatpush.bf16.xpose.msra.mxu0 0
      %275 = vmatpush.bf16.xpose.msra.mxu0 0
      %276 = vmatpush.bf16.xpose.msra.mxu0 0
      %277 = vmatpush.bf16.xpose.msra.mxu0 %v268
      %278 = vmatmul.bf16.gmra.mxu0 %v265
      %v279 = vpop.f32.mrf.mxu0
      %v280 = vadd.f32 0.0, %v279
      %v281 = vpop.f32.mrf.mxu0
      %282 = vdwg.mxu0
      %v283 = vsel %vm122, %v280, -1e+09
      %v284 = vsel %vm152, %v283, -inf
      %285 = vmax.xlane.f32.xlu0 %v284
      %v286 = vpop.xlane.xlu0 %285
      %v287 = vsub.f32 %v283, %v286
      %v288 = vmul.f32 %v287, 1.442695
      %v289 = vpow.pop %v288
      %v290 = vsel %vm152, %v289, 0.0
      %291 = vadd.xlane.f32.xlu0 %v290
      %v292 = vpop.xlane.xlu0 %291
      %v293 = vrcp.pop %v292
      %v294 = vpack.c.bf16 %v289, %v289
      %v296 = vsel %vm152, %v294, 0
      %v299 = vsel %vm169, %v117, 0
      %301 = vmatpush.bf16.msra.mxu0 0
      %302 = vmatpush.bf16.msra.mxu0 0
      %303 = vmatpush.bf16.msra.mxu0 0
      %304 = vmatpush.bf16.msra.mxu0 0
      %305 = vmatpush.bf16.msra.mxu0 0
      %306 = vmatpush.bf16.msra.mxu0 0
      %307 = vmatpush.bf16.msra.mxu0 0
      %308 = vmatpush.bf16.msra.mxu0 %v299
      %309 = vmatmul.bf16.gmra.mxu0 %v296
      %v310 = vpop.f32.mrf.mxu0
      %v311 = vadd.f32 0.0, %v310
      %v312 = vpop.f32.mrf.mxu0
      %313 = vdwg.mxu0
      %v314 = vmul.f32 %v311, %v293
      %v315 = vpack.c.bf16 %v314, %v314
      %317 = vrot.lane.b32.xlu0 %v315, 64
      %v318 = vpop.permute.xlu0 %317
      %vm320 = vcmask 781824
      %321 = vst.msk [vmem:[%s114] sm:$0xf] %vm320, %v318
      %p322 = scmp.lt.s32.totalorder %s12, 1
      %s323 = scalar_select %p322, %s12, 1
      %s324 = smul.addr %s323, 4
      %s325 = scalar_lea.vmem %s1, %s324
      // Predicated region
      $region25: #{lm_model_forward.38} parent=23 // pred_check
        %p326 = pneg %p56
      $region26: #{lm_model_forward.38} parent=23 // pred_check_branch
        %328 = sbr.rel (%p326) target = $region28
      $region27: #{lm_model_forward.38} parent=23 // pred_region
        _
      $region28: #{lm_model_forward.38} parent=23 // pred_fallthru
        _
    $region24: #{lm_model_forward.38} parent=5 // pred_fallthru
      _
    %p329 = scmp.le.s32.totalorder 2, %s7
    // Predicated region
    $region29: #{lm_model_forward.38} parent=5 // pred_check
      %p330 = pneg %p329
    $region30: #{lm_model_forward.38} parent=5 // pred_check_branch
      %332 = sbr.rel (%p330) target = $region32
    $region31: #{lm_model_forward.38} parent=5 // pred_region
      %s333 = ssub.s32 %s7, 2
      // Predicated region
      $region33: #{lm_model_forward.38} parent=31 // pred_check
        %p334 = pneg %p62
      $region34: #{lm_model_forward.38} parent=31 // pred_check_branch
        %336 = sbr.rel (%p334) target = $region36
      $region35: #{lm_model_forward.38} parent=31 // pred_region
        %p337 = scmp.lt.s32.totalorder %s13, 1
        %s338 = scalar_select %p337, %s13, 1
        %s339 = smul.addr %s338, 4
        %s340 = scalar_lea.vmem %s1, %s339
      $region36: #{lm_model_forward.38} parent=31 // pred_fallthru
        _
    $region32: #{lm_model_forward.38} parent=5 // pred_fallthru
      _
  $region6: #{lm_model_forward.38} parent=0 // loop_footer
    %s11 = sadd.s32 1, %s7
  $region7: #{lm_model_forward.38} parent=0 // loop_footer_branch
    %6 = sbr.rel target = $region3
  $region8: #{lm_model_forward.38} parent=0 // loop_exit
    _

// kernel: lm_model_forward.39
$region0: #{lm_model_forward.39}
  #allocation0 [shape = 'u32[]', space=smem, size = 0x4, offset = 0x4, fixed_abs, tag = 'smem constant byte address 0x4 - core index']
  #allocation1 [shape = 'u32[72,128]{1,0:T(1,128)}', space=vmem, size = 0x9000, scoped, tag = 'internal scratch']
  #allocation2 [shape = 'f32[16,96]{1,0:T(8,128)}', space=vmem, size = 0x2000, scoped, tag = 'scratch operand']
  %s0 = inlined_call_operand.vmem [shape: bf16[16,96], index: 0, kind: input, shape index: {}]
  %s1 = inlined_call_operand.vmem [shape: bf16[96,96], index: 1, kind: input, shape index: {}]
  %s2 = inlined_call_operand.vmem [shape: f32[1,96], index: 2, kind: input, shape index: {}]
  %s3 = inlined_call_operand.vmem [shape: bf16[16,96], index: 3, kind: input, shape index: {}]
  %s4 = inlined_call_operand.vmem [shape: f32[1,96], index: 4, kind: input, shape index: {}]
  %s5 = inlined_call_operand.vmem [shape: f32[1,96], index: 5, kind: input, shape index: {}]
  %s6 = inlined_call_operand.vmem [shape: bf16[16,96], index: 6, kind: output, shape index: {}]
  %s7 = sld [smem:[#allocation0]]
  $region42: #{lm_model_forward.39} parent=0
    _
  %s9 = ssub.s32 1, %s7
  %s10 = scalar_select 0, %s9, %s7
  // Predicated region
  $region2: #{lm_model_forward.39} parent=0 // pred_check
    _
  $region3: #{lm_model_forward.39} parent=0 // pred_check_branch
    %12 = sbr.rel (0) target = $region5
  $region4: #{lm_model_forward.39} parent=0 // pred_region
    _
  $region5: #{lm_model_forward.39} parent=0 // pred_fallthru
    _
  // Predicated region
  $region6: #{lm_model_forward.39} parent=0 // pred_check
    _
  $region7: #{lm_model_forward.39} parent=0 // pred_check_branch
    %14 = sbr.rel (0) target = $region9
  $region8: #{lm_model_forward.39} parent=0 // pred_region
    _
  $region9: #{lm_model_forward.39} parent=0 // pred_fallthru
    _
  // Predicated region
  $region10: #{lm_model_forward.39} parent=0 // pred_check
    _
  $region11: #{lm_model_forward.39} parent=0 // pred_check_branch
    %16 = sbr.rel (0) target = $region13
  $region12: #{lm_model_forward.39} parent=0 // pred_region
    _
  $region13: #{lm_model_forward.39} parent=0 // pred_fallthru
    _
  // Predicated region
  $region14: #{lm_model_forward.39} parent=0 // pred_check
    _
  $region15: #{lm_model_forward.39} parent=0 // pred_check_branch
    %18 = sbr.rel (0) target = $region17
  $region16: #{lm_model_forward.39} parent=0 // pred_region
    _
  $region17: #{lm_model_forward.39} parent=0 // pred_fallthru
    _
  // Predicated region
  $region18: #{lm_model_forward.39} parent=0 // pred_check
    _
  $region19: #{lm_model_forward.39} parent=0 // pred_check_branch
    %20 = sbr.rel (0) target = $region21
  $region20: #{lm_model_forward.39} parent=0 // pred_region
    _
  $region21: #{lm_model_forward.39} parent=0 // pred_fallthru
    _
  // Predicated region
  $region22: #{lm_model_forward.39} parent=0 // pred_check
    _
  $region23: #{lm_model_forward.39} parent=0 // pred_check_branch
    %22 = sbr.rel (0) target = $region25
  $region24: #{lm_model_forward.39} parent=0 // pred_region
    _
  $region25: #{lm_model_forward.39} parent=0 // pred_fallthru
    _
  %p24 = scmp.eq.s32.totalorder 0, 0
  // Predicated region
  $region26: #{lm_model_forward.39} parent=0 // pred_check
    %p25 = pneg %p24
  $region27: #{lm_model_forward.39} parent=0 // pred_check_branch
    %27 = sbr.rel (%p25) target = $region29
  $region28: #{lm_model_forward.39} parent=0 // pred_region
    %vm28 = vcmask 785408
    %29 = vst.msk [vmem:[#allocation2] sm:$0xff] %vm28, 0.0
    %30 = vst.msk [vmem:[#allocation2 + $0x8] sm:$0xff] %vm28, 0.0
  $region29: #{lm_model_forward.39} parent=0 // pred_fallthru
    _
  %v31 = vld [vmem:[#allocation2] sm:$0xff]
  %v32 = vld [vmem:[#allocation2 + $0x8] sm:$0xff]
  %v33 = vld [vmem:[%s0] sm:$0xf]
  %v34 = vld [vmem:[%s0 + $0x4] sm:$0xf]
  %v35 = vld [vmem:[%s1] sm:$0xf]
  %v36 = vld [vmem:[%s1 + $0x4] sm:$0xf]
  %v37 = vld [vmem:[%s1 + $0x8] sm:$0xf]
  %v38 = vld [vmem:[%s1 + $0xc] sm:$0xf]
  %v39 = vld [vmem:[%s1 + $0x10] sm:$0xf]
  %v40 = vld [vmem:[%s1 + $0x14] sm:$0xf]
  %v41 = vld [vmem:[%s1 + $0x18] sm:$0xf]
  %v42 = vld [vmem:[%s1 + $0x1c] sm:$0xf]
  %v43 = vld [vmem:[%s1 + $0x20] sm:$0xf]
  %v44 = vld [vmem:[%s1 + $0x24] sm:$0xf]
  %v45 = vld [vmem:[%s1 + $0x28] sm:$0xf]
  %v46 = vld [vmem:[%s1 + $0x2c] sm:$0xf]
  %v49 = vunpack.c.l.b16 %v33
  %v50 = vunpack.c.l.b16 %v34
  %v51 = vpack.c.b16 %v50, %v49
  %v64 = vunpack.c.l.b16 %v35
  %v65 = vunpack.c.l.b16 %v36
  %v66 = vunpack.c.l.b16 %v37
  %v67 = vunpack.c.l.b16 %v38
  %v68 = vunpack.c.l.b16 %v39
  %v69 = vunpack.c.l.b16 %v40
  %v70 = vunpack.c.l.b16 %v41
  %v71 = vunpack.c.l.b16 %v42
  %v72 = vunpack.c.l.b16 %v43
  %v73 = vunpack.c.l.b16 %v44
  %v74 = vunpack.c.l.b16 %v45
  %v75 = vunpack.c.l.b16 %v46
  %v76 = vpack.c.b16 %v65, %v64
  %v77 = vpack.c.b16 %v67, %v66
  %v78 = vpack.c.b16 %v69, %v68
  %v79 = vpack.c.b16 %v71, %v70
  %v80 = vpack.c.b16 %v73, %v72
  %v81 = vpack.c.b16 %v75, %v74
  %vm88 = vcmask 785408
  %v90 = vsel %vm88, %v51, 0
  %92 = vmatpush.bf16.msra.mxu0 0
  %93 = vmatpush.bf16.msra.mxu0 0
  %94 = vmatpush.bf16.msra.mxu0 %v81
  %95 = vmatpush.bf16.msra.mxu0 %v80
  %96 = vmatpush.bf16.msra.mxu0 %v79
  %97 = vmatpush.bf16.msra.mxu0 %v78
  %98 = vmatpush.bf16.msra.mxu0 %v77
  %99 = vmatpush.bf16.msra.mxu0 %v76
  %100 = vmatmul.bf16.gmra.mxu0 %v90
  %v101 = vpop.f32.mrf.mxu0
  %v102 = vadd.f32 0.0, %v101
  %v103 = vpop.f32.mrf.mxu0
  %v104 = vadd.f32 0.0, %v103
  %105 = vdwg.mxu0
  %v106 = vadd.f32 %v31, %v102
  %v107 = vadd.f32 %v32, %v104
  %108 = vst.msk [vmem:[#allocation2] sm:$0xff] %vm88, %v106
  %109 = vst.msk [vmem:[#allocation2 + $0x8] sm:$0xff] %vm88, %v107
  // Predicated region
  $region30: #{lm_model_forward.39} parent=0 // pred_check
    %p110 = pneg %p24
  $region31: #{lm_model_forward.39} parent=0 // pred_check_branch
    %112 = sbr.rel (%p110) target = $region33
  $region32: #{lm_model_forward.39} parent=0 // pred_region
    %v113 = vld [vmem:[#allocation2] sm:$0xff]
    %v114 = vld [vmem:[#allocation2 + $0x8] sm:$0xff]
    %v115 = vld [vmem:[%s2] sm:$0x1]
    %v117 = vperm.slane %v115, 0
    %v119 = vadd.f32 %v113, %v117
    %v120 = vadd.f32 %v114, %v117
    %v121 = vld [vmem:[%s3] sm:$0xf]
    %v122 = vld [vmem:[%s3 + $0x4] sm:$0xf]
    %v123 = vunpack.c.l.bf16 %v121
    %v124 = vunpack.c.l.bf16 %v122
    %v125 = vadd.f32 %v123, %v119
    %v126 = vadd.f32 %v124, %v120
    %v127 = vsel %vm88, %v125, 0.0
    %128 = vadd.xlane.f32.xlu0 %v127
    %v129 = vpop.xlane.xlu0 %128
    %v130 = vsel %vm88, %v126, 0.0
    %131 = vadd.xlane.f32.xlu0 %v130
    %v132 = vpop.xlane.xlu0 %131
    %v133 = vrcp.pop 96.0
    %v134 = vmul.f32 96.0, %v133
    %v135 = vsub.f32 1.0, %v134
    %v136 = vmul.f32 %v133, %v135
    %v137 = vadd.f32 %v133, %v136
    %vm138 = vweird.f32 %v133
    %v139 = vsel %vm138, %v133, %v137
    %v140 = vmul.f32 %v129, %v139
    %v141 = vmul.f32 %v132, %v139
    %v142 = vsub.f32 %v125, %v140
    %v143 = vsub.f32 %v126, %v141
    %v144 = vmul.f32 %v142, %v142
    %v145 = vmul.f32 %v143, %v143
    %v146 = vsel %vm88, %v144, 0.0
    %147 = vadd.xlane.f32.xlu0 %v146
    %v148 = vpop.xlane.xlu0 %147
    %v149 = vsel %vm88, %v145, 0.0
    %150 = vadd.xlane.f32.xlu0 %v149
    %v151 = vpop.xlane.xlu0 %150
    %v152 = vmul.f32 %v148, %v139
    %v153 = vmul.f32 %v151, %v139
    %v154 = vld [vmem:[%s4] sm:$0x1]
    %v155 = vadd.f32 %v152, 1e-05
    %v156 = vadd.f32 %v153, 1e-05
    %v157 = vrsqrt.pop %v155
    %v158 = vmul.f32 %v157, %v155
    %v159 = vmul.f32 %v158, %v157
    %v160 = vmul.f32 0.5, %v159
    %v161 = vsub.f32 1.5, %v160
    %v162 = vmul.f32 %v157, %v161
    %vm163 = vweird.f32 %v155
    %vm164 = vweird.f32 %v157
    %vm165 = vmor %vm163, %vm164
    %v166 = vsel %vm165, %v157, %v162
    %v167 = vrsqrt.pop %v156
    %v168 = vmul.f32 %v167, %v156
    %v169 = vmul.f32 %v168, %v167
    %v170 = vmul.f32 0.5, %v169
    %v171 = vsub.f32 1.5, %v170
    %v172 = vmul.f32 %v167, %v171
    %vm173 = vweird.f32 %v156
    %vm174 = vweird.f32 %v167
    %vm175 = vmor %vm173, %vm174
    %v176 = vsel %vm175, %v167, %v172
    %v177 = vmul.f32 %v142, %v166
    %v178 = vmul.f32 %v143, %v176
    %v180 = vperm.slane %v154, 0
    %v182 = vmul.f32 %v180, %v177
    %v183 = vmul.f32 %v180, %v178
    %v184 = vld [vmem:[%s5] sm:$0x1]
    %v186 = vperm.slane %v184, 0
    %v188 = vadd.f32 %v182, %v186
    %v189 = vadd.f32 %v183, %v186
    %v190 = vpack.c.bf16 %v188, %v188
    %v191 = vpack.c.bf16 %v189, %v189
    %vm192 = vcmask 781312
    %193 = vst.msk [vmem:[%s6] sm:$0xf] %vm192, %v190
    %194 = vst.msk [vmem:[%s6 + $0x4] sm:$0xf] %vm192, %v191
  $region33: #{lm_model_forward.39} parent=0 // pred_fallthru
    _
  // Predicated region
  $region34: #{lm_model_forward.39} parent=0 // pred_check
    _
  $region35: #{lm_model_forward.39} parent=0 // pred_check_branch
    %196 = sbr.rel (0) target = $region37
  $region36: #{lm_model_forward.39} parent=0 // pred_region
    _
  $region37: #{lm_model_forward.39} parent=0 // pred_fallthru
    _
  // Predicated region
  $region38: #{lm_model_forward.39} parent=0 // pred_check
    _
  $region39: #{lm_model_forward.39} parent=0 // pred_check_branch
    %198 = sbr.rel (0) target = $region41
  $region40: #{lm_model_forward.39} parent=0 // pred_region
    _
  $region41: #{lm_model_forward.39} parent=0 // pred_fallthru
    _

// kernel: lm_model_forward.40
$region0: #{lm_model_forward.40}
  #allocation0 [shape = 'u32[]', space=smem, size = 0x4, offset = 0x4, fixed_abs, tag = 'smem constant byte address 0x4 - core index']
  #allocation1 [shape = 'u32[72,128]{1,0:T(1,128)}', space=vmem, size = 0x9000, scoped, tag = 'internal scratch']
  #allocation2 [shape = 'f32[16,128]{1,0:T(8,128)}', space=vmem, size = 0x2000, scoped, tag = 'scratch operand']
  %s0 = inlined_call_operand.vmem [shape: bf16[16,96], index: 0, kind: input, shape index: {}]
  %s1 = inlined_call_operand.vmem [shape: bf16[96,384], index: 1, kind: input, shape index: {}]
  %s2 = inlined_call_operand.vmem [shape: f32[1,384], index: 2, kind: input, shape index: {}]
  %s3 = inlined_call_operand.vmem [shape: bf16[16,384], index: 3, kind: output, shape index: {}]
  %s4 = sld [smem:[#allocation0]]
  $region131: #{lm_model_forward.40} parent=0
    _
  %s6 = ssub.s32 1, %s4
  %s7 = scalar_select 0, %s6, %s4
  $region1: #{lm_model_forward.40} parent=0
    #allocation3 [shape = 'u8[49152]{0}', space=vmem, size = 0xc000, scoped, tag = 'input window, operand 1']
    #allocation4 [shape = 'u8[8192]{0}', space=vmem, size = 0x2000, scoped, tag = 'output window, operand 0']
    loop: start=0, step=1, limit=5
    $region2: #{lm_model_forward.40} parent=1 // loop_pre_header
      _
    $region3: #{lm_model_forward.40} parent=1 // loop_header
      %s9 = sphi 0, %s13
      %p10 = scmp.ge.s32.totalorder %s9, 5
      %s16 = sphi 0, %s35
      %s17 = sphi 0, %s31
      %s18 = sphi 0, %s27
      %s19 = sphi 0, %s16
      %s20 = sphi 0, %s17
      %s21 = sphi 0, %s18
      %s22 = sphi 0, %s19
      %s23 = sphi 0, %s20
      %s24 = sphi 0, %s21
      %s40 = sphi 0, %s42
      %s43 = sphi 0, %s40
      %s44 = sphi 0, %s43
      %s60 = sphi 0, %s44
      %s68 = sphi 0, %s70
      %s71 = sphi 0, %s68
      %s72 = sphi 0, %s71
      %s88 = sphi 0, %s72
      %s94 = sphi 0, %s96
      %s97 = sphi 0, %s94
      %s98 = sphi 0, %s97
      %s114 = sphi 0, %s98
      %s122 = sphi 0, %s124
      %s125 = sphi 0, %s122
      %s126 = sphi 0, %s125
      %s142 = sphi 0, %s126
    $region4: #{lm_model_forward.40} parent=1 // loop_header_branch
      %12 = sbr.rel (%p10) target = $region8
    $region5: #{lm_model_forward.40} parent=1 // loop_body
      %s14 = ssub.s32 %s9, 1
      %s15 = ssub.s32 %s9, 2
      %s25 = sadd.s32 1, %s18
      %p26 = scmp.ge.s32.totalorder %s25, 1
      %s27 = scalar_select %p26, 0, %s25
      %s28 = sadd.s32 1, %s17
      %s29 = scalar_select %p26, %s28, %s17
      %p30 = scmp.ge.s32.totalorder %s29, 3
      %s31 = scalar_select %p30, 0, %s29
      %s32 = sadd.s32 1, %s16
      %s33 = scalar_select %p30, %s32, %s16
      %p34 = scmp.ge.s32.totalorder %s33, 1
      %s35 = scalar_select %p34, 0, %s33
      %s36 = ssub.s32 %s16, %s35
      %s37 = ssub.s32 %s18, %s27
      %s38 = sor.u32 %s36, %s37
      %p39 = scmp.eq.s32.totalorder %s38, 0
      %s41 = sadd.s32 %s40, 1
      %s42 = scalar_select %p39, %s40, %s41
      %p45 = pneg %p39
      %p46 = scmp.eq.s32.totalorder %s9, 2
      %p47 = por %p45, %p46
      %p48 = scmp.ne.s32.totalorder %s40, %s43
      %p49 = scmp.eq.s32.totalorder %s9, 0
      %p50 = por %p48, %p49
      %p51 = scmp.ne.s32.totalorder %s40, %s43
      %p52 = scmp.eq.s32.totalorder %s14, 2
      %p53 = por %p51, %p52
      %p54 = scmp.ne.s32.totalorder %s43, %s44
      %p55 = scmp.eq.s32.totalorder %s14, 0
      %p56 = por %p54, %p55
      %p57 = scmp.ne.s32.totalorder %s43, %s44
      %p58 = scmp.eq.s32.totalorder %s15, 2
      %p59 = por %p57, %p58
      %p61 = scmp.ne.s32.totalorder %s44, %s60
      %p62 = scmp.eq.s32.totalorder %s15, 0
      %p63 = por %p61, %p62
      %s64 = ssub.s32 %s18, %s27
      %s65 = ssub.s32 %s17, %s31
      %s66 = sor.u32 %s64, %s65
      %p67 = scmp.eq.s32.totalorder %s66, 0
      %s69 = sadd.s32 %s68, 1
      %s70 = scalar_select %p67, %s68, %s69
      %p73 = pneg %p67
      %p74 = scmp.eq.s32.totalorder %s9, 2
      %p75 = por %p73, %p74
      %p76 = scmp.ne.s32.totalorder %s68, %s71
      %p77 = scmp.eq.s32.totalorder %s9, 0
      %p78 = por %p76, %p77
      %p79 = scmp.ne.s32.totalorder %s68, %s71
      %p80 = scmp.eq.s32.totalorder %s14, 2
      %p81 = por %p79, %p80
      %p82 = scmp.ne.s32.totalorder %s71, %s72
      %p83 = scmp.eq.s32.totalorder %s14, 0
      %p84 = por %p82, %p83
      %p85 = scmp.ne.s32.totalorder %s71, %s72
      %p86 = scmp.eq.s32.totalorder %s15, 2
      %p87 = por %p85, %p86
      %p89 = scmp.ne.s32.totalorder %s72, %s88
      %p90 = scmp.eq.s32.totalorder %s15, 0
      %p91 = por %p89, %p90
      %s92 = ssub.s32 %s17, %s31
      %p93 = scmp.eq.s32.totalorder %s92, 0
      %s95 = sadd.s32 %s94, 1
      %s96 = scalar_select %p93, %s94, %s95
      %p99 = pneg %p93
      %p100 = scmp.eq.s32.totalorder %s9, 2
      %p101 = por %p99, %p100
      %p102 = scmp.ne.s32.totalorder %s94, %s97
      %p103 = scmp.eq.s32.totalorder %s9, 0
      %p104 = por %p102, %p103
      %p105 = scmp.ne.s32.totalorder %s94, %s97
      %p106 = scmp.eq.s32.totalorder %s14, 2
      %p107 = por %p105, %p106
      %p108 = scmp.ne.s32.totalorder %s97, %s98
      %p109 = scmp.eq.s32.totalorder %s14, 0
      %p110 = por %p108, %p109
      %p111 = scmp.ne.s32.totalorder %s97, %s98
      %p112 = scmp.eq.s32.totalorder %s15, 2
      %p113 = por %p111, %p112
      %p115 = scmp.ne.s32.totalorder %s98, %s114
      %p116 = scmp.eq.s32.totalorder %s15, 0
      %p117 = por %p115, %p116
      %s118 = ssub.s32 %s16, %s35
      %s119 = ssub.s32 %s17, %s31
      %s120 = sor.u32 %s118, %s119
      %p121 = scmp.eq.s32.totalorder %s120, 0
      %s123 = sadd.s32 %s122, 1
      %s124 = scalar_select %p121, %s122, %s123
      %p127 = pneg %p121
      %p128 = scmp.eq.s32.totalorder %s9, 2
      %p129 = por %p127, %p128
      %p130 = scmp.ne.s32.totalorder %s122, %s125
      %p131 = scmp.eq.s32.totalorder %s9, 0
      %p132 = por %p130, %p131
      %p133 = scmp.ne.s32.totalorder %s122, %s125
      %p134 = scmp.eq.s32.totalorder %s14, 2
      %p135 = por %p133, %p134
      %p136 = scmp.ne.s32.totalorder %s125, %s126
      %p137 = scmp.eq.s32.totalorder %s14, 0
      %p138 = por %p136, %p137
      %p139 = scmp.ne.s32.totalorder %s125, %s126
      %p140 = scmp.eq.s32.totalorder %s15, 2
      %p141 = por %p139, %p140
      %p143 = scmp.ne.s32.totalorder %s126, %s142
      %p144 = scmp.eq.s32.totalorder %s15, 0
      %p145 = por %p143, %p144
      %p146 = scmp.le.s32.totalorder 1, %s9
      %p147 = scmp.lt.s32.totalorder %s9, 4
      %p148 = pnand %p146, %p147
      %p149 = pneg %p148
      // Predicated region
      $region9: #{lm_model_forward.40} parent=5 // pred_check
        _
      $region10: #{lm_model_forward.40} parent=5 // pred_check_branch
        %151 = sbr.rel (%p148) target = $region12
      $region11: #{lm_model_forward.40} parent=5 // pred_region
        %s152 = ssub.s32 %s9, 1
        // Predicated region
        $region13: #{lm_model_forward.40} parent=11 // pred_check
          %p153 = pneg %p56
        $region14: #{lm_model_forward.40} parent=11 // pred_check_branch
          %155 = sbr.rel (%p153) target = $region16
        $region15: #{lm_model_forward.40} parent=11 // pred_region
          %s156 = smul.u32 2, %s19
          %p157 = scmp.lt.s32.totalorder %s156, 1
          %s158 = scalar_select %p157, %s156, 1
          %p159 = scmp.lt.s32.totalorder %s21, 0
          %s160 = scalar_select %p159, %s21, 0
          %s161 = sadd.s32 %s160, %s158
          %s162 = smul.addr %s161, 4
          %s163 = scalar_lea.vmem %s0, %s162
          %s164 = smul.u32 2, %s19
        $region16: #{lm_model_forward.40} parent=11 // pred_fallthru
          _
      $region12: #{lm_model_forward.40} parent=5 // pred_fallthru
        _
      %p165 = scmp.lt.s32.totalorder %s9, 3
      // Predicated region
      $region17: #{lm_model_forward.40} parent=5 // pred_check
        %p166 = pneg %p165
      $region18: #{lm_model_forward.40} parent=5 // pred_check_branch
        %168 = sbr.rel (%p166) target = $region20
      $region19: #{lm_model_forward.40} parent=5 // pred_region
        // Predicated region
        $region21: #{lm_model_forward.40} parent=19 // pred_check
          %p169 = pneg %p78
        $region22: #{lm_model_forward.40} parent=19 // pred_check_branch
          %171 = sbr.rel (%p169) target = $region24
        $region23: #{lm_model_forward.40} parent=19 // pred_region
          %s172 = sand.u32 %s68, 1
          %s173 = sand.u32 %s68, 1
          %s174 = smul.addr %s173, 48
          %s175 = scalar_lea.vmem [#allocation3], %s174
          %s176 = smul.u32 12, %s18
          %s177 = smul.addr %s176, 3
          %s178 = sadd.s32 %s17, %s177
          %s179 = smul.addr %s178, 4
          %s180 = scalar_lea.vmem %s1, %s179
          // Predicated region
          $region25: #{lm_model_forward.40} parent=23 // pred_check
            _
          $region26: #{lm_model_forward.40} parent=23 // pred_check_branch
            %182 = sbr.rel (0) target = $region28
          $region27: #{lm_model_forward.40} parent=23 // pred_region
            // Predicated region
            $region29: #{lm_model_forward.40} parent=27 // pred_check
              _
            $region30: #{lm_model_forward.40} parent=27 // pred_check_branch
              %184 = sbr.rel target = $region32
            $region31: #{lm_model_forward.40} parent=27 // pred_region
              // Predicated region
              $region44: #{lm_model_forward.40} parent=31 // pred_check
                _
              $region45: #{lm_model_forward.40} parent=31 // pred_check_branch
                %222 = sbr.rel (0) target = $region47
              $region46: #{lm_model_forward.40} parent=31 // pred_region
                loop: start=0, step=1, limit=1
                $region48: #{lm_model_forward.40} parent=46 // loop_pre_header
                  _
                $region49: #{lm_model_forward.40} parent=46 // loop_header
                  %s224 = sphi 0, %s228
                  %p225 = scmp.ge.s32.totalorder %s224, 1
                  %s229 = sphi %s180, %s180
                  %s230 = sphi %s175, %s175
                $region50: #{lm_model_forward.40} parent=46 // loop_header_branch
                  %227 = sbr.rel (%p225) target = $region54
                $region51: #{lm_model_forward.40} parent=46 // loop_body
                  _
                $region52: #{lm_model_forward.40} parent=46 // loop_footer
                  %s228 = sadd.s32 1, %s224
                $region53: #{lm_model_forward.40} parent=46 // loop_footer_branch
                  %223 = sbr.rel target = $region49
                $region54: #{lm_model_forward.40} parent=46 // loop_exit
                  _
                %s232 = ssub.s32 16, 1
                loop: start=0, step=1, limit=1
                $region55: #{lm_model_forward.40} parent=46 // loop_pre_header
                  _
                $region56: #{lm_model_forward.40} parent=46 // loop_header
                  %s234 = sphi 0, %s238
                  %p235 = scmp.ge.s32.totalorder %s234, 1
                  %s239 = sphi %s180, %s180
                  %s240 = sphi %s175, %s175
                $region57: #{lm_model_forward.40} parent=46 // loop_header_branch
                  %237 = sbr.rel (%p235) target = $region61
                $region58: #{lm_model_forward.40} parent=46 // loop_body
                  %v241 = vld [vmem:[%s239] sm:%s232]
                  %242 = vst [vmem:[%s240] sm:%s232] %v241
                  %v243 = vld [vmem:[%s239 + $0xc] sm:%s232]
                  %244 = vst [vmem:[%s240 + $0x4] sm:%s232] %v243
                  %v245 = vld [vmem:[%s239 + $0x18] sm:%s232]
                  %246 = vst [vmem:[%s240 + $0x8] sm:%s232] %v245
                  %v247 = vld [vmem:[%s239 + $0x24] sm:%s232]
                  %248 = vst [vmem:[%s240 + $0xc] sm:%s232] %v247
                  %v249 = vld [vmem:[%s239 + $0x30] sm:%s232]
                  %250 = vst [vmem:[%s240 + $0x10] sm:%s232] %v249
                  %v251 = vld [vmem:[%s239 + $0x3c] sm:%s232]
                  %252 = vst [vmem:[%s240 + $0x14] sm:%s232] %v251
                  %v253 = vld [vmem:[%s239 + $0x48] sm:%s232]
                  %254 = vst [vmem:[%s240 + $0x18] sm:%s232] %v253
                  %v255 = vld [vmem:[%s239 + $0x54] sm:%s232]
                  %256 = vst [vmem:[%s240 + $0x1c] sm:%s232] %v255
                  %v257 = vld [vmem:[%s239 + $0x60] sm:%s232]
                  %258 = vst [vmem:[%s240 + $0x20] sm:%s232] %v257
                  %v259 = vld [vmem:[%s239 + $0x6c] sm:%s232]
                  %260 = vst [vmem:[%s240 + $0x24] sm:%s232] %v259
                  %v261 = vld [vmem:[%s239 + $0x78] sm:%s232]
                  %262 = vst [vmem:[%s240 + $0x28] sm:%s232] %v261
                  %v263 = vld [vmem:[%s239 + $0x84] sm:%s232]
                  %264 = vst [vmem:[%s240 + $0x2c] sm:%s232] %v263
                $region59: #{lm_model_forward.40} parent=46 // loop_footer
                  %s238 = sadd.s32 1, %s234
                $region60: #{lm_model_forward.40} parent=46 // loop_footer_branch
                  %233 = sbr.rel target = $region56
                $region61: #{lm_model_forward.40} parent=46 // loop_exit
                  _
              $region47: #{lm_model_forward.40} parent=31 // pred_fallthru
                _
            $region32: #{lm_model_forward.40} parent=27 // pred_fallthru
              _
            // Predicated region
            $region33: #{lm_model_forward.40} parent=27 // pred_check
              _
            $region34: #{lm_model_forward.40} parent=27 // pred_check_branch
              %186 = sbr.rel (0) target = $region36
            $region35: #{lm_model_forward.40} parent=27 // pred_region
              %s188 = ssub.s32 16, 1
              loop: start=0, step=1, limit=1
              $region37: #{lm_model_forward.40} parent=35 // loop_pre_header
                _
              $region38: #{lm_model_forward.40} parent=35 // loop_header
                %s190 = sphi 0, %s194
                %p191 = scmp.ge.s32.totalorder %s190, 1
                %s195 = sphi %s180, %s180
                %s196 = sphi %s175, %s175
              $region39: #{lm_model_forward.40} parent=35 // loop_header_branch
                %193 = sbr.rel (%p191) target = $region43
              $region40: #{lm_model_forward.40} parent=35 // loop_body
                %v197 = vld [vmem:[%s195] sm:%s188]
                %198 = vst [vmem:[%s196] sm:%s188] %v197
                %v199 = vld [vmem:[%s195 + $0xc] sm:%s188]
                %200 = vst [vmem:[%s196 + $0x4] sm:%s188] %v199
                %v201 = vld [vmem:[%s195 + $0x18] sm:%s188]
                %202 = vst [vmem:[%s196 + $0x8] sm:%s188] %v201
                %v203 = vld [vmem:[%s195 + $0x24] sm:%s188]
                %204 = vst [vmem:[%s196 + $0xc] sm:%s188] %v203
                %v205 = vld [vmem:[%s195 + $0x30] sm:%s188]
                %206 = vst [vmem:[%s196 + $0x10] sm:%s188] %v205
                %v207 = vld [vmem:[%s195 + $0x3c] sm:%s188]
                %208 = vst [vmem:[%s196 + $0x14] sm:%s188] %v207
                %v209 = vld [vmem:[%s195 + $0x48] sm:%s188]
                %210 = vst [vmem:[%s196 + $0x18] sm:%s188] %v209
                %v211 = vld [vmem:[%s195 + $0x54] sm:%s188]
                %212 = vst [vmem:[%s196 + $0x1c] sm:%s188] %v211
                %v213 = vld [vmem:[%s195 + $0x60] sm:%s188]
                %214 = vst [vmem:[%s196 + $0x20] sm:%s188] %v213
                %v215 = vld [vmem:[%s195 + $0x6c] sm:%s188]
                %216 = vst [vmem:[%s196 + $0x24] sm:%s188] %v215
                %v217 = vld [vmem:[%s195 + $0x78] sm:%s188]
                %218 = vst [vmem:[%s196 + $0x28] sm:%s188] %v217
                %v219 = vld [vmem:[%s195 + $0x84] sm:%s188]
                %220 = vst [vmem:[%s196 + $0x2c] sm:%s188] %v219
              $region41: #{lm_model_forward.40} parent=35 // loop_footer
                %s194 = sadd.s32 1, %s190
              $region42: #{lm_model_forward.40} parent=35 // loop_footer_branch
                %189 = sbr.rel target = $region38
              $region43: #{lm_model_forward.40} parent=35 // loop_exit
                _
            $region36: #{lm_model_forward.40} parent=27 // pred_fallthru
              _
          $region28: #{lm_model_forward.40} parent=23 // pred_fallthru
            _
          %265 = vnop
        $region24: #{lm_model_forward.40} parent=19 // pred_fallthru
          _
        // Predicated region
        $region62: #{lm_model_forward.40} parent=19 // pred_check
          %p266 = pneg %p104
        $region63: #{lm_model_forward.40} parent=19 // pred_check_branch
          %268 = sbr.rel (%p266) target = $region65
        $region64: #{lm_model_forward.40} parent=19 // pred_region
          %p269 = scmp.lt.s32.totalorder %s17, 2
          %s270 = scalar_select %p269, %s17, 2
          %s271 = scalar_lea.vmem %s2, %s270
        $region65: #{lm_model_forward.40} parent=19 // pred_fallthru
          _
      $region20: #{lm_model_forward.40} parent=5 // pred_fallthru
        _
      %p272 = scmp.le.s32.totalorder 1, %s9
      %p273 = scmp.lt.s32.totalorder %s9, 4
      %p274 = pnand %p272, %p273
      %p275 = pneg %p274
      // Predicated region
      $region66: #{lm_model_forward.40} parent=5 // pred_check
        _
      $region67: #{lm_model_forward.40} parent=5 // pred_check_branch
        %277 = sbr.rel (%p274) target = $region69
      $region68: #{lm_model_forward.40} parent=5 // pred_region
        %s278 = ssub.s32 %s9, 1
        %s279 = sand.u32 %s71, 1
        %s280 = sand.u32 %s71, 1
        %s281 = smul.addr %s280, 48
        %s282 = scalar_lea.vmem [#allocation3], %s281
        // Predicated region
        $region70: #{lm_model_forward.40} parent=68 // pred_check
          %p283 = pneg %p84
        $region71: #{lm_model_forward.40} parent=68 // pred_check_branch
          %285 = sbr.rel (%p283) target = $region73
        $region72: #{lm_model_forward.40} parent=68 // pred_region
          _
        $region73: #{lm_model_forward.40} parent=68 // pred_fallthru
          _
        %s286 = smul.u32 2, %s19
        %p287 = scmp.lt.s32.totalorder %s286, 1
        %s288 = scalar_select %p287, %s286, 1
        %p289 = scmp.lt.s32.totalorder %s21, 0
        %s290 = scalar_select %p289, %s21, 0
        %s291 = sadd.s32 %s290, %s288
        %s292 = smul.addr %s291, 4
        %s293 = scalar_lea.vmem %s0, %s292
        %p294 = pneg %p56
        %p295 = pneg %p53
        %s296 = sand.u32 %s71, 1
        %s297 = sand.u32 %s71, 1
        %s298 = smul.addr %s297, 48
        %s299 = scalar_lea.vmem [#allocation3], %s298
        %p300 = pneg %p84
        %p301 = pneg %p81
        %p302 = scmp.lt.s32.totalorder %s20, 2
        %s303 = scalar_select %p302, %s20, 2
        %s304 = scalar_lea.vmem %s2, %s303
        %p305 = pneg %p110
        %p306 = pneg %p107
        %p307 = pneg %p138
        %p308 = pneg %p135
        %s309 = sand.u32 %s125, 1
        %s310 = sand.u32 %s125, 1
        %s311 = smul.addr %s310, 8
        %s312 = scalar_lea.vmem [#allocation4], %s311
        %s313 = smul.u32 2, %s19
        %p314 = scmp.lt.s32.totalorder %s313, 1
        %s315 = scalar_select %p314, %s313, 1
        %p316 = scmp.lt.s32.totalorder %s21, 0
        %s317 = scalar_select %p316, %s21, 0
        %s318 = sadd.s32 %s317, %s315
        %s319 = smul.addr %s318, 4
        %s320 = scalar_lea.vmem %s0, %s319
        %s321 = smul.u32 2, %s19
        %s322 = smul.u32 12, %s21
        %p323 = scmp.lt.s32.totalorder %s20, 2
        %s324 = scalar_select %p323, %s20, 2
        %s325 = scalar_lea.vmem %s2, %s324
        %s326 = smul.u32 2, %s19
        %p328 = scmp.eq.s32.totalorder %s21, 0
        // Predicated region
        $region74: #{lm_model_forward.40} parent=68 // pred_check
          %p329 = pneg %p328
        $region75: #{lm_model_forward.40} parent=68 // pred_check_branch
          %331 = sbr.rel (%p329) target = $region77
        $region76: #{lm_model_forward.40} parent=68 // pred_region
          %332 = vst [vmem:[#allocation2] sm:$0xff] 0.0
          %333 = vst [vmem:[#allocation2 + $0x8] sm:$0xff] 0.0
        $region77: #{lm_model_forward.40} parent=68 // pred_fallthru
          _
        %v334 = vld [vmem:[#allocation2] sm:$0xff]
        %v335 = vld [vmem:[#allocation2 + $0x8] sm:$0xff]
        %v336 = vld [vmem:[%s320] sm:$0xf]
        %v337 = vld [vmem:[%s320 + $0x4] sm:$0xf]
        %v338 = vld [vmem:[%s282] sm:$0xf]
        %v339 = vld [vmem:[%s282 + $0x4] sm:$0xf]
        %v340 = vld [vmem:[%s282 + $0x8] sm:$0xf]
        %v341 = vld [vmem:[%s282 + $0xc] sm:$0xf]
        %v342 = vld [vmem:[%s282 + $0x10] sm:$0xf]
        %v343 = vld [vmem:[%s282 + $0x14] sm:$0xf]
        %v344 = vld [vmem:[%s282 + $0x18] sm:$0xf]
        %v345 = vld [vmem:[%s282 + $0x1c] sm:$0xf]
        %v346 = vld [vmem:[%s282 + $0x20] sm:$0xf]
        %v347 = vld [vmem:[%s282 + $0x24] sm:$0xf]
        %v348 = vld [vmem:[%s282 + $0x28] sm:$0xf]
        %v349 = vld [vmem:[%s282 + $0x2c] sm:$0xf]
        %v352 = vunpack.c.l.b16 %v336
        %v353 = vunpack.c.l.b16 %v337
        %v354 = vpack.c.b16 %v353, %v352
        %v367 = vunpack.c.l.b16 %v338
        %v368 = vunpack.c.l.b16 %v339
        %v369 = vunpack.c.l.b16 %v340
        %v370 = vunpack.c.l.b16 %v341
        %v371 = vunpack.c.l.b16 %v342
        %v372 = vunpack.c.l.b16 %v343
        %v373 = vunpack.c.l.b16 %v344
        %v374 = vunpack.c.l.b16 %v345
        %v375 = vunpack.c.l.b16 %v346
        %v376 = vunpack.c.l.b16 %v347
        %v377 = vunpack.c.l.b16 %v348
        %v378 = vunpack.c.l.b16 %v349
        %v379 = vpack.c.b16 %v368, %v367
        %v380 = vpack.c.b16 %v370, %v369
        %v381 = vpack.c.b16 %v372, %v371
        %v382 = vpack.c.b16 %v374, %v373
        %v383 = vpack.c.b16 %v376, %v375
        %v384 = vpack.c.b16 %v378, %v377
        %vm391 = vcmask 785408
        %v393 = vsel %vm391, %v354, 0
        %395 = vmatpush.bf16.msra.mxu0 0
        %396 = vmatpush.bf16.msra.mxu0 0
        %397 = vmatpush.bf16.msra.mxu0 %v384
        %398 = vmatpush.bf16.msra.mxu0 %v383
        %399 = vmatpush.bf16.msra.mxu0 %v382
        %400 = vmatpush.bf16.msra.mxu0 %v381
        %401 = vmatpush.bf16.msra.mxu0 %v380
        %402 = vmatpush.bf16.msra.mxu0 %v379
        %403 = vmatmul.bf16.gmra.mxu0 %v393
        %v404 = vpop.f32.mrf.mxu0
        %v405 = vadd.f32 0.0, %v404
        %v406 = vpop.f32.mrf.mxu0
        %v407 = vadd.f32 0.0, %v406
        %408 = vdwg.mxu0
        %v409 = vadd.f32 %v334, %v405
        %v410 = vadd.f32 %v335, %v407
        %411 = vst [vmem:[#allocation2] sm:$0xff] %v409
        %412 = vst [vmem:[#allocation2 + $0x8] sm:$0xff] %v410
        // Predicated region
        $region78: #{lm_model_forward.40} parent=68 // pred_check
          %p413 = pneg %p328
        $region79: #{lm_model_forward.40} parent=68 // pred_check_branch
          %415 = sbr.rel (%p413) target = $region81
        $region80: #{lm_model_forward.40} parent=68 // pred_region
          %v416 = vld [vmem:[#allocation2] sm:$0xff]
          %v417 = vld [vmem:[#allocation2 + $0x8] sm:$0xff]
          %v418 = vld [vmem:[%s325] sm:$0x1]
          %v420 = vperm.slane %v418, 0
          %v422 = vadd.f32 %v416, %v420
          %v423 = vadd.f32 %v417, %v420
          %v424 = vmul.f32 %v422, 0.5
          %v425 = vmul.f32 %v423, 0.5
          %v426 = vmul.f32 %v422, 0.044715
          %v427 = vmul.f32 %v423, 0.044715
          %v428 = vmul.f32 %v426, %v422
          %v429 = vmul.f32 %v427, %v423
          %v430 = vmul.f32 %v428, %v422
          %v431 = vmul.f32 %v429, %v423
          %v432 = vadd.f32 %v422, %v430
          %v433 = vadd.f32 %v423, %v431
          %v434 = vmul.f32 %v432, 0.7978846
          %v435 = vmul.f32 %v433, 0.7978846
          %v436 = vtanh.pop %v434
          %v437 = vtanh.pop %v435
          %v438 = vadd.f32 %v436, 1.0
          %v439 = vadd.f32 %v437, 1.0
          %v440 = vmul.f32 %v424, %v438
          %v441 = vmul.f32 %v425, %v439
          %v442 = vpack.c.bf16 %v440, %v440
          %v443 = vpack.c.bf16 %v441, %v441
          %444 = vst [vmem:[%s312] sm:$0xf] %v442
          %445 = vst [vmem:[%s312 + $0x4] sm:$0xf] %v443
        $region81: #{lm_model_forward.40} parent=68 // pred_fallthru
          _
        %s446 = sand.u32 %s125, 1
        %s447 = sand.u32 %s125, 1
        %s448 = smul.addr %s447, 8
        %s449 = scalar_lea.vmem [#allocation4], %s448
        // Predicated region
        $region82: #{lm_model_forward.40} parent=68 // pred_check
          %p450 = pneg %p135
        $region83: #{lm_model_forward.40} parent=68 // pred_check_branch
          %452 = sbr.rel (%p450) target = $region85
        $region84: #{lm_model_forward.40} parent=68 // pred_region
          %s453 = smul.u32 2, %s19
          %s454 = smul.addr %s453, 3
          %s455 = sadd.s32 %s20, %s454
          %s456 = smul.addr %s455, 4
          %s457 = scalar_lea.vmem %s3, %s456
          // Predicated region
          $region86: #{lm_model_forward.40} parent=84 // pred_check
            _
          $region87: #{lm_model_forward.40} parent=84 // pred_check_branch
            %459 = sbr.rel (0) target = $region89
          $region88: #{lm_model_forward.40} parent=84 // pred_region
            // Predicated region
            $region90: #{lm_model_forward.40} parent=88 // pred_check
              _
            $region91: #{lm_model_forward.40} parent=88 // pred_check_branch
              %461 = sbr.rel target = $region93
            $region92: #{lm_model_forward.40} parent=88 // pred_region
              // Predicated region
              $region105: #{lm_model_forward.40} parent=92 // pred_check
                _
              $region106: #{lm_model_forward.40} parent=92 // pred_check_branch
                %479 = sbr.rel (0) target = $region108
              $region107: #{lm_model_forward.40} parent=92 // pred_region
                loop: start=0, step=1, limit=1
                $region109: #{lm_model_forward.40} parent=107 // loop_pre_header
                  _
                $region110: #{lm_model_forward.40} parent=107 // loop_header
                  %s481 = sphi 0, %s485
                  %p482 = scmp.ge.s32.totalorder %s481, 1
                  %s486 = sphi %s449, %s449
                  %s487 = sphi %s457, %s457
                $region111: #{lm_model_forward.40} parent=107 // loop_header_branch
                  %484 = sbr.rel (%p482) target = $region115
                $region112: #{lm_model_forward.40} parent=107 // loop_body
                  _
                $region113: #{lm_model_forward.40} parent=107 // loop_footer
                  %s485 = sadd.s32 1, %s481
                $region114: #{lm_model_forward.40} parent=107 // loop_footer_branch
                  %480 = sbr.rel target = $region110
                $region115: #{lm_model_forward.40} parent=107 // loop_exit
                  _
                %s489 = ssub.s32 16, 1
                loop: start=0, step=1, limit=1
                $region116: #{lm_model_forward.40} parent=107 // loop_pre_header
                  _
                $region117: #{lm_model_forward.40} parent=107 // loop_header
                  %s491 = sphi 0, %s495
                  %p492 = scmp.ge.s32.totalorder %s491, 1
                  %s496 = sphi %s449, %s449
                  %s497 = sphi %s457, %s457
                $region118: #{lm_model_forward.40} parent=107 // loop_header_branch
                  %494 = sbr.rel (%p492) target = $region122
                $region119: #{lm_model_forward.40} parent=107 // loop_body
                  %v498 = vld [vmem:[%s496] sm:%s489]
                  %499 = vst [vmem:[%s497] sm:%s489] %v498
                  %v500 = vld [vmem:[%s496 + $0x4] sm:%s489]
                  %501 = vst [vmem:[%s497 + $0xc] sm:%s489] %v500
                $region120: #{lm_model_forward.40} parent=107 // loop_footer
                  %s495 = sadd.s32 1, %s491
                $region121: #{lm_model_forward.40} parent=107 // loop_footer_branch
                  %490 = sbr.rel target = $region117
                $region122: #{lm_model_forward.40} parent=107 // loop_exit
                  _
              $region108: #{lm_model_forward.40} parent=92 // pred_fallthru
                _
            $region93: #{lm_model_forward.40} parent=88 // pred_fallthru
              _
            // Predicated region
            $region94: #{lm_model_forward.40} parent=88 // pred_check
              _
            $region95: #{lm_model_forward.40} parent=88 // pred_check_branch
              %463 = sbr.rel (0) target = $region97
            $region96: #{lm_model_forward.40} parent=88 // pred_region
              %s465 = ssub.s32 16, 1
              loop: start=0, step=1, limit=1
              $region98: #{lm_model_forward.40} parent=96 // loop_pre_header
                _
              $region99: #{lm_model_forward.40} parent=96 // loop_header
                %s467 = sphi 0, %s471
                %p468 = scmp.ge.s32.totalorder %s467, 1
                %s472 = sphi %s449, %s449
                %s473 = sphi %s457, %s457
              $region100: #{lm_model_forward.40} parent=96 // loop_header_branch
                %470 = sbr.rel (%p468) target = $region104
              $region101: #{lm_model_forward.40} parent=96 // loop_body
                %v474 = vld [vmem:[%s472] sm:%s465]
                %475 = vst [vmem:[%s473] sm:%s465] %v474
                %v476 = vld [vmem:[%s472 + $0x4] sm:%s465]
                %477 = vst [vmem:[%s473 + $0xc] sm:%s465] %v476
              $region102: #{lm_model_forward.40} parent=96 // loop_footer
                %s471 = sadd.s32 1, %s467
              $region103: #{lm_model_forward.40} parent=96 // loop_footer_branch
                %466 = sbr.rel target = $region99
              $region104: #{lm_model_forward.40} parent=96 // loop_exit
                _
            $region97: #{lm_model_forward.40} parent=88 // pred_fallthru
              _
          $region89: #{lm_model_forward.40} parent=84 // pred_fallthru
            _
          %502 = vnop
        $region85: #{lm_model_forward.40} parent=68 // pred_fallthru
          _
      $region69: #{lm_model_forward.40} parent=5 // pred_fallthru
        _
      %p503 = scmp.le.s32.totalorder 2, %s9
      // Predicated region
      $region123: #{lm_model_forward.40} parent=5 // pred_check
        %p504 = pneg %p503
      $region124: #{lm_model_forward.40} parent=5 // pred_check_branch
        %506 = sbr.rel (%p504) target = $region126
      $region125: #{lm_model_forward.40} parent=5 // pred_region
        %s507 = ssub.s32 %s9, 2
        // Predicated region
        $region127: #{lm_model_forward.40} parent=125 // pred_check
          %p508 = pneg %p141
        $region128: #{lm_model_forward.40} parent=125 // pred_check_branch
          %510 = sbr.rel (%p508) target = $region130
        $region129: #{lm_model_forward.40} parent=125 // pred_region
          %s511 = sand.u32 %s126, 1
          %s512 = sand.u32 %s126, 1
          %s513 = smul.addr %s512, 8
          %s514 = scalar_lea.vmem [#allocation4], %s513
        $region130: #{lm_model_forward.40} parent=125 // pred_fallthru
          _
      $region126: #{lm_model_forward.40} parent=5 // pred_fallthru
        _
    $region6: #{lm_model_forward.40} parent=1 // loop_footer
      %s13 = sadd.s32 1, %s9
    $region7: #{lm_model_forward.40} parent=1 // loop_footer_branch
      %8 = sbr.rel target = $region3
    $region8: #{lm_model_forward.40} parent=1 // loop_exit
      _

// kernel: lm_model_forward.41
$region0: #{lm_model_forward.41}
  #allocation0 [shape = 'u32[]', space=smem, size = 0x4, offset = 0x4, fixed_abs, tag = 'smem constant byte address 0x4 - core index']
  #allocation1 [shape = 'u32[72,128]{1,0:T(1,128)}', space=vmem, size = 0x9000, scoped, tag = 'internal scratch']
  #allocation2 [shape = 'f32[16,96]{1,0:T(8,128)}', space=vmem, size = 0x2000, scoped, tag = 'scratch operand']
  %s0 = inlined_call_operand.vmem [shape: bf16[16,384], index: 0, kind: input, shape index: {}]
  %s1 = inlined_call_operand.vmem [shape: bf16[384,96], index: 1, kind: input, shape index: {}]
  %s2 = inlined_call_operand.vmem [shape: f32[1,96], index: 2, kind: input, shape index: {}]
  %s3 = inlined_call_operand.vmem [shape: bf16[16,96], index: 3, kind: input, shape index: {}]
  %s4 = inlined_call_operand.vmem [shape: f32[1,96], index: 4, kind: input, shape index: {}]
  %s5 = inlined_call_operand.vmem [shape: f32[1,96], index: 5, kind: input, shape index: {}]
  %s6 = inlined_call_operand.vmem [shape: bf16[16,96], index: 6, kind: output, shape index: {}]
  %s7 = sld [smem:[#allocation0]]
  $region106: #{lm_model_forward.41} parent=0
    _
  %s9 = ssub.s32 1, %s7
  %s10 = scalar_select 0, %s9, %s7
  $region1: #{lm_model_forward.41} parent=0
    #allocation3 [shape = 'u8[8192]{0}', space=vmem, size = 0x2000, scoped, tag = 'input window, operand 0']
    loop: start=0, step=1, limit=5
    $region2: #{lm_model_forward.41} parent=1 // loop_pre_header
      _
    $region3: #{lm_model_forward.41} parent=1 // loop_header
      %s12 = sphi 0, %s16
      %p13 = scmp.ge.s32.totalorder %s12, 5
      %s19 = sphi 0, %s38
      %s20 = sphi 0, %s34
      %s21 = sphi 0, %s30
      %s22 = sphi 0, %s19
      %s23 = sphi 0, %s20
      %s24 = sphi 0, %s21
      %s25 = sphi 0, %s22
      %s26 = sphi 0, %s23
      %s27 = sphi 0, %s24
      %s43 = sphi 0, %s45
      %s46 = sphi 0, %s43
      %s47 = sphi 0, %s46
      %s63 = sphi 0, %s47
      %s71 = sphi 0, %s73
      %s74 = sphi 0, %s71
      %s75 = sphi 0, %s74
      %s91 = sphi 0, %s75
      %s97 = sphi 0, %s99
      %s100 = sphi 0, %s97
      %s101 = sphi 0, %s100
      %s117 = sphi 0, %s101
      %s125 = sphi 0, %s127
      %s128 = sphi 0, %s125
      %s129 = sphi 0, %s128
      %s145 = sphi 0, %s129
      %s151 = sphi 0, %s153
      %s154 = sphi 0, %s151
      %s155 = sphi 0, %s154
      %s171 = sphi 0, %s155
      %s177 = sphi 0, %s179
      %s180 = sphi 0, %s177
      %s181 = sphi 0, %s180
      %s197 = sphi 0, %s181
      %s205 = sphi 0, %s207
      %s208 = sphi 0, %s205
      %s209 = sphi 0, %s208
      %s225 = sphi 0, %s209
    $region4: #{lm_model_forward.41} parent=1 // loop_header_branch
      %15 = sbr.rel (%p13) target = $region8
    $region5: #{lm_model_forward.41} parent=1 // loop_body
      %s17 = ssub.s32 %s12, 1
      %s18 = ssub.s32 %s12, 2
      %s28 = sadd.s32 1, %s21
      %p29 = scmp.ge.s32.totalorder %s28, 3
      %s30 = scalar_select %p29, 0, %s28
      %s31 = sadd.s32 1, %s20
      %s32 = scalar_select %p29, %s31, %s20
      %p33 = scmp.ge.s32.totalorder %s32, 1
      %s34 = scalar_select %p33, 0, %s32
      %s35 = sadd.s32 1, %s19
      %s36 = scalar_select %p33, %s35, %s19
      %p37 = scmp.ge.s32.totalorder %s36, 1
      %s38 = scalar_select %p37, 0, %s36
      %s39 = ssub.s32 %s19, %s38
      %s40 = ssub.s32 %s21, %s30
      %s41 = sor.u32 %s39, %s40
      %p42 = scmp.eq.s32.totalorder %s41, 0
      %s44 = sadd.s32 %s43, 1
      %s45 = scalar_select %p42, %s43, %s44
      %p48 = pneg %p42
      %p49 = scmp.eq.s32.totalorder %s12, 2
      %p50 = por %p48, %p49
      %p51 = scmp.ne.s32.totalorder %s43, %s46
      %p52 = scmp.eq.s32.totalorder %s12, 0
      %p53 = por %p51, %p52
      %p54 = scmp.ne.s32.totalorder %s43, %s46
      %p55 = scmp.eq.s32.totalorder %s17, 2
      %p56 = por %p54, %p55
      %p57 = scmp.ne.s32.totalorder %s46, %s47
      %p58 = scmp.eq.s32.totalorder %s17, 0
      %p59 = por %p57, %p58
      %p60 = scmp.ne.s32.totalorder %s46, %s47
      %p61 = scmp.eq.s32.totalorder %s18, 2
      %p62 = por %p60, %p61
      %p64 = scmp.ne.s32.totalorder %s47, %s63
      %p65 = scmp.eq.s32.totalorder %s18, 0
      %p66 = por %p64, %p65
      %s67 = ssub.s32 %s21, %s30
      %s68 = ssub.s32 %s20, %s34
      %s69 = sor.u32 %s67, %s68
      %p70 = scmp.eq.s32.totalorder %s69, 0
      %s72 = sadd.s32 %s71, 1
      %s73 = scalar_select %p70, %s71, %s72
      %p76 = pneg %p70
      %p77 = scmp.eq.s32.totalorder %s12, 2
      %p78 = por %p76, %p77
      %p79 = scmp.ne.s32.totalorder %s71, %s74
      %p80 = scmp.eq.s32.totalorder %s12, 0
      %p81 = por %p79, %p80
      %p82 = scmp.ne.s32.totalorder %s71, %s74
      %p83 = scmp.eq.s32.totalorder %s17, 2
      %p84 = por %p82, %p83
      %p85 = scmp.ne.s32.totalorder %s74, %s75
      %p86 = scmp.eq.s32.totalorder %s17, 0
      %p87 = por %p85, %p86
      %p88 = scmp.ne.s32.totalorder %s74, %s75
      %p89 = scmp.eq.s32.totalorder %s18, 2
      %p90 = por %p88, %p89
      %p92 = scmp.ne.s32.totalorder %s75, %s91
      %p93 = scmp.eq.s32.totalorder %s18, 0
      %p94 = por %p92, %p93
      %s95 = ssub.s32 %s20, %s34
      %p96 = scmp.eq.s32.totalorder %s95, 0
      %s98 = sadd.s32 %s97, 1
      %s99 = scalar_select %p96, %s97, %s98
      %p102 = pneg %p96
      %p103 = scmp.eq.s32.totalorder %s12, 2
      %p104 = por %p102, %p103
      %p105 = scmp.ne.s32.totalorder %s97, %s100
      %p106 = scmp.eq.s32.totalorder %s12, 0
      %p107 = por %p105, %p106
      %p108 = scmp.ne.s32.totalorder %s97, %s100
      %p109 = scmp.eq.s32.totalorder %s17, 2
      %p110 = por %p108, %p109
      %p111 = scmp.ne.s32.totalorder %s100, %s101
      %p112 = scmp.eq.s32.totalorder %s17, 0
      %p113 = por %p111, %p112
      %p114 = scmp.ne.s32.totalorder %s100, %s101
      %p115 = scmp.eq.s32.totalorder %s18, 2
      %p116 = por %p114, %p115
      %p118 = scmp.ne.s32.totalorder %s101, %s117
      %p119 = scmp.eq.s32.totalorder %s18, 0
      %p120 = por %p118, %p119
      %s121 = ssub.s32 %s19, %s38
      %s122 = ssub.s32 %s20, %s34
      %s123 = sor.u32 %s121, %s122
      %p124 = scmp.eq.s32.totalorder %s123, 0
      %s126 = sadd.s32 %s125, 1
      %s127 = scalar_select %p124, %s125, %s126
      %p130 = pneg %p124
      %p131 = scmp.eq.s32.totalorder %s12, 2
      %p132 = por %p130, %p131
      %p133 = scmp.ne.s32.totalorder %s125, %s128
      %p134 = scmp.eq.s32.totalorder %s12, 0
      %p135 = por %p133, %p134
      %p136 = scmp.ne.s32.totalorder %s125, %s128
      %p137 = scmp.eq.s32.totalorder %s17, 2
      %p138 = por %p136, %p137
      %p139 = scmp.ne.s32.totalorder %s128, %s129
      %p140 = scmp.eq.s32.totalorder %s17, 0
      %p141 = por %p139, %p140
      %p142 = scmp.ne.s32.totalorder %s128, %s129
      %p143 = scmp.eq.s32.totalorder %s18, 2
      %p144 = por %p142, %p143
      %p146 = scmp.ne.s32.totalorder %s129, %s145
      %p147 = scmp.eq.s32.totalorder %s18, 0
      %p148 = por %p146, %p147
      %s149 = ssub.s32 %s20, %s34
      %p150 = scmp.eq.s32.totalorder %s149, 0
      %s152 = sadd.s32 %s151, 1
      %s153 = scalar_select %p150, %s151, %s152
      %p156 = pneg %p150
      %p157 = scmp.eq.s32.totalorder %s12, 2
      %p158 = por %p156, %p157
      %p159 = scmp.ne.s32.totalorder %s151, %s154
      %p160 = scmp.eq.s32.totalorder %s12, 0
      %p161 = por %p159, %p160
      %p162 = scmp.ne.s32.totalorder %s151, %s154
      %p163 = scmp.eq.s32.totalorder %s17, 2
      %p164 = por %p162, %p163
      %p165 = scmp.ne.s32.totalorder %s154, %s155
      %p166 = scmp.eq.s32.totalorder %s17, 0
      %p167 = por %p165, %p166
      %p168 = scmp.ne.s32.totalorder %s154, %s155
      %p169 = scmp.eq.s32.totalorder %s18, 2
      %p170 = por %p168, %p169
      %p172 = scmp.ne.s32.totalorder %s155, %s171
      %p173 = scmp.eq.s32.totalorder %s18, 0
      %p174 = por %p172, %p173
      %s175 = ssub.s32 %s20, %s34
      %p176 = scmp.eq.s32.totalorder %s175, 0
      %s178 = sadd.s32 %s177, 1
      %s179 = scalar_select %p176, %s177, %s178
      %p182 = pneg %p176
      %p183 = scmp.eq.s32.totalorder %s12, 2
      %p184 = por %p182, %p183
      %p185 = scmp.ne.s32.totalorder %s177, %s180
      %p186 = scmp.eq.s32.totalorder %s12, 0
      %p187 = por %p185, %p186
      %p188 = scmp.ne.s32.totalorder %s177, %s180
      %p189 = scmp.eq.s32.totalorder %s17, 2
      %p190 = por %p188, %p189
      %p191 = scmp.ne.s32.totalorder %s180, %s181
      %p192 = scmp.eq.s32.totalorder %s17, 0
      %p193 = por %p191, %p192
      %p194 = scmp.ne.s32.totalorder %s180, %s181
      %p195 = scmp.eq.s32.totalorder %s18, 2
      %p196 = por %p194, %p195
      %p198 = scmp.ne.s32.totalorder %s181, %s197
      %p199 = scmp.eq.s32.totalorder %s18, 0
      %p200 = por %p198, %p199
      %s201 = ssub.s32 %s19, %s38
      %s202 = ssub.s32 %s20, %s34
      %s203 = sor.u32 %s201, %s202
      %p204 = scmp.eq.s32.totalorder %s203, 0
      %s206 = sadd.s32 %s205, 1
      %s207 = scalar_select %p204, %s205, %s206
      %p210 = pneg %p204
      %p211 = scmp.eq.s32.totalorder %s12, 2
      %p212 = por %p210, %p211
      %p213 = scmp.ne.s32.totalorder %s205, %s208
      %p214 = scmp.eq.s32.totalorder %s12, 0
      %p215 = por %p213, %p214
      %p216 = scmp.ne.s32.totalorder %s205, %s208
      %p217 = scmp.eq.s32.totalorder %s17, 2
      %p218 = por %p216, %p217
      %p219 = scmp.ne.s32.totalorder %s208, %s209
      %p220 = scmp.eq.s32.totalorder %s17, 0
      %p221 = por %p219, %p220
      %p222 = scmp.ne.s32.totalorder %s208, %s209
      %p223 = scmp.eq.s32.totalorder %s18, 2
      %p224 = por %p222, %p223
      %p226 = scmp.ne.s32.totalorder %s209, %s225
      %p227 = scmp.eq.s32.totalorder %s18, 0
      %p228 = por %p226, %p227
      %p229 = scmp.le.s32.totalorder 1, %s12
      %p230 = scmp.lt.s32.totalorder %s12, 4
      %p231 = pnand %p229, %p230
      %p232 = pneg %p231
      // Predicated region
      $region9: #{lm_model_forward.41} parent=5 // pred_check
        _
      $region10: #{lm_model_forward.41} parent=5 // pred_check_branch
        %234 = sbr.rel (%p231) target = $region12
      $region11: #{lm_model_forward.41} parent=5 // pred_region
        %s235 = ssub.s32 %s12, 1
        // Predicated region
        $region13: #{lm_model_forward.41} parent=11 // pred_check
          %p236 = pneg %p113
        $region14: #{lm_model_forward.41} parent=11 // pred_check_branch
          %238 = sbr.rel (%p236) target = $region16
        $region15: #{lm_model_forward.41} parent=11 // pred_region
          %p239 = scmp.lt.s32.totalorder %s23, 0
          %s240 = scalar_select %p239, %s23, 0
          %s241 = scalar_lea.vmem %s2, %s240
        $region16: #{lm_model_forward.41} parent=11 // pred_fallthru
          _
        // Predicated region
        $region17: #{lm_model_forward.41} parent=11 // pred_check
          %p242 = pneg %p141
        $region18: #{lm_model_forward.41} parent=11 // pred_check_branch
          %244 = sbr.rel (%p242) target = $region20
        $region19: #{lm_model_forward.41} parent=11 // pred_region
          %s245 = smul.u32 2, %s22
          %p246 = scmp.lt.s32.totalorder %s245, 1
          %s247 = scalar_select %p246, %s245, 1
          %p248 = scmp.lt.s32.totalorder %s23, 0
          %s249 = scalar_select %p248, %s23, 0
          %s250 = sadd.s32 %s249, %s247
          %s251 = smul.addr %s250, 4
          %s252 = scalar_lea.vmem %s3, %s251
          %s253 = smul.u32 2, %s22
        $region20: #{lm_model_forward.41} parent=11 // pred_fallthru
          _
        // Predicated region
        $region21: #{lm_model_forward.41} parent=11 // pred_check
          %p254 = pneg %p167
        $region22: #{lm_model_forward.41} parent=11 // pred_check_branch
          %256 = sbr.rel (%p254) target = $region24
        $region23: #{lm_model_forward.41} parent=11 // pred_region
          %p257 = scmp.lt.s32.totalorder %s23, 0
          %s258 = scalar_select %p257, %s23, 0
          %s259 = scalar_lea.vmem %s4, %s258
        $region24: #{lm_model_forward.41} parent=11 // pred_fallthru
          _
        // Predicated region
        $region25: #{lm_model_forward.41} parent=11 // pred_check
          %p260 = pneg %p193
        $region26: #{lm_model_forward.41} parent=11 // pred_check_branch
          %262 = sbr.rel (%p260) target = $region28
        $region27: #{lm_model_forward.41} parent=11 // pred_region
          %p263 = scmp.lt.s32.totalorder %s23, 0
          %s264 = scalar_select %p263, %s23, 0
          %s265 = scalar_lea.vmem %s5, %s264
        $region28: #{lm_model_forward.41} parent=11 // pred_fallthru
          _
      $region12: #{lm_model_forward.41} parent=5 // pred_fallthru
        _
      %p266 = scmp.lt.s32.totalorder %s12, 3
      // Predicated region
      $region29: #{lm_model_forward.41} parent=5 // pred_check
        %p267 = pneg %p266
      $region30: #{lm_model_forward.41} parent=5 // pred_check_branch
        %269 = sbr.rel (%p267) target = $region32
      $region31: #{lm_model_forward.41} parent=5 // pred_region
        // Predicated region
        $region33: #{lm_model_forward.41} parent=31 // pred_check
          %p270 = pneg %p53
        $region34: #{lm_model_forward.41} parent=31 // pred_check_branch
          %272 = sbr.rel (%p270) target = $region36
        $region35: #{lm_model_forward.41} parent=31 // pred_region
          %s273 = sand.u32 %s43, 1
          %s274 = sand.u32 %s43, 1
          %s275 = smul.addr %s274, 8
          %s276 = scalar_lea.vmem [#allocation3], %s275
          %s277 = smul.u32 2, %s19
          %s278 = smul.addr %s277, 3
          %s279 = sadd.s32 %s21, %s278
          %s280 = smul.addr %s279, 4
          %s281 = scalar_lea.vmem %s0, %s280
          // Predicated region
          $region37: #{lm_model_forward.41} parent=35 // pred_check
            _
          $region38: #{lm_model_forward.41} parent=35 // pred_check_branch
            %283 = sbr.rel (0) target = $region40
          $region39: #{lm_model_forward.41} parent=35 // pred_region
            // Predicated region
            $region41: #{lm_model_forward.41} parent=39 // pred_check
              _
            $region42: #{lm_model_forward.41} parent=39 // pred_check_branch
              %285 = sbr.rel target = $region44
            $region43: #{lm_model_forward.41} parent=39 // pred_region
              // Predicated region
              $region56: #{lm_model_forward.41} parent=43 // pred_check
                _
              $region57: #{lm_model_forward.41} parent=43 // pred_check_branch
                %303 = sbr.rel (0) target = $region59
              $region58: #{lm_model_forward.41} parent=43 // pred_region
                loop: start=0, step=1, limit=1
                $region60: #{lm_model_forward.41} parent=58 // loop_pre_header
                  _
                $region61: #{lm_model_forward.41} parent=58 // loop_header
                  %s305 = sphi 0, %s309
                  %p306 = scmp.ge.s32.totalorder %s305, 1
                  %s310 = sphi %s281, %s281
                  %s311 = sphi %s276, %s276
                $region62: #{lm_model_forward.41} parent=58 // loop_header_branch
                  %308 = sbr.rel (%p306) target = $region66
                $region63: #{lm_model_forward.41} parent=58 // loop_body
                  _
                $region64: #{lm_model_forward.41} parent=58 // loop_footer
                  %s309 = sadd.s32 1, %s305
                $region65: #{lm_model_forward.41} parent=58 // loop_footer_branch
                  %304 = sbr.rel target = $region61
                $region66: #{lm_model_forward.41} parent=58 // loop_exit
                  _
                %s313 = ssub.s32 16, 1
                loop: start=0, step=1, limit=1
                $region67: #{lm_model_forward.41} parent=58 // loop_pre_header
                  _
                $region68: #{lm_model_forward.41} parent=58 // loop_header
                  %s315 = sphi 0, %s319
                  %p316 = scmp.ge.s32.totalorder %s315, 1
                  %s320 = sphi %s281, %s281
                  %s321 = sphi %s276, %s276
                $region69: #{lm_model_forward.41} parent=58 // loop_header_branch
                  %318 = sbr.rel (%p316) target = $region73
                $region70: #{lm_model_forward.41} parent=58 // loop_body
                  %v322 = vld [vmem:[%s320] sm:%s313]
                  %323 = vst [vmem:[%s321] sm:%s313] %v322
                  %v324 = vld [vmem:[%s320 + $0xc] sm:%s313]
                  %325 = vst [vmem:[%s321 + $0x4] sm:%s313] %v324
                $region71: #{lm_model_forward.41} parent=58 // loop_footer
                  %s319 = sadd.s32 1, %s315
                $region72: #{lm_model_forward.41} parent=58 // loop_footer_branch
                  %314 = sbr.rel target = $region68
                $region73: #{lm_model_forward.41} parent=58 // loop_exit
                  _
              $region59: #{lm_model_forward.41} parent=43 // pred_fallthru
                _
            $region44: #{lm_model_forward.41} parent=39 // pred_fallthru
              _
            // Predicated region
            $region45: #{lm_model_forward.41} parent=39 // pred_check
              _
            $region46: #{lm_model_forward.41} parent=39 // pred_check_branch
              %287 = sbr.rel (0) target = $region48
            $region47: #{lm_model_forward.41} parent=39 // pred_region
              %s289 = ssub.s32 16, 1
              loop: start=0, step=1, limit=1
              $region49: #{lm_model_forward.41} parent=47 // loop_pre_header
                _
              $region50: #{lm_model_forward.41} parent=47 // loop_header
                %s291 = sphi 0, %s295
                %p292 = scmp.ge.s32.totalorder %s291, 1
                %s296 = sphi %s281, %s281
                %s297 = sphi %s276, %s276
              $region51: #{lm_model_forward.41} parent=47 // loop_header_branch
                %294 = sbr.rel (%p292) target = $region55
              $region52: #{lm_model_forward.41} parent=47 // loop_body
                %v298 = vld [vmem:[%s296] sm:%s289]
                %299 = vst [vmem:[%s297] sm:%s289] %v298
                %v300 = vld [vmem:[%s296 + $0xc] sm:%s289]
                %301 = vst [vmem:[%s297 + $0x4] sm:%s289] %v300
              $region53: #{lm_model_forward.41} parent=47 // loop_footer
                %s295 = sadd.s32 1, %s291
              $region54: #{lm_model_forward.41} parent=47 // loop_footer_branch
                %290 = sbr.rel target = $region50
              $region55: #{lm_model_forward.41} parent=47 // loop_exit
                _
            $region48: #{lm_model_forward.41} parent=39 // pred_fallthru
              _
          $region40: #{lm_model_forward.41} parent=35 // pred_fallthru
            _
          %326 = vnop
        $region36: #{lm_model_forward.41} parent=31 // pred_fallthru
          _
        // Predicated region
        $region74: #{lm_model_forward.41} parent=31 // pred_check
          %p327 = pneg %p81
        $region75: #{lm_model_forward.41} parent=31 // pred_check_branch
          %329 = sbr.rel (%p327) target = $region77
        $region76: #{lm_model_forward.41} parent=31 // pred_region
          %s330 = smul.u32 16, %s21
          %p331 = scmp.lt.s32.totalorder %s330, 47
          %s332 = scalar_select %p331, %s330, 47
          %p333 = scmp.lt.s32.totalorder %s20, 0
          %s334 = scalar_select %p333, %s20, 0
          %s335 = sadd.s32 %s334, %s332
          %s336 = smul.addr %s335, 4
          %s337 = scalar_lea.vmem %s1, %s336
          %s338 = smul.u32 16, %s21
        $region77: #{lm_model_forward.41} parent=31 // pred_fallthru
          _
      $region32: #{lm_model_forward.41} parent=5 // pred_fallthru
        _
      %p339 = scmp.le.s32.totalorder 1, %s12
      %p340 = scmp.lt.s32.totalorder %s12, 4
      %p341 = pnand %p339, %p340
      %p342 = pneg %p341
      // Predicated region
      $region78: #{lm_model_forward.41} parent=5 // pred_check
        _
      $region79: #{lm_model_forward.41} parent=5 // pred_check_branch
        %344 = sbr.rel (%p341) target = $region81
      $region80: #{lm_model_forward.41} parent=5 // pred_region
        %s345 = ssub.s32 %s12, 1
        %s346 = sand.u32 %s46, 1
        %s347 = sand.u32 %s46, 1
        %s348 = smul.addr %s347, 8
        %s349 = scalar_lea.vmem [#allocation3], %s348
        // Predicated region
        $region82: #{lm_model_forward.41} parent=80 // pred_check
          %p350 = pneg %p59
        $region83: #{lm_model_forward.41} parent=80 // pred_check_branch
          %352 = sbr.rel (%p350) target = $region85
        $region84: #{lm_model_forward.41} parent=80 // pred_region
          _
        $region85: #{lm_model_forward.41} parent=80 // pred_fallthru
          _
        %s353 = sand.u32 %s46, 1
        %s354 = sand.u32 %s46, 1
        %s355 = smul.addr %s354, 8
        %s356 = scalar_lea.vmem [#allocation3], %s355
        %p357 = pneg %p59
        %p358 = pneg %p56
        %s359 = smul.u32 16, %s24
        %p360 = scmp.lt.s32.totalorder %s359, 47
        %s361 = scalar_select %p360, %s359, 47
        %p362 = scmp.lt.s32.totalorder %s23, 0
        %s363 = scalar_select %p362, %s23, 0
        %s364 = sadd.s32 %s363, %s361
        %s365 = smul.addr %s364, 4
        %s366 = scalar_lea.vmem %s1, %s365
        %p367 = pneg %p87
        %p368 = pneg %p84
        %p369 = scmp.lt.s32.totalorder %s23, 0
        %s370 = scalar_select %p369, %s23, 0
        %s371 = scalar_lea.vmem %s2, %s370
        %p372 = pneg %p113
        %p373 = pneg %p110
        %s374 = smul.u32 2, %s22
        %p375 = scmp.lt.s32.totalorder %s374, 1
        %s376 = scalar_select %p375, %s374, 1
        %p377 = scmp.lt.s32.totalorder %s23, 0
        %s378 = scalar_select %p377, %s23, 0
        %s379 = sadd.s32 %s378, %s376
        %s380 = smul.addr %s379, 4
        %s381 = scalar_lea.vmem %s3, %s380
        %p382 = pneg %p141
        %p383 = pneg %p138
        %p384 = scmp.lt.s32.totalorder %s23, 0
        %s385 = scalar_select %p384, %s23, 0
        %s386 = scalar_lea.vmem %s4, %s385
        %p387 = pneg %p167
        %p388 = pneg %p164
        %p389 = scmp.lt.s32.totalorder %s23, 0
        %s390 = scalar_select %p389, %s23, 0
        %s391 = scalar_lea.vmem %s5, %s390
        %p392 = pneg %p193
        %p393 = pneg %p190
        %p394 = pneg %p221
        %p395 = pneg %p218
        %s396 = smul.u32 2, %s22
        %p397 = scmp.lt.s32.totalorder %s396, 1
        %s398 = scalar_select %p397, %s396, 1
        %p399 = scmp.lt.s32.totalorder %s23, 0
        %s400 = scalar_select %p399, %s23, 0
        %s401 = sadd.s32 %s400, %s398
        %s402 = smul.addr %s401, 4
        %s403 = scalar_lea.vmem %s6, %s402
        %s404 = smul.u32 2, %s22
        %s405 = smul.u32 16, %s24
        %p406 = scmp.lt.s32.totalorder %s405, 47
        %s407 = scalar_select %p406, %s405, 47
        %p408 = scmp.lt.s32.totalorder %s23, 0
        %s409 = scalar_select %p408, %s23, 0
        %s410 = sadd.s32 %s409, %s407
        %s411 = smul.addr %s410, 4
        %s412 = scalar_lea.vmem %s1, %s411
        %s413 = smul.u32 16, %s24
        %p414 = scmp.lt.s32.totalorder %s23, 0
        %s415 = scalar_select %p414, %s23, 0
        %s416 = scalar_lea.vmem %s2, %s415
        %s417 = smul.u32 2, %s22
        %p418 = scmp.lt.s32.totalorder %s417, 1
        %s419 = scalar_select %p418, %s417, 1
        %p420 = scmp.lt.s32.totalorder %s23, 0
        %s421 = scalar_select %p420, %s23, 0
        %s422 = sadd.s32 %s421, %s419
        %s423 = smul.addr %s422, 4
        %s424 = scalar_lea.vmem %s3, %s423
        %s425 = smul.u32 2, %s22
        %p426 = scmp.lt.s32.totalorder %s23, 0
        %s427 = scalar_select %p426, %s23, 0
        %s428 = scalar_lea.vmem %s4, %s427
        %p429 = scmp.lt.s32.totalorder %s23, 0
        %s430 = scalar_select %p429, %s23, 0
        %s431 = scalar_lea.vmem %s5, %s430
        %s432 = smul.u32 2, %s22
        %p433 = scmp.lt.s32.totalorder %s432, 1
        %s434 = scalar_select %p433, %s432, 1
        %p435 = scmp.lt.s32.totalorder %s23, 0
        %s436 = scalar_select %p435, %s23, 0
        %s437 = sadd.s32 %s436, %s434
        %s438 = smul.addr %s437, 4
        %s439 = scalar_lea.vmem %s6, %s438
        %s440 = smul.u32 2, %s22
        %p441 = scmp.eq.s32.totalorder %s24, 0
        // Predicated region
        $region86: #{lm_model_forward.41} parent=80 // pred_check
          %p442 = pneg %p441
        $region87: #{lm_model_forward.41} parent=80 // pred_check_branch
          %444 = sbr.rel (%p442) target = $region89
        $region88: #{lm_model_forward.41} parent=80 // pred_region
          %vm445 = vcmask 785408
          %446 = vst.msk [vmem:[#allocation2] sm:$0xff] %vm445, 0.0
          %447 = vst.msk [vmem:[#allocation2 + $0x8] sm:$0xff] %vm445, 0.0
        $region89: #{lm_model_forward.41} parent=80 // pred_fallthru
          _
        %v448 = vld [vmem:[#allocation2] sm:$0xff]
        %v449 = vld [vmem:[#allocation2 + $0x8] sm:$0xff]
        %v450 = vld [vmem:[%s349] sm:$0xf]
        %v451 = vld [vmem:[%s349 + $0x4] sm:$0xf]
        %v452 = vld [vmem:[%s412] sm:$0xf]
        %v453 = vld [vmem:[%s412 + $0x4] sm:$0xf]
        %v454 = vld [vmem:[%s412 + $0x8] sm:$0xf]
        %v455 = vld [vmem:[%s412 + $0xc] sm:$0xf]
        %v456 = vld [vmem:[%s412 + $0x10] sm:$0xf]
        %v457 = vld [vmem:[%s412 + $0x14] sm:$0xf]
        %v458 = vld [vmem:[%s412 + $0x18] sm:$0xf]
        %v459 = vld [vmem:[%s412 + $0x1c] sm:$0xf]
        %v460 = vld [vmem:[%s412 + $0x20] sm:$0xf]
        %v461 = vld [vmem:[%s412 + $0x24] sm:$0xf]
        %v462 = vld [vmem:[%s412 + $0x28] sm:$0xf]
        %v463 = vld [vmem:[%s412 + $0x2c] sm:$0xf]
        %v464 = vld [vmem:[%s412 + $0x30] sm:$0xf]
        %v465 = vld [vmem:[%s412 + $0x34] sm:$0xf]
        %v466 = vld [vmem:[%s412 + $0x38] sm:$0xf]
        %v467 = vld [vmem:[%s412 + $0x3c] sm:$0xf]
        %v470 = vunpack.c.l.b16 %v450
        %v471 = vunpack.c.l.b16 %v451
        %v472 = vpack.c.b16 %v471, %v470
        %v490 = vunpack.c.l.b16 %v452
        %v491 = vunpack.c.l.b16 %v453
        %v492 = vunpack.c.l.b16 %v454
        %v493 = vunpack.c.l.b16 %v455
        %v494 = vunpack.c.l.b16 %v456
        %v495 = vunpack.c.l.b16 %v457
        %v496 = vunpack.c.l.b16 %v458
        %v497 = vunpack.c.l.b16 %v459
        %v498 = vunpack.c.l.b16 %v460
        %v499 = vunpack.c.l.b16 %v461
        %v500 = vunpack.c.l.b16 %v462
        %v501 = vunpack.c.l.b16 %v463
        %v502 = vunpack.c.l.b16 %v464
        %v503 = vunpack.c.l.b16 %v465
        %v504 = vunpack.c.l.b16 %v466
        %v505 = vunpack.c.l.b16 %v467
        %v506 = vpack.c.b16 %v491, %v490
        %v507 = vpack.c.b16 %v493, %v492
        %v508 = vpack.c.b16 %v495, %v494
        %v509 = vpack.c.b16 %v497, %v496
        %v510 = vpack.c.b16 %v499, %v498
        %v511 = vpack.c.b16 %v501, %v500
        %v512 = vpack.c.b16 %v503, %v502
        %v513 = vpack.c.b16 %v505, %v504
        %522 = vmatpush.bf16.msra.mxu0 %v513
        %523 = vmatpush.bf16.msra.mxu0 %v512
        %524 = vmatpush.bf16.msra.mxu0 %v511
        %525 = vmatpush.bf16.msra.mxu0 %v510
        %526 = vmatpush.bf16.msra.mxu0 %v509
        %527 = vmatpush.bf16.msra.mxu0 %v508
        %528 = vmatpush.bf16.msra.mxu0 %v507
        %529 = vmatpush.bf16.msra.mxu0 %v506
        %530 = vmatmul.bf16.gmra.mxu0 %v472
        %v531 = vpop.f32.mrf.mxu0
        %v532 = vadd.f32 0.0, %v531
        %v533 = vpop.f32.mrf.mxu0
        %v534 = vadd.f32 0.0, %v533
        %535 = vdwg.mxu0
        %v536 = vadd.f32 %v448, %v532
        %v537 = vadd.f32 %v449, %v534
        %vm538 = vcmask 785408
        %539 = vst.msk [vmem:[#allocation2] sm:$0xff] %vm538, %v536
        %540 = vst.msk [vmem:[#allocation2 + $0x8] sm:$0xff] %vm538, %v537
        %p541 = scmp.eq.s32.totalorder %s24, 2
        // Predicated region
        $region90: #{lm_model_forward.41} parent=80 // pred_check
          %p542 = pneg %p541
        $region91: #{lm_model_forward.41} parent=80 // pred_check_branch
          %544 = sbr.rel (%p542) target = $region93
        $region92: #{lm_model_forward.41} parent=80 // pred_region
          %v545 = vld [vmem:[#allocation2] sm:$0xff]
          %v546 = vld [vmem:[#allocation2 + $0x8] sm:$0xff]
          %v547 = vld [vmem:[%s416] sm:$0x1]
          %v549 = vperm.slane %v547, 0
          %v551 = vadd.f32 %v545, %v549
          %v552 = vadd.f32 %v546, %v549
          %v553 = vld [vmem:[%s424] sm:$0xf]
          %v554 = vld [vmem:[%s424 + $0x4] sm:$0xf]
          %v555 = vunpack.c.l.bf16 %v553
          %v556 = vunpack.c.l.bf16 %v554
          %v557 = vadd.f32 %v555, %v551
          %v558 = vadd.f32 %v556, %v552
          %v559 = vsel %vm538, %v557, 0.0
          %560 = vadd.xlane.f32.xlu0 %v559
          %v561 = vpop.xlane.xlu0 %560
          %v562 = vsel %vm538, %v558, 0.0
          %563 = vadd.xlane.f32.xlu0 %v562
          %v564 = vpop.xlane.xlu0 %563
          %v565 = vrcp.pop 96.0
          %v566 = vmul.f32 96.0, %v565
          %v567 = vsub.f32 1.0, %v566
          %v568 = vmul.f32 %v565, %v567
          %v569 = vadd.f32 %v565, %v568
          %vm570 = vweird.f32 %v565
          %v571 = vsel %vm570, %v565, %v569
          %v572 = vmul.f32 %v561, %v571
          %v573 = vmul.f32 %v564, %v571
          %v574 = vsub.f32 %v557, %v572
          %v575 = vsub.f32 %v558, %v573
          %v576 = vmul.f32 %v574, %v574
          %v577 = vmul.f32 %v575, %v575
          %v578 = vsel %vm538, %v576, 0.0
          %579 = vadd.xlane.f32.xlu0 %v578
          %v580 = vpop.xlane.xlu0 %579
          %v581 = vsel %vm538, %v577, 0.0
          %582 = vadd.xlane.f32.xlu0 %v581
          %v583 = vpop.xlane.xlu0 %582
          %v584 = vmul.f32 %v580, %v571
          %v585 = vmul.f32 %v583, %v571
          %v586 = vld [vmem:[%s428] sm:$0x1]
          %v587 = vadd.f32 %v584, 1e-05
          %v588 = vadd.f32 %v585, 1e-05
          %v589 = vrsqrt.pop %v587
          %v590 = vmul.f32 %v589, %v587
          %v591 = vmul.f32 %v590, %v589
          %v592 = vmul.f32 0.5, %v591
          %v593 = vsub.f32 1.5, %v592
          %v594 = vmul.f32 %v589, %v593
          %vm595 = vweird.f32 %v587
          %vm596 = vweird.f32 %v589
          %vm597 = vmor %vm595, %vm596
          %v598 = vsel %vm597, %v589, %v594
          %v599 = vrsqrt.pop %v588
          %v600 = vmul.f32 %v599, %v588
          %v601 = vmul.f32 %v600, %v599
          %v602 = vmul.f32 0.5, %v601
          %v603 = vsub.f32 1.5, %v602
          %v604 = vmul.f32 %v599, %v603
          %vm605 = vweird.f32 %v588
          %vm606 = vweird.f32 %v599
          %vm607 = vmor %vm605, %vm606
          %v608 = vsel %vm607, %v599, %v604
          %v609 = vmul.f32 %v574, %v598
          %v610 = vmul.f32 %v575, %v608
          %v612 = vperm.slane %v586, 0
          %v614 = vmul.f32 %v612, %v609
          %v615 = vmul.f32 %v612, %v610
          %v616 = vld [vmem:[%s431] sm:$0x1]
          %v618 = vperm.slane %v616, 0
          %v620 = vadd.f32 %v614, %v618
          %v621 = vadd.f32 %v615, %v618
          %v622 = vpack.c.bf16 %v620, %v620
          %v623 = vpack.c.bf16 %v621, %v621
          %vm624 = vcmask 781312
          %625 = vst.msk [vmem:[%s439] sm:$0xf] %vm624, %v622
          %626 = vst.msk [vmem:[%s439 + $0x4] sm:$0xf] %vm624, %v623
        $region93: #{lm_model_forward.41} parent=80 // pred_fallthru
          _
        %s627 = smul.u32 2, %s22
        %p628 = scmp.lt.s32.totalorder %s627, 1
        %s629 = scalar_select %p628, %s627, 1
        %p630 = scmp.lt.s32.totalorder %s23, 0
        %s631 = scalar_select %p630, %s23, 0
        %s632 = sadd.s32 %s631, %s629
        %s633 = smul.addr %s632, 4
        %s634 = scalar_lea.vmem %s6, %s633
        // Predicated region
        $region94: #{lm_model_forward.41} parent=80 // pred_check
          %p635 = pneg %p218
        $region95: #{lm_model_forward.41} parent=80 // pred_check_branch
          %637 = sbr.rel (%p635) target = $region97
        $region96: #{lm_model_forward.41} parent=80 // pred_region
          %s638 = smul.u32 2, %s22
        $region97: #{lm_model_forward.41} parent=80 // pred_fallthru
          _
        // Predicated region
        $region98: #{lm_model_forward.41} parent=80 // pred_check
          %p639 = pneg %p218
        $region99: #{lm_model_forward.41} parent=80 // pred_check_branch
          %641 = sbr.rel (%p639) target = $region101
        $region100: #{lm_model_forward.41} parent=80 // pred_region
          %s642 = smul.u32 2, %s22
          %p643 = scmp.lt.s32.totalorder %s642, 1
          %s644 = scalar_select %p643, %s642, 1
          %p645 = scmp.lt.s32.totalorder %s23, 0
          %s646 = scalar_select %p645, %s23, 0
          %s647 = sadd.s32 %s646, %s644
          %s648 = smul.addr %s647, 4
          %s649 = scalar_lea.vmem %s6, %s648
        $region101: #{lm_model_forward.41} parent=80 // pred_fallthru
          _
      $region81: #{lm_model_forward.41} parent=5 // pred_fallthru
        _
      %p650 = scmp.le.s32.totalorder 2, %s12
      // Predicated region
      $region102: #{lm_model_forward.41} parent=5 // pred_check
        %p651 = pneg %p650
      $region103: #{lm_model_forward.41} parent=5 // pred_check_branch
        %653 = sbr.rel (%p651) target = $region105
      $region104: #{lm_model_forward.41} parent=5 // pred_region
        %s654 = ssub.s32 %s12, 2
      $region105: #{lm_model_forward.41} parent=5 // pred_fallthru
        _
    $region6: #{lm_model_forward.41} parent=1 // loop_footer
      %s16 = sadd.s32 1, %s12
    $region7: #{lm_model_forward.41} parent=1 // loop_footer_branch
      %11 = sbr.rel target = $region3
    $region8: #{lm_model_forward.41} parent=1 // loop_exit
      _

// kernel: lm_model_forward.49
$region0: #{lm_model_forward.49}
  #allocation0 [shape = 'u32[]', space=smem, size = 0x4, offset = 0x4, fixed_abs, tag = 'smem constant byte address 0x4 - core index']
  #allocation1 [shape = 'u32[72,128]{1,0:T(1,128)}', space=vmem, size = 0x9000, scoped, tag = 'internal scratch']
  #allocation2 [shape = 'f32[16,10]{1,0:T(8,128)}', space=vmem, size = 0x2000, scoped, tag = 'scratch operand']
  %s0 = inlined_call_operand.vmem [shape: bf16[16,32], index: 0, kind: input, shape index: {}]
  %s1 = inlined_call_operand.vmem [shape: bf16[32,10], index: 1, kind: input, shape index: {}]
  %s2 = inlined_call_operand.hbm [shape: f32[16,10], index: 2, kind: output, shape index: {}]
  %s3 = sld [smem:[#allocation0]]
  $region26: #{lm_model_forward.49} parent=0
    _
  %s5 = ssub.s32 1, %s3
  %s6 = scalar_select 0, %s5, %s3
  $region1: #{lm_model_forward.49} parent=0
    #allocation3 [shape = 'u8[8192]{0}', space=vmem, size = 0x2000, scoped, tag = 'output window, operand 0, single buffered']
    #allocation4 [shape = 's32[1]{0}', space=sflag, size = 0x4, scoped, tag = 'scoped memory for lm_model_forward.49']
    %7 = vsyncpa [#allocation4], 0
    // Predicated region
    $region2: #{lm_model_forward.49} parent=1 // pred_check
      _
    $region3: #{lm_model_forward.49} parent=1 // pred_check_branch
      %9 = sbr.rel (0) target = $region5
    $region4: #{lm_model_forward.49} parent=1 // pred_region
      _
    $region5: #{lm_model_forward.49} parent=1 // pred_fallthru
      _
    // Predicated region
    $region6: #{lm_model_forward.49} parent=1 // pred_check
      _
    $region7: #{lm_model_forward.49} parent=1 // pred_check_branch
      %11 = sbr.rel (0) target = $region9
    $region8: #{lm_model_forward.49} parent=1 // pred_region
      _
    $region9: #{lm_model_forward.49} parent=1 // pred_fallthru
      _
    %p13 = scmp.eq.s32.totalorder 0, 0
    // Predicated region
    $region10: #{lm_model_forward.49} parent=1 // pred_check
      %p14 = pneg %p13
    $region11: #{lm_model_forward.49} parent=1 // pred_check_branch
      %16 = sbr.rel (%p14) target = $region13
    $region12: #{lm_model_forward.49} parent=1 // pred_region
      %vm17 = vcmask 80896
      %18 = vst.msk [vmem:[#allocation2] sm:$0xff] %vm17, 0.0
      %19 = vst.msk [vmem:[#allocation2 + $0x8] sm:$0xff] %vm17, 0.0
    $region13: #{lm_model_forward.49} parent=1 // pred_fallthru
      _
    %v20 = vld [vmem:[#allocation2] sm:$0xff]
    %v21 = vld [vmem:[#allocation2 + $0x8] sm:$0xff]
    %v22 = vld [vmem:[%s0] sm:$0xf]
    %v23 = vld [vmem:[%s0 + $0x4] sm:$0xf]
    %v24 = vld [vmem:[%s1] sm:$0xf]
    %v25 = vld [vmem:[%s1 + $0x4] sm:$0xf]
    %v26 = vld [vmem:[%s1 + $0x8] sm:$0xf]
    %v27 = vld [vmem:[%s1 + $0xc] sm:$0xf]
    %v30 = vunpack.c.l.b16 %v22
    %v31 = vunpack.c.l.b16 %v23
    %v32 = vpack.c.b16 %v31, %v30
    %v37 = vunpack.c.l.b16 %v24
    %v38 = vunpack.c.l.b16 %v25
    %v39 = vunpack.c.l.b16 %v26
    %v40 = vunpack.c.l.b16 %v27
    %v41 = vpack.c.b16 %v38, %v37
    %v42 = vpack.c.b16 %v40, %v39
    %vm45 = vcmask 261120
    %v47 = vsel %vm45, %v32, 0
    %49 = vmatpush.bf16.msra.mxu0 0
    %50 = vmatpush.bf16.msra.mxu0 0
    %51 = vmatpush.bf16.msra.mxu0 0
    %52 = vmatpush.bf16.msra.mxu0 0
    %53 = vmatpush.bf16.msra.mxu0 0
    %54 = vmatpush.bf16.msra.mxu0 0
    %55 = vmatpush.bf16.msra.mxu0 %v42
    %56 = vmatpush.bf16.msra.mxu0 %v41
    %57 = vmatmul.bf16.gmra.mxu0 %v47
    %v58 = vpop.f32.mrf.mxu0
    %v59 = vadd.f32 0.0, %v58
    %v60 = vpop.f32.mrf.mxu0
    %v61 = vadd.f32 0.0, %v60
    %62 = vdwg.mxu0
    %v63 = vadd.f32 %v20, %v59
    %v64 = vadd.f32 %v21, %v61
    %vm65 = vcmask 80896
    %66 = vst.msk [vmem:[#allocation2] sm:$0xff] %vm65, %v63
    %67 = vst.msk [vmem:[#allocation2 + $0x8] sm:$0xff] %vm65, %v64
    // Predicated region
    $region14: #{lm_model_forward.49} parent=1 // pred_check
      %p68 = pneg %p13
    $region15: #{lm_model_forward.49} parent=1 // pred_check_branch
      %70 = sbr.rel (%p68) target = $region17
    $region16: #{lm_model_forward.49} parent=1 // pred_region
      %v71 = vld [vmem:[#allocation2] sm:$0xff]
      %v72 = vld [vmem:[#allocation2 + $0x8] sm:$0xff]
      %73 = vst.msk [vmem:[#allocation3] sm:$0xff] %vm65, %v71
      %74 = vst.msk [vmem:[#allocation3 + $0x8] sm:$0xff] %vm65, %v72
    $region17: #{lm_model_forward.49} parent=1 // pred_fallthru
      _
    // Predicated region
    $region18: #{lm_model_forward.49} parent=1 // pred_check
      _
    $region19: #{lm_model_forward.49} parent=1 // pred_check_branch
      %76 = sbr.rel (0) target = $region21
    $region20: #{lm_model_forward.49} parent=1 // pred_region
      %78 = vsyncadd [#allocation4], 0
      %s79 = sshll.u32 [#allocation3], 4
      %s80 = int_to_ptr.vmem [resolvable:$true] %s79
      %s81 = sshll.u32 %s2, 4
      %s82 = int_to_ptr.hbm [resolvable:$true] %s81
      %87 = dma.vmem_to_hbm [thread:$0]  %s80, 256, %s82, [#allocation4], 128, 128, 8
    $region21: #{lm_model_forward.49} parent=1 // pred_fallthru
      _
    // Predicated region
    $region22: #{lm_model_forward.49} parent=1 // pred_check
      _
    $region23: #{lm_model_forward.49} parent=1 // pred_check_branch
      %89 = sbr.rel (0) target = $region25
    $region24: #{lm_model_forward.49} parent=1 // pred_region
      %91 = dma.done [#allocation4], 256
    $region25: #{lm_model_forward.49} parent=1 // pred_fallthru
      _
    %92 = vsyncpa [#allocation4], 1

// kernel: lm_model_forward.42
$region0: #{lm_model_forward.42}
  #allocation0 [shape = 'u32[]', space=smem, size = 0x4, offset = 0x4, fixed_abs, tag = 'smem constant byte address 0x4 - core index']
  #allocation1 [shape = 'u32[72,128]{1,0:T(1,128)}', space=vmem, size = 0x9000, scoped, tag = 'internal scratch']
  #allocation2 [shape = 'f32[16,64]{1,0:T(8,128)}', space=vmem, size = 0x2000, scoped, tag = 'scratch operand']
  %s0 = inlined_call_operand.vmem [shape: bf16[16,96], index: 0, kind: input, shape index: {}]
  %s1 = inlined_call_operand.vmem [shape: bf16[96,64], index: 1, kind: input, shape index: {}]
  %s2 = inlined_call_operand.vmem [shape: f32[1,64], index: 2, kind: input, shape index: {}]
  %s3 = inlined_call_operand.vmem [shape: bf16[16,64], index: 3, kind: output, shape index: {}]
  %s4 = sld [smem:[#allocation0]]
  $region30: #{lm_model_forward.42} parent=0
    _
  %s6 = ssub.s32 1, %s4
  %s7 = scalar_select 0, %s6, %s4
  // Predicated region
  $region2: #{lm_model_forward.42} parent=0 // pred_check
    _
  $region3: #{lm_model_forward.42} parent=0 // pred_check_branch
    %9 = sbr.rel (0) target = $region5
  $region4: #{lm_model_forward.42} parent=0 // pred_region
    _
  $region5: #{lm_model_forward.42} parent=0 // pred_fallthru
    _
  // Predicated region
  $region6: #{lm_model_forward.42} parent=0 // pred_check
    _
  $region7: #{lm_model_forward.42} parent=0 // pred_check_branch
    %11 = sbr.rel (0) target = $region9
  $region8: #{lm_model_forward.42} parent=0 // pred_region
    _
  $region9: #{lm_model_forward.42} parent=0 // pred_fallthru
    _
  // Predicated region
  $region10: #{lm_model_forward.42} parent=0 // pred_check
    _
  $region11: #{lm_model_forward.42} parent=0 // pred_check_branch
    %13 = sbr.rel (0) target = $region13
  $region12: #{lm_model_forward.42} parent=0 // pred_region
    _
  $region13: #{lm_model_forward.42} parent=0 // pred_fallthru
    _
  %p15 = scmp.eq.s32.totalorder 0, 0
  // Predicated region
  $region14: #{lm_model_forward.42} parent=0 // pred_check
    %p16 = pneg %p15
  $region15: #{lm_model_forward.42} parent=0 // pred_check_branch
    %18 = sbr.rel (%p16) target = $region17
  $region16: #{lm_model_forward.42} parent=0 // pred_region
    %vm19 = vcmask 523264
    %20 = vst.msk [vmem:[#allocation2] sm:$0xff] %vm19, 0.0
    %21 = vst.msk [vmem:[#allocation2 + $0x8] sm:$0xff] %vm19, 0.0
  $region17: #{lm_model_forward.42} parent=0 // pred_fallthru
    _
  %v22 = vld [vmem:[#allocation2] sm:$0xff]
  %v23 = vld [vmem:[#allocation2 + $0x8] sm:$0xff]
  %v24 = vld [vmem:[%s0] sm:$0xf]
  %v25 = vld [vmem:[%s0 + $0x4] sm:$0xf]
  %v26 = vld [vmem:[%s1] sm:$0xf]
  %v27 = vld [vmem:[%s1 + $0x4] sm:$0xf]
  %v28 = vld [vmem:[%s1 + $0x8] sm:$0xf]
  %v29 = vld [vmem:[%s1 + $0xc] sm:$0xf]
  %v30 = vld [vmem:[%s1 + $0x10] sm:$0xf]
  %v31 = vld [vmem:[%s1 + $0x14] sm:$0xf]
  %v32 = vld [vmem:[%s1 + $0x18] sm:$0xf]
  %v33 = vld [vmem:[%s1 + $0x1c] sm:$0xf]
  %v34 = vld [vmem:[%s1 + $0x20] sm:$0xf]
  %v35 = vld [vmem:[%s1 + $0x24] sm:$0xf]
  %v36 = vld [vmem:[%s1 + $0x28] sm:$0xf]
  %v37 = vld [vmem:[%s1 + $0x2c] sm:$0xf]
  %v40 = vunpack.c.l.b16 %v24
  %v41 = vunpack.c.l.b16 %v25
  %v42 = vpack.c.b16 %v41, %v40
  %v55 = vunpack.c.l.b16 %v26
  %v56 = vunpack.c.l.b16 %v27
  %v57 = vunpack.c.l.b16 %v28
  %v58 = vunpack.c.l.b16 %v29
  %v59 = vunpack.c.l.b16 %v30
  %v60 = vunpack.c.l.b16 %v31
  %v61 = vunpack.c.l.b16 %v32
  %v62 = vunpack.c.l.b16 %v33
  %v63 = vunpack.c.l.b16 %v34
  %v64 = vunpack.c.l.b16 %v35
  %v65 = vunpack.c.l.b16 %v36
  %v66 = vunpack.c.l.b16 %v37
  %v67 = vpack.c.b16 %v56, %v55
  %v68 = vpack.c.b16 %v58, %v57
  %v69 = vpack.c.b16 %v60, %v59
  %v70 = vpack.c.b16 %v62, %v61
  %v71 = vpack.c.b16 %v64, %v63
  %v72 = vpack.c.b16 %v66, %v65
  %vm79 = vcmask 785408
  %v81 = vsel %vm79, %v42, 0
  %83 = vmatpush.bf16.msra.mxu0 0
  %84 = vmatpush.bf16.msra.mxu0 0
  %85 = vmatpush.bf16.msra.mxu0 %v72
  %86 = vmatpush.bf16.msra.mxu0 %v71
  %87 = vmatpush.bf16.msra.mxu0 %v70
  %88 = vmatpush.bf16.msra.mxu0 %v69
  %89 = vmatpush.bf16.msra.mxu0 %v68
  %90 = vmatpush.bf16.msra.mxu0 %v67
  %91 = vmatmul.bf16.gmra.mxu0 %v81
  %v92 = vpop.f32.mrf.mxu0
  %v93 = vadd.f32 0.0, %v92
  %v94 = vpop.f32.mrf.mxu0
  %v95 = vadd.f32 0.0, %v94
  %96 = vdwg.mxu0
  %v97 = vadd.f32 %v22, %v93
  %v98 = vadd.f32 %v23, %v95
  %vm99 = vcmask 523264
  %100 = vst.msk [vmem:[#allocation2] sm:$0xff] %vm99, %v97
  %101 = vst.msk [vmem:[#allocation2 + $0x8] sm:$0xff] %vm99, %v98
  // Predicated region
  $region18: #{lm_model_forward.42} parent=0 // pred_check
    %p102 = pneg %p15
  $region19: #{lm_model_forward.42} parent=0 // pred_check_branch
    %104 = sbr.rel (%p102) target = $region21
  $region20: #{lm_model_forward.42} parent=0 // pred_region
    %v105 = vld [vmem:[#allocation2] sm:$0xff]
    %v106 = vld [vmem:[#allocation2 + $0x8] sm:$0xff]
    %v107 = vld [vmem:[%s2] sm:$0x1]
    %v109 = vperm.slane %v107, 0
    %v111 = vadd.f32 %v105, %v109
    %v112 = vadd.f32 %v106, %v109
    %v113 = vpack.c.bf16 %v111, %v111
    %v114 = vpack.c.bf16 %v112, %v112
    %vm115 = vcmask 519168
    %116 = vst.msk [vmem:[%s3] sm:$0xf] %vm115, %v113
    %117 = vst.msk [vmem:[%s3 + $0x4] sm:$0xf] %vm115, %v114
  $region21: #{lm_model_forward.42} parent=0 // pred_fallthru
    _
  // Predicated region
  $region22: #{lm_model_forward.42} parent=0 // pred_check
    _
  $region23: #{lm_model_forward.42} parent=0 // pred_check_branch
    %119 = sbr.rel (0) target = $region25
  $region24: #{lm_model_forward.42} parent=0 // pred_region
    _
  $region25: #{lm_model_forward.42} parent=0 // pred_fallthru
    _
  // Predicated region
  $region26: #{lm_model_forward.42} parent=0 // pred_check
    _
  $region27: #{lm_model_forward.42} parent=0 // pred_check_branch
    %121 = sbr.rel (0) target = $region29
  $region28: #{lm_model_forward.42} parent=0 // pred_region
    _
  $region29: #{lm_model_forward.42} parent=0 // pred_fallthru
    _

</llo_original>
